<compile_context>
chip_gen: v7x
topology: tpu7x:2x2x1
jax: 0.10.0
libtpu: 0.0.40
codegen_flags: <defaults>
</compile_context>

<pallas_src>
import jax
import jax.numpy as jnp
from jax.experimental import pallas as pl
from jax.experimental.pallas import tpu as pltpu

# ----------------------------- configuration -----------------------------
B_PAIRS = 1                 # B in the reference forward (batch holds 2*B frames)
H_WIN = W_WIN = 8           # n = H = W
DIM = 32                    # token dim
DIM_OUT = 32                # must equal DIM (residual x_norm1 + appearance)
DIM_K = 8
DIM_U = 1
HEADS = 4
DIM_V = DIM_OUT // HEADS
MOTION_DIM = 16
MLP_RATIO = 4.0
MLP_HIDDEN = int(DIM * MLP_RATIO)
LN_EPS = 1e-5
BN_EPS = 1e-5
assert DIM_OUT == DIM and DIM_OUT % HEADS == 0 and MOTION_DIM % HEADS == 0
assert (W_WIN & (W_WIN - 1)) == 0   # W used as sublane extent of the dwconv tile


# ----------------------------- fused kernel -----------------------------
def _make_fused_kernel(b2, H, W, heads, dim_k, dim_u, dim_v, hidden):
    N = H * W
    f32 = jnp.float32
    inv_sqrt2 = 0.7071067811865476

    def kernel(x_ref, cor_ref, rel_ref, wqkv_ref, ln_ref, bnq_ref, bnv_ref,
               corw_ref, expq_ref, selv_ref, bdm_ref, wcc_ref, wmot_ref,
               bmot_ref, wfc1_ref, bfc1_ref, dww_ref, dwb_ref, wfc2_ref,
               bfc2_ref, app_ref, mot_ref):
        x = x_ref[...].astype(f32)                    # (b2*N, dim)
        ln = ln_ref[...].astype(f32)                  # (4, dim)

        def layer_norm(v, g, b):
            mu = jnp.mean(v, axis=-1, keepdims=True)
            var = jnp.mean((v - mu) ** 2, axis=-1, keepdims=True)
            return (v - mu) * jax.lax.rsqrt(var + LN_EPS) * g + b

        def batch_norm(v, gb):
            # training-mode BatchNorm2d: per-channel stats over all b2*N rows.
            # Correct only because the full batch lives in this single block.
            mu = jnp.mean(v, axis=0, keepdims=True)
            var = jnp.mean((v - mu) ** 2, axis=0, keepdims=True)
            return (v - mu) * jax.lax.rsqrt(var + BN_EPS) * gb[0:1, :] + gb[1:2, :]

        xn1 = layer_norm(x, ln[0:1, :], ln[1:2, :])   # (b2*N, dim)

        # one packed, lane-dense q|k|v projection (single MXU matmul)
        qkv = jnp.dot(xn1, wqkv_ref[...].astype(f32), preferred_element_type=f32)
        qdim = heads * dim_k
        kdim = dim_u * dim_k
        q = qkv[:, :qdim]
        kk = qkv[:, qdim:qdim + kdim]
        vv = qkv[:, qdim + kdim:]

        Qn = batch_norm(q, bnq_ref[...].astype(f32))   # (b2*N, heads*dim_k)
        Vn = batch_norm(vv, bnv_ref[...].astype(f32))  # (b2*N, dim_u*dim_v)

        # cor embedding: K=2 -> two rank-1 VPU multiply-adds (skip the MXU)
        corw = corw_ref[...].astype(f32)               # (3, heads*dim_k)
        cor = cor_ref[...].astype(f32)                 # (b2*N, 2)
        cor_e = (cor[:, 0:1] * corw[0:1, :] + cor[:, 1:2] * corw[1:2, :]
                 + corw[2:3, :])                       # (b2*N, heads*dim_k)

        rel = rel_ref[...].astype(f32)                 # (dim_k*N, dim_u*N), rows (k n)
        expq = expq_ref[...].astype(f32)               # (heads*dim_k, heads*dim_k*dim_v)
        selv = selv_ref[...].astype(f32)               # (heads*dim_k*dim_v, heads*dim_v)
        bdm = bdm_ref[...].astype(f32)                 # (heads*dim_k, heads*dim_v) block-diag mask
        wcc = wcc_ref[...].astype(f32)
        wmot = wmot_ref[...].astype(f32)
        bmot = bmot_ref[...].astype(f32)
        wfc1 = wfc1_ref[...].astype(f32)
        bfc1 = bfc1_ref[...].astype(f32)
        dww = dww_ref[...].astype(f32)                 # (9, 1, hidden)
        dwb = dwb_ref[...].astype(f32)                 # (1, 1, hidden)
        wfc2 = wfc2_ref[...].astype(f32)
        bfc2 = bfc2_ref[...].astype(f32)

        app_rows, mot_rows = [], []
        for b in range(b2):
            rb = (b + b2 // 2) % b2                    # cross-frame partner index
            lo, rlo = b * N, rb * N
            Q_b = Qn[lo:lo + N, :]                     # (N, heads*dim_k)
            C_b = cor_e[lo:lo + N, :]
            K_b = kk[rlo:rlo + N, :]                   # (N, dim_u*dim_k)
            V_b = Vn[rlo:rlo + N, :]                   # (N, dim_u*dim_v)

            # softmax over positions (rows) independently per (u, k) channel
            kmax = jnp.max(K_b, axis=0, keepdims=True)
            ke = jnp.exp(K_b - kmax)
            ksm = ke / jnp.sum(ke, axis=0, keepdims=True)

            # content lambda (dim_k, dim_v) on the MXU
            lam_c = None
            for u in range(dim_u):
                t = jnp.dot(ksm[:, u * dim_k:(u + 1) * dim_k].T,
                            V_b[:, u * dim_v:(u + 1) * dim_v],
                            preferred_element_type=f32)
                lam_c = t if lam_c is None else lam_c + t
            # block-diagonal content matrix: (heads*dim_k) -> (heads*dim_v), '(h v)' order
            lam_c_row = jnp.concatenate([lam_c] * heads, axis=1)            # (dim_k, heads*dim_v)
            lam_c_bd = bdm * jnp.concatenate([lam_c_row] * heads, axis=0)   # (heads*dim_k, heads*dim_v)

            # positional lambda, lane-dense (N, dim_k*dim_v): per-k matmuls + lane concat
            if dim_u == 1:
                Vr = V_b
            else:
                Vr = jnp.concatenate(
                    [V_b[:, u * dim_v:(u + 1) * dim_v] for u in range(dim_u)], axis=0)
            lam_cols = []
            for k in range(dim_k):
                lam_cols.append(jnp.dot(rel[k * N:(k + 1) * N, :], Vr,
                                        preferred_element_type=f32))        # (N, dim_v)
            lam_flat = jnp.concatenate(lam_cols, axis=1)                    # (N, dim_k*dim_v)
            L = jnp.concatenate([lam_flat] * heads, axis=1)                 # (N, heads*dim_k*dim_v)

            # all heads at once: expand query along (k v), multiply, select back to (h v)
            Qexp = jnp.dot(Q_b, expq, preferred_element_type=f32)           # (N, heads*dim_k*dim_v)
            Cexp = jnp.dot(C_b, expq, preferred_element_type=f32)
            app_b = (jnp.dot(Qexp * L, selv, preferred_element_type=f32)
                     + jnp.dot(Q_b, lam_c_bd, preferred_element_type=f32))  # (N, heads*dim_v)
            cr_b = (jnp.dot(Cexp * L, selv, preferred_element_type=f32)
                    + jnp.dot(C_b, lam_c_bd, preferred_element_type=f32))

            # motion head
            cor_rev_b = jnp.dot(cr_b, wcc, preferred_element_type=f32)
            mot_rows.append(jnp.dot(cor_rev_b - C_b, wmot,
                                    preferred_element_type=f32) + bmot)
            app_rows.append(app_b)

        app_all = jnp.concatenate(app_rows, axis=0)            # (b2*N, heads*dim_v)
        mot_ref[...] = jnp.concatenate(mot_rows, axis=0).astype(mot_ref.dtype)

        # residual (x_norm1 + appearance), then MLP: fc1 -> dwconv -> GELU -> fc2
        # fc1 / GELU / fc2 / LN2 batched over both frames for full-sublane matmuls.
        xapp = xn1 + app_all
        xn2 = layer_norm(xapp, ln[2:3, :], ln[3:4, :])
        h1 = jnp.dot(xn2, wfc1, preferred_element_type=f32) + bfc1          # (b2*N, hidden)

        # depthwise-conv column masks (j + dj must stay inside [0, W))
        j_io = jax.lax.broadcasted_iota(jnp.int32, (H, W, hidden), 1)
        mask_left = j_io >= 1          # reading column j-1 is valid
        mask_right = j_io <= W - 2     # reading column j+1 is valid
        zrow = jnp.zeros((1, W, hidden), f32)

        conv_rows = []
        for b in range(b2):
            xb3 = h1[b * N:(b + 1) * N, :].reshape(H, W, hidden)
            hp = jnp.concatenate([zrow, xb3, zrow], axis=0)      # (H+2, W, hidden)
            acc3 = None
            for di in (-1, 0, 1):
                slab = hp[di + 1:di + 1 + H]                     # free leading-dim slice
                for dj in (-1, 0, 1):
                    widx = (di + 1) * 3 + (dj + 1)
                    if dj == 0:
                        term = slab
                    else:
                        # column shift via single-step sublane rotate + edge mask
                        rolled = pltpu.roll(slab, shift=(-dj) % W, axis=1)
                        m = mask_right if dj > 0 else mask_left
                        term = jnp.where(m, rolled, 0.0)
                    contrib = term * dww[widx:widx + 1]
                    acc3 = contrib if acc3 is None else acc3 + contrib
            conv_rows.append((acc3 + dwb).reshape(N, hidden))
        conv_all = jnp.concatenate(conv_rows, axis=0)            # (b2*N, hidden)

        act = 0.5 * conv_all * (1.0 + jax.lax.erf(conv_all * inv_sqrt2))    # exact GELU
        h2 = jnp.dot(act, wfc2, preferred_element_type=f32) + bfc2
        app_ref[...] = (xapp + h2).astype(app_ref.dtype)

    return kernel


# ----------------------------- wrappers / glue -----------------------------
def _full_spec(shape):
    nd = len(shape)

    def imap(i):
        return (0,) * nd

    return pl.BlockSpec(shape, imap)


def calc_rel_pos(n):
    ii, jj = jnp.meshgrid(jnp.arange(n), jnp.arange(n), indexing="ij")
    pos = jnp.stack([ii, jj], axis=0).reshape(2, n * n).T      # (n*n, 2)
    rel = pos[None, :, :] - pos[:, None, :] + (n - 1)          # (n*n, n*n, 2)
    return rel


def prepare_params(p, H, W):
    """Pack weights / precompute parameter-derived tensors once (hoisted)."""
    N = H * W
    f32 = jnp.float32
    K, U, V, Hd = DIM_K, DIM_U, DIM_V, HEADS

    rel_idx = calc_rel_pos(H)                                         # (N, N, 2)
    rel_g = p["rel_pos_emb"][rel_idx[..., 0], rel_idx[..., 1]]        # (N, N, K, U)
    # rel[(k n), (u m)] = rel_g[n, m, k, u]
    rel = rel_g.transpose(2, 0, 3, 1).reshape(K * N, U * N)

    # constant 0/1 routing matrices for the lane-dense multi-head lambda math
    c = jnp.arange(Hd * K)                                            # channel index (h k)
    j = jnp.arange(Hd * K * V)                                        # expanded index (h k v)
    o = jnp.arange(Hd * V)                                            # output index (h v)
    expq = (j[None, :] // V == c[:, None]).astype(f32)                # (Hd*K, Hd*K*V)
    h_j = j // (K * V)
    v_j = j % V
    selv = ((o[None, :] // V == h_j[:, None])
            & (o[None, :] % V == v_j[:, None])).astype(f32)           # (Hd*K*V, Hd*V)
    bdmask = ((c[:, None] // K) == (o[None, :] // V)).astype(f32)     # (Hd*K, Hd*V)

    return {
        "rel": rel.astype(f32),
        "expq": expq, "selv": selv, "bdmask": bdmask,
        "wqkv": jnp.concatenate([p["w_q"], p["w_k"], p["w_v"]], axis=1).astype(f32),
        "ln": jnp.stack([p["ln1_g"], p["ln1_b"], p["ln2_g"], p["ln2_b"]], 0).astype(f32),
        "bnq": jnp.stack([p["bnq_g"], p["bnq_b"]], 0).astype(f32),
        "bnv": jnp.stack([p["bnv_g"], p["bnv_b"]], 0).astype(f32),
        "corw": jnp.concatenate([p["w_cor"], p["b_cor"][None, :]], 0).astype(f32),
        "wcc": p["w_cc"].astype(f32),
        "wmot": p["w_motion"].astype(f32),
        "bmot": p["b_motion"][None, :].astype(f32),
        "wfc1": p["w_fc1"].astype(f32),
        "bfc1": p["b_fc1"][None, :].astype(f32),
        "dww": p["dw_w"].reshape(9, 1, MLP_HIDDEN).astype(f32),
        "dwb": p["dw_b"].reshape(1, 1, MLP_HIDDEN).astype(f32),
        "wfc2": p["w_fc2"].astype(f32),
        "bfc2": p["b_fc2"][None, :].astype(f32),
    }


def structformer_block_forward(x, cor, H, W, B, packed):
    b2, N, dim = x.shape
    assert b2 == 2 * B and N == H * W and H == W
    hidden = packed["wfc1"].shape[1]
    motion_dim = packed["wmot"].shape[1]

    x_flat = x.reshape(b2 * N, dim)
    cor_flat = cor.reshape(b2 * N, cor.shape[-1])

    kernel = _make_fused_kernel(b2, H, W, HEADS, DIM_K, DIM_U, DIM_V, hidden)

    operands = (x_flat, cor_flat, packed["rel"], packed["wqkv"], packed["ln"],
                packed["bnq"], packed["bnv"], packed["corw"], packed["expq"],
                packed["selv"], packed["bdmask"], packed["wcc"], packed["wmot"],
                packed["bmot"], packed["wfc1"], packed["bfc1"], packed["dww"],
                packed["dwb"], packed["wfc2"], packed["bfc2"])

    app, mot = pl.pallas_call(
        kernel,
        out_shape=(jax.ShapeDtypeStruct((b2 * N, dim), x.dtype),
                   jax.ShapeDtypeStruct((b2 * N, motion_dim), x.dtype)),
        grid=(1,),
        in_specs=[_full_spec(op.shape) for op in operands],
        out_specs=(_full_spec((b2 * N, dim)), _full_spec((b2 * N, motion_dim))),
        compiler_params=pltpu.CompilerParams(dimension_semantics=("arbitrary",)),
    )(*operands)
    return app.reshape(b2, N, dim), mot.reshape(b2, N, motion_dim)


def init_params(key):
    ks = jax.random.split(key, 16)
    f32 = jnp.float32
    nrm = lambda k, shape, s: (s * jax.random.normal(k, shape)).astype(f32)
    return {
        "ln1_g": jnp.ones((DIM,), f32), "ln1_b": jnp.zeros((DIM,), f32),
        "ln2_g": jnp.ones((DIM,), f32), "ln2_b": jnp.zeros((DIM,), f32),
        "w_q": nrm(ks[0], (DIM, DIM_K * HEADS), 0.05),
        "w_k": nrm(ks[1], (DIM, DIM_K * DIM_U), 0.05),
        "w_v": nrm(ks[2], (DIM, DIM_V * DIM_U), 0.05),
        "w_cor": nrm(ks[3], (2, DIM_K * HEADS), 0.05),
        "b_cor": jnp.zeros((DIM_K * HEADS,), f32),
        "w_motion": nrm(ks[4], (DIM_K * HEADS, MOTION_DIM), 0.05),
        "b_motion": jnp.zeros((MOTION_DIM,), f32),
        "w_cc": nrm(ks[5], (DIM_OUT, DIM_K * HEADS), 0.05),
        "bnq_g": jnp.ones((DIM_K * HEADS,), f32), "bnq_b": jnp.zeros((DIM_K * HEADS,), f32),
        "bnv_g": jnp.ones((DIM_V * DIM_U,), f32), "bnv_b": jnp.zeros((DIM_V * DIM_U,), f32),
        "rel_pos_emb": nrm(ks[6], (2 * H_WIN - 1, 2 * W_WIN - 1, DIM_K, DIM_U), 1.0),
        "w_fc1": nrm(ks[7], (DIM, MLP_HIDDEN), 0.02), "b_fc1": jnp.zeros((MLP_HIDDEN,), f32),
        "dw_w": nrm(ks[8], (3, 3, MLP_HIDDEN), 0.1), "dw_b": jnp.zeros((MLP_HIDDEN,), f32),
        "w_fc2": nrm(ks[9], (MLP_HIDDEN, DIM), 0.02), "b_fc2": jnp.zeros((DIM,), f32),
    }


if __name__ == "__main__":
    key = jax.random.PRNGKey(0)
    kp, kx, kc = jax.random.split(key, 3)
    params = init_params(kp)
    packed = prepare_params(params, H_WIN, W_WIN)   # once per parameter set

    B = B_PAIRS
    H, W = H_WIN, W_WIN
    x = jax.random.normal(kx, (2 * B, H * W, DIM), jnp.float32)     # tokens (2B, N, dim)
    cor = jax.random.normal(kc, (2 * B, H, W, 2), jnp.float32)      # coords 'b h w c'

    fwd = jax.jit(structformer_block_forward, static_argnums=(2, 3, 4))
    appearance, motion = fwd(x, cor, H, W, B, packed)
    appearance, motion = jax.block_until_ready((appearance, motion))

    assert appearance.shape == (2 * B, H * W, DIM)
    assert motion.shape == (2 * B, H * W, MOTION_DIM)
    assert bool(jnp.all(jnp.isfinite(appearance))) and bool(jnp.all(jnp.isfinite(motion)))
    print("KERNEL_OK")
</pallas_src>

<mosaic_0001>
module attributes {stable_mosaic.version = 11 : i64} {
  func.func @kernel(%arg0: i32, %arg1: memref<128x32xf32, #tpu.memory_space<vmem>>, %arg2: memref<128x2xf32, #tpu.memory_space<vmem>>, %arg3: memref<512x64xf32, #tpu.memory_space<vmem>>, %arg4: memref<32x48xf32, #tpu.memory_space<vmem>>, %arg5: memref<4x32xf32, #tpu.memory_space<vmem>>, %arg6: memref<2x32xf32, #tpu.memory_space<vmem>>, %arg7: memref<2x8xf32, #tpu.memory_space<vmem>>, %arg8: memref<3x32xf32, #tpu.memory_space<vmem>>, %arg9: memref<32x256xf32, #tpu.memory_space<vmem>>, %arg10: memref<256x32xf32, #tpu.memory_space<vmem>>, %arg11: memref<32x32xf32, #tpu.memory_space<vmem>>, %arg12: memref<32x32xf32, #tpu.memory_space<vmem>>, %arg13: memref<32x16xf32, #tpu.memory_space<vmem>>, %arg14: memref<1x16xf32, #tpu.memory_space<vmem>>, %arg15: memref<32x128xf32, #tpu.memory_space<vmem>>, %arg16: memref<1x128xf32, #tpu.memory_space<vmem>>, %arg17: memref<9x1x128xf32, #tpu.memory_space<vmem>>, %arg18: memref<1x1x128xf32, #tpu.memory_space<vmem>>, %arg19: memref<128x32xf32, #tpu.memory_space<vmem>>, %arg20: memref<1x32xf32, #tpu.memory_space<vmem>>, %arg21: memref<128x32xf32, #tpu.memory_space<vmem>>, %arg22: memref<128x16xf32, #tpu.memory_space<vmem>>) attributes {dimension_semantics = [#tpu.dimension_semantics<arbitrary>], iteration_bounds = array<i64: 1>, scalar_prefetch = 0 : i64, scratch_operands = 0 : i64, tpu.core_type = #tpu.core_type<tc>, window_params = [{pipeline_mode = #tpu.pipeline_mode<synchronous>, transform_indices = @transform_0, window_bounds = array<i64: 128, 32>}, {pipeline_mode = #tpu.pipeline_mode<synchronous>, transform_indices = @transform_1, window_bounds = array<i64: 128, 2>}, {pipeline_mode = #tpu.pipeline_mode<synchronous>, transform_indices = @transform_2, window_bounds = array<i64: 512, 64>}, {pipeline_mode = #tpu.pipeline_mode<synchronous>, transform_indices = @transform_3, window_bounds = array<i64: 32, 48>}, {pipeline_mode = #tpu.pipeline_mode<synchronous>, transform_indices = @transform_4, window_bounds = array<i64: 4, 32>}, {pipeline_mode = #tpu.pipeline_mode<synchronous>, transform_indices = @transform_5, window_bounds = array<i64: 2, 32>}, {pipeline_mode = #tpu.pipeline_mode<synchronous>, transform_indices = @transform_6, window_bounds = array<i64: 2, 8>}, {pipeline_mode = #tpu.pipeline_mode<synchronous>, transform_indices = @transform_7, window_bounds = array<i64: 3, 32>}, {pipeline_mode = #tpu.pipeline_mode<synchronous>, transform_indices = @transform_8, window_bounds = array<i64: 32, 256>}, {pipeline_mode = #tpu.pipeline_mode<synchronous>, transform_indices = @transform_9, window_bounds = array<i64: 256, 32>}, {pipeline_mode = #tpu.pipeline_mode<synchronous>, transform_indices = @transform_10, window_bounds = array<i64: 32, 32>}, {pipeline_mode = #tpu.pipeline_mode<synchronous>, transform_indices = @transform_11, window_bounds = array<i64: 32, 32>}, {pipeline_mode = #tpu.pipeline_mode<synchronous>, transform_indices = @transform_12, window_bounds = array<i64: 32, 16>}, {pipeline_mode = #tpu.pipeline_mode<synchronous>, transform_indices = @transform_13, window_bounds = array<i64: 1, 16>}, {pipeline_mode = #tpu.pipeline_mode<synchronous>, transform_indices = @transform_14, window_bounds = array<i64: 32, 128>}, {pipeline_mode = #tpu.pipeline_mode<synchronous>, transform_indices = @transform_15, window_bounds = array<i64: 1, 128>}, {pipeline_mode = #tpu.pipeline_mode<synchronous>, transform_indices = @transform_16, window_bounds = array<i64: 9, 1, 128>}, {pipeline_mode = #tpu.pipeline_mode<synchronous>, transform_indices = @transform_17, window_bounds = array<i64: 1, 1, 128>}, {pipeline_mode = #tpu.pipeline_mode<synchronous>, transform_indices = @transform_18, window_bounds = array<i64: 128, 32>}, {pipeline_mode = #tpu.pipeline_mode<synchronous>, transform_indices = @transform_19, window_bounds = array<i64: 1, 32>}, {pipeline_mode = #tpu.pipeline_mode<synchronous>, transform_indices = @transform_20, window_bounds = array<i64: 128, 32>}, {pipeline_mode = #tpu.pipeline_mode<synchronous>, transform_indices = @transform_21, window_bounds = array<i64: 128, 16>}]} {
    %c0 = arith.constant 0 : index
    %c0_0 = arith.constant 0 : index
    %0 = vector.load %arg1[%c0, %c0_0] : memref<128x32xf32, #tpu.memory_space<vmem>>, vector<128x32xf32>
    %c0_1 = arith.constant 0 : index
    %c0_2 = arith.constant 0 : index
    %1 = vector.load %arg5[%c0_1, %c0_2] : memref<4x32xf32, #tpu.memory_space<vmem>>, vector<4x32xf32>
    %2 = vector.extract_strided_slice %1 {offsets = [0, 0], sizes = [1, 32], strides = [1, 1]} : vector<4x32xf32> to vector<1x32xf32>
    %3 = vector.extract_strided_slice %1 {offsets = [1, 0], sizes = [1, 32], strides = [1, 1]} : vector<4x32xf32> to vector<1x32xf32>
    %cst = arith.constant dense<0.000000e+00> : vector<128xf32>
    %4 = vector.multi_reduction <add>, %0, %cst [1] : vector<128x32xf32> to vector<128xf32>
    %5 = vector.shape_cast %4 : vector<128xf32> to vector<128x1xf32>
    %cst_3 = arith.constant 3.200000e+01 : f32
    %6 = vector.broadcast %cst_3 : f32 to vector<128x1xf32>
    %7 = arith.divf %5, %6 : vector<128x1xf32>
    %8 = vector.broadcast %7 : vector<128x1xf32> to vector<128x32xf32>
    %9 = arith.subf %0, %8 : vector<128x32xf32>
    %10 = arith.mulf %9, %9 : vector<128x32xf32>
    %cst_4 = arith.constant dense<0.000000e+00> : vector<128xf32>
    %11 = vector.multi_reduction <add>, %10, %cst_4 [1] : vector<128x32xf32> to vector<128xf32>
    %12 = vector.shape_cast %11 : vector<128xf32> to vector<128x1xf32>
    %cst_5 = arith.constant 3.200000e+01 : f32
    %13 = vector.broadcast %cst_5 : f32 to vector<128x1xf32>
    %14 = arith.divf %12, %13 : vector<128x1xf32>
    %15 = vector.broadcast %7 : vector<128x1xf32> to vector<128x32xf32>
    %16 = arith.subf %0, %15 : vector<128x32xf32>
    %cst_6 = arith.constant 9.99999974E-6 : f32
    %17 = vector.broadcast %cst_6 : f32 to vector<128x1xf32>
    %18 = arith.addf %14, %17 : vector<128x1xf32>
    %19 = math.rsqrt %18 : vector<128x1xf32>
    %20 = vector.broadcast %19 : vector<128x1xf32> to vector<128x32xf32>
    %21 = arith.mulf %16, %20 : vector<128x32xf32>
    %22 = vector.broadcast %2 : vector<1x32xf32> to vector<128x32xf32>
    %23 = arith.mulf %21, %22 : vector<128x32xf32>
    %24 = vector.broadcast %3 : vector<1x32xf32> to vector<128x32xf32>
    %25 = arith.addf %23, %24 : vector<128x32xf32>
    %c0_7 = arith.constant 0 : index
    %c0_8 = arith.constant 0 : index
    %26 = vector.load %arg4[%c0_7, %c0_8] : memref<32x48xf32, #tpu.memory_space<vmem>>, vector<32x48xf32>
    %cst_9 = arith.constant dense<0.000000e+00> : vector<128x48xf32>
    %27 = tpu.matmul %25, %26, %cst_9 {dimension_numbers = #tpu.dot_dimension_numbers<[1], [0], [0], [1], [0, 0, 1, 1], [], []>} : vector<128x32xf32>, vector<32x48xf32>, vector<128x48xf32> -> vector<128x48xf32>
    %28 = vector.extract_strided_slice %27 {offsets = [0, 0], sizes = [128, 32], strides = [1, 1]} : vector<128x48xf32> to vector<128x32xf32>
    %29 = vector.extract_strided_slice %27 {offsets = [0, 32], sizes = [128, 8], strides = [1, 1]} : vector<128x48xf32> to vector<128x8xf32>
    %30 = vector.extract_strided_slice %27 {offsets = [0, 40], sizes = [128, 8], strides = [1, 1]} : vector<128x48xf32> to vector<128x8xf32>
    %c0_10 = arith.constant 0 : index
    %c0_11 = arith.constant 0 : index
    %31 = vector.load %arg6[%c0_10, %c0_11] : memref<2x32xf32, #tpu.memory_space<vmem>>, vector<2x32xf32>
    %cst_12 = arith.constant dense<0.000000e+00> : vector<32xf32>
    %32 = vector.multi_reduction <add>, %28, %cst_12 [0] : vector<128x32xf32> to vector<32xf32>
    %33 = vector.shape_cast %32 : vector<32xf32> to vector<1x32xf32>
    %cst_13 = arith.constant 1.280000e+02 : f32
    %34 = vector.broadcast %cst_13 : f32 to vector<1x32xf32>
    %35 = arith.divf %33, %34 : vector<1x32xf32>
    %36 = vector.broadcast %35 : vector<1x32xf32> to vector<128x32xf32>
    %37 = arith.subf %28, %36 : vector<128x32xf32>
    %38 = arith.mulf %37, %37 : vector<128x32xf32>
    %cst_14 = arith.constant dense<0.000000e+00> : vector<32xf32>
    %39 = vector.multi_reduction <add>, %38, %cst_14 [0] : vector<128x32xf32> to vector<32xf32>
    %40 = vector.shape_cast %39 : vector<32xf32> to vector<1x32xf32>
    %cst_15 = arith.constant 1.280000e+02 : f32
    %41 = vector.broadcast %cst_15 : f32 to vector<1x32xf32>
    %42 = arith.divf %40, %41 : vector<1x32xf32>
    %43 = vector.broadcast %35 : vector<1x32xf32> to vector<128x32xf32>
    %44 = arith.subf %28, %43 : vector<128x32xf32>
    %cst_16 = arith.constant 9.99999974E-6 : f32
    %45 = vector.broadcast %cst_16 : f32 to vector<1x32xf32>
    %46 = arith.addf %42, %45 : vector<1x32xf32>
    %47 = math.rsqrt %46 : vector<1x32xf32>
    %48 = vector.broadcast %47 : vector<1x32xf32> to vector<128x32xf32>
    %49 = arith.mulf %44, %48 : vector<128x32xf32>
    %50 = vector.extract_strided_slice %31 {offsets = [0, 0], sizes = [1, 32], strides = [1, 1]} : vector<2x32xf32> to vector<1x32xf32>
    %51 = vector.broadcast %50 : vector<1x32xf32> to vector<128x32xf32>
    %52 = arith.mulf %49, %51 : vector<128x32xf32>
    %53 = vector.extract_strided_slice %31 {offsets = [1, 0], sizes = [1, 32], strides = [1, 1]} : vector<2x32xf32> to vector<1x32xf32>
    %54 = vector.broadcast %53 : vector<1x32xf32> to vector<128x32xf32>
    %55 = arith.addf %52, %54 : vector<128x32xf32>
    %c0_17 = arith.constant 0 : index
    %c0_18 = arith.constant 0 : index
    %56 = vector.load %arg7[%c0_17, %c0_18] : memref<2x8xf32, #tpu.memory_space<vmem>>, vector<2x8xf32>
    %cst_19 = arith.constant dense<0.000000e+00> : vector<8xf32>
    %57 = vector.multi_reduction <add>, %30, %cst_19 [0] : vector<128x8xf32> to vector<8xf32>
    %58 = vector.shape_cast %57 : vector<8xf32> to vector<1x8xf32>
    %cst_20 = arith.constant 1.280000e+02 : f32
    %59 = vector.broadcast %cst_20 : f32 to vector<1x8xf32>
    %60 = arith.divf %58, %59 : vector<1x8xf32>
    %61 = vector.broadcast %60 : vector<1x8xf32> to vector<128x8xf32>
    %62 = arith.subf %30, %61 : vector<128x8xf32>
    %63 = arith.mulf %62, %62 : vector<128x8xf32>
    %cst_21 = arith.constant dense<0.000000e+00> : vector<8xf32>
    %64 = vector.multi_reduction <add>, %63, %cst_21 [0] : vector<128x8xf32> to vector<8xf32>
    %65 = vector.shape_cast %64 : vector<8xf32> to vector<1x8xf32>
    %cst_22 = arith.constant 1.280000e+02 : f32
    %66 = vector.broadcast %cst_22 : f32 to vector<1x8xf32>
    %67 = arith.divf %65, %66 : vector<1x8xf32>
    %68 = vector.broadcast %60 : vector<1x8xf32> to vector<128x8xf32>
    %69 = arith.subf %30, %68 : vector<128x8xf32>
    %cst_23 = arith.constant 9.99999974E-6 : f32
    %70 = vector.broadcast %cst_23 : f32 to vector<1x8xf32>
    %71 = arith.addf %67, %70 : vector<1x8xf32>
    %72 = math.rsqrt %71 : vector<1x8xf32>
    %73 = vector.broadcast %72 : vector<1x8xf32> to vector<128x8xf32>
    %74 = arith.mulf %69, %73 : vector<128x8xf32>
    %75 = vector.extract_strided_slice %56 {offsets = [0, 0], sizes = [1, 8], strides = [1, 1]} : vector<2x8xf32> to vector<1x8xf32>
    %76 = vector.broadcast %75 : vector<1x8xf32> to vector<128x8xf32>
    %77 = arith.mulf %74, %76 : vector<128x8xf32>
    %78 = vector.extract_strided_slice %56 {offsets = [1, 0], sizes = [1, 8], strides = [1, 1]} : vector<2x8xf32> to vector<1x8xf32>
    %79 = vector.broadcast %78 : vector<1x8xf32> to vector<128x8xf32>
    %80 = arith.addf %77, %79 : vector<128x8xf32>
    %c0_24 = arith.constant 0 : index
    %c0_25 = arith.constant 0 : index
    %81 = vector.load %arg8[%c0_24, %c0_25] : memref<3x32xf32, #tpu.memory_space<vmem>>, vector<3x32xf32>
    %c0_26 = arith.constant 0 : index
    %c0_27 = arith.constant 0 : index
    %82 = vector.load %arg2[%c0_26, %c0_27] : memref<128x2xf32, #tpu.memory_space<vmem>>, vector<128x2xf32>
    %83 = vector.extract_strided_slice %82 {offsets = [0, 0], sizes = [128, 1], strides = [1, 1]} : vector<128x2xf32> to vector<128x1xf32>
    %84 = vector.extract_strided_slice %81 {offsets = [0, 0], sizes = [1, 32], strides = [1, 1]} : vector<3x32xf32> to vector<1x32xf32>
    %85 = vector.broadcast %83 : vector<128x1xf32> to vector<128x32xf32>
    %86 = vector.broadcast %84 : vector<1x32xf32> to vector<128x32xf32>
    %87 = arith.mulf %85, %86 : vector<128x32xf32>
    %88 = vector.extract_strided_slice %82 {offsets = [0, 1], sizes = [128, 1], strides = [1, 1]} : vector<128x2xf32> to vector<128x1xf32>
    %89 = vector.extract_strided_slice %81 {offsets = [1, 0], sizes = [1, 32], strides = [1, 1]} : vector<3x32xf32> to vector<1x32xf32>
    %90 = vector.broadcast %88 : vector<128x1xf32> to vector<128x32xf32>
    %91 = vector.broadcast %89 : vector<1x32xf32> to vector<128x32xf32>
    %92 = arith.mulf %90, %91 : vector<128x32xf32>
    %93 = arith.addf %87, %92 : vector<128x32xf32>
    %94 = vector.extract_strided_slice %81 {offsets = [2, 0], sizes = [1, 32], strides = [1, 1]} : vector<3x32xf32> to vector<1x32xf32>
    %95 = vector.broadcast %94 : vector<1x32xf32> to vector<128x32xf32>
    %96 = arith.addf %93, %95 : vector<128x32xf32>
    %c0_28 = arith.constant 0 : index
    %c0_29 = arith.constant 0 : index
    %97 = vector.load %arg3[%c0_28, %c0_29] : memref<512x64xf32, #tpu.memory_space<vmem>>, vector<512x64xf32>
    %c0_30 = arith.constant 0 : index
    %c0_31 = arith.constant 0 : index
    %98 = vector.load %arg9[%c0_30, %c0_31] : memref<32x256xf32, #tpu.memory_space<vmem>>, vector<32x256xf32>
    %c0_32 = arith.constant 0 : index
    %c0_33 = arith.constant 0 : index
    %99 = vector.load %arg10[%c0_32, %c0_33] : memref<256x32xf32, #tpu.memory_space<vmem>>, vector<256x32xf32>
    %c0_34 = arith.constant 0 : index
    %c0_35 = arith.constant 0 : index
    %100 = vector.load %arg11[%c0_34, %c0_35] : memref<32x32xf32, #tpu.memory_space<vmem>>, vector<32x32xf32>
    %c0_36 = arith.constant 0 : index
    %c0_37 = arith.constant 0 : index
    %101 = vector.load %arg12[%c0_36, %c0_37] : memref<32x32xf32, #tpu.memory_space<vmem>>, vector<32x32xf32>
    %c0_38 = arith.constant 0 : index
    %c0_39 = arith.constant 0 : index
    %102 = vector.load %arg13[%c0_38, %c0_39] : memref<32x16xf32, #tpu.memory_space<vmem>>, vector<32x16xf32>
    %c0_40 = arith.constant 0 : index
    %c0_41 = arith.constant 0 : index
    %103 = vector.load %arg14[%c0_40, %c0_41] : memref<1x16xf32, #tpu.memory_space<vmem>>, vector<1x16xf32>
    %c0_42 = arith.constant 0 : index
    %c0_43 = arith.constant 0 : index
    %104 = vector.load %arg15[%c0_42, %c0_43] : memref<32x128xf32, #tpu.memory_space<vmem>>, vector<32x128xf32>
    %c0_44 = arith.constant 0 : index
    %c0_45 = arith.constant 0 : index
    %105 = vector.load %arg16[%c0_44, %c0_45] : memref<1x128xf32, #tpu.memory_space<vmem>>, vector<1x128xf32>
    %c0_46 = arith.constant 0 : index
    %c0_47 = arith.constant 0 : index
    %c0_48 = arith.constant 0 : index
    %106 = vector.load %arg17[%c0_46, %c0_47, %c0_48] : memref<9x1x128xf32, #tpu.memory_space<vmem>>, vector<9x1x128xf32>
    %c0_49 = arith.constant 0 : index
    %c0_50 = arith.constant 0 : index
    %c0_51 = arith.constant 0 : index
    %107 = vector.load %arg18[%c0_49, %c0_50, %c0_51] : memref<1x1x128xf32, #tpu.memory_space<vmem>>, vector<1x1x128xf32>
    %c0_52 = arith.constant 0 : index
    %c0_53 = arith.constant 0 : index
    %108 = vector.load %arg19[%c0_52, %c0_53] : memref<128x32xf32, #tpu.memory_space<vmem>>, vector<128x32xf32>
    %c0_54 = arith.constant 0 : index
    %c0_55 = arith.constant 0 : index
    %109 = vector.load %arg20[%c0_54, %c0_55] : memref<1x32xf32, #tpu.memory_space<vmem>>, vector<1x32xf32>
    %110 = vector.extract_strided_slice %55 {offsets = [0, 0], sizes = [64, 32], strides = [1, 1]} : vector<128x32xf32> to vector<64x32xf32>
    %111 = vector.extract_strided_slice %96 {offsets = [0, 0], sizes = [64, 32], strides = [1, 1]} : vector<128x32xf32> to vector<64x32xf32>
    %112 = vector.extract_strided_slice %29 {offsets = [64, 0], sizes = [64, 8], strides = [1, 1]} : vector<128x8xf32> to vector<64x8xf32>
    %113 = vector.extract_strided_slice %80 {offsets = [64, 0], sizes = [64, 8], strides = [1, 1]} : vector<128x8xf32> to vector<64x8xf32>
    %cst_56 = arith.constant dense<0xFF800000> : vector<8xf32>
    %114 = vector.multi_reduction <maximumf>, %112, %cst_56 [0] : vector<64x8xf32> to vector<8xf32>
    %115 = vector.shape_cast %114 : vector<8xf32> to vector<1x8xf32>
    %116 = vector.broadcast %115 : vector<1x8xf32> to vector<64x8xf32>
    %117 = arith.subf %112, %116 : vector<64x8xf32>
    %118 = math.exp %117 : vector<64x8xf32>
    %cst_57 = arith.constant dense<0.000000e+00> : vector<8xf32>
    %119 = vector.multi_reduction <add>, %118, %cst_57 [0] : vector<64x8xf32> to vector<8xf32>
    %120 = vector.shape_cast %119 : vector<8xf32> to vector<1x8xf32>
    %121 = vector.broadcast %120 : vector<1x8xf32> to vector<64x8xf32>
    %122 = arith.divf %118, %121 : vector<64x8xf32>
    %123 = tpu.transpose %122, [1, 0] : vector<64x8xf32> -> vector<8x64xf32>
    %cst_58 = arith.constant dense<0.000000e+00> : vector<8x8xf32>
    %124 = tpu.matmul %123, %113, %cst_58 {dimension_numbers = #tpu.dot_dimension_numbers<[1], [0], [0], [1], [0, 0, 1, 1], [], []>} : vector<8x64xf32>, vector<64x8xf32>, vector<8x8xf32> -> vector<8x8xf32>
    %125 = tpu.concatenate %124, %124, %124, %124 in 1 : vector<8x8xf32>, vector<8x8xf32>, vector<8x8xf32>, vector<8x8xf32> -> vector<8x32xf32>
    %126 = tpu.concatenate %125, %125, %125, %125 in 0 : vector<8x32xf32>, vector<8x32xf32>, vector<8x32xf32>, vector<8x32xf32> -> vector<32x32xf32>
    %127 = arith.mulf %100, %126 : vector<32x32xf32>
    %128 = vector.extract_strided_slice %97 {offsets = [0, 0], sizes = [64, 64], strides = [1, 1]} : vector<512x64xf32> to vector<64x64xf32>
    %cst_59 = arith.constant dense<0.000000e+00> : vector<64x8xf32>
    %129 = tpu.matmul %128, %113, %cst_59 {dimension_numbers = #tpu.dot_dimension_numbers<[1], [0], [0], [1], [0, 0, 1, 1], [], []>} : vector<64x64xf32>, vector<64x8xf32>, vector<64x8xf32> -> vector<64x8xf32>
    %130 = vector.extract_strided_slice %97 {offsets = [64, 0], sizes = [64, 64], strides = [1, 1]} : vector<512x64xf32> to vector<64x64xf32>
    %cst_60 = arith.constant dense<0.000000e+00> : vector<64x8xf32>
    %131 = tpu.matmul %130, %113, %cst_60 {dimension_numbers = #tpu.dot_dimension_numbers<[1], [0], [0], [1], [0, 0, 1, 1], [], []>} : vector<64x64xf32>, vector<64x8xf32>, vector<64x8xf32> -> vector<64x8xf32>
    %132 = vector.extract_strided_slice %97 {offsets = [128, 0], sizes = [64, 64], strides = [1, 1]} : vector<512x64xf32> to vector<64x64xf32>
    %cst_61 = arith.constant dense<0.000000e+00> : vector<64x8xf32>
    %133 = tpu.matmul %132, %113, %cst_61 {dimension_numbers = #tpu.dot_dimension_numbers<[1], [0], [0], [1], [0, 0, 1, 1], [], []>} : vector<64x64xf32>, vector<64x8xf32>, vector<64x8xf32> -> vector<64x8xf32>
    %134 = vector.extract_strided_slice %97 {offsets = [192, 0], sizes = [64, 64], strides = [1, 1]} : vector<512x64xf32> to vector<64x64xf32>
    %cst_62 = arith.constant dense<0.000000e+00> : vector<64x8xf32>
    %135 = tpu.matmul %134, %113, %cst_62 {dimension_numbers = #tpu.dot_dimension_numbers<[1], [0], [0], [1], [0, 0, 1, 1], [], []>} : vector<64x64xf32>, vector<64x8xf32>, vector<64x8xf32> -> vector<64x8xf32>
    %136 = vector.extract_strided_slice %97 {offsets = [256, 0], sizes = [64, 64], strides = [1, 1]} : vector<512x64xf32> to vector<64x64xf32>
    %cst_63 = arith.constant dense<0.000000e+00> : vector<64x8xf32>
    %137 = tpu.matmul %136, %113, %cst_63 {dimension_numbers = #tpu.dot_dimension_numbers<[1], [0], [0], [1], [0, 0, 1, 1], [], []>} : vector<64x64xf32>, vector<64x8xf32>, vector<64x8xf32> -> vector<64x8xf32>
    %138 = vector.extract_strided_slice %97 {offsets = [320, 0], sizes = [64, 64], strides = [1, 1]} : vector<512x64xf32> to vector<64x64xf32>
    %cst_64 = arith.constant dense<0.000000e+00> : vector<64x8xf32>
    %139 = tpu.matmul %138, %113, %cst_64 {dimension_numbers = #tpu.dot_dimension_numbers<[1], [0], [0], [1], [0, 0, 1, 1], [], []>} : vector<64x64xf32>, vector<64x8xf32>, vector<64x8xf32> -> vector<64x8xf32>
    %140 = vector.extract_strided_slice %97 {offsets = [384, 0], sizes = [64, 64], strides = [1, 1]} : vector<512x64xf32> to vector<64x64xf32>
    %cst_65 = arith.constant dense<0.000000e+00> : vector<64x8xf32>
    %141 = tpu.matmul %140, %113, %cst_65 {dimension_numbers = #tpu.dot_dimension_numbers<[1], [0], [0], [1], [0, 0, 1, 1], [], []>} : vector<64x64xf32>, vector<64x8xf32>, vector<64x8xf32> -> vector<64x8xf32>
    %142 = vector.extract_strided_slice %97 {offsets = [448, 0], sizes = [64, 64], strides = [1, 1]} : vector<512x64xf32> to vector<64x64xf32>
    %cst_66 = arith.constant dense<0.000000e+00> : vector<64x8xf32>
    %143 = tpu.matmul %142, %113, %cst_66 {dimension_numbers = #tpu.dot_dimension_numbers<[1], [0], [0], [1], [0, 0, 1, 1], [], []>} : vector<64x64xf32>, vector<64x8xf32>, vector<64x8xf32> -> vector<64x8xf32>
    %144 = tpu.concatenate %129, %131, %133, %135, %137, %139, %141, %143 in 1 : vector<64x8xf32>, vector<64x8xf32>, vector<64x8xf32>, vector<64x8xf32>, vector<64x8xf32>, vector<64x8xf32>, vector<64x8xf32>, vector<64x8xf32> -> vector<64x64xf32>
    %145 = tpu.concatenate %144, %144, %144, %144 in 1 : vector<64x64xf32>, vector<64x64xf32>, vector<64x64xf32>, vector<64x64xf32> -> vector<64x256xf32>
    %cst_67 = arith.constant dense<0.000000e+00> : vector<64x256xf32>
    %146 = tpu.matmul %110, %98, %cst_67 {dimension_numbers = #tpu.dot_dimension_numbers<[1], [0], [0], [1], [0, 0, 1, 1], [], []>} : vector<64x32xf32>, vector<32x256xf32>, vector<64x256xf32> -> vector<64x256xf32>
    %cst_68 = arith.constant dense<0.000000e+00> : vector<64x256xf32>
    %147 = tpu.matmul %111, %98, %cst_68 {dimension_numbers = #tpu.dot_dimension_numbers<[1], [0], [0], [1], [0, 0, 1, 1], [], []>} : vector<64x32xf32>, vector<32x256xf32>, vector<64x256xf32> -> vector<64x256xf32>
    %148 = arith.mulf %146, %145 : vector<64x256xf32>
    %cst_69 = arith.constant dense<0.000000e+00> : vector<64x32xf32>
    %149 = tpu.matmul %148, %99, %cst_69 {dimension_numbers = #tpu.dot_dimension_numbers<[1], [0], [0], [1], [0, 0, 1, 1], [], []>} : vector<64x256xf32>, vector<256x32xf32>, vector<64x32xf32> -> vector<64x32xf32>
    %cst_70 = arith.constant dense<0.000000e+00> : vector<64x32xf32>
    %150 = tpu.matmul %110, %127, %cst_70 {dimension_numbers = #tpu.dot_dimension_numbers<[1], [0], [0], [1], [0, 0, 1, 1], [], []>} : vector<64x32xf32>, vector<32x32xf32>, vector<64x32xf32> -> vector<64x32xf32>
    %151 = arith.addf %149, %150 : vector<64x32xf32>
    %152 = arith.mulf %147, %145 : vector<64x256xf32>
    %cst_71 = arith.constant dense<0.000000e+00> : vector<64x32xf32>
    %153 = tpu.matmul %152, %99, %cst_71 {dimension_numbers = #tpu.dot_dimension_numbers<[1], [0], [0], [1], [0, 0, 1, 1], [], []>} : vector<64x256xf32>, vector<256x32xf32>, vector<64x32xf32> -> vector<64x32xf32>
    %cst_72 = arith.constant dense<0.000000e+00> : vector<64x32xf32>
    %154 = tpu.matmul %111, %127, %cst_72 {dimension_numbers = #tpu.dot_dimension_numbers<[1], [0], [0], [1], [0, 0, 1, 1], [], []>} : vector<64x32xf32>, vector<32x32xf32>, vector<64x32xf32> -> vector<64x32xf32>
    %155 = arith.addf %153, %154 : vector<64x32xf32>
    %cst_73 = arith.constant dense<0.000000e+00> : vector<64x32xf32>
    %156 = tpu.matmul %155, %101, %cst_73 {dimension_numbers = #tpu.dot_dimension_numbers<[1], [0], [0], [1], [0, 0, 1, 1], [], []>} : vector<64x32xf32>, vector<32x32xf32>, vector<64x32xf32> -> vector<64x32xf32>
    %157 = arith.subf %156, %111 : vector<64x32xf32>
    %cst_74 = arith.constant dense<0.000000e+00> : vector<64x16xf32>
    %158 = tpu.matmul %157, %102, %cst_74 {dimension_numbers = #tpu.dot_dimension_numbers<[1], [0], [0], [1], [0, 0, 1, 1], [], []>} : vector<64x32xf32>, vector<32x16xf32>, vector<64x16xf32> -> vector<64x16xf32>
    %159 = vector.broadcast %103 : vector<1x16xf32> to vector<64x16xf32>
    %160 = arith.addf %158, %159 : vector<64x16xf32>
    %161 = vector.extract_strided_slice %55 {offsets = [64, 0], sizes = [64, 32], strides = [1, 1]} : vector<128x32xf32> to vector<64x32xf32>
    %162 = vector.extract_strided_slice %96 {offsets = [64, 0], sizes = [64, 32], strides = [1, 1]} : vector<128x32xf32> to vector<64x32xf32>
    %163 = vector.extract_strided_slice %29 {offsets = [0, 0], sizes = [64, 8], strides = [1, 1]} : vector<128x8xf32> to vector<64x8xf32>
    %164 = vector.extract_strided_slice %80 {offsets = [0, 0], sizes = [64, 8], strides = [1, 1]} : vector<128x8xf32> to vector<64x8xf32>
    %cst_75 = arith.constant dense<0xFF800000> : vector<8xf32>
    %165 = vector.multi_reduction <maximumf>, %163, %cst_75 [0] : vector<64x8xf32> to vector<8xf32>
    %166 = vector.shape_cast %165 : vector<8xf32> to vector<1x8xf32>
    %167 = vector.broadcast %166 : vector<1x8xf32> to vector<64x8xf32>
    %168 = arith.subf %163, %167 : vector<64x8xf32>
    %169 = math.exp %168 : vector<64x8xf32>
    %cst_76 = arith.constant dense<0.000000e+00> : vector<8xf32>
    %170 = vector.multi_reduction <add>, %169, %cst_76 [0] : vector<64x8xf32> to vector<8xf32>
    %171 = vector.shape_cast %170 : vector<8xf32> to vector<1x8xf32>
    %172 = vector.broadcast %171 : vector<1x8xf32> to vector<64x8xf32>
    %173 = arith.divf %169, %172 : vector<64x8xf32>
    %174 = tpu.transpose %173, [1, 0] : vector<64x8xf32> -> vector<8x64xf32>
    %cst_77 = arith.constant dense<0.000000e+00> : vector<8x8xf32>
    %175 = tpu.matmul %174, %164, %cst_77 {dimension_numbers = #tpu.dot_dimension_numbers<[1], [0], [0], [1], [0, 0, 1, 1], [], []>} : vector<8x64xf32>, vector<64x8xf32>, vector<8x8xf32> -> vector<8x8xf32>
    %176 = tpu.concatenate %175, %175, %175, %175 in 1 : vector<8x8xf32>, vector<8x8xf32>, vector<8x8xf32>, vector<8x8xf32> -> vector<8x32xf32>
    %177 = tpu.concatenate %176, %176, %176, %176 in 0 : vector<8x32xf32>, vector<8x32xf32>, vector<8x32xf32>, vector<8x32xf32> -> vector<32x32xf32>
    %178 = arith.mulf %100, %177 : vector<32x32xf32>
    %179 = vector.extract_strided_slice %97 {offsets = [0, 0], sizes = [64, 64], strides = [1, 1]} : vector<512x64xf32> to vector<64x64xf32>
    %cst_78 = arith.constant dense<0.000000e+00> : vector<64x8xf32>
    %180 = tpu.matmul %179, %164, %cst_78 {dimension_numbers = #tpu.dot_dimension_numbers<[1], [0], [0], [1], [0, 0, 1, 1], [], []>} : vector<64x64xf32>, vector<64x8xf32>, vector<64x8xf32> -> vector<64x8xf32>
    %181 = vector.extract_strided_slice %97 {offsets = [64, 0], sizes = [64, 64], strides = [1, 1]} : vector<512x64xf32> to vector<64x64xf32>
    %cst_79 = arith.constant dense<0.000000e+00> : vector<64x8xf32>
    %182 = tpu.matmul %181, %164, %cst_79 {dimension_numbers = #tpu.dot_dimension_numbers<[1], [0], [0], [1], [0, 0, 1, 1], [], []>} : vector<64x64xf32>, vector<64x8xf32>, vector<64x8xf32> -> vector<64x8xf32>
    %183 = vector.extract_strided_slice %97 {offsets = [128, 0], sizes = [64, 64], strides = [1, 1]} : vector<512x64xf32> to vector<64x64xf32>
    %cst_80 = arith.constant dense<0.000000e+00> : vector<64x8xf32>
    %184 = tpu.matmul %183, %164, %cst_80 {dimension_numbers = #tpu.dot_dimension_numbers<[1], [0], [0], [1], [0, 0, 1, 1], [], []>} : vector<64x64xf32>, vector<64x8xf32>, vector<64x8xf32> -> vector<64x8xf32>
    %185 = vector.extract_strided_slice %97 {offsets = [192, 0], sizes = [64, 64], strides = [1, 1]} : vector<512x64xf32> to vector<64x64xf32>
    %cst_81 = arith.constant dense<0.000000e+00> : vector<64x8xf32>
    %186 = tpu.matmul %185, %164, %cst_81 {dimension_numbers = #tpu.dot_dimension_numbers<[1], [0], [0], [1], [0, 0, 1, 1], [], []>} : vector<64x64xf32>, vector<64x8xf32>, vector<64x8xf32> -> vector<64x8xf32>
    %187 = vector.extract_strided_slice %97 {offsets = [256, 0], sizes = [64, 64], strides = [1, 1]} : vector<512x64xf32> to vector<64x64xf32>
    %cst_82 = arith.constant dense<0.000000e+00> : vector<64x8xf32>
    %188 = tpu.matmul %187, %164, %cst_82 {dimension_numbers = #tpu.dot_dimension_numbers<[1], [0], [0], [1], [0, 0, 1, 1], [], []>} : vector<64x64xf32>, vector<64x8xf32>, vector<64x8xf32> -> vector<64x8xf32>
    %189 = vector.extract_strided_slice %97 {offsets = [320, 0], sizes = [64, 64], strides = [1, 1]} : vector<512x64xf32> to vector<64x64xf32>
    %cst_83 = arith.constant dense<0.000000e+00> : vector<64x8xf32>
    %190 = tpu.matmul %189, %164, %cst_83 {dimension_numbers = #tpu.dot_dimension_numbers<[1], [0], [0], [1], [0, 0, 1, 1], [], []>} : vector<64x64xf32>, vector<64x8xf32>, vector<64x8xf32> -> vector<64x8xf32>
    %191 = vector.extract_strided_slice %97 {offsets = [384, 0], sizes = [64, 64], strides = [1, 1]} : vector<512x64xf32> to vector<64x64xf32>
    %cst_84 = arith.constant dense<0.000000e+00> : vector<64x8xf32>
    %192 = tpu.matmul %191, %164, %cst_84 {dimension_numbers = #tpu.dot_dimension_numbers<[1], [0], [0], [1], [0, 0, 1, 1], [], []>} : vector<64x64xf32>, vector<64x8xf32>, vector<64x8xf32> -> vector<64x8xf32>
    %193 = vector.extract_strided_slice %97 {offsets = [448, 0], sizes = [64, 64], strides = [1, 1]} : vector<512x64xf32> to vector<64x64xf32>
    %cst_85 = arith.constant dense<0.000000e+00> : vector<64x8xf32>
    %194 = tpu.matmul %193, %164, %cst_85 {dimension_numbers = #tpu.dot_dimension_numbers<[1], [0], [0], [1], [0, 0, 1, 1], [], []>} : vector<64x64xf32>, vector<64x8xf32>, vector<64x8xf32> -> vector<64x8xf32>
    %195 = tpu.concatenate %180, %182, %184, %186, %188, %190, %192, %194 in 1 : vector<64x8xf32>, vector<64x8xf32>, vector<64x8xf32>, vector<64x8xf32>, vector<64x8xf32>, vector<64x8xf32>, vector<64x8xf32>, vector<64x8xf32> -> vector<64x64xf32>
    %196 = tpu.concatenate %195, %195, %195, %195 in 1 : vector<64x64xf32>, vector<64x64xf32>, vector<64x64xf32>, vector<64x64xf32> -> vector<64x256xf32>
    %cst_86 = arith.constant dense<0.000000e+00> : vector<64x256xf32>
    %197 = tpu.matmul %161, %98, %cst_86 {dimension_numbers = #tpu.dot_dimension_numbers<[1], [0], [0], [1], [0, 0, 1, 1], [], []>} : vector<64x32xf32>, vector<32x256xf32>, vector<64x256xf32> -> vector<64x256xf32>
    %cst_87 = arith.constant dense<0.000000e+00> : vector<64x256xf32>
    %198 = tpu.matmul %162, %98, %cst_87 {dimension_numbers = #tpu.dot_dimension_numbers<[1], [0], [0], [1], [0, 0, 1, 1], [], []>} : vector<64x32xf32>, vector<32x256xf32>, vector<64x256xf32> -> vector<64x256xf32>
    %199 = arith.mulf %197, %196 : vector<64x256xf32>
    %cst_88 = arith.constant dense<0.000000e+00> : vector<64x32xf32>
    %200 = tpu.matmul %199, %99, %cst_88 {dimension_numbers = #tpu.dot_dimension_numbers<[1], [0], [0], [1], [0, 0, 1, 1], [], []>} : vector<64x256xf32>, vector<256x32xf32>, vector<64x32xf32> -> vector<64x32xf32>
    %cst_89 = arith.constant dense<0.000000e+00> : vector<64x32xf32>
    %201 = tpu.matmul %161, %178, %cst_89 {dimension_numbers = #tpu.dot_dimension_numbers<[1], [0], [0], [1], [0, 0, 1, 1], [], []>} : vector<64x32xf32>, vector<32x32xf32>, vector<64x32xf32> -> vector<64x32xf32>
    %202 = arith.addf %200, %201 : vector<64x32xf32>
    %203 = arith.mulf %198, %196 : vector<64x256xf32>
    %cst_90 = arith.constant dense<0.000000e+00> : vector<64x32xf32>
    %204 = tpu.matmul %203, %99, %cst_90 {dimension_numbers = #tpu.dot_dimension_numbers<[1], [0], [0], [1], [0, 0, 1, 1], [], []>} : vector<64x256xf32>, vector<256x32xf32>, vector<64x32xf32> -> vector<64x32xf32>
    %cst_91 = arith.constant dense<0.000000e+00> : vector<64x32xf32>
    %205 = tpu.matmul %162, %178, %cst_91 {dimension_numbers = #tpu.dot_dimension_numbers<[1], [0], [0], [1], [0, 0, 1, 1], [], []>} : vector<64x32xf32>, vector<32x32xf32>, vector<64x32xf32> -> vector<64x32xf32>
    %206 = arith.addf %204, %205 : vector<64x32xf32>
    %cst_92 = arith.constant dense<0.000000e+00> : vector<64x32xf32>
    %207 = tpu.matmul %206, %101, %cst_92 {dimension_numbers = #tpu.dot_dimension_numbers<[1], [0], [0], [1], [0, 0, 1, 1], [], []>} : vector<64x32xf32>, vector<32x32xf32>, vector<64x32xf32> -> vector<64x32xf32>
    %208 = arith.subf %207, %162 : vector<64x32xf32>
    %cst_93 = arith.constant dense<0.000000e+00> : vector<64x16xf32>
    %209 = tpu.matmul %208, %102, %cst_93 {dimension_numbers = #tpu.dot_dimension_numbers<[1], [0], [0], [1], [0, 0, 1, 1], [], []>} : vector<64x32xf32>, vector<32x16xf32>, vector<64x16xf32> -> vector<64x16xf32>
    %210 = vector.broadcast %103 : vector<1x16xf32> to vector<64x16xf32>
    %211 = arith.addf %209, %210 : vector<64x16xf32>
    %212 = tpu.concatenate %151, %202 in 0 : vector<64x32xf32>, vector<64x32xf32> -> vector<128x32xf32>
    %213 = tpu.concatenate %160, %211 in 0 : vector<64x16xf32>, vector<64x16xf32> -> vector<128x16xf32>
    %c0_94 = arith.constant 0 : index
    %c0_95 = arith.constant 0 : index
    %214 = vector.load %arg22[%c0_94, %c0_95] : memref<128x16xf32, #tpu.memory_space<vmem>>, vector<128x16xf32>
    tpu.vector_store %arg22[%c0_94, %c0_95], %213 {strides = array<i32>} : memref<128x16xf32, #tpu.memory_space<vmem>>, vector<128x16xf32>,
    %215 = arith.addf %25, %212 : vector<128x32xf32>
    %216 = vector.extract_strided_slice %1 {offsets = [2, 0], sizes = [1, 32], strides = [1, 1]} : vector<4x32xf32> to vector<1x32xf32>
    %217 = vector.extract_strided_slice %1 {offsets = [3, 0], sizes = [1, 32], strides = [1, 1]} : vector<4x32xf32> to vector<1x32xf32>
    %cst_96 = arith.constant dense<0.000000e+00> : vector<128xf32>
    %218 = vector.multi_reduction <add>, %215, %cst_96 [1] : vector<128x32xf32> to vector<128xf32>
    %219 = vector.shape_cast %218 : vector<128xf32> to vector<128x1xf32>
    %cst_97 = arith.constant 3.200000e+01 : f32
    %220 = vector.broadcast %cst_97 : f32 to vector<128x1xf32>
    %221 = arith.divf %219, %220 : vector<128x1xf32>
    %222 = vector.broadcast %221 : vector<128x1xf32> to vector<128x32xf32>
    %223 = arith.subf %215, %222 : vector<128x32xf32>
    %224 = arith.mulf %223, %223 : vector<128x32xf32>
    %cst_98 = arith.constant dense<0.000000e+00> : vector<128xf32>
    %225 = vector.multi_reduction <add>, %224, %cst_98 [1] : vector<128x32xf32> to vector<128xf32>
    %226 = vector.shape_cast %225 : vector<128xf32> to vector<128x1xf32>
    %cst_99 = arith.constant 3.200000e+01 : f32
    %227 = vector.broadcast %cst_99 : f32 to vector<128x1xf32>
    %228 = arith.divf %226, %227 : vector<128x1xf32>
    %229 = vector.broadcast %221 : vector<128x1xf32> to vector<128x32xf32>
    %230 = arith.subf %215, %229 : vector<128x32xf32>
    %cst_100 = arith.constant 9.99999974E-6 : f32
    %231 = vector.broadcast %cst_100 : f32 to vector<128x1xf32>
    %232 = arith.addf %228, %231 : vector<128x1xf32>
    %233 = math.rsqrt %232 : vector<128x1xf32>
    %234 = vector.broadcast %233 : vector<128x1xf32> to vector<128x32xf32>
    %235 = arith.mulf %230, %234 : vector<128x32xf32>
    %236 = vector.broadcast %216 : vector<1x32xf32> to vector<128x32xf32>
    %237 = arith.mulf %235, %236 : vector<128x32xf32>
    %238 = vector.broadcast %217 : vector<1x32xf32> to vector<128x32xf32>
    %239 = arith.addf %237, %238 : vector<128x32xf32>
    %cst_101 = arith.constant dense<0.000000e+00> : vector<128x128xf32>
    %240 = tpu.matmul %239, %104, %cst_101 {dimension_numbers = #tpu.dot_dimension_numbers<[1], [0], [0], [1], [0, 0, 1, 1], [], []>} : vector<128x32xf32>, vector<32x128xf32>, vector<128x128xf32> -> vector<128x128xf32>
    %241 = vector.broadcast %105 : vector<1x128xf32> to vector<128x128xf32>
    %242 = arith.addf %240, %241 : vector<128x128xf32>
    %243 = tpu.iota {dimensions = array<i32: 1>} : vector<8x8x128xi32>
    %c1_i32 = arith.constant 1 : i32
    %244 = vector.broadcast %c1_i32 : i32 to vector<8x8x128xi32>
    %245 = arith.cmpi sge, %243, %244 : vector<8x8x128xi32>
    %c6_i32 = arith.constant 6 : i32
    %246 = vector.broadcast %c6_i32 : i32 to vector<8x8x128xi32>
    %247 = arith.cmpi sle, %243, %246 : vector<8x8x128xi32>
    %cst_102 = arith.constant 0.000000e+00 : f32
    %248 = vector.broadcast %cst_102 : f32 to vector<1x8x128xf32>
    %249 = vector.extract_strided_slice %242 {offsets = [0, 0], sizes = [64, 128], strides = [1, 1]} : vector<128x128xf32> to vector<64x128xf32>
    %250 = vector.shape_cast %249 : vector<64x128xf32> to vector<8x8x128xf32>
    %251 = tpu.concatenate %248, %250, %248 in 0 : vector<1x8x128xf32>, vector<8x8x128xf32>, vector<1x8x128xf32> -> vector<10x8x128xf32>
    %252 = vector.extract_strided_slice %251 {offsets = [0, 0, 0], sizes = [8, 8, 128], strides = [1, 1, 1]} : vector<10x8x128xf32> to vector<8x8x128xf32>
    %c1_i32_103 = arith.constant 1 : i32
    %253 = tpu.dynamic_rotate %252 by %c1_i32_103 dim 1 : vector<8x8x128xf32>, i32 -> vector<8x8x128xf32>
    %cst_104 = arith.constant 0.000000e+00 : f32
    %254 = vector.broadcast %cst_104 : f32 to vector<8x8x128xf32>
    %255 = arith.select %245, %253, %254 : vector<8x8x128xi1>, vector<8x8x128xf32>
    %256 = vector.extract_strided_slice %106 {offsets = [0, 0, 0], sizes = [1, 1, 128], strides = [1, 1, 1]} : vector<9x1x128xf32> to vector<1x1x128xf32>
    %257 = vector.broadcast %256 : vector<1x1x128xf32> to vector<8x8x128xf32>
    %258 = arith.mulf %255, %257 : vector<8x8x128xf32>
    %259 = vector.extract_strided_slice %106 {offsets = [1, 0, 0], sizes = [1, 1, 128], strides = [1, 1, 1]} : vector<9x1x128xf32> to vector<1x1x128xf32>
    %260 = vector.broadcast %259 : vector<1x1x128xf32> to vector<8x8x128xf32>
    %261 = arith.mulf %252, %260 : vector<8x8x128xf32>
    %262 = arith.addf %258, %261 : vector<8x8x128xf32>
    %c7_i32 = arith.constant 7 : i32
    %263 = tpu.dynamic_rotate %252 by %c7_i32 dim 1 : vector<8x8x128xf32>, i32 -> vector<8x8x128xf32>
    %cst_105 = arith.constant 0.000000e+00 : f32
    %264 = vector.broadcast %cst_105 : f32 to vector<8x8x128xf32>
    %265 = arith.select %247, %263, %264 : vector<8x8x128xi1>, vector<8x8x128xf32>
    %266 = vector.extract_strided_slice %106 {offsets = [2, 0, 0], sizes = [1, 1, 128], strides = [1, 1, 1]} : vector<9x1x128xf32> to vector<1x1x128xf32>
    %267 = vector.broadcast %266 : vector<1x1x128xf32> to vector<8x8x128xf32>
    %268 = arith.mulf %265, %267 : vector<8x8x128xf32>
    %269 = arith.addf %262, %268 : vector<8x8x128xf32>
    %270 = vector.extract_strided_slice %251 {offsets = [1, 0, 0], sizes = [8, 8, 128], strides = [1, 1, 1]} : vector<10x8x128xf32> to vector<8x8x128xf32>
    %c1_i32_106 = arith.constant 1 : i32
    %271 = tpu.dynamic_rotate %270 by %c1_i32_106 dim 1 : vector<8x8x128xf32>, i32 -> vector<8x8x128xf32>
    %cst_107 = arith.constant 0.000000e+00 : f32
    %272 = vector.broadcast %cst_107 : f32 to vector<8x8x128xf32>
    %273 = arith.select %245, %271, %272 : vector<8x8x128xi1>, vector<8x8x128xf32>
    %274 = vector.extract_strided_slice %106 {offsets = [3, 0, 0], sizes = [1, 1, 128], strides = [1, 1, 1]} : vector<9x1x128xf32> to vector<1x1x128xf32>
    %275 = vector.broadcast %274 : vector<1x1x128xf32> to vector<8x8x128xf32>
    %276 = arith.mulf %273, %275 : vector<8x8x128xf32>
    %277 = arith.addf %269, %276 : vector<8x8x128xf32>
    %278 = vector.extract_strided_slice %106 {offsets = [4, 0, 0], sizes = [1, 1, 128], strides = [1, 1, 1]} : vector<9x1x128xf32> to vector<1x1x128xf32>
    %279 = vector.broadcast %278 : vector<1x1x128xf32> to vector<8x8x128xf32>
    %280 = arith.mulf %270, %279 : vector<8x8x128xf32>
    %281 = arith.addf %277, %280 : vector<8x8x128xf32>
    %c7_i32_108 = arith.constant 7 : i32
    %282 = tpu.dynamic_rotate %270 by %c7_i32_108 dim 1 : vector<8x8x128xf32>, i32 -> vector<8x8x128xf32>
    %cst_109 = arith.constant 0.000000e+00 : f32
    %283 = vector.broadcast %cst_109 : f32 to vector<8x8x128xf32>
    %284 = arith.select %247, %282, %283 : vector<8x8x128xi1>, vector<8x8x128xf32>
    %285 = vector.extract_strided_slice %106 {offsets = [5, 0, 0], sizes = [1, 1, 128], strides = [1, 1, 1]} : vector<9x1x128xf32> to vector<1x1x128xf32>
    %286 = vector.broadcast %285 : vector<1x1x128xf32> to vector<8x8x128xf32>
    %287 = arith.mulf %284, %286 : vector<8x8x128xf32>
    %288 = arith.addf %281, %287 : vector<8x8x128xf32>
    %289 = vector.extract_strided_slice %251 {offsets = [2, 0, 0], sizes = [8, 8, 128], strides = [1, 1, 1]} : vector<10x8x128xf32> to vector<8x8x128xf32>
    %c1_i32_110 = arith.constant 1 : i32
    %290 = tpu.dynamic_rotate %289 by %c1_i32_110 dim 1 : vector<8x8x128xf32>, i32 -> vector<8x8x128xf32>
    %cst_111 = arith.constant 0.000000e+00 : f32
    %291 = vector.broadcast %cst_111 : f32 to vector<8x8x128xf32>
    %292 = arith.select %245, %290, %291 : vector<8x8x128xi1>, vector<8x8x128xf32>
    %293 = vector.extract_strided_slice %106 {offsets = [6, 0, 0], sizes = [1, 1, 128], strides = [1, 1, 1]} : vector<9x1x128xf32> to vector<1x1x128xf32>
    %294 = vector.broadcast %293 : vector<1x1x128xf32> to vector<8x8x128xf32>
    %295 = arith.mulf %292, %294 : vector<8x8x128xf32>
    %296 = arith.addf %288, %295 : vector<8x8x128xf32>
    %297 = vector.extract_strided_slice %106 {offsets = [7, 0, 0], sizes = [1, 1, 128], strides = [1, 1, 1]} : vector<9x1x128xf32> to vector<1x1x128xf32>
    %298 = vector.broadcast %297 : vector<1x1x128xf32> to vector<8x8x128xf32>
    %299 = arith.mulf %289, %298 : vector<8x8x128xf32>
    %300 = arith.addf %296, %299 : vector<8x8x128xf32>
    %c7_i32_112 = arith.constant 7 : i32
    %301 = tpu.dynamic_rotate %289 by %c7_i32_112 dim 1 : vector<8x8x128xf32>, i32 -> vector<8x8x128xf32>
    %cst_113 = arith.constant 0.000000e+00 : f32
    %302 = vector.broadcast %cst_113 : f32 to vector<8x8x128xf32>
    %303 = arith.select %247, %301, %302 : vector<8x8x128xi1>, vector<8x8x128xf32>
    %304 = vector.extract_strided_slice %106 {offsets = [8, 0, 0], sizes = [1, 1, 128], strides = [1, 1, 1]} : vector<9x1x128xf32> to vector<1x1x128xf32>
    %305 = vector.broadcast %304 : vector<1x1x128xf32> to vector<8x8x128xf32>
    %306 = arith.mulf %303, %305 : vector<8x8x128xf32>
    %307 = arith.addf %300, %306 : vector<8x8x128xf32>
    %308 = vector.broadcast %107 : vector<1x1x128xf32> to vector<8x8x128xf32>
    %309 = arith.addf %307, %308 : vector<8x8x128xf32>
    %310 = vector.shape_cast %309 : vector<8x8x128xf32> to vector<64x128xf32>
    %311 = vector.extract_strided_slice %242 {offsets = [64, 0], sizes = [64, 128], strides = [1, 1]} : vector<128x128xf32> to vector<64x128xf32>
    %312 = vector.shape_cast %311 : vector<64x128xf32> to vector<8x8x128xf32>
    %313 = tpu.concatenate %248, %312, %248 in 0 : vector<1x8x128xf32>, vector<8x8x128xf32>, vector<1x8x128xf32> -> vector<10x8x128xf32>
    %314 = vector.extract_strided_slice %313 {offsets = [0, 0, 0], sizes = [8, 8, 128], strides = [1, 1, 1]} : vector<10x8x128xf32> to vector<8x8x128xf32>
    %c1_i32_114 = arith.constant 1 : i32
    %315 = tpu.dynamic_rotate %314 by %c1_i32_114 dim 1 : vector<8x8x128xf32>, i32 -> vector<8x8x128xf32>
    %cst_115 = arith.constant 0.000000e+00 : f32
    %316 = vector.broadcast %cst_115 : f32 to vector<8x8x128xf32>
    %317 = arith.select %245, %315, %316 : vector<8x8x128xi1>, vector<8x8x128xf32>
    %318 = vector.extract_strided_slice %106 {offsets = [0, 0, 0], sizes = [1, 1, 128], strides = [1, 1, 1]} : vector<9x1x128xf32> to vector<1x1x128xf32>
    %319 = vector.broadcast %318 : vector<1x1x128xf32> to vector<8x8x128xf32>
    %320 = arith.mulf %317, %319 : vector<8x8x128xf32>
    %321 = vector.extract_strided_slice %106 {offsets = [1, 0, 0], sizes = [1, 1, 128], strides = [1, 1, 1]} : vector<9x1x128xf32> to vector<1x1x128xf32>
    %322 = vector.broadcast %321 : vector<1x1x128xf32> to vector<8x8x128xf32>
    %323 = arith.mulf %314, %322 : vector<8x8x128xf32>
    %324 = arith.addf %320, %323 : vector<8x8x128xf32>
    %c7_i32_116 = arith.constant 7 : i32
    %325 = tpu.dynamic_rotate %314 by %c7_i32_116 dim 1 : vector<8x8x128xf32>, i32 -> vector<8x8x128xf32>
    %cst_117 = arith.constant 0.000000e+00 : f32
    %326 = vector.broadcast %cst_117 : f32 to vector<8x8x128xf32>
    %327 = arith.select %247, %325, %326 : vector<8x8x128xi1>, vector<8x8x128xf32>
    %328 = vector.extract_strided_slice %106 {offsets = [2, 0, 0], sizes = [1, 1, 128], strides = [1, 1, 1]} : vector<9x1x128xf32> to vector<1x1x128xf32>
    %329 = vector.broadcast %328 : vector<1x1x128xf32> to vector<8x8x128xf32>
    %330 = arith.mulf %327, %329 : vector<8x8x128xf32>
    %331 = arith.addf %324, %330 : vector<8x8x128xf32>
    %332 = vector.extract_strided_slice %313 {offsets = [1, 0, 0], sizes = [8, 8, 128], strides = [1, 1, 1]} : vector<10x8x128xf32> to vector<8x8x128xf32>
    %c1_i32_118 = arith.constant 1 : i32
    %333 = tpu.dynamic_rotate %332 by %c1_i32_118 dim 1 : vector<8x8x128xf32>, i32 -> vector<8x8x128xf32>
    %cst_119 = arith.constant 0.000000e+00 : f32
    %334 = vector.broadcast %cst_119 : f32 to vector<8x8x128xf32>
    %335 = arith.select %245, %333, %334 : vector<8x8x128xi1>, vector<8x8x128xf32>
    %336 = vector.extract_strided_slice %106 {offsets = [3, 0, 0], sizes = [1, 1, 128], strides = [1, 1, 1]} : vector<9x1x128xf32> to vector<1x1x128xf32>
    %337 = vector.broadcast %336 : vector<1x1x128xf32> to vector<8x8x128xf32>
    %338 = arith.mulf %335, %337 : vector<8x8x128xf32>
    %339 = arith.addf %331, %338 : vector<8x8x128xf32>
    %340 = vector.extract_strided_slice %106 {offsets = [4, 0, 0], sizes = [1, 1, 128], strides = [1, 1, 1]} : vector<9x1x128xf32> to vector<1x1x128xf32>
    %341 = vector.broadcast %340 : vector<1x1x128xf32> to vector<8x8x128xf32>
    %342 = arith.mulf %332, %341 : vector<8x8x128xf32>
    %343 = arith.addf %339, %342 : vector<8x8x128xf32>
    %c7_i32_120 = arith.constant 7 : i32
    %344 = tpu.dynamic_rotate %332 by %c7_i32_120 dim 1 : vector<8x8x128xf32>, i32 -> vector<8x8x128xf32>
    %cst_121 = arith.constant 0.000000e+00 : f32
    %345 = vector.broadcast %cst_121 : f32 to vector<8x8x128xf32>
    %346 = arith.select %247, %344, %345 : vector<8x8x128xi1>, vector<8x8x128xf32>
    %347 = vector.extract_strided_slice %106 {offsets = [5, 0, 0], sizes = [1, 1, 128], strides = [1, 1, 1]} : vector<9x1x128xf32> to vector<1x1x128xf32>
    %348 = vector.broadcast %347 : vector<1x1x128xf32> to vector<8x8x128xf32>
    %349 = arith.mulf %346, %348 : vector<8x8x128xf32>
    %350 = arith.addf %343, %349 : vector<8x8x128xf32>
    %351 = vector.extract_strided_slice %313 {offsets = [2, 0, 0], sizes = [8, 8, 128], strides = [1, 1, 1]} : vector<10x8x128xf32> to vector<8x8x128xf32>
    %c1_i32_122 = arith.constant 1 : i32
    %352 = tpu.dynamic_rotate %351 by %c1_i32_122 dim 1 : vector<8x8x128xf32>, i32 -> vector<8x8x128xf32>
    %cst_123 = arith.constant 0.000000e+00 : f32
    %353 = vector.broadcast %cst_123 : f32 to vector<8x8x128xf32>
    %354 = arith.select %245, %352, %353 : vector<8x8x128xi1>, vector<8x8x128xf32>
    %355 = vector.extract_strided_slice %106 {offsets = [6, 0, 0], sizes = [1, 1, 128], strides = [1, 1, 1]} : vector<9x1x128xf32> to vector<1x1x128xf32>
    %356 = vector.broadcast %355 : vector<1x1x128xf32> to vector<8x8x128xf32>
    %357 = arith.mulf %354, %356 : vector<8x8x128xf32>
    %358 = arith.addf %350, %357 : vector<8x8x128xf32>
    %359 = vector.extract_strided_slice %106 {offsets = [7, 0, 0], sizes = [1, 1, 128], strides = [1, 1, 1]} : vector<9x1x128xf32> to vector<1x1x128xf32>
    %360 = vector.broadcast %359 : vector<1x1x128xf32> to vector<8x8x128xf32>
    %361 = arith.mulf %351, %360 : vector<8x8x128xf32>
    %362 = arith.addf %358, %361 : vector<8x8x128xf32>
    %c7_i32_124 = arith.constant 7 : i32
    %363 = tpu.dynamic_rotate %351 by %c7_i32_124 dim 1 : vector<8x8x128xf32>, i32 -> vector<8x8x128xf32>
    %cst_125 = arith.constant 0.000000e+00 : f32
    %364 = vector.broadcast %cst_125 : f32 to vector<8x8x128xf32>
    %365 = arith.select %247, %363, %364 : vector<8x8x128xi1>, vector<8x8x128xf32>
    %366 = vector.extract_strided_slice %106 {offsets = [8, 0, 0], sizes = [1, 1, 128], strides = [1, 1, 1]} : vector<9x1x128xf32> to vector<1x1x128xf32>
    %367 = vector.broadcast %366 : vector<1x1x128xf32> to vector<8x8x128xf32>
    %368 = arith.mulf %365, %367 : vector<8x8x128xf32>
    %369 = arith.addf %362, %368 : vector<8x8x128xf32>
    %370 = vector.broadcast %107 : vector<1x1x128xf32> to vector<8x8x128xf32>
    %371 = arith.addf %369, %370 : vector<8x8x128xf32>
    %372 = vector.shape_cast %371 : vector<8x8x128xf32> to vector<64x128xf32>
    %373 = tpu.concatenate %310, %372 in 0 : vector<64x128xf32>, vector<64x128xf32> -> vector<128x128xf32>
    %cst_126 = arith.constant 5.000000e-01 : f32
    %374 = vector.broadcast %cst_126 : f32 to vector<128x128xf32>
    %375 = arith.mulf %374, %373 : vector<128x128xf32>
    %cst_127 = arith.constant 0.707106769 : f32
    %376 = vector.broadcast %cst_127 : f32 to vector<128x128xf32>
    %377 = arith.mulf %373, %376 : vector<128x128xf32>
    %378 = math.erf %377 : vector<128x128xf32>
    %cst_128 = arith.constant 1.000000e+00 : f32
    %379 = vector.broadcast %cst_128 : f32 to vector<128x128xf32>
    %380 = arith.addf %379, %378 : vector<128x128xf32>
    %381 = arith.mulf %375, %380 : vector<128x128xf32>
    %cst_129 = arith.constant dense<0.000000e+00> : vector<128x32xf32>
    %382 = tpu.matmul %381, %108, %cst_129 {dimension_numbers = #tpu.dot_dimension_numbers<[1], [0], [0], [1], [0, 0, 1, 1], [], []>} : vector<128x128xf32>, vector<128x32xf32>, vector<128x32xf32> -> vector<128x32xf32>
    %383 = vector.broadcast %109 : vector<1x32xf32> to vector<128x32xf32>
    %384 = arith.addf %382, %383 : vector<128x32xf32>
    %385 = arith.addf %215, %384 : vector<128x32xf32>
    %c0_130 = arith.constant 0 : index
    %c0_131 = arith.constant 0 : index
    %386 = vector.load %arg21[%c0_130, %c0_131] : memref<128x32xf32, #tpu.memory_space<vmem>>, vector<128x32xf32>
    tpu.vector_store %arg21[%c0_130, %c0_131], %385 {strides = array<i32>} : memref<128x32xf32, #tpu.memory_space<vmem>>, vector<128x32xf32>,
    return
  }
  func.func @transform_0(%arg0: i32) -> (i32, i32) {
    %c0_i32 = arith.constant 0 : i32
    %c0_i32_0 = arith.constant 0 : i32
    %c0_i32_1 = arith.constant 0 : i32
    return %c0_i32, %c0_i32_0 : i32, i32
  }
  func.func @transform_1(%arg0: i32) -> (i32, i32) {
    %c0_i32 = arith.constant 0 : i32
    %c0_i32_0 = arith.constant 0 : i32
    %c0_i32_1 = arith.constant 0 : i32
    return %c0_i32, %c0_i32_0 : i32, i32
  }
  func.func @transform_2(%arg0: i32) -> (i32, i32) {
    %c0_i32 = arith.constant 0 : i32
    %c0_i32_0 = arith.constant 0 : i32
    %c0_i32_1 = arith.constant 0 : i32
    return %c0_i32, %c0_i32_0 : i32, i32
  }
  func.func @transform_3(%arg0: i32) -> (i32, i32) {
    %c0_i32 = arith.constant 0 : i32
    %c0_i32_0 = arith.constant 0 : i32
    %c0_i32_1 = arith.constant 0 : i32
    return %c0_i32, %c0_i32_0 : i32, i32
  }
  func.func @transform_4(%arg0: i32) -> (i32, i32) {
    %c0_i32 = arith.constant 0 : i32
    %c0_i32_0 = arith.constant 0 : i32
    %c0_i32_1 = arith.constant 0 : i32
    return %c0_i32, %c0_i32_0 : i32, i32
  }
  func.func @transform_5(%arg0: i32) -> (i32, i32) {
    %c0_i32 = arith.constant 0 : i32
    %c0_i32_0 = arith.constant 0 : i32
    %c0_i32_1 = arith.constant 0 : i32
    return %c0_i32, %c0_i32_0 : i32, i32
  }
  func.func @transform_6(%arg0: i32) -> (i32, i32) {
    %c0_i32 = arith.constant 0 : i32
    %c0_i32_0 = arith.constant 0 : i32
    %c0_i32_1 = arith.constant 0 : i32
    return %c0_i32, %c0_i32_0 : i32, i32
  }
  func.func @transform_7(%arg0: i32) -> (i32, i32) {
    %c0_i32 = arith.constant 0 : i32
    %c0_i32_0 = arith.constant 0 : i32
    %c0_i32_1 = arith.constant 0 : i32
    return %c0_i32, %c0_i32_0 : i32, i32
  }
  func.func @transform_8(%arg0: i32) -> (i32, i32) {
    %c0_i32 = arith.constant 0 : i32
    %c0_i32_0 = arith.constant 0 : i32
    %c0_i32_1 = arith.constant 0 : i32
    return %c0_i32, %c0_i32_0 : i32, i32
  }
  func.func @transform_9(%arg0: i32) -> (i32, i32) {
    %c0_i32 = arith.constant 0 : i32
    %c0_i32_0 = arith.constant 0 : i32
    %c0_i32_1 = arith.constant 0 : i32
    return %c0_i32, %c0_i32_0 : i32, i32
  }
  func.func @transform_10(%arg0: i32) -> (i32, i32) {
    %c0_i32 = arith.constant 0 : i32
    %c0_i32_0 = arith.constant 0 : i32
    %c0_i32_1 = arith.constant 0 : i32
    return %c0_i32, %c0_i32_0 : i32, i32
  }
  func.func @transform_11(%arg0: i32) -> (i32, i32) {
    %c0_i32 = arith.constant 0 : i32
    %c0_i32_0 = arith.constant 0 : i32
    %c0_i32_1 = arith.constant 0 : i32
    return %c0_i32, %c0_i32_0 : i32, i32
  }
  func.func @transform_12(%arg0: i32) -> (i32, i32) {
    %c0_i32 = arith.constant 0 : i32
    %c0_i32_0 = arith.constant 0 : i32
    %c0_i32_1 = arith.constant 0 : i32
    return %c0_i32, %c0_i32_0 : i32, i32
  }
  func.func @transform_13(%arg0: i32) -> (i32, i32) {
    %c0_i32 = arith.constant 0 : i32
    %c0_i32_0 = arith.constant 0 : i32
    %c0_i32_1 = arith.constant 0 : i32
    return %c0_i32, %c0_i32_0 : i32, i32
  }
  func.func @transform_14(%arg0: i32) -> (i32, i32) {
    %c0_i32 = arith.constant 0 : i32
    %c0_i32_0 = arith.constant 0 : i32
    %c0_i32_1 = arith.constant 0 : i32
    return %c0_i32, %c0_i32_0 : i32, i32
  }
  func.func @transform_15(%arg0: i32) -> (i32, i32) {
    %c0_i32 = arith.constant 0 : i32
    %c0_i32_0 = arith.constant 0 : i32
    %c0_i32_1 = arith.constant 0 : i32
    return %c0_i32, %c0_i32_0 : i32, i32
  }
  func.func @transform_16(%arg0: i32) -> (i32, i32, i32) {
    %c0_i32 = arith.constant 0 : i32
    %c0_i32_0 = arith.constant 0 : i32
    %c0_i32_1 = arith.constant 0 : i32
    %c0_i32_2 = arith.constant 0 : i32
    return %c0_i32, %c0_i32_0, %c0_i32_1 : i32, i32, i32
  }
  func.func @transform_17(%arg0: i32) -> (i32, i32, i32) {
    %c0_i32 = arith.constant 0 : i32
    %c0_i32_0 = arith.constant 0 : i32
    %c0_i32_1 = arith.constant 0 : i32
    %c0_i32_2 = arith.constant 0 : i32
    return %c0_i32, %c0_i32_0, %c0_i32_1 : i32, i32, i32
  }
  func.func @transform_18(%arg0: i32) -> (i32, i32) {
    %c0_i32 = arith.constant 0 : i32
    %c0_i32_0 = arith.constant 0 : i32
    %c0_i32_1 = arith.constant 0 : i32
    return %c0_i32, %c0_i32_0 : i32, i32
  }
  func.func @transform_19(%arg0: i32) -> (i32, i32) {
    %c0_i32 = arith.constant 0 : i32
    %c0_i32_0 = arith.constant 0 : i32
    %c0_i32_1 = arith.constant 0 : i32
    return %c0_i32, %c0_i32_0 : i32, i32
  }
  func.func @transform_20(%arg0: i32) -> (i32, i32) {
    %c0_i32 = arith.constant 0 : i32
    %c0_i32_0 = arith.constant 0 : i32
    %c0_i32_1 = arith.constant 0 : i32
    return %c0_i32, %c0_i32_0 : i32, i32
  }
  func.func @transform_21(%arg0: i32) -> (i32, i32) {
    %c0_i32 = arith.constant 0 : i32
    %c0_i32_0 = arith.constant 0 : i32
    %c0_i32_1 = arith.constant 0 : i32
    return %c0_i32, %c0_i32_0 : i32, i32
  }
}

</mosaic_0001>

<llo_original>
// kernel: structformer_block_forward.1
$region0: #{structformer_block_forward.1}
  #allocation0 [shape = 'u32[]', space=smem, size = 0x4, offset = 0x4, fixed_abs, tag = 'smem constant byte address 0x4 - core index']
  #allocation1 [shape = 'u32[144,128]{1,0:T(1,128)}', space=vmem, size = 0x12000, scoped, tag = 'internal scratch']
  %s0 = inlined_call_operand.vmem [shape: f32[128,32], index: 0, kind: input, shape index: {}]
  %s1 = inlined_call_operand.vmem [shape: f32[128,2], index: 1, kind: input, shape index: {}]
  %s2 = inlined_call_operand.vmem [shape: f32[512,64], index: 2, kind: input, shape index: {}]
  %s3 = inlined_call_operand.vmem [shape: f32[32,48], index: 3, kind: input, shape index: {}]
  %s4 = inlined_call_operand.vmem [shape: f32[4,32], index: 4, kind: input, shape index: {}]
  %s5 = inlined_call_operand.vmem [shape: f32[2,32], index: 5, kind: input, shape index: {}]
  %s6 = inlined_call_operand.vmem [shape: f32[2,8], index: 6, kind: input, shape index: {}]
  %s7 = inlined_call_operand.vmem [shape: f32[3,32], index: 7, kind: input, shape index: {}]
  %s8 = inlined_call_operand.vmem [shape: f32[32,256], index: 8, kind: input, shape index: {}]
  %s9 = inlined_call_operand.vmem [shape: f32[256,32], index: 9, kind: input, shape index: {}]
  %s10 = inlined_call_operand.vmem [shape: f32[32,32], index: 10, kind: input, shape index: {}]
  %s11 = inlined_call_operand.vmem [shape: f32[32,32], index: 11, kind: input, shape index: {}]
  %s12 = inlined_call_operand.vmem [shape: f32[32,16], index: 12, kind: input, shape index: {}]
  %s13 = inlined_call_operand.vmem [shape: f32[1,16], index: 13, kind: input, shape index: {}]
  %s14 = inlined_call_operand.vmem [shape: f32[32,128], index: 14, kind: input, shape index: {}]
  %s15 = inlined_call_operand.vmem [shape: f32[1,128], index: 15, kind: input, shape index: {}]
  %s16 = inlined_call_operand.vmem [shape: f32[9,1,128], index: 16, kind: input, shape index: {}]
  %s17 = inlined_call_operand.vmem [shape: f32[1,1,128], index: 17, kind: input, shape index: {}]
  %s18 = inlined_call_operand.vmem [shape: f32[128,32], index: 18, kind: input, shape index: {}]
  %s19 = inlined_call_operand.vmem [shape: f32[1,32], index: 19, kind: input, shape index: {}]
  %s20 = inlined_call_operand.vmem [shape: f32[128,32], index: 20, kind: output, shape index: {0}]
  %s21 = inlined_call_operand.vmem [shape: f32[128,16], index: 21, kind: output, shape index: {1}]
  %22 = xla_tuple %s20, %s21
  %s23 = sld [smem:[#allocation0]]
  $region98: #{structformer_block_forward.1} parent=0
    _
  %s25 = ssub.s32 1, %s23
  %s26 = scalar_select 0, %s25, %s23
  // Predicated region
  $region2: #{structformer_block_forward.1} parent=0 // pred_check
    _
  $region3: #{structformer_block_forward.1} parent=0 // pred_check_branch
    %28 = sbr.rel (0) target = $region5
  $region4: #{structformer_block_forward.1} parent=0 // pred_region
    _
  $region5: #{structformer_block_forward.1} parent=0 // pred_fallthru
    _
  // Predicated region
  $region6: #{structformer_block_forward.1} parent=0 // pred_check
    _
  $region7: #{structformer_block_forward.1} parent=0 // pred_check_branch
    %30 = sbr.rel (0) target = $region9
  $region8: #{structformer_block_forward.1} parent=0 // pred_region
    _
  $region9: #{structformer_block_forward.1} parent=0 // pred_fallthru
    _
  // Predicated region
  $region10: #{structformer_block_forward.1} parent=0 // pred_check
    _
  $region11: #{structformer_block_forward.1} parent=0 // pred_check_branch
    %32 = sbr.rel (0) target = $region13
  $region12: #{structformer_block_forward.1} parent=0 // pred_region
    _
  $region13: #{structformer_block_forward.1} parent=0 // pred_fallthru
    _
  // Predicated region
  $region14: #{structformer_block_forward.1} parent=0 // pred_check
    _
  $region15: #{structformer_block_forward.1} parent=0 // pred_check_branch
    %34 = sbr.rel (0) target = $region17
  $region16: #{structformer_block_forward.1} parent=0 // pred_region
    _
  $region17: #{structformer_block_forward.1} parent=0 // pred_fallthru
    _
  // Predicated region
  $region18: #{structformer_block_forward.1} parent=0 // pred_check
    _
  $region19: #{structformer_block_forward.1} parent=0 // pred_check_branch
    %36 = sbr.rel (0) target = $region21
  $region20: #{structformer_block_forward.1} parent=0 // pred_region
    _
  $region21: #{structformer_block_forward.1} parent=0 // pred_fallthru
    _
  // Predicated region
  $region22: #{structformer_block_forward.1} parent=0 // pred_check
    _
  $region23: #{structformer_block_forward.1} parent=0 // pred_check_branch
    %38 = sbr.rel (0) target = $region25
  $region24: #{structformer_block_forward.1} parent=0 // pred_region
    _
  $region25: #{structformer_block_forward.1} parent=0 // pred_fallthru
    _
  // Predicated region
  $region26: #{structformer_block_forward.1} parent=0 // pred_check
    _
  $region27: #{structformer_block_forward.1} parent=0 // pred_check_branch
    %40 = sbr.rel (0) target = $region29
  $region28: #{structformer_block_forward.1} parent=0 // pred_region
    _
  $region29: #{structformer_block_forward.1} parent=0 // pred_fallthru
    _
  // Predicated region
  $region30: #{structformer_block_forward.1} parent=0 // pred_check
    _
  $region31: #{structformer_block_forward.1} parent=0 // pred_check_branch
    %42 = sbr.rel (0) target = $region33
  $region32: #{structformer_block_forward.1} parent=0 // pred_region
    _
  $region33: #{structformer_block_forward.1} parent=0 // pred_fallthru
    _
  // Predicated region
  $region34: #{structformer_block_forward.1} parent=0 // pred_check
    _
  $region35: #{structformer_block_forward.1} parent=0 // pred_check_branch
    %44 = sbr.rel (0) target = $region37
  $region36: #{structformer_block_forward.1} parent=0 // pred_region
    _
  $region37: #{structformer_block_forward.1} parent=0 // pred_fallthru
    _
  // Predicated region
  $region38: #{structformer_block_forward.1} parent=0 // pred_check
    _
  $region39: #{structformer_block_forward.1} parent=0 // pred_check_branch
    %46 = sbr.rel (0) target = $region41
  $region40: #{structformer_block_forward.1} parent=0 // pred_region
    _
  $region41: #{structformer_block_forward.1} parent=0 // pred_fallthru
    _
  // Predicated region
  $region42: #{structformer_block_forward.1} parent=0 // pred_check
    _
  $region43: #{structformer_block_forward.1} parent=0 // pred_check_branch
    %48 = sbr.rel (0) target = $region45
  $region44: #{structformer_block_forward.1} parent=0 // pred_region
    _
  $region45: #{structformer_block_forward.1} parent=0 // pred_fallthru
    _
  // Predicated region
  $region46: #{structformer_block_forward.1} parent=0 // pred_check
    _
  $region47: #{structformer_block_forward.1} parent=0 // pred_check_branch
    %50 = sbr.rel (0) target = $region49
  $region48: #{structformer_block_forward.1} parent=0 // pred_region
    _
  $region49: #{structformer_block_forward.1} parent=0 // pred_fallthru
    _
  // Predicated region
  $region50: #{structformer_block_forward.1} parent=0 // pred_check
    _
  $region51: #{structformer_block_forward.1} parent=0 // pred_check_branch
    %52 = sbr.rel (0) target = $region53
  $region52: #{structformer_block_forward.1} parent=0 // pred_region
    _
  $region53: #{structformer_block_forward.1} parent=0 // pred_fallthru
    _
  // Predicated region
  $region54: #{structformer_block_forward.1} parent=0 // pred_check
    _
  $region55: #{structformer_block_forward.1} parent=0 // pred_check_branch
    %54 = sbr.rel (0) target = $region57
  $region56: #{structformer_block_forward.1} parent=0 // pred_region
    _
  $region57: #{structformer_block_forward.1} parent=0 // pred_fallthru
    _
  // Predicated region
  $region58: #{structformer_block_forward.1} parent=0 // pred_check
    _
  $region59: #{structformer_block_forward.1} parent=0 // pred_check_branch
    %56 = sbr.rel (0) target = $region61
  $region60: #{structformer_block_forward.1} parent=0 // pred_region
    _
  $region61: #{structformer_block_forward.1} parent=0 // pred_fallthru
    _
  // Predicated region
  $region62: #{structformer_block_forward.1} parent=0 // pred_check
    _
  $region63: #{structformer_block_forward.1} parent=0 // pred_check_branch
    %58 = sbr.rel (0) target = $region65
  $region64: #{structformer_block_forward.1} parent=0 // pred_region
    _
  $region65: #{structformer_block_forward.1} parent=0 // pred_fallthru
    _
  // Predicated region
  $region66: #{structformer_block_forward.1} parent=0 // pred_check
    _
  $region67: #{structformer_block_forward.1} parent=0 // pred_check_branch
    %60 = sbr.rel (0) target = $region69
  $region68: #{structformer_block_forward.1} parent=0 // pred_region
    _
  $region69: #{structformer_block_forward.1} parent=0 // pred_fallthru
    _
  // Predicated region
  $region70: #{structformer_block_forward.1} parent=0 // pred_check
    _
  $region71: #{structformer_block_forward.1} parent=0 // pred_check_branch
    %62 = sbr.rel (0) target = $region73
  $region72: #{structformer_block_forward.1} parent=0 // pred_region
    _
  $region73: #{structformer_block_forward.1} parent=0 // pred_fallthru
    _
  // Predicated region
  $region74: #{structformer_block_forward.1} parent=0 // pred_check
    _
  $region75: #{structformer_block_forward.1} parent=0 // pred_check_branch
    %64 = sbr.rel (0) target = $region77
  $region76: #{structformer_block_forward.1} parent=0 // pred_region
    _
  $region77: #{structformer_block_forward.1} parent=0 // pred_fallthru
    _
  // Predicated region
  $region78: #{structformer_block_forward.1} parent=0 // pred_check
    _
  $region79: #{structformer_block_forward.1} parent=0 // pred_check_branch
    %66 = sbr.rel (0) target = $region81
  $region80: #{structformer_block_forward.1} parent=0 // pred_region
    _
  $region81: #{structformer_block_forward.1} parent=0 // pred_fallthru
    _
  %v67 = vld [vmem:[%s0] sm:$0xff]
  %v68 = vld [vmem:[%s0 + $0x8] sm:$0xff]
  %v69 = vld [vmem:[%s0 + $0x10] sm:$0xff]
  %v70 = vld [vmem:[%s0 + $0x18] sm:$0xff]
  %v71 = vld [vmem:[%s0 + $0x20] sm:$0xff]
  %v72 = vld [vmem:[%s0 + $0x28] sm:$0xff]
  %v73 = vld [vmem:[%s0 + $0x30] sm:$0xff]
  %v74 = vld [vmem:[%s0 + $0x38] sm:$0xff]
  %v75 = vld [vmem:[%s0 + $0x40] sm:$0xff]
  %v76 = vld [vmem:[%s0 + $0x48] sm:$0xff]
  %v77 = vld [vmem:[%s0 + $0x50] sm:$0xff]
  %v78 = vld [vmem:[%s0 + $0x58] sm:$0xff]
  %v79 = vld [vmem:[%s0 + $0x60] sm:$0xff]
  %v80 = vld [vmem:[%s0 + $0x68] sm:$0xff]
  %v81 = vld [vmem:[%s0 + $0x70] sm:$0xff]
  %v82 = vld [vmem:[%s0 + $0x78] sm:$0xff]
  %v83 = vld [vmem:[%s4] sm:$0xf]
  %vm84 = vcmask 261120
  %v85 = vsel %vm84, %v67, 0.0
  %86 = vadd.xlane.f32.xlu0 %v85
  %v87 = vpop.xlane.xlu0 %86
  %v88 = vsel %vm84, %v68, 0.0
  %89 = vadd.xlane.f32.xlu0 %v88
  %v90 = vpop.xlane.xlu0 %89
  %v91 = vsel %vm84, %v69, 0.0
  %92 = vadd.xlane.f32.xlu0 %v91
  %v93 = vpop.xlane.xlu0 %92
  %v94 = vsel %vm84, %v70, 0.0
  %95 = vadd.xlane.f32.xlu0 %v94
  %v96 = vpop.xlane.xlu0 %95
  %v97 = vsel %vm84, %v71, 0.0
  %98 = vadd.xlane.f32.xlu0 %v97
  %v99 = vpop.xlane.xlu0 %98
  %v100 = vsel %vm84, %v72, 0.0
  %101 = vadd.xlane.f32.xlu0 %v100
  %v102 = vpop.xlane.xlu0 %101
  %v103 = vsel %vm84, %v73, 0.0
  %104 = vadd.xlane.f32.xlu0 %v103
  %v105 = vpop.xlane.xlu0 %104
  %v106 = vsel %vm84, %v74, 0.0
  %107 = vadd.xlane.f32.xlu0 %v106
  %v108 = vpop.xlane.xlu0 %107
  %v109 = vsel %vm84, %v75, 0.0
  %110 = vadd.xlane.f32.xlu0 %v109
  %v111 = vpop.xlane.xlu0 %110
  %v112 = vsel %vm84, %v76, 0.0
  %113 = vadd.xlane.f32.xlu0 %v112
  %v114 = vpop.xlane.xlu0 %113
  %v115 = vsel %vm84, %v77, 0.0
  %116 = vadd.xlane.f32.xlu0 %v115
  %v117 = vpop.xlane.xlu0 %116
  %v118 = vsel %vm84, %v78, 0.0
  %119 = vadd.xlane.f32.xlu0 %v118
  %v120 = vpop.xlane.xlu0 %119
  %v121 = vsel %vm84, %v79, 0.0
  %122 = vadd.xlane.f32.xlu0 %v121
  %v123 = vpop.xlane.xlu0 %122
  %v124 = vsel %vm84, %v80, 0.0
  %125 = vadd.xlane.f32.xlu0 %v124
  %v126 = vpop.xlane.xlu0 %125
  %v127 = vsel %vm84, %v81, 0.0
  %128 = vadd.xlane.f32.xlu0 %v127
  %v129 = vpop.xlane.xlu0 %128
  %v130 = vsel %vm84, %v82, 0.0
  %131 = vadd.xlane.f32.xlu0 %v130
  %v132 = vpop.xlane.xlu0 %131
  %v133 = vrcp.pop 32.0
  %v134 = vmul.f32 %v87, %v133
  %v135 = vmul.f32 %v90, %v133
  %v136 = vmul.f32 %v93, %v133
  %v137 = vmul.f32 %v96, %v133
  %v138 = vmul.f32 %v99, %v133
  %v139 = vmul.f32 %v102, %v133
  %v140 = vmul.f32 %v105, %v133
  %v141 = vmul.f32 %v108, %v133
  %v142 = vmul.f32 %v111, %v133
  %v143 = vmul.f32 %v114, %v133
  %v144 = vmul.f32 %v117, %v133
  %v145 = vmul.f32 %v120, %v133
  %v146 = vmul.f32 %v123, %v133
  %v147 = vmul.f32 %v126, %v133
  %v148 = vmul.f32 %v129, %v133
  %v149 = vmul.f32 %v132, %v133
  %v150 = vsub.f32 %v67, %v134
  %v151 = vsub.f32 %v68, %v135
  %v152 = vsub.f32 %v69, %v136
  %v153 = vsub.f32 %v70, %v137
  %v154 = vsub.f32 %v71, %v138
  %v155 = vsub.f32 %v72, %v139
  %v156 = vsub.f32 %v73, %v140
  %v157 = vsub.f32 %v74, %v141
  %v158 = vsub.f32 %v75, %v142
  %v159 = vsub.f32 %v76, %v143
  %v160 = vsub.f32 %v77, %v144
  %v161 = vsub.f32 %v78, %v145
  %v162 = vsub.f32 %v79, %v146
  %v163 = vsub.f32 %v80, %v147
  %v164 = vsub.f32 %v81, %v148
  %v165 = vsub.f32 %v82, %v149
  %v166 = vmul.f32 %v150, %v150
  %v167 = vmul.f32 %v151, %v151
  %v168 = vmul.f32 %v152, %v152
  %v169 = vmul.f32 %v153, %v153
  %v170 = vmul.f32 %v154, %v154
  %v171 = vmul.f32 %v155, %v155
  %v172 = vmul.f32 %v156, %v156
  %v173 = vmul.f32 %v157, %v157
  %v174 = vmul.f32 %v158, %v158
  %v175 = vmul.f32 %v159, %v159
  %v176 = vmul.f32 %v160, %v160
  %v177 = vmul.f32 %v161, %v161
  %v178 = vmul.f32 %v162, %v162
  %v179 = vmul.f32 %v163, %v163
  %v180 = vmul.f32 %v164, %v164
  %v181 = vmul.f32 %v165, %v165
  %v182 = vsel %vm84, %v166, 0.0
  %183 = vadd.xlane.f32.xlu0 %v182
  %v184 = vpop.xlane.xlu0 %183
  %v185 = vsel %vm84, %v167, 0.0
  %186 = vadd.xlane.f32.xlu0 %v185
  %v187 = vpop.xlane.xlu0 %186
  %v188 = vsel %vm84, %v168, 0.0
  %189 = vadd.xlane.f32.xlu0 %v188
  %v190 = vpop.xlane.xlu0 %189
  %v191 = vsel %vm84, %v169, 0.0
  %192 = vadd.xlane.f32.xlu0 %v191
  %v193 = vpop.xlane.xlu0 %192
  %v194 = vsel %vm84, %v170, 0.0
  %195 = vadd.xlane.f32.xlu0 %v194
  %v196 = vpop.xlane.xlu0 %195
  %v197 = vsel %vm84, %v171, 0.0
  %198 = vadd.xlane.f32.xlu0 %v197
  %v199 = vpop.xlane.xlu0 %198
  %v200 = vsel %vm84, %v172, 0.0
  %201 = vadd.xlane.f32.xlu0 %v200
  %v202 = vpop.xlane.xlu0 %201
  %v203 = vsel %vm84, %v173, 0.0
  %204 = vadd.xlane.f32.xlu0 %v203
  %v205 = vpop.xlane.xlu0 %204
  %v206 = vsel %vm84, %v174, 0.0
  %207 = vadd.xlane.f32.xlu0 %v206
  %v208 = vpop.xlane.xlu0 %207
  %v209 = vsel %vm84, %v175, 0.0
  %210 = vadd.xlane.f32.xlu0 %v209
  %v211 = vpop.xlane.xlu0 %210
  %v212 = vsel %vm84, %v176, 0.0
  %213 = vadd.xlane.f32.xlu0 %v212
  %v214 = vpop.xlane.xlu0 %213
  %v215 = vsel %vm84, %v177, 0.0
  %216 = vadd.xlane.f32.xlu0 %v215
  %v217 = vpop.xlane.xlu0 %216
  %v218 = vsel %vm84, %v178, 0.0
  %219 = vadd.xlane.f32.xlu0 %v218
  %v220 = vpop.xlane.xlu0 %219
  %v221 = vsel %vm84, %v179, 0.0
  %222 = vadd.xlane.f32.xlu0 %v221
  %v223 = vpop.xlane.xlu0 %222
  %v224 = vsel %vm84, %v180, 0.0
  %225 = vadd.xlane.f32.xlu0 %v224
  %v226 = vpop.xlane.xlu0 %225
  %v227 = vsel %vm84, %v181, 0.0
  %228 = vadd.xlane.f32.xlu0 %v227
  %v229 = vpop.xlane.xlu0 %228
  %v230 = vmul.f32 %v184, %v133
  %v231 = vmul.f32 %v187, %v133
  %v232 = vmul.f32 %v190, %v133
  %v233 = vmul.f32 %v193, %v133
  %v234 = vmul.f32 %v196, %v133
  %v235 = vmul.f32 %v199, %v133
  %v236 = vmul.f32 %v202, %v133
  %v237 = vmul.f32 %v205, %v133
  %v238 = vmul.f32 %v208, %v133
  %v239 = vmul.f32 %v211, %v133
  %v240 = vmul.f32 %v214, %v133
  %v241 = vmul.f32 %v217, %v133
  %v242 = vmul.f32 %v220, %v133
  %v243 = vmul.f32 %v223, %v133
  %v244 = vmul.f32 %v226, %v133
  %v245 = vmul.f32 %v229, %v133
  %v246 = vadd.f32 %v230, 1e-05
  %v247 = vadd.f32 %v231, 1e-05
  %v248 = vadd.f32 %v232, 1e-05
  %v249 = vadd.f32 %v233, 1e-05
  %v250 = vadd.f32 %v234, 1e-05
  %v251 = vadd.f32 %v235, 1e-05
  %v252 = vadd.f32 %v236, 1e-05
  %v253 = vadd.f32 %v237, 1e-05
  %v254 = vadd.f32 %v238, 1e-05
  %v255 = vadd.f32 %v239, 1e-05
  %v256 = vadd.f32 %v240, 1e-05
  %v257 = vadd.f32 %v241, 1e-05
  %v258 = vadd.f32 %v242, 1e-05
  %v259 = vadd.f32 %v243, 1e-05
  %v260 = vadd.f32 %v244, 1e-05
  %v261 = vadd.f32 %v245, 1e-05
  %v262 = vrsqrt.pop %v246
  %v263 = vrsqrt.pop %v247
  %v264 = vrsqrt.pop %v248
  %v265 = vrsqrt.pop %v249
  %v266 = vrsqrt.pop %v250
  %v267 = vrsqrt.pop %v251
  %v268 = vrsqrt.pop %v252
  %v269 = vrsqrt.pop %v253
  %v270 = vrsqrt.pop %v254
  %v271 = vrsqrt.pop %v255
  %v272 = vrsqrt.pop %v256
  %v273 = vrsqrt.pop %v257
  %v274 = vrsqrt.pop %v258
  %v275 = vrsqrt.pop %v259
  %v276 = vrsqrt.pop %v260
  %v277 = vrsqrt.pop %v261
  %v278 = vmul.f32 %v150, %v262
  %v279 = vmul.f32 %v151, %v263
  %v280 = vmul.f32 %v152, %v264
  %v281 = vmul.f32 %v153, %v265
  %v282 = vmul.f32 %v154, %v266
  %v283 = vmul.f32 %v155, %v267
  %v284 = vmul.f32 %v156, %v268
  %v285 = vmul.f32 %v157, %v269
  %v286 = vmul.f32 %v158, %v270
  %v287 = vmul.f32 %v159, %v271
  %v288 = vmul.f32 %v160, %v272
  %v289 = vmul.f32 %v161, %v273
  %v290 = vmul.f32 %v162, %v274
  %v291 = vmul.f32 %v163, %v275
  %v292 = vmul.f32 %v164, %v276
  %v293 = vmul.f32 %v165, %v277
  %v294 = vlaneseq
  %v295 = vshrl.u32 %v294, 7
  %v296 = vsub.s32 0, %v295
  %v297 = vrot.slane %v83, %v296
  %v298 = vmul.f32 %v278, %v297
  %v299 = vmul.f32 %v279, %v297
  %v300 = vmul.f32 %v280, %v297
  %v301 = vmul.f32 %v281, %v297
  %v302 = vmul.f32 %v282, %v297
  %v303 = vmul.f32 %v283, %v297
  %v304 = vmul.f32 %v284, %v297
  %v305 = vmul.f32 %v285, %v297
  %v306 = vmul.f32 %v286, %v297
  %v307 = vmul.f32 %v287, %v297
  %v308 = vmul.f32 %v288, %v297
  %v309 = vmul.f32 %v289, %v297
  %v310 = vmul.f32 %v290, %v297
  %v311 = vmul.f32 %v291, %v297
  %v312 = vmul.f32 %v292, %v297
  %v313 = vmul.f32 %v293, %v297
  %v314 = vlaneseq
  %v315 = vshrl.u32 %v314, 7
  %v316 = vsub.s32 1, %v315
  %v317 = vrot.slane %v83, %v316
  %v318 = vadd.f32 %v298, %v317
  %v319 = vadd.f32 %v299, %v317
  %v320 = vadd.f32 %v300, %v317
  %v321 = vadd.f32 %v301, %v317
  %v322 = vadd.f32 %v302, %v317
  %v323 = vadd.f32 %v303, %v317
  %v324 = vadd.f32 %v304, %v317
  %v325 = vadd.f32 %v305, %v317
  %v326 = vadd.f32 %v306, %v317
  %v327 = vadd.f32 %v307, %v317
  %v328 = vadd.f32 %v308, %v317
  %v329 = vadd.f32 %v309, %v317
  %v330 = vadd.f32 %v310, %v317
  %v331 = vadd.f32 %v311, %v317
  %v332 = vadd.f32 %v312, %v317
  %v333 = vadd.f32 %v313, %v317
  %v334 = vld [vmem:[%s3] sm:$0xff]
  %v335 = vld [vmem:[%s3 + $0x8] sm:$0xff]
  %v336 = vld [vmem:[%s3 + $0x10] sm:$0xff]
  %v337 = vld [vmem:[%s3 + $0x18] sm:$0xff]
  %v339 = vsel %vm84, %v318, 0
  %v342 = vsel %vm84, %v319, 0
  %v345 = vsel %vm84, %v320, 0
  %v348 = vsel %vm84, %v321, 0
  %v351 = vsel %vm84, %v322, 0
  %v354 = vsel %vm84, %v323, 0
  %v357 = vsel %vm84, %v324, 0
  %v360 = vsel %vm84, %v325, 0
  %v363 = vsel %vm84, %v326, 0
  %v366 = vsel %vm84, %v327, 0
  %v369 = vsel %vm84, %v328, 0
  %v372 = vsel %vm84, %v329, 0
  %v375 = vsel %vm84, %v330, 0
  %v378 = vsel %vm84, %v331, 0
  %v381 = vsel %vm84, %v332, 0
  %v384 = vsel %vm84, %v333, 0
  %386 = vmatprep.subr.mxu0 0.0
  %387 = vmatpush1.msra.mxu0 %v334
  %388 = vmatprep.subr.mxu0 0.0
  %389 = vmatpush1.msra.mxu0 %v335
  %390 = vmatprep.subr.mxu0 0.0
  %391 = vmatpush1.msra.mxu0 %v336
  %392 = vmatprep.subr.mxu0 0.0
  %393 = vmatpush1.msra.mxu0 %v337
  %394 = vmatprep.subr.mxu0 0.0
  %395 = vmatpush1.msra.mxu0 0.0
  %396 = vmatprep.subr.mxu0 0.0
  %397 = vmatpush1.msra.mxu0 0.0
  %398 = vmatprep.subr.mxu0 0.0
  %399 = vmatpush1.msra.mxu0 0.0
  %400 = vmatprep.subr.mxu0 0.0
  %401 = vmatpush1.msra.mxu0 0.0
  %402 = vmatprep.subr.mxu0 0.0
  %403 = vmatpush1.msra.mxu0 0.0
  %404 = vmatprep.subr.mxu0 0.0
  %405 = vmatpush1.msra.mxu0 0.0
  %406 = vmatprep.subr.mxu0 0.0
  %407 = vmatpush1.msra.mxu0 0.0
  %408 = vmatprep.subr.mxu0 0.0
  %409 = vmatpush1.msra.mxu0 0.0
  %410 = vmatprep.subr.mxu0 0.0
  %411 = vmatpush1.msra.mxu0 0.0
  %412 = vmatprep.subr.mxu0 0.0
  %413 = vmatpush1.msra.mxu0 0.0
  %414 = vmatprep.subr.mxu0 0.0
  %415 = vmatpush1.msra.mxu0 0.0
  %416 = vmatprep.subr.mxu0 0.0
  %417 = vmatpush1.msra.mxu0 0.0
  %418 = vmatprep.subr.mxu0 0.0
  %419 = vmatpush1.msra.mxu0 0.0
  %420 = vmatprep.subr.mxu0 0.0
  %421 = vmatpush1.msra.mxu0 0.0
  %422 = vmatprep.subr.mxu0 0.0
  %423 = vmatpush1.msra.mxu0 0.0
  %424 = vmatprep.subr.mxu0 0.0
  %425 = vmatpush1.msra.mxu0 0.0
  %426 = vmatprep.subr.mxu0 0.0
  %427 = vmatpush1.msra.mxu0 0.0
  %428 = vmatprep.subr.mxu0 0.0
  %429 = vmatpush1.msra.mxu0 0.0
  %430 = vmatprep.subr.mxu0 0.0
  %431 = vmatpush1.msra.mxu0 0.0
  %432 = vmatprep.subr.mxu0 0.0
  %433 = vmatpush1.msra.mxu0 0.0
  %434 = vmatprep.subr.mxu0 0.0
  %435 = vmatpush1.msra.mxu0 0.0
  %436 = vmatprep.subr.mxu0 0.0
  %437 = vmatpush1.msra.mxu0 0.0
  %438 = vmatprep.subr.mxu0 0.0
  %439 = vmatpush1.msra.mxu0 0.0
  %440 = vmatprep.subr.mxu0 0.0
  %441 = vmatpush1.msra.mxu0 0.0
  %442 = vmatprep.subr.mxu0 0.0
  %443 = vmatpush1.msra.mxu0 0.0
  %444 = vmatprep.subr.mxu0 0.0
  %445 = vmatpush1.msra.mxu0 0.0
  %446 = vmatprep.subr.mxu0 0.0
  %447 = vmatpush1.msra.mxu0 0.0
  %448 = vmatprep.subr.mxu0 0.0
  %449 = vmatpush1.msra.mxu0 0.0
  %450 = vmatprep.mubr.f32.mxu0 0.0
  %451 = vmatmul.mubr.f32.gmra.mrb[0].mxu0 %v339
  %v452 = vpop.f32.mrb[0].mxu0
  %v453 = vadd.f32 0.0, %v452
  %v454 = vpop.f32.mrb[0].mxu0
  %455 = vmatprep.mubr.f32.mxu0 0.0
  %456 = vmatmul.mubr.f32.gmra.mrb[0].mxu0 %v342
  %v457 = vpop.f32.mrb[0].mxu0
  %v458 = vadd.f32 0.0, %v457
  %v459 = vpop.f32.mrb[0].mxu0
  %460 = vmatprep.mubr.f32.mxu0 0.0
  %461 = vmatmul.mubr.f32.gmra.mrb[0].mxu0 %v345
  %v462 = vpop.f32.mrb[0].mxu0
  %v463 = vadd.f32 0.0, %v462
  %v464 = vpop.f32.mrb[0].mxu0
  %465 = vmatprep.mubr.f32.mxu0 0.0
  %466 = vmatmul.mubr.f32.gmra.mrb[0].mxu0 %v348
  %v467 = vpop.f32.mrb[0].mxu0
  %v468 = vadd.f32 0.0, %v467
  %v469 = vpop.f32.mrb[0].mxu0
  %470 = vmatprep.mubr.f32.mxu0 0.0
  %471 = vmatmul.mubr.f32.gmra.mrb[0].mxu0 %v351
  %v472 = vpop.f32.mrb[0].mxu0
  %v473 = vadd.f32 0.0, %v472
  %v474 = vpop.f32.mrb[0].mxu0
  %475 = vmatprep.mubr.f32.mxu0 0.0
  %476 = vmatmul.mubr.f32.gmra.mrb[0].mxu0 %v354
  %v477 = vpop.f32.mrb[0].mxu0
  %v478 = vadd.f32 0.0, %v477
  %v479 = vpop.f32.mrb[0].mxu0
  %480 = vmatprep.mubr.f32.mxu0 0.0
  %481 = vmatmul.mubr.f32.gmra.mrb[0].mxu0 %v357
  %v482 = vpop.f32.mrb[0].mxu0
  %v483 = vadd.f32 0.0, %v482
  %v484 = vpop.f32.mrb[0].mxu0
  %485 = vmatprep.mubr.f32.mxu0 0.0
  %486 = vmatmul.mubr.f32.gmra.mrb[0].mxu0 %v360
  %v487 = vpop.f32.mrb[0].mxu0
  %v488 = vadd.f32 0.0, %v487
  %v489 = vpop.f32.mrb[0].mxu0
  %490 = vmatprep.mubr.f32.mxu0 0.0
  %491 = vmatmul.mubr.f32.gmra.mrb[0].mxu0 %v363
  %v492 = vpop.f32.mrb[0].mxu0
  %v493 = vadd.f32 0.0, %v492
  %v494 = vpop.f32.mrb[0].mxu0
  %495 = vmatprep.mubr.f32.mxu0 0.0
  %496 = vmatmul.mubr.f32.gmra.mrb[0].mxu0 %v366
  %v497 = vpop.f32.mrb[0].mxu0
  %v498 = vadd.f32 0.0, %v497
  %v499 = vpop.f32.mrb[0].mxu0
  %500 = vmatprep.mubr.f32.mxu0 0.0
  %501 = vmatmul.mubr.f32.gmra.mrb[0].mxu0 %v369
  %v502 = vpop.f32.mrb[0].mxu0
  %v503 = vadd.f32 0.0, %v502
  %v504 = vpop.f32.mrb[0].mxu0
  %505 = vmatprep.mubr.f32.mxu0 0.0
  %506 = vmatmul.mubr.f32.gmra.mrb[0].mxu0 %v372
  %v507 = vpop.f32.mrb[0].mxu0
  %v508 = vadd.f32 0.0, %v507
  %v509 = vpop.f32.mrb[0].mxu0
  %510 = vmatprep.mubr.f32.mxu0 0.0
  %511 = vmatmul.mubr.f32.gmra.mrb[0].mxu0 %v375
  %v512 = vpop.f32.mrb[0].mxu0
  %v513 = vadd.f32 0.0, %v512
  %v514 = vpop.f32.mrb[0].mxu0
  %515 = vmatprep.mubr.f32.mxu0 0.0
  %516 = vmatmul.mubr.f32.gmra.mrb[0].mxu0 %v378
  %v517 = vpop.f32.mrb[0].mxu0
  %v518 = vadd.f32 0.0, %v517
  %v519 = vpop.f32.mrb[0].mxu0
  %520 = vmatprep.mubr.f32.mxu0 0.0
  %521 = vmatmul.mubr.f32.gmra.mrb[0].mxu0 %v381
  %v522 = vpop.f32.mrb[0].mxu0
  %v523 = vadd.f32 0.0, %v522
  %v524 = vpop.f32.mrb[0].mxu0
  %525 = vmatprep.mubr.f32.mxu0 0.0
  %526 = vmatmul.mubr.f32.gmra.mrb[0].mxu0 %v384
  %v527 = vpop.f32.mrb[0].mxu0
  %v528 = vadd.f32 0.0, %v527
  %v529 = vpop.f32.mrb[0].mxu0
  %530 = vdwg.mxu0
  %v531 = vld [vmem:[%s5] sm:$0x3]
  %v532 = vsel %vm84, %v453, 0.0
  %v533 = vsel %vm84, %v458, 0.0
  %v534 = vadd.f32 %v532, %v533
  %v535 = vsel %vm84, %v463, 0.0
  %v536 = vadd.f32 %v534, %v535
  %v537 = vsel %vm84, %v468, 0.0
  %v538 = vadd.f32 %v536, %v537
  %v539 = vsel %vm84, %v473, 0.0
  %v540 = vadd.f32 %v538, %v539
  %v541 = vsel %vm84, %v478, 0.0
  %v542 = vadd.f32 %v540, %v541
  %v543 = vsel %vm84, %v483, 0.0
  %v544 = vadd.f32 %v542, %v543
  %v545 = vsel %vm84, %v488, 0.0
  %v546 = vadd.f32 %v544, %v545
  %v547 = vsel %vm84, %v493, 0.0
  %v548 = vadd.f32 %v546, %v547
  %v549 = vsel %vm84, %v498, 0.0
  %v550 = vadd.f32 %v548, %v549
  %v551 = vsel %vm84, %v503, 0.0
  %v552 = vadd.f32 %v550, %v551
  %v553 = vsel %vm84, %v508, 0.0
  %v554 = vadd.f32 %v552, %v553
  %v555 = vsel %vm84, %v513, 0.0
  %v556 = vadd.f32 %v554, %v555
  %v557 = vsel %vm84, %v518, 0.0
  %v558 = vadd.f32 %v556, %v557
  %v559 = vsel %vm84, %v523, 0.0
  %v560 = vadd.f32 %v558, %v559
  %v561 = vsel %vm84, %v528, 0.0
  %v562 = vadd.f32 %v560, %v561
  %v563 = vrot.slane %v562, 4
  %v564 = vadd.f32 %v562, %v563
  %v565 = vrot.slane %v564, 2
  %v566 = vadd.f32 %v564, %v565
  %v567 = vrot.slane %v566, 1
  %v568 = vadd.f32 %v566, %v567
  %v569 = vrcp.pop 128.0
  %v570 = vmul.f32 %v568, %v569
  %v571 = vsub.f32 %v453, %v570
  %v572 = vsub.f32 %v458, %v570
  %v573 = vsub.f32 %v463, %v570
  %v574 = vsub.f32 %v468, %v570
  %v575 = vsub.f32 %v473, %v570
  %v576 = vsub.f32 %v478, %v570
  %v577 = vsub.f32 %v483, %v570
  %v578 = vsub.f32 %v488, %v570
  %v579 = vsub.f32 %v493, %v570
  %v580 = vsub.f32 %v498, %v570
  %v581 = vsub.f32 %v503, %v570
  %v582 = vsub.f32 %v508, %v570
  %v583 = vsub.f32 %v513, %v570
  %v584 = vsub.f32 %v518, %v570
  %v585 = vsub.f32 %v523, %v570
  %v586 = vsub.f32 %v528, %v570
  %v587 = vmul.f32 %v571, %v571
  %v588 = vmul.f32 %v572, %v572
  %v589 = vmul.f32 %v573, %v573
  %v590 = vmul.f32 %v574, %v574
  %v591 = vmul.f32 %v575, %v575
  %v592 = vmul.f32 %v576, %v576
  %v593 = vmul.f32 %v577, %v577
  %v594 = vmul.f32 %v578, %v578
  %v595 = vmul.f32 %v579, %v579
  %v596 = vmul.f32 %v580, %v580
  %v597 = vmul.f32 %v581, %v581
  %v598 = vmul.f32 %v582, %v582
  %v599 = vmul.f32 %v583, %v583
  %v600 = vmul.f32 %v584, %v584
  %v601 = vmul.f32 %v585, %v585
  %v602 = vmul.f32 %v586, %v586
  %v603 = vsel %vm84, %v587, 0.0
  %v604 = vsel %vm84, %v588, 0.0
  %v605 = vadd.f32 %v603, %v604
  %v606 = vsel %vm84, %v589, 0.0
  %v607 = vadd.f32 %v605, %v606
  %v608 = vsel %vm84, %v590, 0.0
  %v609 = vadd.f32 %v607, %v608
  %v610 = vsel %vm84, %v591, 0.0
  %v611 = vadd.f32 %v609, %v610
  %v612 = vsel %vm84, %v592, 0.0
  %v613 = vadd.f32 %v611, %v612
  %v614 = vsel %vm84, %v593, 0.0
  %v615 = vadd.f32 %v613, %v614
  %v616 = vsel %vm84, %v594, 0.0
  %v617 = vadd.f32 %v615, %v616
  %v618 = vsel %vm84, %v595, 0.0
  %v619 = vadd.f32 %v617, %v618
  %v620 = vsel %vm84, %v596, 0.0
  %v621 = vadd.f32 %v619, %v620
  %v622 = vsel %vm84, %v597, 0.0
  %v623 = vadd.f32 %v621, %v622
  %v624 = vsel %vm84, %v598, 0.0
  %v625 = vadd.f32 %v623, %v624
  %v626 = vsel %vm84, %v599, 0.0
  %v627 = vadd.f32 %v625, %v626
  %v628 = vsel %vm84, %v600, 0.0
  %v629 = vadd.f32 %v627, %v628
  %v630 = vsel %vm84, %v601, 0.0
  %v631 = vadd.f32 %v629, %v630
  %v632 = vsel %vm84, %v602, 0.0
  %v633 = vadd.f32 %v631, %v632
  %v634 = vrot.slane %v633, 4
  %v635 = vadd.f32 %v633, %v634
  %v636 = vrot.slane %v635, 2
  %v637 = vadd.f32 %v635, %v636
  %v638 = vrot.slane %v637, 1
  %v639 = vadd.f32 %v637, %v638
  %v640 = vmul.f32 %v639, %v569
  %v641 = vadd.f32 %v640, 1e-05
  %v642 = vrsqrt.pop %v641
  %v643 = vmul.f32 %v571, %v642
  %v644 = vmul.f32 %v572, %v642
  %v645 = vmul.f32 %v573, %v642
  %v646 = vmul.f32 %v574, %v642
  %v647 = vmul.f32 %v575, %v642
  %v648 = vmul.f32 %v576, %v642
  %v649 = vmul.f32 %v577, %v642
  %v650 = vmul.f32 %v578, %v642
  %v651 = vmul.f32 %v579, %v642
  %v652 = vmul.f32 %v580, %v642
  %v653 = vmul.f32 %v581, %v642
  %v654 = vmul.f32 %v582, %v642
  %v655 = vmul.f32 %v583, %v642
  %v656 = vmul.f32 %v584, %v642
  %v657 = vmul.f32 %v585, %v642
  %v658 = vmul.f32 %v586, %v642
  %v659 = vlaneseq
  %v660 = vshrl.u32 %v659, 7
  %v661 = vsub.s32 0, %v660
  %v662 = vrot.slane %v531, %v661
  %v663 = vmul.f32 %v643, %v662
  %v664 = vmul.f32 %v644, %v662
  %v665 = vmul.f32 %v645, %v662
  %v666 = vmul.f32 %v646, %v662
  %v667 = vmul.f32 %v647, %v662
  %v668 = vmul.f32 %v648, %v662
  %v669 = vmul.f32 %v649, %v662
  %v670 = vmul.f32 %v650, %v662
  %v671 = vmul.f32 %v651, %v662
  %v672 = vmul.f32 %v652, %v662
  %v673 = vmul.f32 %v653, %v662
  %v674 = vmul.f32 %v654, %v662
  %v675 = vmul.f32 %v655, %v662
  %v676 = vmul.f32 %v656, %v662
  %v677 = vmul.f32 %v657, %v662
  %v678 = vmul.f32 %v658, %v662
  %v679 = vlaneseq
  %v680 = vshrl.u32 %v679, 7
  %v681 = vsub.s32 1, %v680
  %v682 = vrot.slane %v531, %v681
  %v683 = vadd.f32 %v663, %v682
  %v684 = vadd.f32 %v664, %v682
  %v685 = vadd.f32 %v665, %v682
  %v686 = vadd.f32 %v666, %v682
  %v687 = vadd.f32 %v667, %v682
  %v688 = vadd.f32 %v668, %v682
  %v689 = vadd.f32 %v669, %v682
  %v690 = vadd.f32 %v670, %v682
  %v691 = vadd.f32 %v671, %v682
  %v692 = vadd.f32 %v672, %v682
  %v693 = vadd.f32 %v673, %v682
  %v694 = vadd.f32 %v674, %v682
  %v695 = vadd.f32 %v675, %v682
  %v696 = vadd.f32 %v676, %v682
  %v697 = vadd.f32 %v677, %v682
  %v698 = vadd.f32 %v678, %v682
  %v699 = vld [vmem:[%s6] sm:$0x3]
  %vm700 = vcmask 392512
  %v701 = vsel %vm700, %v453, 0.0
  %v702 = vsel %vm700, %v458, 0.0
  %v703 = vadd.f32 %v701, %v702
  %v704 = vsel %vm700, %v463, 0.0
  %v705 = vadd.f32 %v703, %v704
  %v706 = vsel %vm700, %v468, 0.0
  %v707 = vadd.f32 %v705, %v706
  %v708 = vsel %vm700, %v473, 0.0
  %v709 = vadd.f32 %v707, %v708
  %v710 = vsel %vm700, %v478, 0.0
  %v711 = vadd.f32 %v709, %v710
  %v712 = vsel %vm700, %v483, 0.0
  %v713 = vadd.f32 %v711, %v712
  %v714 = vsel %vm700, %v488, 0.0
  %v715 = vadd.f32 %v713, %v714
  %v716 = vsel %vm700, %v493, 0.0
  %v717 = vadd.f32 %v715, %v716
  %v718 = vsel %vm700, %v498, 0.0
  %v719 = vadd.f32 %v717, %v718
  %v720 = vsel %vm700, %v503, 0.0
  %v721 = vadd.f32 %v719, %v720
  %v722 = vsel %vm700, %v508, 0.0
  %v723 = vadd.f32 %v721, %v722
  %v724 = vsel %vm700, %v513, 0.0
  %v725 = vadd.f32 %v723, %v724
  %v726 = vsel %vm700, %v518, 0.0
  %v727 = vadd.f32 %v725, %v726
  %v728 = vsel %vm700, %v523, 0.0
  %v729 = vadd.f32 %v727, %v728
  %v730 = vsel %vm700, %v528, 0.0
  %v731 = vadd.f32 %v729, %v730
  %v732 = vrot.slane %v731, 4
  %v733 = vadd.f32 %v731, %v732
  %v734 = vrot.slane %v733, 2
  %v735 = vadd.f32 %v733, %v734
  %v736 = vrot.slane %v735, 1
  %v737 = vadd.f32 %v735, %v736
  %v738 = vmul.f32 %v737, %v569
  %v739 = vsub.f32 %v453, %v738
  %v740 = vsub.f32 %v458, %v738
  %v741 = vsub.f32 %v463, %v738
  %v742 = vsub.f32 %v468, %v738
  %v743 = vsub.f32 %v473, %v738
  %v744 = vsub.f32 %v478, %v738
  %v745 = vsub.f32 %v483, %v738
  %v746 = vsub.f32 %v488, %v738
  %v747 = vsub.f32 %v493, %v738
  %v748 = vsub.f32 %v498, %v738
  %v749 = vsub.f32 %v503, %v738
  %v750 = vsub.f32 %v508, %v738
  %v751 = vsub.f32 %v513, %v738
  %v752 = vsub.f32 %v518, %v738
  %v753 = vsub.f32 %v523, %v738
  %v754 = vsub.f32 %v528, %v738
  %v755 = vmul.f32 %v739, %v739
  %v756 = vmul.f32 %v740, %v740
  %v757 = vmul.f32 %v741, %v741
  %v758 = vmul.f32 %v742, %v742
  %v759 = vmul.f32 %v743, %v743
  %v760 = vmul.f32 %v744, %v744
  %v761 = vmul.f32 %v745, %v745
  %v762 = vmul.f32 %v746, %v746
  %v763 = vmul.f32 %v747, %v747
  %v764 = vmul.f32 %v748, %v748
  %v765 = vmul.f32 %v749, %v749
  %v766 = vmul.f32 %v750, %v750
  %v767 = vmul.f32 %v751, %v751
  %v768 = vmul.f32 %v752, %v752
  %v769 = vmul.f32 %v753, %v753
  %v770 = vmul.f32 %v754, %v754
  %v771 = vsel %vm700, %v755, 0.0
  %v772 = vsel %vm700, %v756, 0.0
  %v773 = vadd.f32 %v771, %v772
  %v774 = vsel %vm700, %v757, 0.0
  %v775 = vadd.f32 %v773, %v774
  %v776 = vsel %vm700, %v758, 0.0
  %v777 = vadd.f32 %v775, %v776
  %v778 = vsel %vm700, %v759, 0.0
  %v779 = vadd.f32 %v777, %v778
  %v780 = vsel %vm700, %v760, 0.0
  %v781 = vadd.f32 %v779, %v780
  %v782 = vsel %vm700, %v761, 0.0
  %v783 = vadd.f32 %v781, %v782
  %v784 = vsel %vm700, %v762, 0.0
  %v785 = vadd.f32 %v783, %v784
  %v786 = vsel %vm700, %v763, 0.0
  %v787 = vadd.f32 %v785, %v786
  %v788 = vsel %vm700, %v764, 0.0
  %v789 = vadd.f32 %v787, %v788
  %v790 = vsel %vm700, %v765, 0.0
  %v791 = vadd.f32 %v789, %v790
  %v792 = vsel %vm700, %v766, 0.0
  %v793 = vadd.f32 %v791, %v792
  %v794 = vsel %vm700, %v767, 0.0
  %v795 = vadd.f32 %v793, %v794
  %v796 = vsel %vm700, %v768, 0.0
  %v797 = vadd.f32 %v795, %v796
  %v798 = vsel %vm700, %v769, 0.0
  %v799 = vadd.f32 %v797, %v798
  %v800 = vsel %vm700, %v770, 0.0
  %v801 = vadd.f32 %v799, %v800
  %v802 = vrot.slane %v801, 4
  %v803 = vadd.f32 %v801, %v802
  %v804 = vrot.slane %v803, 2
  %v805 = vadd.f32 %v803, %v804
  %v806 = vrot.slane %v805, 1
  %v807 = vadd.f32 %v805, %v806
  %v808 = vmul.f32 %v807, %v569
  %v809 = vadd.f32 %v808, 1e-05
  %v810 = vrsqrt.pop %v809
  %v811 = vmul.f32 %v739, %v810
  %v812 = vmul.f32 %v740, %v810
  %v813 = vmul.f32 %v741, %v810
  %v814 = vmul.f32 %v742, %v810
  %v815 = vmul.f32 %v743, %v810
  %v816 = vmul.f32 %v744, %v810
  %v817 = vmul.f32 %v745, %v810
  %v818 = vmul.f32 %v746, %v810
  %v819 = vmul.f32 %v747, %v810
  %v820 = vmul.f32 %v748, %v810
  %v821 = vmul.f32 %v749, %v810
  %v822 = vmul.f32 %v750, %v810
  %v823 = vmul.f32 %v751, %v810
  %v824 = vmul.f32 %v752, %v810
  %v825 = vmul.f32 %v753, %v810
  %v826 = vmul.f32 %v754, %v810
  %v827 = vlaneseq
  %v828 = vshrl.u32 %v827, 7
  %v829 = vsub.s32 0, %v828
  %v830 = vrot.slane %v699, %v829
  %832 = vrot.lane.b32.xlu0 %v830, 40
  %v833 = vpop.permute.xlu0 %832
  %v835 = vmul.f32 %v811, %v833
  %v836 = vmul.f32 %v812, %v833
  %v837 = vmul.f32 %v813, %v833
  %v838 = vmul.f32 %v814, %v833
  %v839 = vmul.f32 %v815, %v833
  %v840 = vmul.f32 %v816, %v833
  %v841 = vmul.f32 %v817, %v833
  %v842 = vmul.f32 %v818, %v833
  %v843 = vmul.f32 %v819, %v833
  %v844 = vmul.f32 %v820, %v833
  %v845 = vmul.f32 %v821, %v833
  %v846 = vmul.f32 %v822, %v833
  %v847 = vmul.f32 %v823, %v833
  %v848 = vmul.f32 %v824, %v833
  %v849 = vmul.f32 %v825, %v833
  %v850 = vmul.f32 %v826, %v833
  %v851 = vlaneseq
  %v852 = vshrl.u32 %v851, 7
  %v853 = vsub.s32 1, %v852
  %v854 = vrot.slane %v699, %v853
  %856 = vrot.lane.b32.xlu0 %v854, 40
  %v857 = vpop.permute.xlu0 %856
  %v859 = vadd.f32 %v835, %v857
  %v860 = vadd.f32 %v836, %v857
  %v861 = vadd.f32 %v837, %v857
  %v862 = vadd.f32 %v838, %v857
  %v863 = vadd.f32 %v839, %v857
  %v864 = vadd.f32 %v840, %v857
  %v865 = vadd.f32 %v841, %v857
  %v866 = vadd.f32 %v842, %v857
  %v867 = vadd.f32 %v843, %v857
  %v868 = vadd.f32 %v844, %v857
  %v869 = vadd.f32 %v845, %v857
  %v870 = vadd.f32 %v846, %v857
  %v871 = vadd.f32 %v847, %v857
  %v872 = vadd.f32 %v848, %v857
  %v873 = vadd.f32 %v849, %v857
  %v874 = vadd.f32 %v850, %v857
  %v875 = vld [vmem:[%s7] sm:$0x7]
  %v876 = vld [vmem:[%s1] sm:$0xff]
  %v877 = vld [vmem:[%s1 + $0x8] sm:$0xff]
  %v878 = vld [vmem:[%s1 + $0x10] sm:$0xff]
  %v879 = vld [vmem:[%s1 + $0x18] sm:$0xff]
  %v880 = vld [vmem:[%s1 + $0x20] sm:$0xff]
  %v881 = vld [vmem:[%s1 + $0x28] sm:$0xff]
  %v882 = vld [vmem:[%s1 + $0x30] sm:$0xff]
  %v883 = vld [vmem:[%s1 + $0x38] sm:$0xff]
  %v884 = vld [vmem:[%s1 + $0x40] sm:$0xff]
  %v885 = vld [vmem:[%s1 + $0x48] sm:$0xff]
  %v886 = vld [vmem:[%s1 + $0x50] sm:$0xff]
  %v887 = vld [vmem:[%s1 + $0x58] sm:$0xff]
  %v888 = vld [vmem:[%s1 + $0x60] sm:$0xff]
  %v889 = vld [vmem:[%s1 + $0x68] sm:$0xff]
  %v890 = vld [vmem:[%s1 + $0x70] sm:$0xff]
  %v891 = vld [vmem:[%s1 + $0x78] sm:$0xff]
  %893 = vset.pattern.permute.xlu0 0
  %894 = vperm.xlu0 %893, %v876
  %v895 = vpop.permute.xlu0 %894
  %898 = vset.pattern.permute.xlu0 0
  %899 = vperm.xlu0 %898, %v877
  %v900 = vpop.permute.xlu0 %899
  %903 = vset.pattern.permute.xlu0 0
  %904 = vperm.xlu0 %903, %v878
  %v905 = vpop.permute.xlu0 %904
  %908 = vset.pattern.permute.xlu0 0
  %909 = vperm.xlu0 %908, %v879
  %v910 = vpop.permute.xlu0 %909
  %913 = vset.pattern.permute.xlu0 0
  %914 = vperm.xlu0 %913, %v880
  %v915 = vpop.permute.xlu0 %914
  %918 = vset.pattern.permute.xlu0 0
  %919 = vperm.xlu0 %918, %v881
  %v920 = vpop.permute.xlu0 %919
  %923 = vset.pattern.permute.xlu0 0
  %924 = vperm.xlu0 %923, %v882
  %v925 = vpop.permute.xlu0 %924
  %928 = vset.pattern.permute.xlu0 0
  %929 = vperm.xlu0 %928, %v883
  %v930 = vpop.permute.xlu0 %929
  %933 = vset.pattern.permute.xlu0 0
  %934 = vperm.xlu0 %933, %v884
  %v935 = vpop.permute.xlu0 %934
  %938 = vset.pattern.permute.xlu0 0
  %939 = vperm.xlu0 %938, %v885
  %v940 = vpop.permute.xlu0 %939
  %943 = vset.pattern.permute.xlu0 0
  %944 = vperm.xlu0 %943, %v886
  %v945 = vpop.permute.xlu0 %944
  %948 = vset.pattern.permute.xlu0 0
  %949 = vperm.xlu0 %948, %v887
  %v950 = vpop.permute.xlu0 %949
  %953 = vset.pattern.permute.xlu0 0
  %954 = vperm.xlu0 %953, %v888
  %v955 = vpop.permute.xlu0 %954
  %958 = vset.pattern.permute.xlu0 0
  %959 = vperm.xlu0 %958, %v889
  %v960 = vpop.permute.xlu0 %959
  %963 = vset.pattern.permute.xlu0 0
  %964 = vperm.xlu0 %963, %v890
  %v965 = vpop.permute.xlu0 %964
  %968 = vset.pattern.permute.xlu0 0
  %969 = vperm.xlu0 %968, %v891
  %v970 = vpop.permute.xlu0 %969
  %v972 = vlaneseq
  %v973 = vshrl.u32 %v972, 7
  %v974 = vsub.s32 0, %v973
  %v975 = vrot.slane %v875, %v974
  %v976 = vmul.f32 %v895, %v975
  %v977 = vmul.f32 %v900, %v975
  %v978 = vmul.f32 %v905, %v975
  %v979 = vmul.f32 %v910, %v975
  %v980 = vmul.f32 %v915, %v975
  %v981 = vmul.f32 %v920, %v975
  %v982 = vmul.f32 %v925, %v975
  %v983 = vmul.f32 %v930, %v975
  %v984 = vmul.f32 %v935, %v975
  %v985 = vmul.f32 %v940, %v975
  %v986 = vmul.f32 %v945, %v975
  %v987 = vmul.f32 %v950, %v975
  %v988 = vmul.f32 %v955, %v975
  %v989 = vmul.f32 %v960, %v975
  %v990 = vmul.f32 %v965, %v975
  %v991 = vmul.f32 %v970, %v975
  %992 = vset.pattern.permute.xlu0 1
  %993 = vperm.xlu0 %992, %v876
  %v994 = vpop.permute.xlu0 %993
  %996 = vset.pattern.permute.xlu0 1
  %997 = vperm.xlu0 %996, %v877
  %v998 = vpop.permute.xlu0 %997
  %1000 = vset.pattern.permute.xlu0 1
  %1001 = vperm.xlu0 %1000, %v878
  %v1002 = vpop.permute.xlu0 %1001
  %1004 = vset.pattern.permute.xlu0 1
  %1005 = vperm.xlu0 %1004, %v879
  %v1006 = vpop.permute.xlu0 %1005
  %1008 = vset.pattern.permute.xlu0 1
  %1009 = vperm.xlu0 %1008, %v880
  %v1010 = vpop.permute.xlu0 %1009
  %1012 = vset.pattern.permute.xlu0 1
  %1013 = vperm.xlu0 %1012, %v881
  %v1014 = vpop.permute.xlu0 %1013
  %1016 = vset.pattern.permute.xlu0 1
  %1017 = vperm.xlu0 %1016, %v882
  %v1018 = vpop.permute.xlu0 %1017
  %1020 = vset.pattern.permute.xlu0 1
  %1021 = vperm.xlu0 %1020, %v883
  %v1022 = vpop.permute.xlu0 %1021
  %1024 = vset.pattern.permute.xlu0 1
  %1025 = vperm.xlu0 %1024, %v884
  %v1026 = vpop.permute.xlu0 %1025
  %1028 = vset.pattern.permute.xlu0 1
  %1029 = vperm.xlu0 %1028, %v885
  %v1030 = vpop.permute.xlu0 %1029
  %1032 = vset.pattern.permute.xlu0 1
  %1033 = vperm.xlu0 %1032, %v886
  %v1034 = vpop.permute.xlu0 %1033
  %1036 = vset.pattern.permute.xlu0 1
  %1037 = vperm.xlu0 %1036, %v887
  %v1038 = vpop.permute.xlu0 %1037
  %1040 = vset.pattern.permute.xlu0 1
  %1041 = vperm.xlu0 %1040, %v888
  %v1042 = vpop.permute.xlu0 %1041
  %1044 = vset.pattern.permute.xlu0 1
  %1045 = vperm.xlu0 %1044, %v889
  %v1046 = vpop.permute.xlu0 %1045
  %1048 = vset.pattern.permute.xlu0 1
  %1049 = vperm.xlu0 %1048, %v890
  %v1050 = vpop.permute.xlu0 %1049
  %1052 = vset.pattern.permute.xlu0 1
  %1053 = vperm.xlu0 %1052, %v891
  %v1054 = vpop.permute.xlu0 %1053
  %v1056 = vlaneseq
  %v1057 = vshrl.u32 %v1056, 7
  %v1058 = vsub.s32 1, %v1057
  %v1059 = vrot.slane %v875, %v1058
  %v1060 = vmul.f32 %v994, %v1059
  %v1061 = vmul.f32 %v998, %v1059
  %v1062 = vmul.f32 %v1002, %v1059
  %v1063 = vmul.f32 %v1006, %v1059
  %v1064 = vmul.f32 %v1010, %v1059
  %v1065 = vmul.f32 %v1014, %v1059
  %v1066 = vmul.f32 %v1018, %v1059
  %v1067 = vmul.f32 %v1022, %v1059
  %v1068 = vmul.f32 %v1026, %v1059
  %v1069 = vmul.f32 %v1030, %v1059
  %v1070 = vmul.f32 %v1034, %v1059
  %v1071 = vmul.f32 %v1038, %v1059
  %v1072 = vmul.f32 %v1042, %v1059
  %v1073 = vmul.f32 %v1046, %v1059
  %v1074 = vmul.f32 %v1050, %v1059
  %v1075 = vmul.f32 %v1054, %v1059
  %v1076 = vadd.f32 %v976, %v1060
  %v1077 = vadd.f32 %v977, %v1061
  %v1078 = vadd.f32 %v978, %v1062
  %v1079 = vadd.f32 %v979, %v1063
  %v1080 = vadd.f32 %v980, %v1064
  %v1081 = vadd.f32 %v981, %v1065
  %v1082 = vadd.f32 %v982, %v1066
  %v1083 = vadd.f32 %v983, %v1067
  %v1084 = vadd.f32 %v984, %v1068
  %v1085 = vadd.f32 %v985, %v1069
  %v1086 = vadd.f32 %v986, %v1070
  %v1087 = vadd.f32 %v987, %v1071
  %v1088 = vadd.f32 %v988, %v1072
  %v1089 = vadd.f32 %v989, %v1073
  %v1090 = vadd.f32 %v990, %v1074
  %v1091 = vadd.f32 %v991, %v1075
  %v1092 = vlaneseq
  %v1093 = vshrl.u32 %v1092, 7
  %v1094 = vsub.s32 2, %v1093
  %v1095 = vrot.slane %v875, %v1094
  %v1096 = vadd.f32 %v1076, %v1095
  %v1097 = vadd.f32 %v1077, %v1095
  %v1098 = vadd.f32 %v1078, %v1095
  %v1099 = vadd.f32 %v1079, %v1095
  %v1100 = vadd.f32 %v1080, %v1095
  %v1101 = vadd.f32 %v1081, %v1095
  %v1102 = vadd.f32 %v1082, %v1095
  %v1103 = vadd.f32 %v1083, %v1095
  %v1104 = vadd.f32 %v1084, %v1095
  %v1105 = vadd.f32 %v1085, %v1095
  %v1106 = vadd.f32 %v1086, %v1095
  %v1107 = vadd.f32 %v1087, %v1095
  %v1108 = vadd.f32 %v1088, %v1095
  %v1109 = vadd.f32 %v1089, %v1095
  %v1110 = vadd.f32 %v1090, %v1095
  %v1111 = vadd.f32 %v1091, %v1095
  %v1112 = vld [vmem:[%s2] sm:$0xff]
  %v1113 = vld [vmem:[%s2 + $0x8] sm:$0xff]
  %v1114 = vld [vmem:[%s2 + $0x10] sm:$0xff]
  %v1115 = vld [vmem:[%s2 + $0x18] sm:$0xff]
  %v1116 = vld [vmem:[%s2 + $0x20] sm:$0xff]
  %v1117 = vld [vmem:[%s2 + $0x28] sm:$0xff]
  %v1118 = vld [vmem:[%s2 + $0x30] sm:$0xff]
  %v1119 = vld [vmem:[%s2 + $0x38] sm:$0xff]
  %v1120 = vld [vmem:[%s2 + $0x40] sm:$0xff]
  %v1121 = vld [vmem:[%s2 + $0x48] sm:$0xff]
  %v1122 = vld [vmem:[%s2 + $0x50] sm:$0xff]
  %v1123 = vld [vmem:[%s2 + $0x58] sm:$0xff]
  %v1124 = vld [vmem:[%s2 + $0x60] sm:$0xff]
  %v1125 = vld [vmem:[%s2 + $0x68] sm:$0xff]
  %v1126 = vld [vmem:[%s2 + $0x70] sm:$0xff]
  %v1127 = vld [vmem:[%s2 + $0x78] sm:$0xff]
  %v1128 = vld [vmem:[%s2 + $0x80] sm:$0xff]
  %v1129 = vld [vmem:[%s2 + $0x88] sm:$0xff]
  %v1130 = vld [vmem:[%s2 + $0x90] sm:$0xff]
  %v1131 = vld [vmem:[%s2 + $0x98] sm:$0xff]
  %v1132 = vld [vmem:[%s2 + $0xa0] sm:$0xff]
  %v1133 = vld [vmem:[%s2 + $0xa8] sm:$0xff]
  %v1134 = vld [vmem:[%s2 + $0xb0] sm:$0xff]
  %v1135 = vld [vmem:[%s2 + $0xb8] sm:$0xff]
  %v1136 = vld [vmem:[%s2 + $0xc0] sm:$0xff]
  %v1137 = vld [vmem:[%s2 + $0xc8] sm:$0xff]
  %v1138 = vld [vmem:[%s2 + $0xd0] sm:$0xff]
  %v1139 = vld [vmem:[%s2 + $0xd8] sm:$0xff]
  %v1140 = vld [vmem:[%s2 + $0xe0] sm:$0xff]
  %v1141 = vld [vmem:[%s2 + $0xe8] sm:$0xff]
  %v1142 = vld [vmem:[%s2 + $0xf0] sm:$0xff]
  %v1143 = vld [vmem:[%s2 + $0xf8] sm:$0xff]
  %v1144 = vld [vmem:[%s2 + $0x100] sm:$0xff]
  %v1145 = vld [vmem:[%s2 + $0x108] sm:$0xff]
  %v1146 = vld [vmem:[%s2 + $0x110] sm:$0xff]
  %v1147 = vld [vmem:[%s2 + $0x118] sm:$0xff]
  %v1148 = vld [vmem:[%s2 + $0x120] sm:$0xff]
  %v1149 = vld [vmem:[%s2 + $0x128] sm:$0xff]
  %v1150 = vld [vmem:[%s2 + $0x130] sm:$0xff]
  %v1151 = vld [vmem:[%s2 + $0x138] sm:$0xff]
  %v1152 = vld [vmem:[%s2 + $0x140] sm:$0xff]
  %v1153 = vld [vmem:[%s2 + $0x148] sm:$0xff]
  %v1154 = vld [vmem:[%s2 + $0x150] sm:$0xff]
  %v1155 = vld [vmem:[%s2 + $0x158] sm:$0xff]
  %v1156 = vld [vmem:[%s2 + $0x160] sm:$0xff]
  %v1157 = vld [vmem:[%s2 + $0x168] sm:$0xff]
  %v1158 = vld [vmem:[%s2 + $0x170] sm:$0xff]
  %v1159 = vld [vmem:[%s2 + $0x178] sm:$0xff]
  %v1160 = vld [vmem:[%s2 + $0x180] sm:$0xff]
  %v1161 = vld [vmem:[%s2 + $0x188] sm:$0xff]
  %v1162 = vld [vmem:[%s2 + $0x190] sm:$0xff]
  %v1163 = vld [vmem:[%s2 + $0x198] sm:$0xff]
  %v1164 = vld [vmem:[%s2 + $0x1a0] sm:$0xff]
  %v1165 = vld [vmem:[%s2 + $0x1a8] sm:$0xff]
  %v1166 = vld [vmem:[%s2 + $0x1b0] sm:$0xff]
  %v1167 = vld [vmem:[%s2 + $0x1b8] sm:$0xff]
  %v1168 = vld [vmem:[%s2 + $0x1c0] sm:$0xff]
  %v1169 = vld [vmem:[%s2 + $0x1c8] sm:$0xff]
  %v1170 = vld [vmem:[%s2 + $0x1d0] sm:$0xff]
  %v1171 = vld [vmem:[%s2 + $0x1d8] sm:$0xff]
  %v1172 = vld [vmem:[%s2 + $0x1e0] sm:$0xff]
  %v1173 = vld [vmem:[%s2 + $0x1e8] sm:$0xff]
  %v1174 = vld [vmem:[%s2 + $0x1f0] sm:$0xff]
  %v1175 = vld [vmem:[%s2 + $0x1f8] sm:$0xff]
  %v1176 = vld [vmem:[%s8] sm:$0xff]
  %v1177 = vld [vmem:[%s8 + $0x8] sm:$0xff]
  %v1178 = vld [vmem:[%s8 + $0x10] sm:$0xff]
  %v1179 = vld [vmem:[%s8 + $0x18] sm:$0xff]
  %v1180 = vld [vmem:[%s8 + $0x20] sm:$0xff]
  %v1181 = vld [vmem:[%s8 + $0x28] sm:$0xff]
  %v1182 = vld [vmem:[%s8 + $0x30] sm:$0xff]
  %v1183 = vld [vmem:[%s8 + $0x38] sm:$0xff]
  %v1184 = vld [vmem:[%s9] sm:$0xff]
  %v1185 = vld [vmem:[%s9 + $0x8] sm:$0xff]
  %v1186 = vld [vmem:[%s9 + $0x10] sm:$0xff]
  %v1187 = vld [vmem:[%s9 + $0x18] sm:$0xff]
  %v1188 = vld [vmem:[%s9 + $0x20] sm:$0xff]
  %v1189 = vld [vmem:[%s9 + $0x28] sm:$0xff]
  %v1190 = vld [vmem:[%s9 + $0x30] sm:$0xff]
  %v1191 = vld [vmem:[%s9 + $0x38] sm:$0xff]
  %v1192 = vld [vmem:[%s9 + $0x40] sm:$0xff]
  %v1193 = vld [vmem:[%s9 + $0x48] sm:$0xff]
  %v1194 = vld [vmem:[%s9 + $0x50] sm:$0xff]
  %v1195 = vld [vmem:[%s9 + $0x58] sm:$0xff]
  %v1196 = vld [vmem:[%s9 + $0x60] sm:$0xff]
  %v1197 = vld [vmem:[%s9 + $0x68] sm:$0xff]
  %v1198 = vld [vmem:[%s9 + $0x70] sm:$0xff]
  %v1199 = vld [vmem:[%s9 + $0x78] sm:$0xff]
  %v1200 = vld [vmem:[%s9 + $0x80] sm:$0xff]
  %v1201 = vld [vmem:[%s9 + $0x88] sm:$0xff]
  %v1202 = vld [vmem:[%s9 + $0x90] sm:$0xff]
  %v1203 = vld [vmem:[%s9 + $0x98] sm:$0xff]
  %v1204 = vld [vmem:[%s9 + $0xa0] sm:$0xff]
  %v1205 = vld [vmem:[%s9 + $0xa8] sm:$0xff]
  %v1206 = vld [vmem:[%s9 + $0xb0] sm:$0xff]
  %v1207 = vld [vmem:[%s9 + $0xb8] sm:$0xff]
  %v1208 = vld [vmem:[%s9 + $0xc0] sm:$0xff]
  %v1209 = vld [vmem:[%s9 + $0xc8] sm:$0xff]
  %v1210 = vld [vmem:[%s9 + $0xd0] sm:$0xff]
  %v1211 = vld [vmem:[%s9 + $0xd8] sm:$0xff]
  %v1212 = vld [vmem:[%s9 + $0xe0] sm:$0xff]
  %v1213 = vld [vmem:[%s9 + $0xe8] sm:$0xff]
  %v1214 = vld [vmem:[%s9 + $0xf0] sm:$0xff]
  %v1215 = vld [vmem:[%s9 + $0xf8] sm:$0xff]
  %v1216 = vld [vmem:[%s10] sm:$0xff]
  %v1217 = vld [vmem:[%s10 + $0x8] sm:$0xff]
  %v1218 = vld [vmem:[%s10 + $0x10] sm:$0xff]
  %v1219 = vld [vmem:[%s10 + $0x18] sm:$0xff]
  %v1220 = vld [vmem:[%s11] sm:$0xff]
  %v1221 = vld [vmem:[%s11 + $0x8] sm:$0xff]
  %v1222 = vld [vmem:[%s11 + $0x10] sm:$0xff]
  %v1223 = vld [vmem:[%s11 + $0x18] sm:$0xff]
  %v1224 = vld [vmem:[%s12] sm:$0xff]
  %v1225 = vld [vmem:[%s12 + $0x8] sm:$0xff]
  %v1226 = vld [vmem:[%s12 + $0x10] sm:$0xff]
  %v1227 = vld [vmem:[%s12 + $0x18] sm:$0xff]
  %v1228 = vld [vmem:[%s13] sm:$0x1]
  %v1229 = vld [vmem:[%s14] sm:$0xff]
  %v1230 = vld [vmem:[%s14 + $0x8] sm:$0xff]
  %v1231 = vld [vmem:[%s14 + $0x10] sm:$0xff]
  %v1232 = vld [vmem:[%s14 + $0x18] sm:$0xff]
  %v1233 = vld [vmem:[%s15] sm:$0x1]
  %v1234 = vld [vmem:[%s16] sm:$0x1]
  %v1235 = vld [vmem:[%s16 + $0x1] sm:$0x1]
  %v1236 = vld [vmem:[%s16 + $0x2] sm:$0x1]
  %v1237 = vld [vmem:[%s16 + $0x3] sm:$0x1]
  %v1238 = vld [vmem:[%s16 + $0x4] sm:$0x1]
  %v1239 = vld [vmem:[%s16 + $0x5] sm:$0x1]
  %v1240 = vld [vmem:[%s16 + $0x6] sm:$0x1]
  %v1241 = vld [vmem:[%s16 + $0x7] sm:$0x1]
  %v1242 = vld [vmem:[%s16 + $0x8] sm:$0x1]
  %v1243 = vld [vmem:[%s17] sm:$0x1]
  %v1244 = vld [vmem:[%s18] sm:$0xff]
  %v1245 = vld [vmem:[%s18 + $0x8] sm:$0xff]
  %v1246 = vld [vmem:[%s18 + $0x10] sm:$0xff]
  %v1247 = vld [vmem:[%s18 + $0x18] sm:$0xff]
  %v1248 = vld [vmem:[%s18 + $0x20] sm:$0xff]
  %v1249 = vld [vmem:[%s18 + $0x28] sm:$0xff]
  %v1250 = vld [vmem:[%s18 + $0x30] sm:$0xff]
  %v1251 = vld [vmem:[%s18 + $0x38] sm:$0xff]
  %v1252 = vld [vmem:[%s18 + $0x40] sm:$0xff]
  %v1253 = vld [vmem:[%s18 + $0x48] sm:$0xff]
  %v1254 = vld [vmem:[%s18 + $0x50] sm:$0xff]
  %v1255 = vld [vmem:[%s18 + $0x58] sm:$0xff]
  %v1256 = vld [vmem:[%s18 + $0x60] sm:$0xff]
  %v1257 = vld [vmem:[%s18 + $0x68] sm:$0xff]
  %v1258 = vld [vmem:[%s18 + $0x70] sm:$0xff]
  %v1259 = vld [vmem:[%s18 + $0x78] sm:$0xff]
  %v1260 = vld [vmem:[%s19] sm:$0x1]
  %vm1261 = vcmask 326912
  %v1262 = vsel %vm1261, %v493, -inf
  %v1263 = vsel %vm1261, %v498, -inf
  %v1264 = vsel %vm1261, %v503, -inf
  %v1265 = vsel %vm1261, %v508, -inf
  %v1266 = vsel %vm1261, %v513, -inf
  %v1267 = vmax.f32 %v1262, %v1266
  %v1268 = vsel %vm1261, %v518, -inf
  %v1269 = vmax.f32 %v1263, %v1268
  %v1270 = vsel %vm1261, %v523, -inf
  %v1271 = vmax.f32 %v1264, %v1270
  %v1272 = vsel %vm1261, %v528, -inf
  %v1273 = vmax.f32 %v1265, %v1272
  %v1274 = vmax.f32 %v1267, %v1269
  %v1275 = vmax.f32 %v1271, %v1273
  %v1276 = vmax.f32 %v1274, %v1275
  %v1277 = vrot.slane %v1276, 4
  %v1278 = vmax.f32 %v1276, %v1277
  %v1279 = vrot.slane %v1278, 2
  %v1280 = vmax.f32 %v1278, %v1279
  %v1281 = vrot.slane %v1280, 1
  %v1282 = vmax.f32 %v1280, %v1281
  %v1283 = vsub.f32 %v493, %v1282
  %v1284 = vsub.f32 %v498, %v1282
  %v1285 = vsub.f32 %v503, %v1282
  %v1286 = vsub.f32 %v508, %v1282
  %v1287 = vsub.f32 %v513, %v1282
  %v1288 = vsub.f32 %v518, %v1282
  %v1289 = vsub.f32 %v523, %v1282
  %v1290 = vsub.f32 %v528, %v1282
  %v1291 = vmul.f32 %v1283, 1.442695
  %v1292 = vpow.pop %v1291
  %v1293 = vmul.f32 %v1284, 1.442695
  %v1294 = vpow.pop %v1293
  %v1295 = vmul.f32 %v1285, 1.442695
  %v1296 = vpow.pop %v1295
  %v1297 = vmul.f32 %v1286, 1.442695
  %v1298 = vpow.pop %v1297
  %v1299 = vmul.f32 %v1287, 1.442695
  %v1300 = vpow.pop %v1299
  %v1301 = vmul.f32 %v1288, 1.442695
  %v1302 = vpow.pop %v1301
  %v1303 = vmul.f32 %v1289, 1.442695
  %v1304 = vpow.pop %v1303
  %v1305 = vmul.f32 %v1290, 1.442695
  %v1306 = vpow.pop %v1305
  %v1307 = vsel %vm1261, %v1292, 0.0
  %v1308 = vsel %vm1261, %v1294, 0.0
  %v1309 = vadd.f32 %v1307, %v1308
  %v1310 = vsel %vm1261, %v1296, 0.0
  %v1311 = vadd.f32 %v1309, %v1310
  %v1312 = vsel %vm1261, %v1298, 0.0
  %v1313 = vadd.f32 %v1311, %v1312
  %v1314 = vsel %vm1261, %v1300, 0.0
  %v1315 = vadd.f32 %v1313, %v1314
  %v1316 = vsel %vm1261, %v1302, 0.0
  %v1317 = vadd.f32 %v1315, %v1316
  %v1318 = vsel %vm1261, %v1304, 0.0
  %v1319 = vadd.f32 %v1317, %v1318
  %v1320 = vsel %vm1261, %v1306, 0.0
  %v1321 = vadd.f32 %v1319, %v1320
  %v1322 = vrot.slane %v1321, 4
  %v1323 = vadd.f32 %v1321, %v1322
  %v1324 = vrot.slane %v1323, 2
  %v1325 = vadd.f32 %v1323, %v1324
  %v1326 = vrot.slane %v1325, 1
  %v1327 = vadd.f32 %v1325, %v1326
  %v1328 = vrcp.pop %v1327
  %v1329 = vmul.f32 %v1292, %v1328
  %v1330 = vmul.f32 %v1294, %v1328
  %v1331 = vmul.f32 %v1296, %v1328
  %v1332 = vmul.f32 %v1298, %v1328
  %v1333 = vmul.f32 %v1300, %v1328
  %v1334 = vmul.f32 %v1302, %v1328
  %v1335 = vmul.f32 %v1304, %v1328
  %v1336 = vmul.f32 %v1306, %v1328
  %1345 = vrot.lane.b32.xlu0 %v1329, 96
  %v1346 = vpop.permute.xlu0 %1345
  %1347 = vrot.lane.b32.xlu0 %v1330, 96
  %v1348 = vpop.permute.xlu0 %1347
  %1349 = vrot.lane.b32.xlu0 %v1331, 96
  %v1350 = vpop.permute.xlu0 %1349
  %1351 = vrot.lane.b32.xlu0 %v1332, 96
  %v1352 = vpop.permute.xlu0 %1351
  %1353 = vrot.lane.b32.xlu0 %v1333, 96
  %v1354 = vpop.permute.xlu0 %1353
  %1355 = vrot.lane.b32.xlu0 %v1334, 96
  %v1356 = vpop.permute.xlu0 %1355
  %1357 = vrot.lane.b32.xlu0 %v1335, 96
  %v1358 = vpop.permute.xlu0 %1357
  %1359 = vrot.lane.b32.xlu0 %v1336, 96
  %v1360 = vpop.permute.xlu0 %1359
  %1369 = vxpose.xlu0.b32.start [1/16] %v1346, 128
  %1370 = vxpose.xlu0.b32.cont [2/16] %v1348, 128
  %1371 = vxpose.xlu0.b32.cont [3/16] %v1350, 128
  %1372 = vxpose.xlu0.b32.cont [4/16] %v1352, 128
  %1373 = vxpose.xlu0.b32.cont [5/16] %v1354, 128
  %1374 = vxpose.xlu0.b32.cont [6/16] %v1356, 128
  %1375 = vxpose.xlu0.b32.cont [7/16] %v1358, 128
  %1376 = vxpose.xlu0.b32.cont [8/16] %v1360, 128
  %1377 = vxpose.xlu0.b32.cont [9/16] 0.0, 128
  %1378 = vxpose.xlu0.b32.cont [10/16] 0.0, 128
  %1379 = vxpose.xlu0.b32.cont [11/16] 0.0, 128
  %1380 = vxpose.xlu0.b32.cont [12/16] 0.0, 128
  %1381 = vxpose.xlu0.b32.cont [13/16] 0.0, 128
  %1382 = vxpose.xlu0.b32.cont [14/16] 0.0, 128
  %1383 = vxpose.xlu0.b32.cont [15/16] 0.0, 128
  %1384 = vxpose.xlu0.b32.end [16/16] 0.0, 128
  %v1385 = vpop.trf.xlu0
  %v1386 = vpop.trf.xlu0
  %v1387 = vpop.trf.xlu0
  %v1388 = vpop.trf.xlu0
  %v1389 = vpop.trf.xlu0
  %v1390 = vpop.trf.xlu0
  %v1391 = vpop.trf.xlu0
  %v1392 = vpop.trf.xlu0
  %v1393 = vpop.trf.xlu0
  %v1394 = vpop.trf.xlu0
  %v1395 = vpop.trf.xlu0
  %v1396 = vpop.trf.xlu0
  %v1397 = vpop.trf.xlu0
  %v1398 = vpop.trf.xlu0
  %v1399 = vpop.trf.xlu0
  %v1400 = vpop.trf.xlu0
  %1409 = vrot.lane.b32.xlu0 %v867, 88
  %v1410 = vpop.permute.xlu0 %1409
  %1411 = vrot.lane.b32.xlu0 %v868, 88
  %v1412 = vpop.permute.xlu0 %1411
  %1413 = vrot.lane.b32.xlu0 %v869, 88
  %v1414 = vpop.permute.xlu0 %1413
  %1415 = vrot.lane.b32.xlu0 %v870, 88
  %v1416 = vpop.permute.xlu0 %1415
  %1417 = vrot.lane.b32.xlu0 %v871, 88
  %v1418 = vpop.permute.xlu0 %1417
  %1419 = vrot.lane.b32.xlu0 %v872, 88
  %v1420 = vpop.permute.xlu0 %1419
  %1421 = vrot.lane.b32.xlu0 %v873, 88
  %v1422 = vpop.permute.xlu0 %1421
  %1423 = vrot.lane.b32.xlu0 %v874, 88
  %v1424 = vpop.permute.xlu0 %1423
  %vm1433 = vcmask 523264
  %v1435 = vsel %vm1433, %v1385, 0
  %1437 = vmatprep.subr.mxu0 0.0
  %1438 = vmatpush1.msra.mxu0 %v1410
  %1439 = vmatprep.subr.mxu0 0.0
  %1440 = vmatpush1.msra.mxu0 %v1412
  %1441 = vmatprep.subr.mxu0 0.0
  %1442 = vmatpush1.msra.mxu0 %v1414
  %1443 = vmatprep.subr.mxu0 0.0
  %1444 = vmatpush1.msra.mxu0 %v1416
  %1445 = vmatprep.subr.mxu0 0.0
  %1446 = vmatpush1.msra.mxu0 %v1418
  %1447 = vmatprep.subr.mxu0 0.0
  %1448 = vmatpush1.msra.mxu0 %v1420
  %1449 = vmatprep.subr.mxu0 0.0
  %1450 = vmatpush1.msra.mxu0 %v1422
  %1451 = vmatprep.subr.mxu0 0.0
  %1452 = vmatpush1.msra.mxu0 %v1424
  %1453 = vmatprep.subr.mxu0 0.0
  %1454 = vmatpush1.msra.mxu0 0.0
  %1455 = vmatprep.subr.mxu0 0.0
  %1456 = vmatpush1.msra.mxu0 0.0
  %1457 = vmatprep.subr.mxu0 0.0
  %1458 = vmatpush1.msra.mxu0 0.0
  %1459 = vmatprep.subr.mxu0 0.0
  %1460 = vmatpush1.msra.mxu0 0.0
  %1461 = vmatprep.subr.mxu0 0.0
  %1462 = vmatpush1.msra.mxu0 0.0
  %1463 = vmatprep.subr.mxu0 0.0
  %1464 = vmatpush1.msra.mxu0 0.0
  %1465 = vmatprep.subr.mxu0 0.0
  %1466 = vmatpush1.msra.mxu0 0.0
  %1467 = vmatprep.subr.mxu0 0.0
  %1468 = vmatpush1.msra.mxu0 0.0
  %1469 = vmatprep.subr.mxu0 0.0
  %1470 = vmatpush1.msra.mxu0 0.0
  %1471 = vmatprep.subr.mxu0 0.0
  %1472 = vmatpush1.msra.mxu0 0.0
  %1473 = vmatprep.subr.mxu0 0.0
  %1474 = vmatpush1.msra.mxu0 0.0
  %1475 = vmatprep.subr.mxu0 0.0
  %1476 = vmatpush1.msra.mxu0 0.0
  %1477 = vmatprep.subr.mxu0 0.0
  %1478 = vmatpush1.msra.mxu0 0.0
  %1479 = vmatprep.subr.mxu0 0.0
  %1480 = vmatpush1.msra.mxu0 0.0
  %1481 = vmatprep.subr.mxu0 0.0
  %1482 = vmatpush1.msra.mxu0 0.0
  %1483 = vmatprep.subr.mxu0 0.0
  %1484 = vmatpush1.msra.mxu0 0.0
  %1485 = vmatprep.subr.mxu0 0.0
  %1486 = vmatpush1.msra.mxu0 0.0
  %1487 = vmatprep.subr.mxu0 0.0
  %1488 = vmatpush1.msra.mxu0 0.0
  %1489 = vmatprep.subr.mxu0 0.0
  %1490 = vmatpush1.msra.mxu0 0.0
  %1491 = vmatprep.subr.mxu0 0.0
  %1492 = vmatpush1.msra.mxu0 0.0
  %1493 = vmatprep.subr.mxu0 0.0
  %1494 = vmatpush1.msra.mxu0 0.0
  %1495 = vmatprep.subr.mxu0 0.0
  %1496 = vmatpush1.msra.mxu0 0.0
  %1497 = vmatprep.subr.mxu0 0.0
  %1498 = vmatpush1.msra.mxu0 0.0
  %1499 = vmatprep.subr.mxu0 0.0
  %1500 = vmatpush1.msra.mxu0 0.0
  %1501 = vmatprep.mubr.f32.mxu0 0.0
  %1502 = vmatmul.mubr.f32.gmra.mrb[0].mxu0 %v1435
  %v1503 = vpop.f32.mrb[0].mxu0
  %v1504 = vadd.f32 0.0, %v1503
  %v1505 = vpop.f32.mrb[0].mxu0
  %1506 = vdwg.mxu0
  %1508 = vrot.lane.b32.xlu0 %v1504, 8
  %v1509 = vpop.permute.xlu0 %1508
  %1511 = vrot.lane.b32.xlu0 %v1504, 16
  %v1512 = vpop.permute.xlu0 %1511
  %1514 = vrot.lane.b32.xlu0 %v1504, 24
  %v1515 = vpop.permute.xlu0 %1514
  %vm1517 = vcmask 64512
  %v1518 = vsel %vm1517, %v1504, %v1509
  %vm1519 = vcmask 130048
  %v1520 = vsel %vm1519, %v1518, %v1512
  %vm1521 = vcmask 195584
  %v1522 = vsel %vm1521, %v1520, %v1515
  %v1523 = vmul.f32 %v1216, %v1522
  %v1524 = vmul.f32 %v1217, %v1522
  %v1525 = vmul.f32 %v1218, %v1522
  %v1526 = vmul.f32 %v1219, %v1522
  %v1528 = vsel %vm1433, %v1112, 0
  %v1531 = vsel %vm1433, %v1113, 0
  %v1534 = vsel %vm1433, %v1114, 0
  %v1537 = vsel %vm1433, %v1115, 0
  %v1540 = vsel %vm1433, %v1116, 0
  %v1543 = vsel %vm1433, %v1117, 0
  %v1546 = vsel %vm1433, %v1118, 0
  %v1549 = vsel %vm1433, %v1119, 0
  %1551 = vmatprep.subr.mxu0 0.0
  %1552 = vmatpush1.msra.mxu0 %v1410
  %1553 = vmatprep.subr.mxu0 0.0
  %1554 = vmatpush1.msra.mxu0 %v1412
  %1555 = vmatprep.subr.mxu0 0.0
  %1556 = vmatpush1.msra.mxu0 %v1414
  %1557 = vmatprep.subr.mxu0 0.0
  %1558 = vmatpush1.msra.mxu0 %v1416
  %1559 = vmatprep.subr.mxu0 0.0
  %1560 = vmatpush1.msra.mxu0 %v1418
  %1561 = vmatprep.subr.mxu0 0.0
  %1562 = vmatpush1.msra.mxu0 %v1420
  %1563 = vmatprep.subr.mxu0 0.0
  %1564 = vmatpush1.msra.mxu0 %v1422
  %1565 = vmatprep.subr.mxu0 0.0
  %1566 = vmatpush1.msra.mxu0 %v1424
  %1567 = vmatprep.subr.mxu0 0.0
  %1568 = vmatpush1.msra.mxu0 0.0
  %1569 = vmatprep.subr.mxu0 0.0
  %1570 = vmatpush1.msra.mxu0 0.0
  %1571 = vmatprep.subr.mxu0 0.0
  %1572 = vmatpush1.msra.mxu0 0.0
  %1573 = vmatprep.subr.mxu0 0.0
  %1574 = vmatpush1.msra.mxu0 0.0
  %1575 = vmatprep.subr.mxu0 0.0
  %1576 = vmatpush1.msra.mxu0 0.0
  %1577 = vmatprep.subr.mxu0 0.0
  %1578 = vmatpush1.msra.mxu0 0.0
  %1579 = vmatprep.subr.mxu0 0.0
  %1580 = vmatpush1.msra.mxu0 0.0
  %1581 = vmatprep.subr.mxu0 0.0
  %1582 = vmatpush1.msra.mxu0 0.0
  %1583 = vmatprep.subr.mxu0 0.0
  %1584 = vmatpush1.msra.mxu0 0.0
  %1585 = vmatprep.subr.mxu0 0.0
  %1586 = vmatpush1.msra.mxu0 0.0
  %1587 = vmatprep.subr.mxu0 0.0
  %1588 = vmatpush1.msra.mxu0 0.0
  %1589 = vmatprep.subr.mxu0 0.0
  %1590 = vmatpush1.msra.mxu0 0.0
  %1591 = vmatprep.subr.mxu0 0.0
  %1592 = vmatpush1.msra.mxu0 0.0
  %1593 = vmatprep.subr.mxu0 0.0
  %1594 = vmatpush1.msra.mxu0 0.0
  %1595 = vmatprep.subr.mxu0 0.0
  %1596 = vmatpush1.msra.mxu0 0.0
  %1597 = vmatprep.subr.mxu0 0.0
  %1598 = vmatpush1.msra.mxu0 0.0
  %1599 = vmatprep.subr.mxu0 0.0
  %1600 = vmatpush1.msra.mxu0 0.0
  %1601 = vmatprep.subr.mxu0 0.0
  %1602 = vmatpush1.msra.mxu0 0.0
  %1603 = vmatprep.subr.mxu0 0.0
  %1604 = vmatpush1.msra.mxu0 0.0
  %1605 = vmatprep.subr.mxu0 0.0
  %1606 = vmatpush1.msra.mxu0 0.0
  %1607 = vmatprep.subr.mxu0 0.0
  %1608 = vmatpush1.msra.mxu0 0.0
  %1609 = vmatprep.subr.mxu0 0.0
  %1610 = vmatpush1.msra.mxu0 0.0
  %1611 = vmatprep.subr.mxu0 0.0
  %1612 = vmatpush1.msra.mxu0 0.0
  %1613 = vmatprep.subr.mxu0 0.0
  %1614 = vmatpush1.msra.mxu0 0.0
  %1615 = vmatprep.mubr.f32.mxu0 0.0
  %1616 = vmatmul.mubr.f32.gmra.mrb[0].mxu0 %v1528
  %v1617 = vpop.f32.mrb[0].mxu0
  %v1618 = vadd.f32 0.0, %v1617
  %v1619 = vpop.f32.mrb[0].mxu0
  %1620 = vmatprep.mubr.f32.mxu0 0.0
  %1621 = vmatmul.mubr.f32.gmra.mrb[0].mxu0 %v1531
  %v1622 = vpop.f32.mrb[0].mxu0
  %v1623 = vadd.f32 0.0, %v1622
  %v1624 = vpop.f32.mrb[0].mxu0
  %1625 = vmatprep.mubr.f32.mxu0 0.0
  %1626 = vmatmul.mubr.f32.gmra.mrb[0].mxu0 %v1534
  %v1627 = vpop.f32.mrb[0].mxu0
  %v1628 = vadd.f32 0.0, %v1627
  %v1629 = vpop.f32.mrb[0].mxu0
  %1630 = vmatprep.mubr.f32.mxu0 0.0
  %1631 = vmatmul.mubr.f32.gmra.mrb[0].mxu0 %v1537
  %v1632 = vpop.f32.mrb[0].mxu0
  %v1633 = vadd.f32 0.0, %v1632
  %v1634 = vpop.f32.mrb[0].mxu0
  %1635 = vmatprep.mubr.f32.mxu0 0.0
  %1636 = vmatmul.mubr.f32.gmra.mrb[0].mxu0 %v1540
  %v1637 = vpop.f32.mrb[0].mxu0
  %v1638 = vadd.f32 0.0, %v1637
  %v1639 = vpop.f32.mrb[0].mxu0
  %1640 = vmatprep.mubr.f32.mxu0 0.0
  %1641 = vmatmul.mubr.f32.gmra.mrb[0].mxu0 %v1543
  %v1642 = vpop.f32.mrb[0].mxu0
  %v1643 = vadd.f32 0.0, %v1642
  %v1644 = vpop.f32.mrb[0].mxu0
  %1645 = vmatprep.mubr.f32.mxu0 0.0
  %1646 = vmatmul.mubr.f32.gmra.mrb[0].mxu0 %v1546
  %v1647 = vpop.f32.mrb[0].mxu0
  %v1648 = vadd.f32 0.0, %v1647
  %v1649 = vpop.f32.mrb[0].mxu0
  %1650 = vmatprep.mubr.f32.mxu0 0.0
  %1651 = vmatmul.mubr.f32.gmra.mrb[0].mxu0 %v1549
  %v1652 = vpop.f32.mrb[0].mxu0
  %v1653 = vadd.f32 0.0, %v1652
  %v1654 = vpop.f32.mrb[0].mxu0
  %1655 = vdwg.mxu0
  %v1657 = vsel %vm1433, %v1120, 0
  %v1660 = vsel %vm1433, %v1121, 0
  %v1663 = vsel %vm1433, %v1122, 0
  %v1666 = vsel %vm1433, %v1123, 0
  %v1669 = vsel %vm1433, %v1124, 0
  %v1672 = vsel %vm1433, %v1125, 0
  %v1675 = vsel %vm1433, %v1126, 0
  %v1678 = vsel %vm1433, %v1127, 0
  %1680 = vmatprep.subr.mxu0 0.0
  %1681 = vmatpush1.msra.mxu0 %v1410
  %1682 = vmatprep.subr.mxu0 0.0
  %1683 = vmatpush1.msra.mxu0 %v1412
  %1684 = vmatprep.subr.mxu0 0.0
  %1685 = vmatpush1.msra.mxu0 %v1414
  %1686 = vmatprep.subr.mxu0 0.0
  %1687 = vmatpush1.msra.mxu0 %v1416
  %1688 = vmatprep.subr.mxu0 0.0
  %1689 = vmatpush1.msra.mxu0 %v1418
  %1690 = vmatprep.subr.mxu0 0.0
  %1691 = vmatpush1.msra.mxu0 %v1420
  %1692 = vmatprep.subr.mxu0 0.0
  %1693 = vmatpush1.msra.mxu0 %v1422
  %1694 = vmatprep.subr.mxu0 0.0
  %1695 = vmatpush1.msra.mxu0 %v1424
  %1696 = vmatprep.subr.mxu0 0.0
  %1697 = vmatpush1.msra.mxu0 0.0
  %1698 = vmatprep.subr.mxu0 0.0
  %1699 = vmatpush1.msra.mxu0 0.0
  %1700 = vmatprep.subr.mxu0 0.0
  %1701 = vmatpush1.msra.mxu0 0.0
  %1702 = vmatprep.subr.mxu0 0.0
  %1703 = vmatpush1.msra.mxu0 0.0
  %1704 = vmatprep.subr.mxu0 0.0
  %1705 = vmatpush1.msra.mxu0 0.0
  %1706 = vmatprep.subr.mxu0 0.0
  %1707 = vmatpush1.msra.mxu0 0.0
  %1708 = vmatprep.subr.mxu0 0.0
  %1709 = vmatpush1.msra.mxu0 0.0
  %1710 = vmatprep.subr.mxu0 0.0
  %1711 = vmatpush1.msra.mxu0 0.0
  %1712 = vmatprep.subr.mxu0 0.0
  %1713 = vmatpush1.msra.mxu0 0.0
  %1714 = vmatprep.subr.mxu0 0.0
  %1715 = vmatpush1.msra.mxu0 0.0
  %1716 = vmatprep.subr.mxu0 0.0
  %1717 = vmatpush1.msra.mxu0 0.0
  %1718 = vmatprep.subr.mxu0 0.0
  %1719 = vmatpush1.msra.mxu0 0.0
  %1720 = vmatprep.subr.mxu0 0.0
  %1721 = vmatpush1.msra.mxu0 0.0
  %1722 = vmatprep.subr.mxu0 0.0
  %1723 = vmatpush1.msra.mxu0 0.0
  %1724 = vmatprep.subr.mxu0 0.0
  %1725 = vmatpush1.msra.mxu0 0.0
  %1726 = vmatprep.subr.mxu0 0.0
  %1727 = vmatpush1.msra.mxu0 0.0
  %1728 = vmatprep.subr.mxu0 0.0
  %1729 = vmatpush1.msra.mxu0 0.0
  %1730 = vmatprep.subr.mxu0 0.0
  %1731 = vmatpush1.msra.mxu0 0.0
  %1732 = vmatprep.subr.mxu0 0.0
  %1733 = vmatpush1.msra.mxu0 0.0
  %1734 = vmatprep.subr.mxu0 0.0
  %1735 = vmatpush1.msra.mxu0 0.0
  %1736 = vmatprep.subr.mxu0 0.0
  %1737 = vmatpush1.msra.mxu0 0.0
  %1738 = vmatprep.subr.mxu0 0.0
  %1739 = vmatpush1.msra.mxu0 0.0
  %1740 = vmatprep.subr.mxu0 0.0
  %1741 = vmatpush1.msra.mxu0 0.0
  %1742 = vmatprep.subr.mxu0 0.0
  %1743 = vmatpush1.msra.mxu0 0.0
  %1744 = vmatprep.mubr.f32.mxu0 0.0
  %1745 = vmatmul.mubr.f32.gmra.mrb[0].mxu0 %v1657
  %v1746 = vpop.f32.mrb[0].mxu0
  %v1747 = vadd.f32 0.0, %v1746
  %v1748 = vpop.f32.mrb[0].mxu0
  %1749 = vmatprep.mubr.f32.mxu0 0.0
  %1750 = vmatmul.mubr.f32.gmra.mrb[0].mxu0 %v1660
  %v1751 = vpop.f32.mrb[0].mxu0
  %v1752 = vadd.f32 0.0, %v1751
  %v1753 = vpop.f32.mrb[0].mxu0
  %1754 = vmatprep.mubr.f32.mxu0 0.0
  %1755 = vmatmul.mubr.f32.gmra.mrb[0].mxu0 %v1663
  %v1756 = vpop.f32.mrb[0].mxu0
  %v1757 = vadd.f32 0.0, %v1756
  %v1758 = vpop.f32.mrb[0].mxu0
  %1759 = vmatprep.mubr.f32.mxu0 0.0
  %1760 = vmatmul.mubr.f32.gmra.mrb[0].mxu0 %v1666
  %v1761 = vpop.f32.mrb[0].mxu0
  %v1762 = vadd.f32 0.0, %v1761
  %v1763 = vpop.f32.mrb[0].mxu0
  %1764 = vmatprep.mubr.f32.mxu0 0.0
  %1765 = vmatmul.mubr.f32.gmra.mrb[0].mxu0 %v1669
  %v1766 = vpop.f32.mrb[0].mxu0
  %v1767 = vadd.f32 0.0, %v1766
  %v1768 = vpop.f32.mrb[0].mxu0
  %1769 = vmatprep.mubr.f32.mxu0 0.0
  %1770 = vmatmul.mubr.f32.gmra.mrb[0].mxu0 %v1672
  %v1771 = vpop.f32.mrb[0].mxu0
  %v1772 = vadd.f32 0.0, %v1771
  %v1773 = vpop.f32.mrb[0].mxu0
  %1774 = vmatprep.mubr.f32.mxu0 0.0
  %1775 = vmatmul.mubr.f32.gmra.mrb[0].mxu0 %v1675
  %v1776 = vpop.f32.mrb[0].mxu0
  %v1777 = vadd.f32 0.0, %v1776
  %v1778 = vpop.f32.mrb[0].mxu0
  %1779 = vmatprep.mubr.f32.mxu0 0.0
  %1780 = vmatmul.mubr.f32.gmra.mrb[0].mxu0 %v1678
  %v1781 = vpop.f32.mrb[0].mxu0
  %v1782 = vadd.f32 0.0, %v1781
  %v1783 = vpop.f32.mrb[0].mxu0
  %1784 = vdwg.mxu0
  %v1786 = vsel %vm1433, %v1128, 0
  %v1789 = vsel %vm1433, %v1129, 0
  %v1792 = vsel %vm1433, %v1130, 0
  %v1795 = vsel %vm1433, %v1131, 0
  %v1798 = vsel %vm1433, %v1132, 0
  %v1801 = vsel %vm1433, %v1133, 0
  %v1804 = vsel %vm1433, %v1134, 0
  %v1807 = vsel %vm1433, %v1135, 0
  %1809 = vmatprep.subr.mxu0 0.0
  %1810 = vmatpush1.msra.mxu0 %v1410
  %1811 = vmatprep.subr.mxu0 0.0
  %1812 = vmatpush1.msra.mxu0 %v1412
  %1813 = vmatprep.subr.mxu0 0.0
  %1814 = vmatpush1.msra.mxu0 %v1414
  %1815 = vmatprep.subr.mxu0 0.0
  %1816 = vmatpush1.msra.mxu0 %v1416
  %1817 = vmatprep.subr.mxu0 0.0
  %1818 = vmatpush1.msra.mxu0 %v1418
  %1819 = vmatprep.subr.mxu0 0.0
  %1820 = vmatpush1.msra.mxu0 %v1420
  %1821 = vmatprep.subr.mxu0 0.0
  %1822 = vmatpush1.msra.mxu0 %v1422
  %1823 = vmatprep.subr.mxu0 0.0
  %1824 = vmatpush1.msra.mxu0 %v1424
  %1825 = vmatprep.subr.mxu0 0.0
  %1826 = vmatpush1.msra.mxu0 0.0
  %1827 = vmatprep.subr.mxu0 0.0
  %1828 = vmatpush1.msra.mxu0 0.0
  %1829 = vmatprep.subr.mxu0 0.0
  %1830 = vmatpush1.msra.mxu0 0.0
  %1831 = vmatprep.subr.mxu0 0.0
  %1832 = vmatpush1.msra.mxu0 0.0
  %1833 = vmatprep.subr.mxu0 0.0
  %1834 = vmatpush1.msra.mxu0 0.0
  %1835 = vmatprep.subr.mxu0 0.0
  %1836 = vmatpush1.msra.mxu0 0.0
  %1837 = vmatprep.subr.mxu0 0.0
  %1838 = vmatpush1.msra.mxu0 0.0
  %1839 = vmatprep.subr.mxu0 0.0
  %1840 = vmatpush1.msra.mxu0 0.0
  %1841 = vmatprep.subr.mxu0 0.0
  %1842 = vmatpush1.msra.mxu0 0.0
  %1843 = vmatprep.subr.mxu0 0.0
  %1844 = vmatpush1.msra.mxu0 0.0
  %1845 = vmatprep.subr.mxu0 0.0
  %1846 = vmatpush1.msra.mxu0 0.0
  %1847 = vmatprep.subr.mxu0 0.0
  %1848 = vmatpush1.msra.mxu0 0.0
  %1849 = vmatprep.subr.mxu0 0.0
  %1850 = vmatpush1.msra.mxu0 0.0
  %1851 = vmatprep.subr.mxu0 0.0
  %1852 = vmatpush1.msra.mxu0 0.0
  %1853 = vmatprep.subr.mxu0 0.0
  %1854 = vmatpush1.msra.mxu0 0.0
  %1855 = vmatprep.subr.mxu0 0.0
  %1856 = vmatpush1.msra.mxu0 0.0
  %1857 = vmatprep.subr.mxu0 0.0
  %1858 = vmatpush1.msra.mxu0 0.0
  %1859 = vmatprep.subr.mxu0 0.0
  %1860 = vmatpush1.msra.mxu0 0.0
  %1861 = vmatprep.subr.mxu0 0.0
  %1862 = vmatpush1.msra.mxu0 0.0
  %1863 = vmatprep.subr.mxu0 0.0
  %1864 = vmatpush1.msra.mxu0 0.0
  %1865 = vmatprep.subr.mxu0 0.0
  %1866 = vmatpush1.msra.mxu0 0.0
  %1867 = vmatprep.subr.mxu0 0.0
  %1868 = vmatpush1.msra.mxu0 0.0
  %1869 = vmatprep.subr.mxu0 0.0
  %1870 = vmatpush1.msra.mxu0 0.0
  %1871 = vmatprep.subr.mxu0 0.0
  %1872 = vmatpush1.msra.mxu0 0.0
  %1873 = vmatprep.mubr.f32.mxu0 0.0
  %1874 = vmatmul.mubr.f32.gmra.mrb[0].mxu0 %v1786
  %v1875 = vpop.f32.mrb[0].mxu0
  %v1876 = vadd.f32 0.0, %v1875
  %v1877 = vpop.f32.mrb[0].mxu0
  %1878 = vmatprep.mubr.f32.mxu0 0.0
  %1879 = vmatmul.mubr.f32.gmra.mrb[0].mxu0 %v1789
  %v1880 = vpop.f32.mrb[0].mxu0
  %v1881 = vadd.f32 0.0, %v1880
  %v1882 = vpop.f32.mrb[0].mxu0
  %1883 = vmatprep.mubr.f32.mxu0 0.0
  %1884 = vmatmul.mubr.f32.gmra.mrb[0].mxu0 %v1792
  %v1885 = vpop.f32.mrb[0].mxu0
  %v1886 = vadd.f32 0.0, %v1885
  %v1887 = vpop.f32.mrb[0].mxu0
  %1888 = vmatprep.mubr.f32.mxu0 0.0
  %1889 = vmatmul.mubr.f32.gmra.mrb[0].mxu0 %v1795
  %v1890 = vpop.f32.mrb[0].mxu0
  %v1891 = vadd.f32 0.0, %v1890
  %v1892 = vpop.f32.mrb[0].mxu0
  %1893 = vmatprep.mubr.f32.mxu0 0.0
  %1894 = vmatmul.mubr.f32.gmra.mrb[0].mxu0 %v1798
  %v1895 = vpop.f32.mrb[0].mxu0
  %v1896 = vadd.f32 0.0, %v1895
  %v1897 = vpop.f32.mrb[0].mxu0
  %1898 = vmatprep.mubr.f32.mxu0 0.0
  %1899 = vmatmul.mubr.f32.gmra.mrb[0].mxu0 %v1801
  %v1900 = vpop.f32.mrb[0].mxu0
  %v1901 = vadd.f32 0.0, %v1900
  %v1902 = vpop.f32.mrb[0].mxu0
  %1903 = vmatprep.mubr.f32.mxu0 0.0
  %1904 = vmatmul.mubr.f32.gmra.mrb[0].mxu0 %v1804
  %v1905 = vpop.f32.mrb[0].mxu0
  %v1906 = vadd.f32 0.0, %v1905
  %v1907 = vpop.f32.mrb[0].mxu0
  %1908 = vmatprep.mubr.f32.mxu0 0.0
  %1909 = vmatmul.mubr.f32.gmra.mrb[0].mxu0 %v1807
  %v1910 = vpop.f32.mrb[0].mxu0
  %v1911 = vadd.f32 0.0, %v1910
  %v1912 = vpop.f32.mrb[0].mxu0
  %1913 = vdwg.mxu0
  %v1915 = vsel %vm1433, %v1136, 0
  %v1918 = vsel %vm1433, %v1137, 0
  %v1921 = vsel %vm1433, %v1138, 0
  %v1924 = vsel %vm1433, %v1139, 0
  %v1927 = vsel %vm1433, %v1140, 0
  %v1930 = vsel %vm1433, %v1141, 0
  %v1933 = vsel %vm1433, %v1142, 0
  %v1936 = vsel %vm1433, %v1143, 0
  %1938 = vmatprep.subr.mxu0 0.0
  %1939 = vmatpush1.msra.mxu0 %v1410
  %1940 = vmatprep.subr.mxu0 0.0
  %1941 = vmatpush1.msra.mxu0 %v1412
  %1942 = vmatprep.subr.mxu0 0.0
  %1943 = vmatpush1.msra.mxu0 %v1414
  %1944 = vmatprep.subr.mxu0 0.0
  %1945 = vmatpush1.msra.mxu0 %v1416
  %1946 = vmatprep.subr.mxu0 0.0
  %1947 = vmatpush1.msra.mxu0 %v1418
  %1948 = vmatprep.subr.mxu0 0.0
  %1949 = vmatpush1.msra.mxu0 %v1420
  %1950 = vmatprep.subr.mxu0 0.0
  %1951 = vmatpush1.msra.mxu0 %v1422
  %1952 = vmatprep.subr.mxu0 0.0
  %1953 = vmatpush1.msra.mxu0 %v1424
  %1954 = vmatprep.subr.mxu0 0.0
  %1955 = vmatpush1.msra.mxu0 0.0
  %1956 = vmatprep.subr.mxu0 0.0
  %1957 = vmatpush1.msra.mxu0 0.0
  %1958 = vmatprep.subr.mxu0 0.0
  %1959 = vmatpush1.msra.mxu0 0.0
  %1960 = vmatprep.subr.mxu0 0.0
  %1961 = vmatpush1.msra.mxu0 0.0
  %1962 = vmatprep.subr.mxu0 0.0
  %1963 = vmatpush1.msra.mxu0 0.0
  %1964 = vmatprep.subr.mxu0 0.0
  %1965 = vmatpush1.msra.mxu0 0.0
  %1966 = vmatprep.subr.mxu0 0.0
  %1967 = vmatpush1.msra.mxu0 0.0
  %1968 = vmatprep.subr.mxu0 0.0
  %1969 = vmatpush1.msra.mxu0 0.0
  %1970 = vmatprep.subr.mxu0 0.0
  %1971 = vmatpush1.msra.mxu0 0.0
  %1972 = vmatprep.subr.mxu0 0.0
  %1973 = vmatpush1.msra.mxu0 0.0
  %1974 = vmatprep.subr.mxu0 0.0
  %1975 = vmatpush1.msra.mxu0 0.0
  %1976 = vmatprep.subr.mxu0 0.0
  %1977 = vmatpush1.msra.mxu0 0.0
  %1978 = vmatprep.subr.mxu0 0.0
  %1979 = vmatpush1.msra.mxu0 0.0
  %1980 = vmatprep.subr.mxu0 0.0
  %1981 = vmatpush1.msra.mxu0 0.0
  %1982 = vmatprep.subr.mxu0 0.0
  %1983 = vmatpush1.msra.mxu0 0.0
  %1984 = vmatprep.subr.mxu0 0.0
  %1985 = vmatpush1.msra.mxu0 0.0
  %1986 = vmatprep.subr.mxu0 0.0
  %1987 = vmatpush1.msra.mxu0 0.0
  %1988 = vmatprep.subr.mxu0 0.0
  %1989 = vmatpush1.msra.mxu0 0.0
  %1990 = vmatprep.subr.mxu0 0.0
  %1991 = vmatpush1.msra.mxu0 0.0
  %1992 = vmatprep.subr.mxu0 0.0
  %1993 = vmatpush1.msra.mxu0 0.0
  %1994 = vmatprep.subr.mxu0 0.0
  %1995 = vmatpush1.msra.mxu0 0.0
  %1996 = vmatprep.subr.mxu0 0.0
  %1997 = vmatpush1.msra.mxu0 0.0
  %1998 = vmatprep.subr.mxu0 0.0
  %1999 = vmatpush1.msra.mxu0 0.0
  %2000 = vmatprep.subr.mxu0 0.0
  %2001 = vmatpush1.msra.mxu0 0.0
  %2002 = vmatprep.mubr.f32.mxu0 0.0
  %2003 = vmatmul.mubr.f32.gmra.mrb[0].mxu0 %v1915
  %v2004 = vpop.f32.mrb[0].mxu0
  %v2005 = vadd.f32 0.0, %v2004
  %v2006 = vpop.f32.mrb[0].mxu0
  %2007 = vmatprep.mubr.f32.mxu0 0.0
  %2008 = vmatmul.mubr.f32.gmra.mrb[0].mxu0 %v1918
  %v2009 = vpop.f32.mrb[0].mxu0
  %v2010 = vadd.f32 0.0, %v2009
  %v2011 = vpop.f32.mrb[0].mxu0
  %2012 = vmatprep.mubr.f32.mxu0 0.0
  %2013 = vmatmul.mubr.f32.gmra.mrb[0].mxu0 %v1921
  %v2014 = vpop.f32.mrb[0].mxu0
  %v2015 = vadd.f32 0.0, %v2014
  %v2016 = vpop.f32.mrb[0].mxu0
  %2017 = vmatprep.mubr.f32.mxu0 0.0
  %2018 = vmatmul.mubr.f32.gmra.mrb[0].mxu0 %v1924
  %v2019 = vpop.f32.mrb[0].mxu0
  %v2020 = vadd.f32 0.0, %v2019
  %v2021 = vpop.f32.mrb[0].mxu0
  %2022 = vmatprep.mubr.f32.mxu0 0.0
  %2023 = vmatmul.mubr.f32.gmra.mrb[0].mxu0 %v1927
  %v2024 = vpop.f32.mrb[0].mxu0
  %v2025 = vadd.f32 0.0, %v2024
  %v2026 = vpop.f32.mrb[0].mxu0
  %2027 = vmatprep.mubr.f32.mxu0 0.0
  %2028 = vmatmul.mubr.f32.gmra.mrb[0].mxu0 %v1930
  %v2029 = vpop.f32.mrb[0].mxu0
  %v2030 = vadd.f32 0.0, %v2029
  %v2031 = vpop.f32.mrb[0].mxu0
  %2032 = vmatprep.mubr.f32.mxu0 0.0
  %2033 = vmatmul.mubr.f32.gmra.mrb[0].mxu0 %v1933
  %v2034 = vpop.f32.mrb[0].mxu0
  %v2035 = vadd.f32 0.0, %v2034
  %v2036 = vpop.f32.mrb[0].mxu0
  %2037 = vmatprep.mubr.f32.mxu0 0.0
  %2038 = vmatmul.mubr.f32.gmra.mrb[0].mxu0 %v1936
  %v2039 = vpop.f32.mrb[0].mxu0
  %v2040 = vadd.f32 0.0, %v2039
  %v2041 = vpop.f32.mrb[0].mxu0
  %2042 = vdwg.mxu0
  %v2044 = vsel %vm1433, %v1144, 0
  %v2047 = vsel %vm1433, %v1145, 0
  %v2050 = vsel %vm1433, %v1146, 0
  %v2053 = vsel %vm1433, %v1147, 0
  %v2056 = vsel %vm1433, %v1148, 0
  %v2059 = vsel %vm1433, %v1149, 0
  %v2062 = vsel %vm1433, %v1150, 0
  %v2065 = vsel %vm1433, %v1151, 0
  %2067 = vmatprep.subr.mxu0 0.0
  %2068 = vmatpush1.msra.mxu0 %v1410
  %2069 = vmatprep.subr.mxu0 0.0
  %2070 = vmatpush1.msra.mxu0 %v1412
  %2071 = vmatprep.subr.mxu0 0.0
  %2072 = vmatpush1.msra.mxu0 %v1414
  %2073 = vmatprep.subr.mxu0 0.0
  %2074 = vmatpush1.msra.mxu0 %v1416
  %2075 = vmatprep.subr.mxu0 0.0
  %2076 = vmatpush1.msra.mxu0 %v1418
  %2077 = vmatprep.subr.mxu0 0.0
  %2078 = vmatpush1.msra.mxu0 %v1420
  %2079 = vmatprep.subr.mxu0 0.0
  %2080 = vmatpush1.msra.mxu0 %v1422
  %2081 = vmatprep.subr.mxu0 0.0
  %2082 = vmatpush1.msra.mxu0 %v1424
  %2083 = vmatprep.subr.mxu0 0.0
  %2084 = vmatpush1.msra.mxu0 0.0
  %2085 = vmatprep.subr.mxu0 0.0
  %2086 = vmatpush1.msra.mxu0 0.0
  %2087 = vmatprep.subr.mxu0 0.0
  %2088 = vmatpush1.msra.mxu0 0.0
  %2089 = vmatprep.subr.mxu0 0.0
  %2090 = vmatpush1.msra.mxu0 0.0
  %2091 = vmatprep.subr.mxu0 0.0
  %2092 = vmatpush1.msra.mxu0 0.0
  %2093 = vmatprep.subr.mxu0 0.0
  %2094 = vmatpush1.msra.mxu0 0.0
  %2095 = vmatprep.subr.mxu0 0.0
  %2096 = vmatpush1.msra.mxu0 0.0
  %2097 = vmatprep.subr.mxu0 0.0
  %2098 = vmatpush1.msra.mxu0 0.0
  %2099 = vmatprep.subr.mxu0 0.0
  %2100 = vmatpush1.msra.mxu0 0.0
  %2101 = vmatprep.subr.mxu0 0.0
  %2102 = vmatpush1.msra.mxu0 0.0
  %2103 = vmatprep.subr.mxu0 0.0
  %2104 = vmatpush1.msra.mxu0 0.0
  %2105 = vmatprep.subr.mxu0 0.0
  %2106 = vmatpush1.msra.mxu0 0.0
  %2107 = vmatprep.subr.mxu0 0.0
  %2108 = vmatpush1.msra.mxu0 0.0
  %2109 = vmatprep.subr.mxu0 0.0
  %2110 = vmatpush1.msra.mxu0 0.0
  %2111 = vmatprep.subr.mxu0 0.0
  %2112 = vmatpush1.msra.mxu0 0.0
  %2113 = vmatprep.subr.mxu0 0.0
  %2114 = vmatpush1.msra.mxu0 0.0
  %2115 = vmatprep.subr.mxu0 0.0
  %2116 = vmatpush1.msra.mxu0 0.0
  %2117 = vmatprep.subr.mxu0 0.0
  %2118 = vmatpush1.msra.mxu0 0.0
  %2119 = vmatprep.subr.mxu0 0.0
  %2120 = vmatpush1.msra.mxu0 0.0
  %2121 = vmatprep.subr.mxu0 0.0
  %2122 = vmatpush1.msra.mxu0 0.0
  %2123 = vmatprep.subr.mxu0 0.0
  %2124 = vmatpush1.msra.mxu0 0.0
  %2125 = vmatprep.subr.mxu0 0.0
  %2126 = vmatpush1.msra.mxu0 0.0
  %2127 = vmatprep.subr.mxu0 0.0
  %2128 = vmatpush1.msra.mxu0 0.0
  %2129 = vmatprep.subr.mxu0 0.0
  %2130 = vmatpush1.msra.mxu0 0.0
  %2131 = vmatprep.mubr.f32.mxu0 0.0
  %2132 = vmatmul.mubr.f32.gmra.mrb[0].mxu0 %v2044
  %v2133 = vpop.f32.mrb[0].mxu0
  %v2134 = vadd.f32 0.0, %v2133
  %v2135 = vpop.f32.mrb[0].mxu0
  %2136 = vmatprep.mubr.f32.mxu0 0.0
  %2137 = vmatmul.mubr.f32.gmra.mrb[0].mxu0 %v2047
  %v2138 = vpop.f32.mrb[0].mxu0
  %v2139 = vadd.f32 0.0, %v2138
  %v2140 = vpop.f32.mrb[0].mxu0
  %2141 = vmatprep.mubr.f32.mxu0 0.0
  %2142 = vmatmul.mubr.f32.gmra.mrb[0].mxu0 %v2050
  %v2143 = vpop.f32.mrb[0].mxu0
  %v2144 = vadd.f32 0.0, %v2143
  %v2145 = vpop.f32.mrb[0].mxu0
  %2146 = vmatprep.mubr.f32.mxu0 0.0
  %2147 = vmatmul.mubr.f32.gmra.mrb[0].mxu0 %v2053
  %v2148 = vpop.f32.mrb[0].mxu0
  %v2149 = vadd.f32 0.0, %v2148
  %v2150 = vpop.f32.mrb[0].mxu0
  %2151 = vmatprep.mubr.f32.mxu0 0.0
  %2152 = vmatmul.mubr.f32.gmra.mrb[0].mxu0 %v2056
  %v2153 = vpop.f32.mrb[0].mxu0
  %v2154 = vadd.f32 0.0, %v2153
  %v2155 = vpop.f32.mrb[0].mxu0
  %2156 = vmatprep.mubr.f32.mxu0 0.0
  %2157 = vmatmul.mubr.f32.gmra.mrb[0].mxu0 %v2059
  %v2158 = vpop.f32.mrb[0].mxu0
  %v2159 = vadd.f32 0.0, %v2158
  %v2160 = vpop.f32.mrb[0].mxu0
  %2161 = vmatprep.mubr.f32.mxu0 0.0
  %2162 = vmatmul.mubr.f32.gmra.mrb[0].mxu0 %v2062
  %v2163 = vpop.f32.mrb[0].mxu0
  %v2164 = vadd.f32 0.0, %v2163
  %v2165 = vpop.f32.mrb[0].mxu0
  %2166 = vmatprep.mubr.f32.mxu0 0.0
  %2167 = vmatmul.mubr.f32.gmra.mrb[0].mxu0 %v2065
  %v2168 = vpop.f32.mrb[0].mxu0
  %v2169 = vadd.f32 0.0, %v2168
  %v2170 = vpop.f32.mrb[0].mxu0
  %2171 = vdwg.mxu0
  %v2173 = vsel %vm1433, %v1152, 0
  %v2176 = vsel %vm1433, %v1153, 0
  %v2179 = vsel %vm1433, %v1154, 0
  %v2182 = vsel %vm1433, %v1155, 0
  %v2185 = vsel %vm1433, %v1156, 0
  %v2188 = vsel %vm1433, %v1157, 0
  %v2191 = vsel %vm1433, %v1158, 0
  %v2194 = vsel %vm1433, %v1159, 0
  %2196 = vmatprep.subr.mxu0 0.0
  %2197 = vmatpush1.msra.mxu0 %v1410
  %2198 = vmatprep.subr.mxu0 0.0
  %2199 = vmatpush1.msra.mxu0 %v1412
  %2200 = vmatprep.subr.mxu0 0.0
  %2201 = vmatpush1.msra.mxu0 %v1414
  %2202 = vmatprep.subr.mxu0 0.0
  %2203 = vmatpush1.msra.mxu0 %v1416
  %2204 = vmatprep.subr.mxu0 0.0
  %2205 = vmatpush1.msra.mxu0 %v1418
  %2206 = vmatprep.subr.mxu0 0.0
  %2207 = vmatpush1.msra.mxu0 %v1420
  %2208 = vmatprep.subr.mxu0 0.0
  %2209 = vmatpush1.msra.mxu0 %v1422
  %2210 = vmatprep.subr.mxu0 0.0
  %2211 = vmatpush1.msra.mxu0 %v1424
  %2212 = vmatprep.subr.mxu0 0.0
  %2213 = vmatpush1.msra.mxu0 0.0
  %2214 = vmatprep.subr.mxu0 0.0
  %2215 = vmatpush1.msra.mxu0 0.0
  %2216 = vmatprep.subr.mxu0 0.0
  %2217 = vmatpush1.msra.mxu0 0.0
  %2218 = vmatprep.subr.mxu0 0.0
  %2219 = vmatpush1.msra.mxu0 0.0
  %2220 = vmatprep.subr.mxu0 0.0
  %2221 = vmatpush1.msra.mxu0 0.0
  %2222 = vmatprep.subr.mxu0 0.0
  %2223 = vmatpush1.msra.mxu0 0.0
  %2224 = vmatprep.subr.mxu0 0.0
  %2225 = vmatpush1.msra.mxu0 0.0
  %2226 = vmatprep.subr.mxu0 0.0
  %2227 = vmatpush1.msra.mxu0 0.0
  %2228 = vmatprep.subr.mxu0 0.0
  %2229 = vmatpush1.msra.mxu0 0.0
  %2230 = vmatprep.subr.mxu0 0.0
  %2231 = vmatpush1.msra.mxu0 0.0
  %2232 = vmatprep.subr.mxu0 0.0
  %2233 = vmatpush1.msra.mxu0 0.0
  %2234 = vmatprep.subr.mxu0 0.0
  %2235 = vmatpush1.msra.mxu0 0.0
  %2236 = vmatprep.subr.mxu0 0.0
  %2237 = vmatpush1.msra.mxu0 0.0
  %2238 = vmatprep.subr.mxu0 0.0
  %2239 = vmatpush1.msra.mxu0 0.0
  %2240 = vmatprep.subr.mxu0 0.0
  %2241 = vmatpush1.msra.mxu0 0.0
  %2242 = vmatprep.subr.mxu0 0.0
  %2243 = vmatpush1.msra.mxu0 0.0
  %2244 = vmatprep.subr.mxu0 0.0
  %2245 = vmatpush1.msra.mxu0 0.0
  %2246 = vmatprep.subr.mxu0 0.0
  %2247 = vmatpush1.msra.mxu0 0.0
  %2248 = vmatprep.subr.mxu0 0.0
  %2249 = vmatpush1.msra.mxu0 0.0
  %2250 = vmatprep.subr.mxu0 0.0
  %2251 = vmatpush1.msra.mxu0 0.0
  %2252 = vmatprep.subr.mxu0 0.0
  %2253 = vmatpush1.msra.mxu0 0.0
  %2254 = vmatprep.subr.mxu0 0.0
  %2255 = vmatpush1.msra.mxu0 0.0
  %2256 = vmatprep.subr.mxu0 0.0
  %2257 = vmatpush1.msra.mxu0 0.0
  %2258 = vmatprep.subr.mxu0 0.0
  %2259 = vmatpush1.msra.mxu0 0.0
  %2260 = vmatprep.mubr.f32.mxu0 0.0
  %2261 = vmatmul.mubr.f32.gmra.mrb[0].mxu0 %v2173
  %v2262 = vpop.f32.mrb[0].mxu0
  %v2263 = vadd.f32 0.0, %v2262
  %v2264 = vpop.f32.mrb[0].mxu0
  %2265 = vmatprep.mubr.f32.mxu0 0.0
  %2266 = vmatmul.mubr.f32.gmra.mrb[0].mxu0 %v2176
  %v2267 = vpop.f32.mrb[0].mxu0
  %v2268 = vadd.f32 0.0, %v2267
  %v2269 = vpop.f32.mrb[0].mxu0
  %2270 = vmatprep.mubr.f32.mxu0 0.0
  %2271 = vmatmul.mubr.f32.gmra.mrb[0].mxu0 %v2179
  %v2272 = vpop.f32.mrb[0].mxu0
  %v2273 = vadd.f32 0.0, %v2272
  %v2274 = vpop.f32.mrb[0].mxu0
  %2275 = vmatprep.mubr.f32.mxu0 0.0
  %2276 = vmatmul.mubr.f32.gmra.mrb[0].mxu0 %v2182
  %v2277 = vpop.f32.mrb[0].mxu0
  %v2278 = vadd.f32 0.0, %v2277
  %v2279 = vpop.f32.mrb[0].mxu0
  %2280 = vmatprep.mubr.f32.mxu0 0.0
  %2281 = vmatmul.mubr.f32.gmra.mrb[0].mxu0 %v2185
  %v2282 = vpop.f32.mrb[0].mxu0
  %v2283 = vadd.f32 0.0, %v2282
  %v2284 = vpop.f32.mrb[0].mxu0
  %2285 = vmatprep.mubr.f32.mxu0 0.0
  %2286 = vmatmul.mubr.f32.gmra.mrb[0].mxu0 %v2188
  %v2287 = vpop.f32.mrb[0].mxu0
  %v2288 = vadd.f32 0.0, %v2287
  %v2289 = vpop.f32.mrb[0].mxu0
  %2290 = vmatprep.mubr.f32.mxu0 0.0
  %2291 = vmatmul.mubr.f32.gmra.mrb[0].mxu0 %v2191
  %v2292 = vpop.f32.mrb[0].mxu0
  %v2293 = vadd.f32 0.0, %v2292
  %v2294 = vpop.f32.mrb[0].mxu0
  %2295 = vmatprep.mubr.f32.mxu0 0.0
  %2296 = vmatmul.mubr.f32.gmra.mrb[0].mxu0 %v2194
  %v2297 = vpop.f32.mrb[0].mxu0
  %v2298 = vadd.f32 0.0, %v2297
  %v2299 = vpop.f32.mrb[0].mxu0
  %2300 = vdwg.mxu0
  %v2302 = vsel %vm1433, %v1160, 0
  %v2305 = vsel %vm1433, %v1161, 0
  %v2308 = vsel %vm1433, %v1162, 0
  %v2311 = vsel %vm1433, %v1163, 0
  %v2314 = vsel %vm1433, %v1164, 0
  %v2317 = vsel %vm1433, %v1165, 0
  %v2320 = vsel %vm1433, %v1166, 0
  %v2323 = vsel %vm1433, %v1167, 0
  %2325 = vmatprep.subr.mxu0 0.0
  %2326 = vmatpush1.msra.mxu0 %v1410
  %2327 = vmatprep.subr.mxu0 0.0
  %2328 = vmatpush1.msra.mxu0 %v1412
  %2329 = vmatprep.subr.mxu0 0.0
  %2330 = vmatpush1.msra.mxu0 %v1414
  %2331 = vmatprep.subr.mxu0 0.0
  %2332 = vmatpush1.msra.mxu0 %v1416
  %2333 = vmatprep.subr.mxu0 0.0
  %2334 = vmatpush1.msra.mxu0 %v1418
  %2335 = vmatprep.subr.mxu0 0.0
  %2336 = vmatpush1.msra.mxu0 %v1420
  %2337 = vmatprep.subr.mxu0 0.0
  %2338 = vmatpush1.msra.mxu0 %v1422
  %2339 = vmatprep.subr.mxu0 0.0
  %2340 = vmatpush1.msra.mxu0 %v1424
  %2341 = vmatprep.subr.mxu0 0.0
  %2342 = vmatpush1.msra.mxu0 0.0
  %2343 = vmatprep.subr.mxu0 0.0
  %2344 = vmatpush1.msra.mxu0 0.0
  %2345 = vmatprep.subr.mxu0 0.0
  %2346 = vmatpush1.msra.mxu0 0.0
  %2347 = vmatprep.subr.mxu0 0.0
  %2348 = vmatpush1.msra.mxu0 0.0
  %2349 = vmatprep.subr.mxu0 0.0
  %2350 = vmatpush1.msra.mxu0 0.0
  %2351 = vmatprep.subr.mxu0 0.0
  %2352 = vmatpush1.msra.mxu0 0.0
  %2353 = vmatprep.subr.mxu0 0.0
  %2354 = vmatpush1.msra.mxu0 0.0
  %2355 = vmatprep.subr.mxu0 0.0
  %2356 = vmatpush1.msra.mxu0 0.0
  %2357 = vmatprep.subr.mxu0 0.0
  %2358 = vmatpush1.msra.mxu0 0.0
  %2359 = vmatprep.subr.mxu0 0.0
  %2360 = vmatpush1.msra.mxu0 0.0
  %2361 = vmatprep.subr.mxu0 0.0
  %2362 = vmatpush1.msra.mxu0 0.0
  %2363 = vmatprep.subr.mxu0 0.0
  %2364 = vmatpush1.msra.mxu0 0.0
  %2365 = vmatprep.subr.mxu0 0.0
  %2366 = vmatpush1.msra.mxu0 0.0
  %2367 = vmatprep.subr.mxu0 0.0
  %2368 = vmatpush1.msra.mxu0 0.0
  %2369 = vmatprep.subr.mxu0 0.0
  %2370 = vmatpush1.msra.mxu0 0.0
  %2371 = vmatprep.subr.mxu0 0.0
  %2372 = vmatpush1.msra.mxu0 0.0
  %2373 = vmatprep.subr.mxu0 0.0
  %2374 = vmatpush1.msra.mxu0 0.0
  %2375 = vmatprep.subr.mxu0 0.0
  %2376 = vmatpush1.msra.mxu0 0.0
  %2377 = vmatprep.subr.mxu0 0.0
  %2378 = vmatpush1.msra.mxu0 0.0
  %2379 = vmatprep.subr.mxu0 0.0
  %2380 = vmatpush1.msra.mxu0 0.0
  %2381 = vmatprep.subr.mxu0 0.0
  %2382 = vmatpush1.msra.mxu0 0.0
  %2383 = vmatprep.subr.mxu0 0.0
  %2384 = vmatpush1.msra.mxu0 0.0
  %2385 = vmatprep.subr.mxu0 0.0
  %2386 = vmatpush1.msra.mxu0 0.0
  %2387 = vmatprep.subr.mxu0 0.0
  %2388 = vmatpush1.msra.mxu0 0.0
  %2389 = vmatprep.mubr.f32.mxu0 0.0
  %2390 = vmatmul.mubr.f32.gmra.mrb[0].mxu0 %v2302
  %v2391 = vpop.f32.mrb[0].mxu0
  %v2392 = vadd.f32 0.0, %v2391
  %v2393 = vpop.f32.mrb[0].mxu0
  %2394 = vmatprep.mubr.f32.mxu0 0.0
  %2395 = vmatmul.mubr.f32.gmra.mrb[0].mxu0 %v2305
  %v2396 = vpop.f32.mrb[0].mxu0
  %v2397 = vadd.f32 0.0, %v2396
  %v2398 = vpop.f32.mrb[0].mxu0
  %2399 = vmatprep.mubr.f32.mxu0 0.0
  %2400 = vmatmul.mubr.f32.gmra.mrb[0].mxu0 %v2308
  %v2401 = vpop.f32.mrb[0].mxu0
  %v2402 = vadd.f32 0.0, %v2401
  %v2403 = vpop.f32.mrb[0].mxu0
  %2404 = vmatprep.mubr.f32.mxu0 0.0
  %2405 = vmatmul.mubr.f32.gmra.mrb[0].mxu0 %v2311
  %v2406 = vpop.f32.mrb[0].mxu0
  %v2407 = vadd.f32 0.0, %v2406
  %v2408 = vpop.f32.mrb[0].mxu0
  %2409 = vmatprep.mubr.f32.mxu0 0.0
  %2410 = vmatmul.mubr.f32.gmra.mrb[0].mxu0 %v2314
  %v2411 = vpop.f32.mrb[0].mxu0
  %v2412 = vadd.f32 0.0, %v2411
  %v2413 = vpop.f32.mrb[0].mxu0
  %2414 = vmatprep.mubr.f32.mxu0 0.0
  %2415 = vmatmul.mubr.f32.gmra.mrb[0].mxu0 %v2317
  %v2416 = vpop.f32.mrb[0].mxu0
  %v2417 = vadd.f32 0.0, %v2416
  %v2418 = vpop.f32.mrb[0].mxu0
  %2419 = vmatprep.mubr.f32.mxu0 0.0
  %2420 = vmatmul.mubr.f32.gmra.mrb[0].mxu0 %v2320
  %v2421 = vpop.f32.mrb[0].mxu0
  %v2422 = vadd.f32 0.0, %v2421
  %v2423 = vpop.f32.mrb[0].mxu0
  %2424 = vmatprep.mubr.f32.mxu0 0.0
  %2425 = vmatmul.mubr.f32.gmra.mrb[0].mxu0 %v2323
  %v2426 = vpop.f32.mrb[0].mxu0
  %v2427 = vadd.f32 0.0, %v2426
  %v2428 = vpop.f32.mrb[0].mxu0
  %2429 = vdwg.mxu0
  %v2431 = vsel %vm1433, %v1168, 0
  %v2434 = vsel %vm1433, %v1169, 0
  %v2437 = vsel %vm1433, %v1170, 0
  %v2440 = vsel %vm1433, %v1171, 0
  %v2443 = vsel %vm1433, %v1172, 0
  %v2446 = vsel %vm1433, %v1173, 0
  %v2449 = vsel %vm1433, %v1174, 0
  %v2452 = vsel %vm1433, %v1175, 0
  %2454 = vmatprep.subr.mxu0 0.0
  %2455 = vmatpush1.msra.mxu0 %v1410
  %2456 = vmatprep.subr.mxu0 0.0
  %2457 = vmatpush1.msra.mxu0 %v1412
  %2458 = vmatprep.subr.mxu0 0.0
  %2459 = vmatpush1.msra.mxu0 %v1414
  %2460 = vmatprep.subr.mxu0 0.0
  %2461 = vmatpush1.msra.mxu0 %v1416
  %2462 = vmatprep.subr.mxu0 0.0
  %2463 = vmatpush1.msra.mxu0 %v1418
  %2464 = vmatprep.subr.mxu0 0.0
  %2465 = vmatpush1.msra.mxu0 %v1420
  %2466 = vmatprep.subr.mxu0 0.0
  %2467 = vmatpush1.msra.mxu0 %v1422
  %2468 = vmatprep.subr.mxu0 0.0
  %2469 = vmatpush1.msra.mxu0 %v1424
  %2470 = vmatprep.subr.mxu0 0.0
  %2471 = vmatpush1.msra.mxu0 0.0
  %2472 = vmatprep.subr.mxu0 0.0
  %2473 = vmatpush1.msra.mxu0 0.0
  %2474 = vmatprep.subr.mxu0 0.0
  %2475 = vmatpush1.msra.mxu0 0.0
  %2476 = vmatprep.subr.mxu0 0.0
  %2477 = vmatpush1.msra.mxu0 0.0
  %2478 = vmatprep.subr.mxu0 0.0
  %2479 = vmatpush1.msra.mxu0 0.0
  %2480 = vmatprep.subr.mxu0 0.0
  %2481 = vmatpush1.msra.mxu0 0.0
  %2482 = vmatprep.subr.mxu0 0.0
  %2483 = vmatpush1.msra.mxu0 0.0
  %2484 = vmatprep.subr.mxu0 0.0
  %2485 = vmatpush1.msra.mxu0 0.0
  %2486 = vmatprep.subr.mxu0 0.0
  %2487 = vmatpush1.msra.mxu0 0.0
  %2488 = vmatprep.subr.mxu0 0.0
  %2489 = vmatpush1.msra.mxu0 0.0
  %2490 = vmatprep.subr.mxu0 0.0
  %2491 = vmatpush1.msra.mxu0 0.0
  %2492 = vmatprep.subr.mxu0 0.0
  %2493 = vmatpush1.msra.mxu0 0.0
  %2494 = vmatprep.subr.mxu0 0.0
  %2495 = vmatpush1.msra.mxu0 0.0
  %2496 = vmatprep.subr.mxu0 0.0
  %2497 = vmatpush1.msra.mxu0 0.0
  %2498 = vmatprep.subr.mxu0 0.0
  %2499 = vmatpush1.msra.mxu0 0.0
  %2500 = vmatprep.subr.mxu0 0.0
  %2501 = vmatpush1.msra.mxu0 0.0
  %2502 = vmatprep.subr.mxu0 0.0
  %2503 = vmatpush1.msra.mxu0 0.0
  %2504 = vmatprep.subr.mxu0 0.0
  %2505 = vmatpush1.msra.mxu0 0.0
  %2506 = vmatprep.subr.mxu0 0.0
  %2507 = vmatpush1.msra.mxu0 0.0
  %2508 = vmatprep.subr.mxu0 0.0
  %2509 = vmatpush1.msra.mxu0 0.0
  %2510 = vmatprep.subr.mxu0 0.0
  %2511 = vmatpush1.msra.mxu0 0.0
  %2512 = vmatprep.subr.mxu0 0.0
  %2513 = vmatpush1.msra.mxu0 0.0
  %2514 = vmatprep.subr.mxu0 0.0
  %2515 = vmatpush1.msra.mxu0 0.0
  %2516 = vmatprep.subr.mxu0 0.0
  %2517 = vmatpush1.msra.mxu0 0.0
  %2518 = vmatprep.mubr.f32.mxu0 0.0
  %2519 = vmatmul.mubr.f32.gmra.mrb[0].mxu0 %v2431
  %v2520 = vpop.f32.mrb[0].mxu0
  %v2521 = vadd.f32 0.0, %v2520
  %v2522 = vpop.f32.mrb[0].mxu0
  %2523 = vmatprep.mubr.f32.mxu0 0.0
  %2524 = vmatmul.mubr.f32.gmra.mrb[0].mxu0 %v2434
  %v2525 = vpop.f32.mrb[0].mxu0
  %v2526 = vadd.f32 0.0, %v2525
  %v2527 = vpop.f32.mrb[0].mxu0
  %2528 = vmatprep.mubr.f32.mxu0 0.0
  %2529 = vmatmul.mubr.f32.gmra.mrb[0].mxu0 %v2437
  %v2530 = vpop.f32.mrb[0].mxu0
  %v2531 = vadd.f32 0.0, %v2530
  %v2532 = vpop.f32.mrb[0].mxu0
  %2533 = vmatprep.mubr.f32.mxu0 0.0
  %2534 = vmatmul.mubr.f32.gmra.mrb[0].mxu0 %v2440
  %v2535 = vpop.f32.mrb[0].mxu0
  %v2536 = vadd.f32 0.0, %v2535
  %v2537 = vpop.f32.mrb[0].mxu0
  %2538 = vmatprep.mubr.f32.mxu0 0.0
  %2539 = vmatmul.mubr.f32.gmra.mrb[0].mxu0 %v2443
  %v2540 = vpop.f32.mrb[0].mxu0
  %v2541 = vadd.f32 0.0, %v2540
  %v2542 = vpop.f32.mrb[0].mxu0
  %2543 = vmatprep.mubr.f32.mxu0 0.0
  %2544 = vmatmul.mubr.f32.gmra.mrb[0].mxu0 %v2446
  %v2545 = vpop.f32.mrb[0].mxu0
  %v2546 = vadd.f32 0.0, %v2545
  %v2547 = vpop.f32.mrb[0].mxu0
  %2548 = vmatprep.mubr.f32.mxu0 0.0
  %2549 = vmatmul.mubr.f32.gmra.mrb[0].mxu0 %v2449
  %v2550 = vpop.f32.mrb[0].mxu0
  %v2551 = vadd.f32 0.0, %v2550
  %v2552 = vpop.f32.mrb[0].mxu0
  %2553 = vmatprep.mubr.f32.mxu0 0.0
  %2554 = vmatmul.mubr.f32.gmra.mrb[0].mxu0 %v2452
  %v2555 = vpop.f32.mrb[0].mxu0
  %v2556 = vadd.f32 0.0, %v2555
  %v2557 = vpop.f32.mrb[0].mxu0
  %2558 = vdwg.mxu0
  %2567 = vrot.lane.b32.xlu0 %v1747, 8
  %v2568 = vpop.permute.xlu0 %2567
  %2569 = vrot.lane.b32.xlu0 %v1752, 8
  %v2570 = vpop.permute.xlu0 %2569
  %2571 = vrot.lane.b32.xlu0 %v1757, 8
  %v2572 = vpop.permute.xlu0 %2571
  %2573 = vrot.lane.b32.xlu0 %v1762, 8
  %v2574 = vpop.permute.xlu0 %2573
  %2575 = vrot.lane.b32.xlu0 %v1767, 8
  %v2576 = vpop.permute.xlu0 %2575
  %2577 = vrot.lane.b32.xlu0 %v1772, 8
  %v2578 = vpop.permute.xlu0 %2577
  %2579 = vrot.lane.b32.xlu0 %v1777, 8
  %v2580 = vpop.permute.xlu0 %2579
  %2581 = vrot.lane.b32.xlu0 %v1782, 8
  %v2582 = vpop.permute.xlu0 %2581
  %2599 = vrot.lane.b32.xlu0 %v1876, 16
  %v2600 = vpop.permute.xlu0 %2599
  %2601 = vrot.lane.b32.xlu0 %v1881, 16
  %v2602 = vpop.permute.xlu0 %2601
  %2603 = vrot.lane.b32.xlu0 %v1886, 16
  %v2604 = vpop.permute.xlu0 %2603
  %2605 = vrot.lane.b32.xlu0 %v1891, 16
  %v2606 = vpop.permute.xlu0 %2605
  %2607 = vrot.lane.b32.xlu0 %v1896, 16
  %v2608 = vpop.permute.xlu0 %2607
  %2609 = vrot.lane.b32.xlu0 %v1901, 16
  %v2610 = vpop.permute.xlu0 %2609
  %2611 = vrot.lane.b32.xlu0 %v1906, 16
  %v2612 = vpop.permute.xlu0 %2611
  %2613 = vrot.lane.b32.xlu0 %v1911, 16
  %v2614 = vpop.permute.xlu0 %2613
  %2631 = vrot.lane.b32.xlu0 %v2005, 24
  %v2632 = vpop.permute.xlu0 %2631
  %2633 = vrot.lane.b32.xlu0 %v2010, 24
  %v2634 = vpop.permute.xlu0 %2633
  %2635 = vrot.lane.b32.xlu0 %v2015, 24
  %v2636 = vpop.permute.xlu0 %2635
  %2637 = vrot.lane.b32.xlu0 %v2020, 24
  %v2638 = vpop.permute.xlu0 %2637
  %2639 = vrot.lane.b32.xlu0 %v2025, 24
  %v2640 = vpop.permute.xlu0 %2639
  %2641 = vrot.lane.b32.xlu0 %v2030, 24
  %v2642 = vpop.permute.xlu0 %2641
  %2643 = vrot.lane.b32.xlu0 %v2035, 24
  %v2644 = vpop.permute.xlu0 %2643
  %2645 = vrot.lane.b32.xlu0 %v2040, 24
  %v2646 = vpop.permute.xlu0 %2645
  %2663 = vrot.lane.b32.xlu0 %v2134, 32
  %v2664 = vpop.permute.xlu0 %2663
  %2665 = vrot.lane.b32.xlu0 %v2139, 32
  %v2666 = vpop.permute.xlu0 %2665
  %2667 = vrot.lane.b32.xlu0 %v2144, 32
  %v2668 = vpop.permute.xlu0 %2667
  %2669 = vrot.lane.b32.xlu0 %v2149, 32
  %v2670 = vpop.permute.xlu0 %2669
  %2671 = vrot.lane.b32.xlu0 %v2154, 32
  %v2672 = vpop.permute.xlu0 %2671
  %2673 = vrot.lane.b32.xlu0 %v2159, 32
  %v2674 = vpop.permute.xlu0 %2673
  %2675 = vrot.lane.b32.xlu0 %v2164, 32
  %v2676 = vpop.permute.xlu0 %2675
  %2677 = vrot.lane.b32.xlu0 %v2169, 32
  %v2678 = vpop.permute.xlu0 %2677
  %2695 = vrot.lane.b32.xlu0 %v2263, 40
  %v2696 = vpop.permute.xlu0 %2695
  %2697 = vrot.lane.b32.xlu0 %v2268, 40
  %v2698 = vpop.permute.xlu0 %2697
  %2699 = vrot.lane.b32.xlu0 %v2273, 40
  %v2700 = vpop.permute.xlu0 %2699
  %2701 = vrot.lane.b32.xlu0 %v2278, 40
  %v2702 = vpop.permute.xlu0 %2701
  %2703 = vrot.lane.b32.xlu0 %v2283, 40
  %v2704 = vpop.permute.xlu0 %2703
  %2705 = vrot.lane.b32.xlu0 %v2288, 40
  %v2706 = vpop.permute.xlu0 %2705
  %2707 = vrot.lane.b32.xlu0 %v2293, 40
  %v2708 = vpop.permute.xlu0 %2707
  %2709 = vrot.lane.b32.xlu0 %v2298, 40
  %v2710 = vpop.permute.xlu0 %2709
  %2727 = vrot.lane.b32.xlu0 %v2392, 48
  %v2728 = vpop.permute.xlu0 %2727
  %2729 = vrot.lane.b32.xlu0 %v2397, 48
  %v2730 = vpop.permute.xlu0 %2729
  %2731 = vrot.lane.b32.xlu0 %v2402, 48
  %v2732 = vpop.permute.xlu0 %2731
  %2733 = vrot.lane.b32.xlu0 %v2407, 48
  %v2734 = vpop.permute.xlu0 %2733
  %2735 = vrot.lane.b32.xlu0 %v2412, 48
  %v2736 = vpop.permute.xlu0 %2735
  %2737 = vrot.lane.b32.xlu0 %v2417, 48
  %v2738 = vpop.permute.xlu0 %2737
  %2739 = vrot.lane.b32.xlu0 %v2422, 48
  %v2740 = vpop.permute.xlu0 %2739
  %2741 = vrot.lane.b32.xlu0 %v2427, 48
  %v2742 = vpop.permute.xlu0 %2741
  %2759 = vrot.lane.b32.xlu0 %v2521, 56
  %v2760 = vpop.permute.xlu0 %2759
  %2761 = vrot.lane.b32.xlu0 %v2526, 56
  %v2762 = vpop.permute.xlu0 %2761
  %2763 = vrot.lane.b32.xlu0 %v2531, 56
  %v2764 = vpop.permute.xlu0 %2763
  %2765 = vrot.lane.b32.xlu0 %v2536, 56
  %v2766 = vpop.permute.xlu0 %2765
  %2767 = vrot.lane.b32.xlu0 %v2541, 56
  %v2768 = vpop.permute.xlu0 %2767
  %2769 = vrot.lane.b32.xlu0 %v2546, 56
  %v2770 = vpop.permute.xlu0 %2769
  %2771 = vrot.lane.b32.xlu0 %v2551, 56
  %v2772 = vpop.permute.xlu0 %2771
  %2773 = vrot.lane.b32.xlu0 %v2556, 56
  %v2774 = vpop.permute.xlu0 %2773
  %v2783 = vsel %vm1517, %v1618, %v2568
  %v2784 = vsel %vm1517, %v1623, %v2570
  %v2785 = vsel %vm1517, %v1628, %v2572
  %v2786 = vsel %vm1517, %v1633, %v2574
  %v2787 = vsel %vm1517, %v1638, %v2576
  %v2788 = vsel %vm1517, %v1643, %v2578
  %v2789 = vsel %vm1517, %v1648, %v2580
  %v2790 = vsel %vm1517, %v1653, %v2582
  %v2791 = vsel %vm1519, %v2783, %v2600
  %v2792 = vsel %vm1519, %v2784, %v2602
  %v2793 = vsel %vm1519, %v2785, %v2604
  %v2794 = vsel %vm1519, %v2786, %v2606
  %v2795 = vsel %vm1519, %v2787, %v2608
  %v2796 = vsel %vm1519, %v2788, %v2610
  %v2797 = vsel %vm1519, %v2789, %v2612
  %v2798 = vsel %vm1519, %v2790, %v2614
  %v2799 = vsel %vm1521, %v2791, %v2632
  %v2800 = vsel %vm1521, %v2792, %v2634
  %v2801 = vsel %vm1521, %v2793, %v2636
  %v2802 = vsel %vm1521, %v2794, %v2638
  %v2803 = vsel %vm1521, %v2795, %v2640
  %v2804 = vsel %vm1521, %v2796, %v2642
  %v2805 = vsel %vm1521, %v2797, %v2644
  %v2806 = vsel %vm1521, %v2798, %v2646
  %v2807 = vsel %vm84, %v2799, %v2664
  %v2808 = vsel %vm84, %v2800, %v2666
  %v2809 = vsel %vm84, %v2801, %v2668
  %v2810 = vsel %vm84, %v2802, %v2670
  %v2811 = vsel %vm84, %v2803, %v2672
  %v2812 = vsel %vm84, %v2804, %v2674
  %v2813 = vsel %vm84, %v2805, %v2676
  %v2814 = vsel %vm84, %v2806, %v2678
  %vm2815 = vcmask 326656
  %v2816 = vsel %vm2815, %v2807, %v2696
  %v2817 = vsel %vm2815, %v2808, %v2698
  %v2818 = vsel %vm2815, %v2809, %v2700
  %v2819 = vsel %vm2815, %v2810, %v2702
  %v2820 = vsel %vm2815, %v2811, %v2704
  %v2821 = vsel %vm2815, %v2812, %v2706
  %v2822 = vsel %vm2815, %v2813, %v2708
  %v2823 = vsel %vm2815, %v2814, %v2710
  %vm2824 = vcmask 392192
  %v2825 = vsel %vm2824, %v2816, %v2728
  %v2826 = vsel %vm2824, %v2817, %v2730
  %v2827 = vsel %vm2824, %v2818, %v2732
  %v2828 = vsel %vm2824, %v2819, %v2734
  %v2829 = vsel %vm2824, %v2820, %v2736
  %v2830 = vsel %vm2824, %v2821, %v2738
  %v2831 = vsel %vm2824, %v2822, %v2740
  %v2832 = vsel %vm2824, %v2823, %v2742
  %vm2833 = vcmask 457728
  %v2834 = vsel %vm2833, %v2825, %v2760
  %v2835 = vsel %vm2833, %v2826, %v2762
  %v2836 = vsel %vm2833, %v2827, %v2764
  %v2837 = vsel %vm2833, %v2828, %v2766
  %v2838 = vsel %vm2833, %v2829, %v2768
  %v2839 = vsel %vm2833, %v2830, %v2770
  %v2840 = vsel %vm2833, %v2831, %v2772
  %v2841 = vsel %vm2833, %v2832, %v2774
  %2850 = vrot.lane.b32.xlu0 %v2834, 64
  %v2851 = vpop.permute.xlu0 %2850
  %2852 = vrot.lane.b32.xlu0 %v2835, 64
  %v2853 = vpop.permute.xlu0 %2852
  %2854 = vrot.lane.b32.xlu0 %v2836, 64
  %v2855 = vpop.permute.xlu0 %2854
  %2856 = vrot.lane.b32.xlu0 %v2837, 64
  %v2857 = vpop.permute.xlu0 %2856
  %2858 = vrot.lane.b32.xlu0 %v2838, 64
  %v2859 = vpop.permute.xlu0 %2858
  %2860 = vrot.lane.b32.xlu0 %v2839, 64
  %v2861 = vpop.permute.xlu0 %2860
  %2862 = vrot.lane.b32.xlu0 %v2840, 64
  %v2863 = vpop.permute.xlu0 %2862
  %2864 = vrot.lane.b32.xlu0 %v2841, 64
  %v2865 = vpop.permute.xlu0 %2864
  %v2874 = vsel %vm1433, %v2834, %v2851
  %v2875 = vsel %vm1433, %v2835, %v2853
  %v2876 = vsel %vm1433, %v2836, %v2855
  %v2877 = vsel %vm1433, %v2837, %v2857
  %v2878 = vsel %vm1433, %v2838, %v2859
  %v2879 = vsel %vm1433, %v2839, %v2861
  %v2880 = vsel %vm1433, %v2840, %v2863
  %v2881 = vsel %vm1433, %v2841, %v2865
  %v2883 = vsel %vm84, %v683, 0
  %v2886 = vsel %vm84, %v684, 0
  %v2889 = vsel %vm84, %v685, 0
  %v2892 = vsel %vm84, %v686, 0
  %v2895 = vsel %vm84, %v687, 0
  %v2898 = vsel %vm84, %v688, 0
  %v2901 = vsel %vm84, %v689, 0
  %v2904 = vsel %vm84, %v690, 0
  %2906 = vmatprep.subr.mxu0 %v1177
  %2907 = vmatpush1.msra.mxu0 %v1176
  %2908 = vmatprep.subr.mxu0 %v1179
  %2909 = vmatpush1.msra.mxu0 %v1178
  %2910 = vmatprep.subr.mxu0 %v1181
  %2911 = vmatpush1.msra.mxu0 %v1180
  %2912 = vmatprep.subr.mxu0 %v1183
  %2913 = vmatpush1.msra.mxu0 %v1182
  %2914 = vmatprep.subr.mxu0 0.0
  %2915 = vmatpush1.msra.mxu0 0.0
  %2916 = vmatprep.subr.mxu0 0.0
  %2917 = vmatpush1.msra.mxu0 0.0
  %2918 = vmatprep.subr.mxu0 0.0
  %2919 = vmatpush1.msra.mxu0 0.0
  %2920 = vmatprep.subr.mxu0 0.0
  %2921 = vmatpush1.msra.mxu0 0.0
  %2922 = vmatprep.subr.mxu0 0.0
  %2923 = vmatpush1.msra.mxu0 0.0
  %2924 = vmatprep.subr.mxu0 0.0
  %2925 = vmatpush1.msra.mxu0 0.0
  %2926 = vmatprep.subr.mxu0 0.0
  %2927 = vmatpush1.msra.mxu0 0.0
  %2928 = vmatprep.subr.mxu0 0.0
  %2929 = vmatpush1.msra.mxu0 0.0
  %2930 = vmatprep.subr.mxu0 0.0
  %2931 = vmatpush1.msra.mxu0 0.0
  %2932 = vmatprep.subr.mxu0 0.0
  %2933 = vmatpush1.msra.mxu0 0.0
  %2934 = vmatprep.subr.mxu0 0.0
  %2935 = vmatpush1.msra.mxu0 0.0
  %2936 = vmatprep.subr.mxu0 0.0
  %2937 = vmatpush1.msra.mxu0 0.0
  %2938 = vmatprep.subr.mxu0 0.0
  %2939 = vmatpush1.msra.mxu0 0.0
  %2940 = vmatprep.subr.mxu0 0.0
  %2941 = vmatpush1.msra.mxu0 0.0
  %2942 = vmatprep.subr.mxu0 0.0
  %2943 = vmatpush1.msra.mxu0 0.0
  %2944 = vmatprep.subr.mxu0 0.0
  %2945 = vmatpush1.msra.mxu0 0.0
  %2946 = vmatprep.subr.mxu0 0.0
  %2947 = vmatpush1.msra.mxu0 0.0
  %2948 = vmatprep.subr.mxu0 0.0
  %2949 = vmatpush1.msra.mxu0 0.0
  %2950 = vmatprep.subr.mxu0 0.0
  %2951 = vmatpush1.msra.mxu0 0.0
  %2952 = vmatprep.subr.mxu0 0.0
  %2953 = vmatpush1.msra.mxu0 0.0
  %2954 = vmatprep.subr.mxu0 0.0
  %2955 = vmatpush1.msra.mxu0 0.0
  %2956 = vmatprep.subr.mxu0 0.0
  %2957 = vmatpush1.msra.mxu0 0.0
  %2958 = vmatprep.subr.mxu0 0.0
  %2959 = vmatpush1.msra.mxu0 0.0
  %2960 = vmatprep.subr.mxu0 0.0
  %2961 = vmatpush1.msra.mxu0 0.0
  %2962 = vmatprep.subr.mxu0 0.0
  %2963 = vmatpush1.msra.mxu0 0.0
  %2964 = vmatprep.subr.mxu0 0.0
  %2965 = vmatpush1.msra.mxu0 0.0
  %2966 = vmatprep.subr.mxu0 0.0
  %2967 = vmatpush1.msra.mxu0 0.0
  %2968 = vmatprep.subr.mxu0 0.0
  %2969 = vmatpush1.msra.mxu0 0.0
  %2970 = vmatprep.mubr.f32.mxu0 0.0
  %2971 = vmatmul.mubr.f32.gmra.mrb[0].mxu0 %v2883
  %v2972 = vpop.f32.mrb[0].mxu0
  %v2973 = vadd.f32 0.0, %v2972
  %v2974 = vpop.f32.mrb[0].mxu0
  %v2975 = vadd.f32 0.0, %v2974
  %2976 = vmatprep.mubr.f32.mxu0 0.0
  %2977 = vmatmul.mubr.f32.gmra.mrb[0].mxu0 %v2886
  %v2978 = vpop.f32.mrb[0].mxu0
  %v2979 = vadd.f32 0.0, %v2978
  %v2980 = vpop.f32.mrb[0].mxu0
  %v2981 = vadd.f32 0.0, %v2980
  %2982 = vmatprep.mubr.f32.mxu0 0.0
  %2983 = vmatmul.mubr.f32.gmra.mrb[0].mxu0 %v2889
  %v2984 = vpop.f32.mrb[0].mxu0
  %v2985 = vadd.f32 0.0, %v2984
  %v2986 = vpop.f32.mrb[0].mxu0
  %v2987 = vadd.f32 0.0, %v2986
  %2988 = vmatprep.mubr.f32.mxu0 0.0
  %2989 = vmatmul.mubr.f32.gmra.mrb[0].mxu0 %v2892
  %v2990 = vpop.f32.mrb[0].mxu0
  %v2991 = vadd.f32 0.0, %v2990
  %v2992 = vpop.f32.mrb[0].mxu0
  %v2993 = vadd.f32 0.0, %v2992
  %2994 = vmatprep.mubr.f32.mxu0 0.0
  %2995 = vmatmul.mubr.f32.gmra.mrb[0].mxu0 %v2895
  %v2996 = vpop.f32.mrb[0].mxu0
  %v2997 = vadd.f32 0.0, %v2996
  %v2998 = vpop.f32.mrb[0].mxu0
  %v2999 = vadd.f32 0.0, %v2998
  %3000 = vmatprep.mubr.f32.mxu0 0.0
  %3001 = vmatmul.mubr.f32.gmra.mrb[0].mxu0 %v2898
  %v3002 = vpop.f32.mrb[0].mxu0
  %v3003 = vadd.f32 0.0, %v3002
  %v3004 = vpop.f32.mrb[0].mxu0
  %v3005 = vadd.f32 0.0, %v3004
  %3006 = vmatprep.mubr.f32.mxu0 0.0
  %3007 = vmatmul.mubr.f32.gmra.mrb[0].mxu0 %v2901
  %v3008 = vpop.f32.mrb[0].mxu0
  %v3009 = vadd.f32 0.0, %v3008
  %v3010 = vpop.f32.mrb[0].mxu0
  %v3011 = vadd.f32 0.0, %v3010
  %3012 = vmatprep.mubr.f32.mxu0 0.0
  %3013 = vmatmul.mubr.f32.gmra.mrb[0].mxu0 %v2904
  %v3014 = vpop.f32.mrb[0].mxu0
  %v3015 = vadd.f32 0.0, %v3014
  %v3016 = vpop.f32.mrb[0].mxu0
  %v3017 = vadd.f32 0.0, %v3016
  %3018 = vdwg.mxu0
  %v3020 = vsel %vm84, %v1096, 0
  %v3023 = vsel %vm84, %v1097, 0
  %v3026 = vsel %vm84, %v1098, 0
  %v3029 = vsel %vm84, %v1099, 0
  %v3032 = vsel %vm84, %v1100, 0
  %v3035 = vsel %vm84, %v1101, 0
  %v3038 = vsel %vm84, %v1102, 0
  %v3041 = vsel %vm84, %v1103, 0
  %3043 = vmatprep.subr.mxu0 %v1177
  %3044 = vmatpush1.msra.mxu0 %v1176
  %3045 = vmatprep.subr.mxu0 %v1179
  %3046 = vmatpush1.msra.mxu0 %v1178
  %3047 = vmatprep.subr.mxu0 %v1181
  %3048 = vmatpush1.msra.mxu0 %v1180
  %3049 = vmatprep.subr.mxu0 %v1183
  %3050 = vmatpush1.msra.mxu0 %v1182
  %3051 = vmatprep.subr.mxu0 0.0
  %3052 = vmatpush1.msra.mxu0 0.0
  %3053 = vmatprep.subr.mxu0 0.0
  %3054 = vmatpush1.msra.mxu0 0.0
  %3055 = vmatprep.subr.mxu0 0.0
  %3056 = vmatpush1.msra.mxu0 0.0
  %3057 = vmatprep.subr.mxu0 0.0
  %3058 = vmatpush1.msra.mxu0 0.0
  %3059 = vmatprep.subr.mxu0 0.0
  %3060 = vmatpush1.msra.mxu0 0.0
  %3061 = vmatprep.subr.mxu0 0.0
  %3062 = vmatpush1.msra.mxu0 0.0
  %3063 = vmatprep.subr.mxu0 0.0
  %3064 = vmatpush1.msra.mxu0 0.0
  %3065 = vmatprep.subr.mxu0 0.0
  %3066 = vmatpush1.msra.mxu0 0.0
  %3067 = vmatprep.subr.mxu0 0.0
  %3068 = vmatpush1.msra.mxu0 0.0
  %3069 = vmatprep.subr.mxu0 0.0
  %3070 = vmatpush1.msra.mxu0 0.0
  %3071 = vmatprep.subr.mxu0 0.0
  %3072 = vmatpush1.msra.mxu0 0.0
  %3073 = vmatprep.subr.mxu0 0.0
  %3074 = vmatpush1.msra.mxu0 0.0
  %3075 = vmatprep.subr.mxu0 0.0
  %3076 = vmatpush1.msra.mxu0 0.0
  %3077 = vmatprep.subr.mxu0 0.0
  %3078 = vmatpush1.msra.mxu0 0.0
  %3079 = vmatprep.subr.mxu0 0.0
  %3080 = vmatpush1.msra.mxu0 0.0
  %3081 = vmatprep.subr.mxu0 0.0
  %3082 = vmatpush1.msra.mxu0 0.0
  %3083 = vmatprep.subr.mxu0 0.0
  %3084 = vmatpush1.msra.mxu0 0.0
  %3085 = vmatprep.subr.mxu0 0.0
  %3086 = vmatpush1.msra.mxu0 0.0
  %3087 = vmatprep.subr.mxu0 0.0
  %3088 = vmatpush1.msra.mxu0 0.0
  %3089 = vmatprep.subr.mxu0 0.0
  %3090 = vmatpush1.msra.mxu0 0.0
  %3091 = vmatprep.subr.mxu0 0.0
  %3092 = vmatpush1.msra.mxu0 0.0
  %3093 = vmatprep.subr.mxu0 0.0
  %3094 = vmatpush1.msra.mxu0 0.0
  %3095 = vmatprep.subr.mxu0 0.0
  %3096 = vmatpush1.msra.mxu0 0.0
  %3097 = vmatprep.subr.mxu0 0.0
  %3098 = vmatpush1.msra.mxu0 0.0
  %3099 = vmatprep.subr.mxu0 0.0
  %3100 = vmatpush1.msra.mxu0 0.0
  %3101 = vmatprep.subr.mxu0 0.0
  %3102 = vmatpush1.msra.mxu0 0.0
  %3103 = vmatprep.subr.mxu0 0.0
  %3104 = vmatpush1.msra.mxu0 0.0
  %3105 = vmatprep.subr.mxu0 0.0
  %3106 = vmatpush1.msra.mxu0 0.0
  %3107 = vmatprep.mubr.f32.mxu0 0.0
  %3108 = vmatmul.mubr.f32.gmra.mrb[0].mxu0 %v3020
  %v3109 = vpop.f32.mrb[0].mxu0
  %v3110 = vadd.f32 0.0, %v3109
  %v3111 = vpop.f32.mrb[0].mxu0
  %v3112 = vadd.f32 0.0, %v3111
  %3113 = vmatprep.mubr.f32.mxu0 0.0
  %3114 = vmatmul.mubr.f32.gmra.mrb[0].mxu0 %v3023
  %v3115 = vpop.f32.mrb[0].mxu0
  %v3116 = vadd.f32 0.0, %v3115
  %v3117 = vpop.f32.mrb[0].mxu0
  %v3118 = vadd.f32 0.0, %v3117
  %3119 = vmatprep.mubr.f32.mxu0 0.0
  %3120 = vmatmul.mubr.f32.gmra.mrb[0].mxu0 %v3026
  %v3121 = vpop.f32.mrb[0].mxu0
  %v3122 = vadd.f32 0.0, %v3121
  %v3123 = vpop.f32.mrb[0].mxu0
  %v3124 = vadd.f32 0.0, %v3123
  %3125 = vmatprep.mubr.f32.mxu0 0.0
  %3126 = vmatmul.mubr.f32.gmra.mrb[0].mxu0 %v3029
  %v3127 = vpop.f32.mrb[0].mxu0
  %v3128 = vadd.f32 0.0, %v3127
  %v3129 = vpop.f32.mrb[0].mxu0
  %v3130 = vadd.f32 0.0, %v3129
  %3131 = vmatprep.mubr.f32.mxu0 0.0
  %3132 = vmatmul.mubr.f32.gmra.mrb[0].mxu0 %v3032
  %v3133 = vpop.f32.mrb[0].mxu0
  %v3134 = vadd.f32 0.0, %v3133
  %v3135 = vpop.f32.mrb[0].mxu0
  %v3136 = vadd.f32 0.0, %v3135
  %3137 = vmatprep.mubr.f32.mxu0 0.0
  %3138 = vmatmul.mubr.f32.gmra.mrb[0].mxu0 %v3035
  %v3139 = vpop.f32.mrb[0].mxu0
  %v3140 = vadd.f32 0.0, %v3139
  %v3141 = vpop.f32.mrb[0].mxu0
  %v3142 = vadd.f32 0.0, %v3141
  %3143 = vmatprep.mubr.f32.mxu0 0.0
  %3144 = vmatmul.mubr.f32.gmra.mrb[0].mxu0 %v3038
  %v3145 = vpop.f32.mrb[0].mxu0
  %v3146 = vadd.f32 0.0, %v3145
  %v3147 = vpop.f32.mrb[0].mxu0
  %v3148 = vadd.f32 0.0, %v3147
  %3149 = vmatprep.mubr.f32.mxu0 0.0
  %3150 = vmatmul.mubr.f32.gmra.mrb[0].mxu0 %v3041
  %v3151 = vpop.f32.mrb[0].mxu0
  %v3152 = vadd.f32 0.0, %v3151
  %v3153 = vpop.f32.mrb[0].mxu0
  %v3154 = vadd.f32 0.0, %v3153
  %3155 = vdwg.mxu0
  %v3156 = vmul.f32 %v2973, %v2874
  %v3157 = vmul.f32 %v2975, %v2874
  %v3158 = vmul.f32 %v2979, %v2875
  %v3159 = vmul.f32 %v2981, %v2875
  %v3160 = vmul.f32 %v2985, %v2876
  %v3161 = vmul.f32 %v2987, %v2876
  %v3162 = vmul.f32 %v2991, %v2877
  %v3163 = vmul.f32 %v2993, %v2877
  %v3164 = vmul.f32 %v2997, %v2878
  %v3165 = vmul.f32 %v2999, %v2878
  %v3166 = vmul.f32 %v3003, %v2879
  %v3167 = vmul.f32 %v3005, %v2879
  %v3168 = vmul.f32 %v3009, %v2880
  %v3169 = vmul.f32 %v3011, %v2880
  %v3170 = vmul.f32 %v3015, %v2881
  %v3171 = vmul.f32 %v3017, %v2881
  %3172 = vmatprep.subr.mxu0 0.0
  %3173 = vmatpush1.msra.mxu0 %v1523
  %3174 = vmatprep.subr.mxu0 0.0
  %3175 = vmatpush1.msra.mxu0 %v1524
  %3176 = vmatprep.subr.mxu0 0.0
  %3177 = vmatpush1.msra.mxu0 %v1525
  %3178 = vmatprep.subr.mxu0 0.0
  %3179 = vmatpush1.msra.mxu0 %v1526
  %3180 = vmatprep.subr.mxu0 0.0
  %3181 = vmatpush1.msra.mxu0 0.0
  %3182 = vmatprep.subr.mxu0 0.0
  %3183 = vmatpush1.msra.mxu0 0.0
  %3184 = vmatprep.subr.mxu0 0.0
  %3185 = vmatpush1.msra.mxu0 0.0
  %3186 = vmatprep.subr.mxu0 0.0
  %3187 = vmatpush1.msra.mxu0 0.0
  %3188 = vmatprep.subr.mxu0 0.0
  %3189 = vmatpush1.msra.mxu0 0.0
  %3190 = vmatprep.subr.mxu0 0.0
  %3191 = vmatpush1.msra.mxu0 0.0
  %3192 = vmatprep.subr.mxu0 0.0
  %3193 = vmatpush1.msra.mxu0 0.0
  %3194 = vmatprep.subr.mxu0 0.0
  %3195 = vmatpush1.msra.mxu0 0.0
  %3196 = vmatprep.subr.mxu0 0.0
  %3197 = vmatpush1.msra.mxu0 0.0
  %3198 = vmatprep.subr.mxu0 0.0
  %3199 = vmatpush1.msra.mxu0 0.0
  %3200 = vmatprep.subr.mxu0 0.0
  %3201 = vmatpush1.msra.mxu0 0.0
  %3202 = vmatprep.subr.mxu0 0.0
  %3203 = vmatpush1.msra.mxu0 0.0
  %3204 = vmatprep.subr.mxu0 0.0
  %3205 = vmatpush1.msra.mxu0 0.0
  %3206 = vmatprep.subr.mxu0 0.0
  %3207 = vmatpush1.msra.mxu0 0.0
  %3208 = vmatprep.subr.mxu0 0.0
  %3209 = vmatpush1.msra.mxu0 0.0
  %3210 = vmatprep.subr.mxu0 0.0
  %3211 = vmatpush1.msra.mxu0 0.0
  %3212 = vmatprep.subr.mxu0 0.0
  %3213 = vmatpush1.msra.mxu0 0.0
  %3214 = vmatprep.subr.mxu0 0.0
  %3215 = vmatpush1.msra.mxu0 0.0
  %3216 = vmatprep.subr.mxu0 0.0
  %3217 = vmatpush1.msra.mxu0 0.0
  %3218 = vmatprep.subr.mxu0 0.0
  %3219 = vmatpush1.msra.mxu0 0.0
  %3220 = vmatprep.subr.mxu0 0.0
  %3221 = vmatpush1.msra.mxu0 0.0
  %3222 = vmatprep.subr.mxu0 0.0
  %3223 = vmatpush1.msra.mxu0 0.0
  %3224 = vmatprep.subr.mxu0 0.0
  %3225 = vmatpush1.msra.mxu0 0.0
  %3226 = vmatprep.subr.mxu0 0.0
  %3227 = vmatpush1.msra.mxu0 0.0
  %3228 = vmatprep.subr.mxu0 0.0
  %3229 = vmatpush1.msra.mxu0 0.0
  %3230 = vmatprep.subr.mxu0 0.0
  %3231 = vmatpush1.msra.mxu0 0.0
  %3232 = vmatprep.subr.mxu0 0.0
  %3233 = vmatpush1.msra.mxu0 0.0
  %3234 = vmatprep.subr.mxu0 0.0
  %3235 = vmatpush1.msra.mxu0 0.0
  %3236 = vmatprep.mubr.f32.mxu0 0.0
  %3237 = vmatmul.mubr.f32.gmra.mrb[0].mxu0 %v2883
  %v3238 = vpop.f32.mrb[0].mxu0
  %v3239 = vadd.f32 0.0, %v3238
  %v3240 = vpop.f32.mrb[0].mxu0
  %3241 = vmatprep.mubr.f32.mxu0 0.0
  %3242 = vmatmul.mubr.f32.gmra.mrb[0].mxu0 %v2886
  %v3243 = vpop.f32.mrb[0].mxu0
  %v3244 = vadd.f32 0.0, %v3243
  %v3245 = vpop.f32.mrb[0].mxu0
  %3246 = vmatprep.mubr.f32.mxu0 0.0
  %3247 = vmatmul.mubr.f32.gmra.mrb[0].mxu0 %v2889
  %v3248 = vpop.f32.mrb[0].mxu0
  %v3249 = vadd.f32 0.0, %v3248
  %v3250 = vpop.f32.mrb[0].mxu0
  %3251 = vmatprep.mubr.f32.mxu0 0.0
  %3252 = vmatmul.mubr.f32.gmra.mrb[0].mxu0 %v2892
  %v3253 = vpop.f32.mrb[0].mxu0
  %v3254 = vadd.f32 0.0, %v3253
  %v3255 = vpop.f32.mrb[0].mxu0
  %3256 = vmatprep.mubr.f32.mxu0 0.0
  %3257 = vmatmul.mubr.f32.gmra.mrb[0].mxu0 %v2895
  %v3258 = vpop.f32.mrb[0].mxu0
  %v3259 = vadd.f32 0.0, %v3258
  %v3260 = vpop.f32.mrb[0].mxu0
  %3261 = vmatprep.mubr.f32.mxu0 0.0
  %3262 = vmatmul.mubr.f32.gmra.mrb[0].mxu0 %v2898
  %v3263 = vpop.f32.mrb[0].mxu0
  %v3264 = vadd.f32 0.0, %v3263
  %v3265 = vpop.f32.mrb[0].mxu0
  %3266 = vmatprep.mubr.f32.mxu0 0.0
  %3267 = vmatmul.mubr.f32.gmra.mrb[0].mxu0 %v2901
  %v3268 = vpop.f32.mrb[0].mxu0
  %v3269 = vadd.f32 0.0, %v3268
  %v3270 = vpop.f32.mrb[0].mxu0
  %3271 = vmatprep.mubr.f32.mxu0 0.0
  %3272 = vmatmul.mubr.f32.gmra.mrb[0].mxu0 %v2904
  %v3273 = vpop.f32.mrb[0].mxu0
  %v3274 = vadd.f32 0.0, %v3273
  %v3275 = vpop.f32.mrb[0].mxu0
  %3276 = vdwg.mxu0
  %3277 = vmatprep.subr.mxu0 0.0
  %3278 = vmatpush1.msra.mxu0 %v1184
  %3279 = vmatprep.subr.mxu0 0.0
  %3280 = vmatpush1.msra.mxu0 %v1185
  %3281 = vmatprep.subr.mxu0 0.0
  %3282 = vmatpush1.msra.mxu0 %v1186
  %3283 = vmatprep.subr.mxu0 0.0
  %3284 = vmatpush1.msra.mxu0 %v1187
  %3285 = vmatprep.subr.mxu0 0.0
  %3286 = vmatpush1.msra.mxu0 %v1188
  %3287 = vmatprep.subr.mxu0 0.0
  %3288 = vmatpush1.msra.mxu0 %v1189
  %3289 = vmatprep.subr.mxu0 0.0
  %3290 = vmatpush1.msra.mxu0 %v1190
  %3291 = vmatprep.subr.mxu0 0.0
  %3292 = vmatpush1.msra.mxu0 %v1191
  %3293 = vmatprep.subr.mxu0 0.0
  %3294 = vmatpush1.msra.mxu0 %v1192
  %3295 = vmatprep.subr.mxu0 0.0
  %3296 = vmatpush1.msra.mxu0 %v1193
  %3297 = vmatprep.subr.mxu0 0.0
  %3298 = vmatpush1.msra.mxu0 %v1194
  %3299 = vmatprep.subr.mxu0 0.0
  %3300 = vmatpush1.msra.mxu0 %v1195
  %3301 = vmatprep.subr.mxu0 0.0
  %3302 = vmatpush1.msra.mxu0 %v1196
  %3303 = vmatprep.subr.mxu0 0.0
  %3304 = vmatpush1.msra.mxu0 %v1197
  %3305 = vmatprep.subr.mxu0 0.0
  %3306 = vmatpush1.msra.mxu0 %v1198
  %3307 = vmatprep.subr.mxu0 0.0
  %3308 = vmatpush1.msra.mxu0 %v1199
  %3309 = vmatprep.subr.mxu0 0.0
  %3310 = vmatpush1.msra.mxu0 %v1200
  %3311 = vmatprep.subr.mxu0 0.0
  %3312 = vmatpush1.msra.mxu0 %v1201
  %3313 = vmatprep.subr.mxu0 0.0
  %3314 = vmatpush1.msra.mxu0 %v1202
  %3315 = vmatprep.subr.mxu0 0.0
  %3316 = vmatpush1.msra.mxu0 %v1203
  %3317 = vmatprep.subr.mxu0 0.0
  %3318 = vmatpush1.msra.mxu0 %v1204
  %3319 = vmatprep.subr.mxu0 0.0
  %3320 = vmatpush1.msra.mxu0 %v1205
  %3321 = vmatprep.subr.mxu0 0.0
  %3322 = vmatpush1.msra.mxu0 %v1206
  %3323 = vmatprep.subr.mxu0 0.0
  %3324 = vmatpush1.msra.mxu0 %v1207
  %3325 = vmatprep.subr.mxu0 0.0
  %3326 = vmatpush1.msra.mxu0 %v1208
  %3327 = vmatprep.subr.mxu0 0.0
  %3328 = vmatpush1.msra.mxu0 %v1209
  %3329 = vmatprep.subr.mxu0 0.0
  %3330 = vmatpush1.msra.mxu0 %v1210
  %3331 = vmatprep.subr.mxu0 0.0
  %3332 = vmatpush1.msra.mxu0 %v1211
  %3333 = vmatprep.subr.mxu0 0.0
  %3334 = vmatpush1.msra.mxu0 %v1212
  %3335 = vmatprep.subr.mxu0 0.0
  %3336 = vmatpush1.msra.mxu0 %v1213
  %3337 = vmatprep.subr.mxu0 0.0
  %3338 = vmatpush1.msra.mxu0 %v1214
  %3339 = vmatprep.subr.mxu0 0.0
  %3340 = vmatpush1.msra.mxu0 %v1215
  %3341 = vmatprep.mubr.f32.mxu0 %v3157
  %3342 = vmatmul.mubr.f32.gmra.mrb[0].mxu0 %v3156
  %v3343 = vpop.f32.mrb[0].mxu0
  %v3344 = vadd.f32 %v3239, %v3343
  %v3345 = vpop.f32.mrb[0].mxu0
  %3346 = vmatprep.mubr.f32.mxu0 %v3159
  %3347 = vmatmul.mubr.f32.gmra.mrb[0].mxu0 %v3158
  %v3348 = vpop.f32.mrb[0].mxu0
  %v3349 = vadd.f32 %v3244, %v3348
  %v3350 = vpop.f32.mrb[0].mxu0
  %3351 = vmatprep.mubr.f32.mxu0 %v3161
  %3352 = vmatmul.mubr.f32.gmra.mrb[0].mxu0 %v3160
  %v3353 = vpop.f32.mrb[0].mxu0
  %v3354 = vadd.f32 %v3249, %v3353
  %v3355 = vpop.f32.mrb[0].mxu0
  %3356 = vmatprep.mubr.f32.mxu0 %v3163
  %3357 = vmatmul.mubr.f32.gmra.mrb[0].mxu0 %v3162
  %v3358 = vpop.f32.mrb[0].mxu0
  %v3359 = vadd.f32 %v3254, %v3358
  %v3360 = vpop.f32.mrb[0].mxu0
  %3361 = vmatprep.mubr.f32.mxu0 %v3165
  %3362 = vmatmul.mubr.f32.gmra.mrb[0].mxu0 %v3164
  %v3363 = vpop.f32.mrb[0].mxu0
  %v3364 = vadd.f32 %v3259, %v3363
  %v3365 = vpop.f32.mrb[0].mxu0
  %3366 = vmatprep.mubr.f32.mxu0 %v3167
  %3367 = vmatmul.mubr.f32.gmra.mrb[0].mxu0 %v3166
  %v3368 = vpop.f32.mrb[0].mxu0
  %v3369 = vadd.f32 %v3264, %v3368
  %v3370 = vpop.f32.mrb[0].mxu0
  %3371 = vmatprep.mubr.f32.mxu0 %v3169
  %3372 = vmatmul.mubr.f32.gmra.mrb[0].mxu0 %v3168
  %v3373 = vpop.f32.mrb[0].mxu0
  %v3374 = vadd.f32 %v3269, %v3373
  %v3375 = vpop.f32.mrb[0].mxu0
  %3376 = vmatprep.mubr.f32.mxu0 %v3171
  %3377 = vmatmul.mubr.f32.gmra.mrb[0].mxu0 %v3170
  %v3378 = vpop.f32.mrb[0].mxu0
  %v3379 = vadd.f32 %v3274, %v3378
  %v3380 = vpop.f32.mrb[0].mxu0
  %3381 = vdwg.mxu0
  %v3382 = vmul.f32 %v3110, %v2874
  %v3383 = vmul.f32 %v3112, %v2874
  %v3384 = vmul.f32 %v3116, %v2875
  %v3385 = vmul.f32 %v3118, %v2875
  %v3386 = vmul.f32 %v3122, %v2876
  %v3387 = vmul.f32 %v3124, %v2876
  %v3388 = vmul.f32 %v3128, %v2877
  %v3389 = vmul.f32 %v3130, %v2877
  %v3390 = vmul.f32 %v3134, %v2878
  %v3391 = vmul.f32 %v3136, %v2878
  %v3392 = vmul.f32 %v3140, %v2879
  %v3393 = vmul.f32 %v3142, %v2879
  %v3394 = vmul.f32 %v3146, %v2880
  %v3395 = vmul.f32 %v3148, %v2880
  %v3396 = vmul.f32 %v3152, %v2881
  %v3397 = vmul.f32 %v3154, %v2881
  %3398 = vmatprep.subr.mxu0 0.0
  %3399 = vmatpush1.msra.mxu0 %v1523
  %3400 = vmatprep.subr.mxu0 0.0
  %3401 = vmatpush1.msra.mxu0 %v1524
  %3402 = vmatprep.subr.mxu0 0.0
  %3403 = vmatpush1.msra.mxu0 %v1525
  %3404 = vmatprep.subr.mxu0 0.0
  %3405 = vmatpush1.msra.mxu0 %v1526
  %3406 = vmatprep.subr.mxu0 0.0
  %3407 = vmatpush1.msra.mxu0 0.0
  %3408 = vmatprep.subr.mxu0 0.0
  %3409 = vmatpush1.msra.mxu0 0.0
  %3410 = vmatprep.subr.mxu0 0.0
  %3411 = vmatpush1.msra.mxu0 0.0
  %3412 = vmatprep.subr.mxu0 0.0
  %3413 = vmatpush1.msra.mxu0 0.0
  %3414 = vmatprep.subr.mxu0 0.0
  %3415 = vmatpush1.msra.mxu0 0.0
  %3416 = vmatprep.subr.mxu0 0.0
  %3417 = vmatpush1.msra.mxu0 0.0
  %3418 = vmatprep.subr.mxu0 0.0
  %3419 = vmatpush1.msra.mxu0 0.0
  %3420 = vmatprep.subr.mxu0 0.0
  %3421 = vmatpush1.msra.mxu0 0.0
  %3422 = vmatprep.subr.mxu0 0.0
  %3423 = vmatpush1.msra.mxu0 0.0
  %3424 = vmatprep.subr.mxu0 0.0
  %3425 = vmatpush1.msra.mxu0 0.0
  %3426 = vmatprep.subr.mxu0 0.0
  %3427 = vmatpush1.msra.mxu0 0.0
  %3428 = vmatprep.subr.mxu0 0.0
  %3429 = vmatpush1.msra.mxu0 0.0
  %3430 = vmatprep.subr.mxu0 0.0
  %3431 = vmatpush1.msra.mxu0 0.0
  %3432 = vmatprep.subr.mxu0 0.0
  %3433 = vmatpush1.msra.mxu0 0.0
  %3434 = vmatprep.subr.mxu0 0.0
  %3435 = vmatpush1.msra.mxu0 0.0
  %3436 = vmatprep.subr.mxu0 0.0
  %3437 = vmatpush1.msra.mxu0 0.0
  %3438 = vmatprep.subr.mxu0 0.0
  %3439 = vmatpush1.msra.mxu0 0.0
  %3440 = vmatprep.subr.mxu0 0.0
  %3441 = vmatpush1.msra.mxu0 0.0
  %3442 = vmatprep.subr.mxu0 0.0
  %3443 = vmatpush1.msra.mxu0 0.0
  %3444 = vmatprep.subr.mxu0 0.0
  %3445 = vmatpush1.msra.mxu0 0.0
  %3446 = vmatprep.subr.mxu0 0.0
  %3447 = vmatpush1.msra.mxu0 0.0
  %3448 = vmatprep.subr.mxu0 0.0
  %3449 = vmatpush1.msra.mxu0 0.0
  %3450 = vmatprep.subr.mxu0 0.0
  %3451 = vmatpush1.msra.mxu0 0.0
  %3452 = vmatprep.subr.mxu0 0.0
  %3453 = vmatpush1.msra.mxu0 0.0
  %3454 = vmatprep.subr.mxu0 0.0
  %3455 = vmatpush1.msra.mxu0 0.0
  %3456 = vmatprep.subr.mxu0 0.0
  %3457 = vmatpush1.msra.mxu0 0.0
  %3458 = vmatprep.subr.mxu0 0.0
  %3459 = vmatpush1.msra.mxu0 0.0
  %3460 = vmatprep.subr.mxu0 0.0
  %3461 = vmatpush1.msra.mxu0 0.0
  %3462 = vmatprep.mubr.f32.mxu0 0.0
  %3463 = vmatmul.mubr.f32.gmra.mrb[0].mxu0 %v3020
  %v3464 = vpop.f32.mrb[0].mxu0
  %v3465 = vadd.f32 0.0, %v3464
  %v3466 = vpop.f32.mrb[0].mxu0
  %3467 = vmatprep.mubr.f32.mxu0 0.0
  %3468 = vmatmul.mubr.f32.gmra.mrb[0].mxu0 %v3023
  %v3469 = vpop.f32.mrb[0].mxu0
  %v3470 = vadd.f32 0.0, %v3469
  %v3471 = vpop.f32.mrb[0].mxu0
  %3472 = vmatprep.mubr.f32.mxu0 0.0
  %3473 = vmatmul.mubr.f32.gmra.mrb[0].mxu0 %v3026
  %v3474 = vpop.f32.mrb[0].mxu0
  %v3475 = vadd.f32 0.0, %v3474
  %v3476 = vpop.f32.mrb[0].mxu0
  %3477 = vmatprep.mubr.f32.mxu0 0.0
  %3478 = vmatmul.mubr.f32.gmra.mrb[0].mxu0 %v3029
  %v3479 = vpop.f32.mrb[0].mxu0
  %v3480 = vadd.f32 0.0, %v3479
  %v3481 = vpop.f32.mrb[0].mxu0
  %3482 = vmatprep.mubr.f32.mxu0 0.0
  %3483 = vmatmul.mubr.f32.gmra.mrb[0].mxu0 %v3032
  %v3484 = vpop.f32.mrb[0].mxu0
  %v3485 = vadd.f32 0.0, %v3484
  %v3486 = vpop.f32.mrb[0].mxu0
  %3487 = vmatprep.mubr.f32.mxu0 0.0
  %3488 = vmatmul.mubr.f32.gmra.mrb[0].mxu0 %v3035
  %v3489 = vpop.f32.mrb[0].mxu0
  %v3490 = vadd.f32 0.0, %v3489
  %v3491 = vpop.f32.mrb[0].mxu0
  %3492 = vmatprep.mubr.f32.mxu0 0.0
  %3493 = vmatmul.mubr.f32.gmra.mrb[0].mxu0 %v3038
  %v3494 = vpop.f32.mrb[0].mxu0
  %v3495 = vadd.f32 0.0, %v3494
  %v3496 = vpop.f32.mrb[0].mxu0
  %3497 = vmatprep.mubr.f32.mxu0 0.0
  %3498 = vmatmul.mubr.f32.gmra.mrb[0].mxu0 %v3041
  %v3499 = vpop.f32.mrb[0].mxu0
  %v3500 = vadd.f32 0.0, %v3499
  %v3501 = vpop.f32.mrb[0].mxu0
  %3502 = vdwg.mxu0
  %3503 = vmatprep.subr.mxu0 0.0
  %3504 = vmatpush1.msra.mxu0 %v1184
  %3505 = vmatprep.subr.mxu0 0.0
  %3506 = vmatpush1.msra.mxu0 %v1185
  %3507 = vmatprep.subr.mxu0 0.0
  %3508 = vmatpush1.msra.mxu0 %v1186
  %3509 = vmatprep.subr.mxu0 0.0
  %3510 = vmatpush1.msra.mxu0 %v1187
  %3511 = vmatprep.subr.mxu0 0.0
  %3512 = vmatpush1.msra.mxu0 %v1188
  %3513 = vmatprep.subr.mxu0 0.0
  %3514 = vmatpush1.msra.mxu0 %v1189
  %3515 = vmatprep.subr.mxu0 0.0
  %3516 = vmatpush1.msra.mxu0 %v1190
  %3517 = vmatprep.subr.mxu0 0.0
  %3518 = vmatpush1.msra.mxu0 %v1191
  %3519 = vmatprep.subr.mxu0 0.0
  %3520 = vmatpush1.msra.mxu0 %v1192
  %3521 = vmatprep.subr.mxu0 0.0
  %3522 = vmatpush1.msra.mxu0 %v1193
  %3523 = vmatprep.subr.mxu0 0.0
  %3524 = vmatpush1.msra.mxu0 %v1194
  %3525 = vmatprep.subr.mxu0 0.0
  %3526 = vmatpush1.msra.mxu0 %v1195
  %3527 = vmatprep.subr.mxu0 0.0
  %3528 = vmatpush1.msra.mxu0 %v1196
  %3529 = vmatprep.subr.mxu0 0.0
  %3530 = vmatpush1.msra.mxu0 %v1197
  %3531 = vmatprep.subr.mxu0 0.0
  %3532 = vmatpush1.msra.mxu0 %v1198
  %3533 = vmatprep.subr.mxu0 0.0
  %3534 = vmatpush1.msra.mxu0 %v1199
  %3535 = vmatprep.subr.mxu0 0.0
  %3536 = vmatpush1.msra.mxu0 %v1200
  %3537 = vmatprep.subr.mxu0 0.0
  %3538 = vmatpush1.msra.mxu0 %v1201
  %3539 = vmatprep.subr.mxu0 0.0
  %3540 = vmatpush1.msra.mxu0 %v1202
  %3541 = vmatprep.subr.mxu0 0.0
  %3542 = vmatpush1.msra.mxu0 %v1203
  %3543 = vmatprep.subr.mxu0 0.0
  %3544 = vmatpush1.msra.mxu0 %v1204
  %3545 = vmatprep.subr.mxu0 0.0
  %3546 = vmatpush1.msra.mxu0 %v1205
  %3547 = vmatprep.subr.mxu0 0.0
  %3548 = vmatpush1.msra.mxu0 %v1206
  %3549 = vmatprep.subr.mxu0 0.0
  %3550 = vmatpush1.msra.mxu0 %v1207
  %3551 = vmatprep.subr.mxu0 0.0
  %3552 = vmatpush1.msra.mxu0 %v1208
  %3553 = vmatprep.subr.mxu0 0.0
  %3554 = vmatpush1.msra.mxu0 %v1209
  %3555 = vmatprep.subr.mxu0 0.0
  %3556 = vmatpush1.msra.mxu0 %v1210
  %3557 = vmatprep.subr.mxu0 0.0
  %3558 = vmatpush1.msra.mxu0 %v1211
  %3559 = vmatprep.subr.mxu0 0.0
  %3560 = vmatpush1.msra.mxu0 %v1212
  %3561 = vmatprep.subr.mxu0 0.0
  %3562 = vmatpush1.msra.mxu0 %v1213
  %3563 = vmatprep.subr.mxu0 0.0
  %3564 = vmatpush1.msra.mxu0 %v1214
  %3565 = vmatprep.subr.mxu0 0.0
  %3566 = vmatpush1.msra.mxu0 %v1215
  %3567 = vmatprep.mubr.f32.mxu0 %v3383
  %3568 = vmatmul.mubr.f32.gmra.mrb[0].mxu0 %v3382
  %v3569 = vpop.f32.mrb[0].mxu0
  %v3570 = vadd.f32 %v3465, %v3569
  %v3571 = vpop.f32.mrb[0].mxu0
  %3572 = vmatprep.mubr.f32.mxu0 %v3385
  %3573 = vmatmul.mubr.f32.gmra.mrb[0].mxu0 %v3384
  %v3574 = vpop.f32.mrb[0].mxu0
  %v3575 = vadd.f32 %v3470, %v3574
  %v3576 = vpop.f32.mrb[0].mxu0
  %3577 = vmatprep.mubr.f32.mxu0 %v3387
  %3578 = vmatmul.mubr.f32.gmra.mrb[0].mxu0 %v3386
  %v3579 = vpop.f32.mrb[0].mxu0
  %v3580 = vadd.f32 %v3475, %v3579
  %v3581 = vpop.f32.mrb[0].mxu0
  %3582 = vmatprep.mubr.f32.mxu0 %v3389
  %3583 = vmatmul.mubr.f32.gmra.mrb[0].mxu0 %v3388
  %v3584 = vpop.f32.mrb[0].mxu0
  %v3585 = vadd.f32 %v3480, %v3584
  %v3586 = vpop.f32.mrb[0].mxu0
  %3587 = vmatprep.mubr.f32.mxu0 %v3391
  %3588 = vmatmul.mubr.f32.gmra.mrb[0].mxu0 %v3390
  %v3589 = vpop.f32.mrb[0].mxu0
  %v3590 = vadd.f32 %v3485, %v3589
  %v3591 = vpop.f32.mrb[0].mxu0
  %3592 = vmatprep.mubr.f32.mxu0 %v3393
  %3593 = vmatmul.mubr.f32.gmra.mrb[0].mxu0 %v3392
  %v3594 = vpop.f32.mrb[0].mxu0
  %v3595 = vadd.f32 %v3490, %v3594
  %v3596 = vpop.f32.mrb[0].mxu0
  %3597 = vmatprep.mubr.f32.mxu0 %v3395
  %3598 = vmatmul.mubr.f32.gmra.mrb[0].mxu0 %v3394
  %v3599 = vpop.f32.mrb[0].mxu0
  %v3600 = vadd.f32 %v3495, %v3599
  %v3601 = vpop.f32.mrb[0].mxu0
  %3602 = vmatprep.mubr.f32.mxu0 %v3397
  %3603 = vmatmul.mubr.f32.gmra.mrb[0].mxu0 %v3396
  %v3604 = vpop.f32.mrb[0].mxu0
  %v3605 = vadd.f32 %v3500, %v3604
  %v3606 = vpop.f32.mrb[0].mxu0
  %3607 = vdwg.mxu0
  %v3609 = vsel %vm84, %v3570, 0
  %v3612 = vsel %vm84, %v3575, 0
  %v3615 = vsel %vm84, %v3580, 0
  %v3618 = vsel %vm84, %v3585, 0
  %v3621 = vsel %vm84, %v3590, 0
  %v3624 = vsel %vm84, %v3595, 0
  %v3627 = vsel %vm84, %v3600, 0
  %v3630 = vsel %vm84, %v3605, 0
  %3632 = vmatprep.subr.mxu0 0.0
  %3633 = vmatpush1.msra.mxu0 %v1220
  %3634 = vmatprep.subr.mxu0 0.0
  %3635 = vmatpush1.msra.mxu0 %v1221
  %3636 = vmatprep.subr.mxu0 0.0
  %3637 = vmatpush1.msra.mxu0 %v1222
  %3638 = vmatprep.subr.mxu0 0.0
  %3639 = vmatpush1.msra.mxu0 %v1223
  %3640 = vmatprep.subr.mxu0 0.0
  %3641 = vmatpush1.msra.mxu0 0.0
  %3642 = vmatprep.subr.mxu0 0.0
  %3643 = vmatpush1.msra.mxu0 0.0
  %3644 = vmatprep.subr.mxu0 0.0
  %3645 = vmatpush1.msra.mxu0 0.0
  %3646 = vmatprep.subr.mxu0 0.0
  %3647 = vmatpush1.msra.mxu0 0.0
  %3648 = vmatprep.subr.mxu0 0.0
  %3649 = vmatpush1.msra.mxu0 0.0
  %3650 = vmatprep.subr.mxu0 0.0
  %3651 = vmatpush1.msra.mxu0 0.0
  %3652 = vmatprep.subr.mxu0 0.0
  %3653 = vmatpush1.msra.mxu0 0.0
  %3654 = vmatprep.subr.mxu0 0.0
  %3655 = vmatpush1.msra.mxu0 0.0
  %3656 = vmatprep.subr.mxu0 0.0
  %3657 = vmatpush1.msra.mxu0 0.0
  %3658 = vmatprep.subr.mxu0 0.0
  %3659 = vmatpush1.msra.mxu0 0.0
  %3660 = vmatprep.subr.mxu0 0.0
  %3661 = vmatpush1.msra.mxu0 0.0
  %3662 = vmatprep.subr.mxu0 0.0
  %3663 = vmatpush1.msra.mxu0 0.0
  %3664 = vmatprep.subr.mxu0 0.0
  %3665 = vmatpush1.msra.mxu0 0.0
  %3666 = vmatprep.subr.mxu0 0.0
  %3667 = vmatpush1.msra.mxu0 0.0
  %3668 = vmatprep.subr.mxu0 0.0
  %3669 = vmatpush1.msra.mxu0 0.0
  %3670 = vmatprep.subr.mxu0 0.0
  %3671 = vmatpush1.msra.mxu0 0.0
  %3672 = vmatprep.subr.mxu0 0.0
  %3673 = vmatpush1.msra.mxu0 0.0
  %3674 = vmatprep.subr.mxu0 0.0
  %3675 = vmatpush1.msra.mxu0 0.0
  %3676 = vmatprep.subr.mxu0 0.0
  %3677 = vmatpush1.msra.mxu0 0.0
  %3678 = vmatprep.subr.mxu0 0.0
  %3679 = vmatpush1.msra.mxu0 0.0
  %3680 = vmatprep.subr.mxu0 0.0
  %3681 = vmatpush1.msra.mxu0 0.0
  %3682 = vmatprep.subr.mxu0 0.0
  %3683 = vmatpush1.msra.mxu0 0.0
  %3684 = vmatprep.subr.mxu0 0.0
  %3685 = vmatpush1.msra.mxu0 0.0
  %3686 = vmatprep.subr.mxu0 0.0
  %3687 = vmatpush1.msra.mxu0 0.0
  %3688 = vmatprep.subr.mxu0 0.0
  %3689 = vmatpush1.msra.mxu0 0.0
  %3690 = vmatprep.subr.mxu0 0.0
  %3691 = vmatpush1.msra.mxu0 0.0
  %3692 = vmatprep.subr.mxu0 0.0
  %3693 = vmatpush1.msra.mxu0 0.0
  %3694 = vmatprep.subr.mxu0 0.0
  %3695 = vmatpush1.msra.mxu0 0.0
  %3696 = vmatprep.mubr.f32.mxu0 0.0
  %3697 = vmatmul.mubr.f32.gmra.mrb[0].mxu0 %v3609
  %v3698 = vpop.f32.mrb[0].mxu0
  %v3699 = vadd.f32 0.0, %v3698
  %v3700 = vpop.f32.mrb[0].mxu0
  %3701 = vmatprep.mubr.f32.mxu0 0.0
  %3702 = vmatmul.mubr.f32.gmra.mrb[0].mxu0 %v3612
  %v3703 = vpop.f32.mrb[0].mxu0
  %v3704 = vadd.f32 0.0, %v3703
  %v3705 = vpop.f32.mrb[0].mxu0
  %3706 = vmatprep.mubr.f32.mxu0 0.0
  %3707 = vmatmul.mubr.f32.gmra.mrb[0].mxu0 %v3615
  %v3708 = vpop.f32.mrb[0].mxu0
  %v3709 = vadd.f32 0.0, %v3708
  %v3710 = vpop.f32.mrb[0].mxu0
  %3711 = vmatprep.mubr.f32.mxu0 0.0
  %3712 = vmatmul.mubr.f32.gmra.mrb[0].mxu0 %v3618
  %v3713 = vpop.f32.mrb[0].mxu0
  %v3714 = vadd.f32 0.0, %v3713
  %v3715 = vpop.f32.mrb[0].mxu0
  %3716 = vmatprep.mubr.f32.mxu0 0.0
  %3717 = vmatmul.mubr.f32.gmra.mrb[0].mxu0 %v3621
  %v3718 = vpop.f32.mrb[0].mxu0
  %v3719 = vadd.f32 0.0, %v3718
  %v3720 = vpop.f32.mrb[0].mxu0
  %3721 = vmatprep.mubr.f32.mxu0 0.0
  %3722 = vmatmul.mubr.f32.gmra.mrb[0].mxu0 %v3624
  %v3723 = vpop.f32.mrb[0].mxu0
  %v3724 = vadd.f32 0.0, %v3723
  %v3725 = vpop.f32.mrb[0].mxu0
  %3726 = vmatprep.mubr.f32.mxu0 0.0
  %3727 = vmatmul.mubr.f32.gmra.mrb[0].mxu0 %v3627
  %v3728 = vpop.f32.mrb[0].mxu0
  %v3729 = vadd.f32 0.0, %v3728
  %v3730 = vpop.f32.mrb[0].mxu0
  %3731 = vmatprep.mubr.f32.mxu0 0.0
  %3732 = vmatmul.mubr.f32.gmra.mrb[0].mxu0 %v3630
  %v3733 = vpop.f32.mrb[0].mxu0
  %v3734 = vadd.f32 0.0, %v3733
  %v3735 = vpop.f32.mrb[0].mxu0
  %3736 = vdwg.mxu0
  %v3737 = vsub.f32 %v3699, %v1096
  %v3738 = vsub.f32 %v3704, %v1097
  %v3739 = vsub.f32 %v3709, %v1098
  %v3740 = vsub.f32 %v3714, %v1099
  %v3741 = vsub.f32 %v3719, %v1100
  %v3742 = vsub.f32 %v3724, %v1101
  %v3743 = vsub.f32 %v3729, %v1102
  %v3744 = vsub.f32 %v3734, %v1103
  %v3746 = vlaneseq
  %v3747 = vshrl.u32 %v3746, 7
  %v3748 = vsub.s32 0, %v3747
  %v3749 = vrot.slane %v1228, %v3748
  %v3752 = vsel %vm84, %v3737, 0
  %v3755 = vsel %vm84, %v3738, 0
  %v3758 = vsel %vm84, %v3739, 0
  %v3761 = vsel %vm84, %v3740, 0
  %v3764 = vsel %vm84, %v3741, 0
  %v3767 = vsel %vm84, %v3742, 0
  %v3770 = vsel %vm84, %v3743, 0
  %v3773 = vsel %vm84, %v3744, 0
  %3775 = vmatprep.subr.mxu0 0.0
  %3776 = vmatpush1.msra.mxu0 %v1224
  %3777 = vmatprep.subr.mxu0 0.0
  %3778 = vmatpush1.msra.mxu0 %v1225
  %3779 = vmatprep.subr.mxu0 0.0
  %3780 = vmatpush1.msra.mxu0 %v1226
  %3781 = vmatprep.subr.mxu0 0.0
  %3782 = vmatpush1.msra.mxu0 %v1227
  %3783 = vmatprep.subr.mxu0 0.0
  %3784 = vmatpush1.msra.mxu0 0.0
  %3785 = vmatprep.subr.mxu0 0.0
  %3786 = vmatpush1.msra.mxu0 0.0
  %3787 = vmatprep.subr.mxu0 0.0
  %3788 = vmatpush1.msra.mxu0 0.0
  %3789 = vmatprep.subr.mxu0 0.0
  %3790 = vmatpush1.msra.mxu0 0.0
  %3791 = vmatprep.subr.mxu0 0.0
  %3792 = vmatpush1.msra.mxu0 0.0
  %3793 = vmatprep.subr.mxu0 0.0
  %3794 = vmatpush1.msra.mxu0 0.0
  %3795 = vmatprep.subr.mxu0 0.0
  %3796 = vmatpush1.msra.mxu0 0.0
  %3797 = vmatprep.subr.mxu0 0.0
  %3798 = vmatpush1.msra.mxu0 0.0
  %3799 = vmatprep.subr.mxu0 0.0
  %3800 = vmatpush1.msra.mxu0 0.0
  %3801 = vmatprep.subr.mxu0 0.0
  %3802 = vmatpush1.msra.mxu0 0.0
  %3803 = vmatprep.subr.mxu0 0.0
  %3804 = vmatpush1.msra.mxu0 0.0
  %3805 = vmatprep.subr.mxu0 0.0
  %3806 = vmatpush1.msra.mxu0 0.0
  %3807 = vmatprep.subr.mxu0 0.0
  %3808 = vmatpush1.msra.mxu0 0.0
  %3809 = vmatprep.subr.mxu0 0.0
  %3810 = vmatpush1.msra.mxu0 0.0
  %3811 = vmatprep.subr.mxu0 0.0
  %3812 = vmatpush1.msra.mxu0 0.0
  %3813 = vmatprep.subr.mxu0 0.0
  %3814 = vmatpush1.msra.mxu0 0.0
  %3815 = vmatprep.subr.mxu0 0.0
  %3816 = vmatpush1.msra.mxu0 0.0
  %3817 = vmatprep.subr.mxu0 0.0
  %3818 = vmatpush1.msra.mxu0 0.0
  %3819 = vmatprep.subr.mxu0 0.0
  %3820 = vmatpush1.msra.mxu0 0.0
  %3821 = vmatprep.subr.mxu0 0.0
  %3822 = vmatpush1.msra.mxu0 0.0
  %3823 = vmatprep.subr.mxu0 0.0
  %3824 = vmatpush1.msra.mxu0 0.0
  %3825 = vmatprep.subr.mxu0 0.0
  %3826 = vmatpush1.msra.mxu0 0.0
  %3827 = vmatprep.subr.mxu0 0.0
  %3828 = vmatpush1.msra.mxu0 0.0
  %3829 = vmatprep.subr.mxu0 0.0
  %3830 = vmatpush1.msra.mxu0 0.0
  %3831 = vmatprep.subr.mxu0 0.0
  %3832 = vmatpush1.msra.mxu0 0.0
  %3833 = vmatprep.subr.mxu0 0.0
  %3834 = vmatpush1.msra.mxu0 0.0
  %3835 = vmatprep.subr.mxu0 0.0
  %3836 = vmatpush1.msra.mxu0 0.0
  %3837 = vmatprep.subr.mxu0 0.0
  %3838 = vmatpush1.msra.mxu0 0.0
  %3839 = vmatprep.mubr.f32.mxu0 0.0
  %3840 = vmatmul.mubr.f32.gmra.mrb[0].mxu0 %v3752
  %v3841 = vpop.f32.mrb[0].mxu0
  %v3842 = vadd.f32 %v3749, %v3841
  %v3843 = vpop.f32.mrb[0].mxu0
  %3844 = vmatprep.mubr.f32.mxu0 0.0
  %3845 = vmatmul.mubr.f32.gmra.mrb[0].mxu0 %v3755
  %v3846 = vpop.f32.mrb[0].mxu0
  %v3847 = vadd.f32 %v3749, %v3846
  %v3848 = vpop.f32.mrb[0].mxu0
  %3849 = vmatprep.mubr.f32.mxu0 0.0
  %3850 = vmatmul.mubr.f32.gmra.mrb[0].mxu0 %v3758
  %v3851 = vpop.f32.mrb[0].mxu0
  %v3852 = vadd.f32 %v3749, %v3851
  %v3853 = vpop.f32.mrb[0].mxu0
  %3854 = vmatprep.mubr.f32.mxu0 0.0
  %3855 = vmatmul.mubr.f32.gmra.mrb[0].mxu0 %v3761
  %v3856 = vpop.f32.mrb[0].mxu0
  %v3857 = vadd.f32 %v3749, %v3856
  %v3858 = vpop.f32.mrb[0].mxu0
  %3859 = vmatprep.mubr.f32.mxu0 0.0
  %3860 = vmatmul.mubr.f32.gmra.mrb[0].mxu0 %v3764
  %v3861 = vpop.f32.mrb[0].mxu0
  %v3862 = vadd.f32 %v3749, %v3861
  %v3863 = vpop.f32.mrb[0].mxu0
  %3864 = vmatprep.mubr.f32.mxu0 0.0
  %3865 = vmatmul.mubr.f32.gmra.mrb[0].mxu0 %v3767
  %v3866 = vpop.f32.mrb[0].mxu0
  %v3867 = vadd.f32 %v3749, %v3866
  %v3868 = vpop.f32.mrb[0].mxu0
  %3869 = vmatprep.mubr.f32.mxu0 0.0
  %3870 = vmatmul.mubr.f32.gmra.mrb[0].mxu0 %v3770
  %v3871 = vpop.f32.mrb[0].mxu0
  %v3872 = vadd.f32 %v3749, %v3871
  %v3873 = vpop.f32.mrb[0].mxu0
  %3874 = vmatprep.mubr.f32.mxu0 0.0
  %3875 = vmatmul.mubr.f32.gmra.mrb[0].mxu0 %v3773
  %v3876 = vpop.f32.mrb[0].mxu0
  %v3877 = vadd.f32 %v3749, %v3876
  %v3878 = vpop.f32.mrb[0].mxu0
  %3879 = vdwg.mxu0
  %v3880 = vsel %vm1261, %v453, -inf
  %v3881 = vsel %vm1261, %v458, -inf
  %v3882 = vsel %vm1261, %v463, -inf
  %v3883 = vsel %vm1261, %v468, -inf
  %v3884 = vsel %vm1261, %v473, -inf
  %v3885 = vmax.f32 %v3880, %v3884
  %v3886 = vsel %vm1261, %v478, -inf
  %v3887 = vmax.f32 %v3881, %v3886
  %v3888 = vsel %vm1261, %v483, -inf
  %v3889 = vmax.f32 %v3882, %v3888
  %v3890 = vsel %vm1261, %v488, -inf
  %v3891 = vmax.f32 %v3883, %v3890
  %v3892 = vmax.f32 %v3885, %v3887
  %v3893 = vmax.f32 %v3889, %v3891
  %v3894 = vmax.f32 %v3892, %v3893
  %v3895 = vrot.slane %v3894, 4
  %v3896 = vmax.f32 %v3894, %v3895
  %v3897 = vrot.slane %v3896, 2
  %v3898 = vmax.f32 %v3896, %v3897
  %v3899 = vrot.slane %v3898, 1
  %v3900 = vmax.f32 %v3898, %v3899
  %v3901 = vsub.f32 %v453, %v3900
  %v3902 = vsub.f32 %v458, %v3900
  %v3903 = vsub.f32 %v463, %v3900
  %v3904 = vsub.f32 %v468, %v3900
  %v3905 = vsub.f32 %v473, %v3900
  %v3906 = vsub.f32 %v478, %v3900
  %v3907 = vsub.f32 %v483, %v3900
  %v3908 = vsub.f32 %v488, %v3900
  %v3909 = vmul.f32 %v3901, 1.442695
  %v3910 = vpow.pop %v3909
  %v3911 = vmul.f32 %v3902, 1.442695
  %v3912 = vpow.pop %v3911
  %v3913 = vmul.f32 %v3903, 1.442695
  %v3914 = vpow.pop %v3913
  %v3915 = vmul.f32 %v3904, 1.442695
  %v3916 = vpow.pop %v3915
  %v3917 = vmul.f32 %v3905, 1.442695
  %v3918 = vpow.pop %v3917
  %v3919 = vmul.f32 %v3906, 1.442695
  %v3920 = vpow.pop %v3919
  %v3921 = vmul.f32 %v3907, 1.442695
  %v3922 = vpow.pop %v3921
  %v3923 = vmul.f32 %v3908, 1.442695
  %v3924 = vpow.pop %v3923
  %v3925 = vsel %vm1261, %v3910, 0.0
  %v3926 = vsel %vm1261, %v3912, 0.0
  %v3927 = vadd.f32 %v3925, %v3926
  %v3928 = vsel %vm1261, %v3914, 0.0
  %v3929 = vadd.f32 %v3927, %v3928
  %v3930 = vsel %vm1261, %v3916, 0.0
  %v3931 = vadd.f32 %v3929, %v3930
  %v3932 = vsel %vm1261, %v3918, 0.0
  %v3933 = vadd.f32 %v3931, %v3932
  %v3934 = vsel %vm1261, %v3920, 0.0
  %v3935 = vadd.f32 %v3933, %v3934
  %v3936 = vsel %vm1261, %v3922, 0.0
  %v3937 = vadd.f32 %v3935, %v3936
  %v3938 = vsel %vm1261, %v3924, 0.0
  %v3939 = vadd.f32 %v3937, %v3938
  %v3940 = vrot.slane %v3939, 4
  %v3941 = vadd.f32 %v3939, %v3940
  %v3942 = vrot.slane %v3941, 2
  %v3943 = vadd.f32 %v3941, %v3942
  %v3944 = vrot.slane %v3943, 1
  %v3945 = vadd.f32 %v3943, %v3944
  %v3946 = vrcp.pop %v3945
  %v3947 = vmul.f32 %v3910, %v3946
  %v3948 = vmul.f32 %v3912, %v3946
  %v3949 = vmul.f32 %v3914, %v3946
  %v3950 = vmul.f32 %v3916, %v3946
  %v3951 = vmul.f32 %v3918, %v3946
  %v3952 = vmul.f32 %v3920, %v3946
  %v3953 = vmul.f32 %v3922, %v3946
  %v3954 = vmul.f32 %v3924, %v3946
  %3963 = vrot.lane.b32.xlu0 %v3947, 96
  %v3964 = vpop.permute.xlu0 %3963
  %3965 = vrot.lane.b32.xlu0 %v3948, 96
  %v3966 = vpop.permute.xlu0 %3965
  %3967 = vrot.lane.b32.xlu0 %v3949, 96
  %v3968 = vpop.permute.xlu0 %3967
  %3969 = vrot.lane.b32.xlu0 %v3950, 96
  %v3970 = vpop.permute.xlu0 %3969
  %3971 = vrot.lane.b32.xlu0 %v3951, 96
  %v3972 = vpop.permute.xlu0 %3971
  %3973 = vrot.lane.b32.xlu0 %v3952, 96
  %v3974 = vpop.permute.xlu0 %3973
  %3975 = vrot.lane.b32.xlu0 %v3953, 96
  %v3976 = vpop.permute.xlu0 %3975
  %3977 = vrot.lane.b32.xlu0 %v3954, 96
  %v3978 = vpop.permute.xlu0 %3977
  %3987 = vxpose.xlu0.b32.start [1/16] %v3964, 128
  %3988 = vxpose.xlu0.b32.cont [2/16] %v3966, 128
  %3989 = vxpose.xlu0.b32.cont [3/16] %v3968, 128
  %3990 = vxpose.xlu0.b32.cont [4/16] %v3970, 128
  %3991 = vxpose.xlu0.b32.cont [5/16] %v3972, 128
  %3992 = vxpose.xlu0.b32.cont [6/16] %v3974, 128
  %3993 = vxpose.xlu0.b32.cont [7/16] %v3976, 128
  %3994 = vxpose.xlu0.b32.cont [8/16] %v3978, 128
  %3995 = vxpose.xlu0.b32.cont [9/16] 0.0, 128
  %3996 = vxpose.xlu0.b32.cont [10/16] 0.0, 128
  %3997 = vxpose.xlu0.b32.cont [11/16] 0.0, 128
  %3998 = vxpose.xlu0.b32.cont [12/16] 0.0, 128
  %3999 = vxpose.xlu0.b32.cont [13/16] 0.0, 128
  %4000 = vxpose.xlu0.b32.cont [14/16] 0.0, 128
  %4001 = vxpose.xlu0.b32.cont [15/16] 0.0, 128
  %4002 = vxpose.xlu0.b32.end [16/16] 0.0, 128
  %v4003 = vpop.trf.xlu0
  %v4004 = vpop.trf.xlu0
  %v4005 = vpop.trf.xlu0
  %v4006 = vpop.trf.xlu0
  %v4007 = vpop.trf.xlu0
  %v4008 = vpop.trf.xlu0
  %v4009 = vpop.trf.xlu0
  %v4010 = vpop.trf.xlu0
  %v4011 = vpop.trf.xlu0
  %v4012 = vpop.trf.xlu0
  %v4013 = vpop.trf.xlu0
  %v4014 = vpop.trf.xlu0
  %v4015 = vpop.trf.xlu0
  %v4016 = vpop.trf.xlu0
  %v4017 = vpop.trf.xlu0
  %v4018 = vpop.trf.xlu0
  %4027 = vrot.lane.b32.xlu0 %v859, 88
  %v4028 = vpop.permute.xlu0 %4027
  %4029 = vrot.lane.b32.xlu0 %v860, 88
  %v4030 = vpop.permute.xlu0 %4029
  %4031 = vrot.lane.b32.xlu0 %v861, 88
  %v4032 = vpop.permute.xlu0 %4031
  %4033 = vrot.lane.b32.xlu0 %v862, 88
  %v4034 = vpop.permute.xlu0 %4033
  %4035 = vrot.lane.b32.xlu0 %v863, 88
  %v4036 = vpop.permute.xlu0 %4035
  %4037 = vrot.lane.b32.xlu0 %v864, 88
  %v4038 = vpop.permute.xlu0 %4037
  %4039 = vrot.lane.b32.xlu0 %v865, 88
  %v4040 = vpop.permute.xlu0 %4039
  %4041 = vrot.lane.b32.xlu0 %v866, 88
  %v4042 = vpop.permute.xlu0 %4041
  %v4052 = vsel %vm1433, %v4003, 0
  %4054 = vmatprep.subr.mxu0 0.0
  %4055 = vmatpush1.msra.mxu0 %v4028
  %4056 = vmatprep.subr.mxu0 0.0
  %4057 = vmatpush1.msra.mxu0 %v4030
  %4058 = vmatprep.subr.mxu0 0.0
  %4059 = vmatpush1.msra.mxu0 %v4032
  %4060 = vmatprep.subr.mxu0 0.0
  %4061 = vmatpush1.msra.mxu0 %v4034
  %4062 = vmatprep.subr.mxu0 0.0
  %4063 = vmatpush1.msra.mxu0 %v4036
  %4064 = vmatprep.subr.mxu0 0.0
  %4065 = vmatpush1.msra.mxu0 %v4038
  %4066 = vmatprep.subr.mxu0 0.0
  %4067 = vmatpush1.msra.mxu0 %v4040
  %4068 = vmatprep.subr.mxu0 0.0
  %4069 = vmatpush1.msra.mxu0 %v4042
  %4070 = vmatprep.subr.mxu0 0.0
  %4071 = vmatpush1.msra.mxu0 0.0
  %4072 = vmatprep.subr.mxu0 0.0
  %4073 = vmatpush1.msra.mxu0 0.0
  %4074 = vmatprep.subr.mxu0 0.0
  %4075 = vmatpush1.msra.mxu0 0.0
  %4076 = vmatprep.subr.mxu0 0.0
  %4077 = vmatpush1.msra.mxu0 0.0
  %4078 = vmatprep.subr.mxu0 0.0
  %4079 = vmatpush1.msra.mxu0 0.0
  %4080 = vmatprep.subr.mxu0 0.0
  %4081 = vmatpush1.msra.mxu0 0.0
  %4082 = vmatprep.subr.mxu0 0.0
  %4083 = vmatpush1.msra.mxu0 0.0
  %4084 = vmatprep.subr.mxu0 0.0
  %4085 = vmatpush1.msra.mxu0 0.0
  %4086 = vmatprep.subr.mxu0 0.0
  %4087 = vmatpush1.msra.mxu0 0.0
  %4088 = vmatprep.subr.mxu0 0.0
  %4089 = vmatpush1.msra.mxu0 0.0
  %4090 = vmatprep.subr.mxu0 0.0
  %4091 = vmatpush1.msra.mxu0 0.0
  %4092 = vmatprep.subr.mxu0 0.0
  %4093 = vmatpush1.msra.mxu0 0.0
  %4094 = vmatprep.subr.mxu0 0.0
  %4095 = vmatpush1.msra.mxu0 0.0
  %4096 = vmatprep.subr.mxu0 0.0
  %4097 = vmatpush1.msra.mxu0 0.0
  %4098 = vmatprep.subr.mxu0 0.0
  %4099 = vmatpush1.msra.mxu0 0.0
  %4100 = vmatprep.subr.mxu0 0.0
  %4101 = vmatpush1.msra.mxu0 0.0
  %4102 = vmatprep.subr.mxu0 0.0
  %4103 = vmatpush1.msra.mxu0 0.0
  %4104 = vmatprep.subr.mxu0 0.0
  %4105 = vmatpush1.msra.mxu0 0.0
  %4106 = vmatprep.subr.mxu0 0.0
  %4107 = vmatpush1.msra.mxu0 0.0
  %4108 = vmatprep.subr.mxu0 0.0
  %4109 = vmatpush1.msra.mxu0 0.0
  %4110 = vmatprep.subr.mxu0 0.0
  %4111 = vmatpush1.msra.mxu0 0.0
  %4112 = vmatprep.subr.mxu0 0.0
  %4113 = vmatpush1.msra.mxu0 0.0
  %4114 = vmatprep.subr.mxu0 0.0
  %4115 = vmatpush1.msra.mxu0 0.0
  %4116 = vmatprep.subr.mxu0 0.0
  %4117 = vmatpush1.msra.mxu0 0.0
  %4118 = vmatprep.mubr.f32.mxu0 0.0
  %4119 = vmatmul.mubr.f32.gmra.mrb[0].mxu0 %v4052
  %v4120 = vpop.f32.mrb[0].mxu0
  %v4121 = vadd.f32 0.0, %v4120
  %v4122 = vpop.f32.mrb[0].mxu0
  %4123 = vdwg.mxu0
  %4125 = vrot.lane.b32.xlu0 %v4121, 8
  %v4126 = vpop.permute.xlu0 %4125
  %4128 = vrot.lane.b32.xlu0 %v4121, 16
  %v4129 = vpop.permute.xlu0 %4128
  %4131 = vrot.lane.b32.xlu0 %v4121, 24
  %v4132 = vpop.permute.xlu0 %4131
  %v4134 = vsel %vm1517, %v4121, %v4126
  %v4135 = vsel %vm1519, %v4134, %v4129
  %v4136 = vsel %vm1521, %v4135, %v4132
  %v4137 = vmul.f32 %v1216, %v4136
  %v4138 = vmul.f32 %v1217, %v4136
  %v4139 = vmul.f32 %v1218, %v4136
  %v4140 = vmul.f32 %v1219, %v4136
  %4141 = vmatprep.subr.mxu0 0.0
  %4142 = vmatpush1.msra.mxu0 %v4028
  %4143 = vmatprep.subr.mxu0 0.0
  %4144 = vmatpush1.msra.mxu0 %v4030
  %4145 = vmatprep.subr.mxu0 0.0
  %4146 = vmatpush1.msra.mxu0 %v4032
  %4147 = vmatprep.subr.mxu0 0.0
  %4148 = vmatpush1.msra.mxu0 %v4034
  %4149 = vmatprep.subr.mxu0 0.0
  %4150 = vmatpush1.msra.mxu0 %v4036
  %4151 = vmatprep.subr.mxu0 0.0
  %4152 = vmatpush1.msra.mxu0 %v4038
  %4153 = vmatprep.subr.mxu0 0.0
  %4154 = vmatpush1.msra.mxu0 %v4040
  %4155 = vmatprep.subr.mxu0 0.0
  %4156 = vmatpush1.msra.mxu0 %v4042
  %4157 = vmatprep.subr.mxu0 0.0
  %4158 = vmatpush1.msra.mxu0 0.0
  %4159 = vmatprep.subr.mxu0 0.0
  %4160 = vmatpush1.msra.mxu0 0.0
  %4161 = vmatprep.subr.mxu0 0.0
  %4162 = vmatpush1.msra.mxu0 0.0
  %4163 = vmatprep.subr.mxu0 0.0
  %4164 = vmatpush1.msra.mxu0 0.0
  %4165 = vmatprep.subr.mxu0 0.0
  %4166 = vmatpush1.msra.mxu0 0.0
  %4167 = vmatprep.subr.mxu0 0.0
  %4168 = vmatpush1.msra.mxu0 0.0
  %4169 = vmatprep.subr.mxu0 0.0
  %4170 = vmatpush1.msra.mxu0 0.0
  %4171 = vmatprep.subr.mxu0 0.0
  %4172 = vmatpush1.msra.mxu0 0.0
  %4173 = vmatprep.subr.mxu0 0.0
  %4174 = vmatpush1.msra.mxu0 0.0
  %4175 = vmatprep.subr.mxu0 0.0
  %4176 = vmatpush1.msra.mxu0 0.0
  %4177 = vmatprep.subr.mxu0 0.0
  %4178 = vmatpush1.msra.mxu0 0.0
  %4179 = vmatprep.subr.mxu0 0.0
  %4180 = vmatpush1.msra.mxu0 0.0
  %4181 = vmatprep.subr.mxu0 0.0
  %4182 = vmatpush1.msra.mxu0 0.0
  %4183 = vmatprep.subr.mxu0 0.0
  %4184 = vmatpush1.msra.mxu0 0.0
  %4185 = vmatprep.subr.mxu0 0.0
  %4186 = vmatpush1.msra.mxu0 0.0
  %4187 = vmatprep.subr.mxu0 0.0
  %4188 = vmatpush1.msra.mxu0 0.0
  %4189 = vmatprep.subr.mxu0 0.0
  %4190 = vmatpush1.msra.mxu0 0.0
  %4191 = vmatprep.subr.mxu0 0.0
  %4192 = vmatpush1.msra.mxu0 0.0
  %4193 = vmatprep.subr.mxu0 0.0
  %4194 = vmatpush1.msra.mxu0 0.0
  %4195 = vmatprep.subr.mxu0 0.0
  %4196 = vmatpush1.msra.mxu0 0.0
  %4197 = vmatprep.subr.mxu0 0.0
  %4198 = vmatpush1.msra.mxu0 0.0
  %4199 = vmatprep.subr.mxu0 0.0
  %4200 = vmatpush1.msra.mxu0 0.0
  %4201 = vmatprep.subr.mxu0 0.0
  %4202 = vmatpush1.msra.mxu0 0.0
  %4203 = vmatprep.subr.mxu0 0.0
  %4204 = vmatpush1.msra.mxu0 0.0
  %4205 = vmatprep.mubr.f32.mxu0 0.0
  %4206 = vmatmul.mubr.f32.gmra.mrb[0].mxu0 %v1528
  %v4207 = vpop.f32.mrb[0].mxu0
  %v4208 = vadd.f32 0.0, %v4207
  %v4209 = vpop.f32.mrb[0].mxu0
  %4210 = vmatprep.mubr.f32.mxu0 0.0
  %4211 = vmatmul.mubr.f32.gmra.mrb[0].mxu0 %v1531
  %v4212 = vpop.f32.mrb[0].mxu0
  %v4213 = vadd.f32 0.0, %v4212
  %v4214 = vpop.f32.mrb[0].mxu0
  %4215 = vmatprep.mubr.f32.mxu0 0.0
  %4216 = vmatmul.mubr.f32.gmra.mrb[0].mxu0 %v1534
  %v4217 = vpop.f32.mrb[0].mxu0
  %v4218 = vadd.f32 0.0, %v4217
  %v4219 = vpop.f32.mrb[0].mxu0
  %4220 = vmatprep.mubr.f32.mxu0 0.0
  %4221 = vmatmul.mubr.f32.gmra.mrb[0].mxu0 %v1537
  %v4222 = vpop.f32.mrb[0].mxu0
  %v4223 = vadd.f32 0.0, %v4222
  %v4224 = vpop.f32.mrb[0].mxu0
  %4225 = vmatprep.mubr.f32.mxu0 0.0
  %4226 = vmatmul.mubr.f32.gmra.mrb[0].mxu0 %v1540
  %v4227 = vpop.f32.mrb[0].mxu0
  %v4228 = vadd.f32 0.0, %v4227
  %v4229 = vpop.f32.mrb[0].mxu0
  %4230 = vmatprep.mubr.f32.mxu0 0.0
  %4231 = vmatmul.mubr.f32.gmra.mrb[0].mxu0 %v1543
  %v4232 = vpop.f32.mrb[0].mxu0
  %v4233 = vadd.f32 0.0, %v4232
  %v4234 = vpop.f32.mrb[0].mxu0
  %4235 = vmatprep.mubr.f32.mxu0 0.0
  %4236 = vmatmul.mubr.f32.gmra.mrb[0].mxu0 %v1546
  %v4237 = vpop.f32.mrb[0].mxu0
  %v4238 = vadd.f32 0.0, %v4237
  %v4239 = vpop.f32.mrb[0].mxu0
  %4240 = vmatprep.mubr.f32.mxu0 0.0
  %4241 = vmatmul.mubr.f32.gmra.mrb[0].mxu0 %v1549
  %v4242 = vpop.f32.mrb[0].mxu0
  %v4243 = vadd.f32 0.0, %v4242
  %v4244 = vpop.f32.mrb[0].mxu0
  %4245 = vdwg.mxu0
  %4246 = vmatprep.subr.mxu0 0.0
  %4247 = vmatpush1.msra.mxu0 %v4028
  %4248 = vmatprep.subr.mxu0 0.0
  %4249 = vmatpush1.msra.mxu0 %v4030
  %4250 = vmatprep.subr.mxu0 0.0
  %4251 = vmatpush1.msra.mxu0 %v4032
  %4252 = vmatprep.subr.mxu0 0.0
  %4253 = vmatpush1.msra.mxu0 %v4034
  %4254 = vmatprep.subr.mxu0 0.0
  %4255 = vmatpush1.msra.mxu0 %v4036
  %4256 = vmatprep.subr.mxu0 0.0
  %4257 = vmatpush1.msra.mxu0 %v4038
  %4258 = vmatprep.subr.mxu0 0.0
  %4259 = vmatpush1.msra.mxu0 %v4040
  %4260 = vmatprep.subr.mxu0 0.0
  %4261 = vmatpush1.msra.mxu0 %v4042
  %4262 = vmatprep.subr.mxu0 0.0
  %4263 = vmatpush1.msra.mxu0 0.0
  %4264 = vmatprep.subr.mxu0 0.0
  %4265 = vmatpush1.msra.mxu0 0.0
  %4266 = vmatprep.subr.mxu0 0.0
  %4267 = vmatpush1.msra.mxu0 0.0
  %4268 = vmatprep.subr.mxu0 0.0
  %4269 = vmatpush1.msra.mxu0 0.0
  %4270 = vmatprep.subr.mxu0 0.0
  %4271 = vmatpush1.msra.mxu0 0.0
  %4272 = vmatprep.subr.mxu0 0.0
  %4273 = vmatpush1.msra.mxu0 0.0
  %4274 = vmatprep.subr.mxu0 0.0
  %4275 = vmatpush1.msra.mxu0 0.0
  %4276 = vmatprep.subr.mxu0 0.0
  %4277 = vmatpush1.msra.mxu0 0.0
  %4278 = vmatprep.subr.mxu0 0.0
  %4279 = vmatpush1.msra.mxu0 0.0
  %4280 = vmatprep.subr.mxu0 0.0
  %4281 = vmatpush1.msra.mxu0 0.0
  %4282 = vmatprep.subr.mxu0 0.0
  %4283 = vmatpush1.msra.mxu0 0.0
  %4284 = vmatprep.subr.mxu0 0.0
  %4285 = vmatpush1.msra.mxu0 0.0
  %4286 = vmatprep.subr.mxu0 0.0
  %4287 = vmatpush1.msra.mxu0 0.0
  %4288 = vmatprep.subr.mxu0 0.0
  %4289 = vmatpush1.msra.mxu0 0.0
  %4290 = vmatprep.subr.mxu0 0.0
  %4291 = vmatpush1.msra.mxu0 0.0
  %4292 = vmatprep.subr.mxu0 0.0
  %4293 = vmatpush1.msra.mxu0 0.0
  %4294 = vmatprep.subr.mxu0 0.0
  %4295 = vmatpush1.msra.mxu0 0.0
  %4296 = vmatprep.subr.mxu0 0.0
  %4297 = vmatpush1.msra.mxu0 0.0
  %4298 = vmatprep.subr.mxu0 0.0
  %4299 = vmatpush1.msra.mxu0 0.0
  %4300 = vmatprep.subr.mxu0 0.0
  %4301 = vmatpush1.msra.mxu0 0.0
  %4302 = vmatprep.subr.mxu0 0.0
  %4303 = vmatpush1.msra.mxu0 0.0
  %4304 = vmatprep.subr.mxu0 0.0
  %4305 = vmatpush1.msra.mxu0 0.0
  %4306 = vmatprep.subr.mxu0 0.0
  %4307 = vmatpush1.msra.mxu0 0.0
  %4308 = vmatprep.subr.mxu0 0.0
  %4309 = vmatpush1.msra.mxu0 0.0
  %4310 = vmatprep.mubr.f32.mxu0 0.0
  %4311 = vmatmul.mubr.f32.gmra.mrb[0].mxu0 %v1657
  %v4312 = vpop.f32.mrb[0].mxu0
  %v4313 = vadd.f32 0.0, %v4312
  %v4314 = vpop.f32.mrb[0].mxu0
  %4315 = vmatprep.mubr.f32.mxu0 0.0
  %4316 = vmatmul.mubr.f32.gmra.mrb[0].mxu0 %v1660
  %v4317 = vpop.f32.mrb[0].mxu0
  %v4318 = vadd.f32 0.0, %v4317
  %v4319 = vpop.f32.mrb[0].mxu0
  %4320 = vmatprep.mubr.f32.mxu0 0.0
  %4321 = vmatmul.mubr.f32.gmra.mrb[0].mxu0 %v1663
  %v4322 = vpop.f32.mrb[0].mxu0
  %v4323 = vadd.f32 0.0, %v4322
  %v4324 = vpop.f32.mrb[0].mxu0
  %4325 = vmatprep.mubr.f32.mxu0 0.0
  %4326 = vmatmul.mubr.f32.gmra.mrb[0].mxu0 %v1666
  %v4327 = vpop.f32.mrb[0].mxu0
  %v4328 = vadd.f32 0.0, %v4327
  %v4329 = vpop.f32.mrb[0].mxu0
  %4330 = vmatprep.mubr.f32.mxu0 0.0
  %4331 = vmatmul.mubr.f32.gmra.mrb[0].mxu0 %v1669
  %v4332 = vpop.f32.mrb[0].mxu0
  %v4333 = vadd.f32 0.0, %v4332
  %v4334 = vpop.f32.mrb[0].mxu0
  %4335 = vmatprep.mubr.f32.mxu0 0.0
  %4336 = vmatmul.mubr.f32.gmra.mrb[0].mxu0 %v1672
  %v4337 = vpop.f32.mrb[0].mxu0
  %v4338 = vadd.f32 0.0, %v4337
  %v4339 = vpop.f32.mrb[0].mxu0
  %4340 = vmatprep.mubr.f32.mxu0 0.0
  %4341 = vmatmul.mubr.f32.gmra.mrb[0].mxu0 %v1675
  %v4342 = vpop.f32.mrb[0].mxu0
  %v4343 = vadd.f32 0.0, %v4342
  %v4344 = vpop.f32.mrb[0].mxu0
  %4345 = vmatprep.mubr.f32.mxu0 0.0
  %4346 = vmatmul.mubr.f32.gmra.mrb[0].mxu0 %v1678
  %v4347 = vpop.f32.mrb[0].mxu0
  %v4348 = vadd.f32 0.0, %v4347
  %v4349 = vpop.f32.mrb[0].mxu0
  %4350 = vdwg.mxu0
  %4351 = vmatprep.subr.mxu0 0.0
  %4352 = vmatpush1.msra.mxu0 %v4028
  %4353 = vmatprep.subr.mxu0 0.0
  %4354 = vmatpush1.msra.mxu0 %v4030
  %4355 = vmatprep.subr.mxu0 0.0
  %4356 = vmatpush1.msra.mxu0 %v4032
  %4357 = vmatprep.subr.mxu0 0.0
  %4358 = vmatpush1.msra.mxu0 %v4034
  %4359 = vmatprep.subr.mxu0 0.0
  %4360 = vmatpush1.msra.mxu0 %v4036
  %4361 = vmatprep.subr.mxu0 0.0
  %4362 = vmatpush1.msra.mxu0 %v4038
  %4363 = vmatprep.subr.mxu0 0.0
  %4364 = vmatpush1.msra.mxu0 %v4040
  %4365 = vmatprep.subr.mxu0 0.0
  %4366 = vmatpush1.msra.mxu0 %v4042
  %4367 = vmatprep.subr.mxu0 0.0
  %4368 = vmatpush1.msra.mxu0 0.0
  %4369 = vmatprep.subr.mxu0 0.0
  %4370 = vmatpush1.msra.mxu0 0.0
  %4371 = vmatprep.subr.mxu0 0.0
  %4372 = vmatpush1.msra.mxu0 0.0
  %4373 = vmatprep.subr.mxu0 0.0
  %4374 = vmatpush1.msra.mxu0 0.0
  %4375 = vmatprep.subr.mxu0 0.0
  %4376 = vmatpush1.msra.mxu0 0.0
  %4377 = vmatprep.subr.mxu0 0.0
  %4378 = vmatpush1.msra.mxu0 0.0
  %4379 = vmatprep.subr.mxu0 0.0
  %4380 = vmatpush1.msra.mxu0 0.0
  %4381 = vmatprep.subr.mxu0 0.0
  %4382 = vmatpush1.msra.mxu0 0.0
  %4383 = vmatprep.subr.mxu0 0.0
  %4384 = vmatpush1.msra.mxu0 0.0
  %4385 = vmatprep.subr.mxu0 0.0
  %4386 = vmatpush1.msra.mxu0 0.0
  %4387 = vmatprep.subr.mxu0 0.0
  %4388 = vmatpush1.msra.mxu0 0.0
  %4389 = vmatprep.subr.mxu0 0.0
  %4390 = vmatpush1.msra.mxu0 0.0
  %4391 = vmatprep.subr.mxu0 0.0
  %4392 = vmatpush1.msra.mxu0 0.0
  %4393 = vmatprep.subr.mxu0 0.0
  %4394 = vmatpush1.msra.mxu0 0.0
  %4395 = vmatprep.subr.mxu0 0.0
  %4396 = vmatpush1.msra.mxu0 0.0
  %4397 = vmatprep.subr.mxu0 0.0
  %4398 = vmatpush1.msra.mxu0 0.0
  %4399 = vmatprep.subr.mxu0 0.0
  %4400 = vmatpush1.msra.mxu0 0.0
  %4401 = vmatprep.subr.mxu0 0.0
  %4402 = vmatpush1.msra.mxu0 0.0
  %4403 = vmatprep.subr.mxu0 0.0
  %4404 = vmatpush1.msra.mxu0 0.0
  %4405 = vmatprep.subr.mxu0 0.0
  %4406 = vmatpush1.msra.mxu0 0.0
  %4407 = vmatprep.subr.mxu0 0.0
  %4408 = vmatpush1.msra.mxu0 0.0
  %4409 = vmatprep.subr.mxu0 0.0
  %4410 = vmatpush1.msra.mxu0 0.0
  %4411 = vmatprep.subr.mxu0 0.0
  %4412 = vmatpush1.msra.mxu0 0.0
  %4413 = vmatprep.subr.mxu0 0.0
  %4414 = vmatpush1.msra.mxu0 0.0
  %4415 = vmatprep.mubr.f32.mxu0 0.0
  %4416 = vmatmul.mubr.f32.gmra.mrb[0].mxu0 %v1786
  %v4417 = vpop.f32.mrb[0].mxu0
  %v4418 = vadd.f32 0.0, %v4417
  %v4419 = vpop.f32.mrb[0].mxu0
  %4420 = vmatprep.mubr.f32.mxu0 0.0
  %4421 = vmatmul.mubr.f32.gmra.mrb[0].mxu0 %v1789
  %v4422 = vpop.f32.mrb[0].mxu0
  %v4423 = vadd.f32 0.0, %v4422
  %v4424 = vpop.f32.mrb[0].mxu0
  %4425 = vmatprep.mubr.f32.mxu0 0.0
  %4426 = vmatmul.mubr.f32.gmra.mrb[0].mxu0 %v1792
  %v4427 = vpop.f32.mrb[0].mxu0
  %v4428 = vadd.f32 0.0, %v4427
  %v4429 = vpop.f32.mrb[0].mxu0
  %4430 = vmatprep.mubr.f32.mxu0 0.0
  %4431 = vmatmul.mubr.f32.gmra.mrb[0].mxu0 %v1795
  %v4432 = vpop.f32.mrb[0].mxu0
  %v4433 = vadd.f32 0.0, %v4432
  %v4434 = vpop.f32.mrb[0].mxu0
  %4435 = vmatprep.mubr.f32.mxu0 0.0
  %4436 = vmatmul.mubr.f32.gmra.mrb[0].mxu0 %v1798
  %v4437 = vpop.f32.mrb[0].mxu0
  %v4438 = vadd.f32 0.0, %v4437
  %v4439 = vpop.f32.mrb[0].mxu0
  %4440 = vmatprep.mubr.f32.mxu0 0.0
  %4441 = vmatmul.mubr.f32.gmra.mrb[0].mxu0 %v1801
  %v4442 = vpop.f32.mrb[0].mxu0
  %v4443 = vadd.f32 0.0, %v4442
  %v4444 = vpop.f32.mrb[0].mxu0
  %4445 = vmatprep.mubr.f32.mxu0 0.0
  %4446 = vmatmul.mubr.f32.gmra.mrb[0].mxu0 %v1804
  %v4447 = vpop.f32.mrb[0].mxu0
  %v4448 = vadd.f32 0.0, %v4447
  %v4449 = vpop.f32.mrb[0].mxu0
  %4450 = vmatprep.mubr.f32.mxu0 0.0
  %4451 = vmatmul.mubr.f32.gmra.mrb[0].mxu0 %v1807
  %v4452 = vpop.f32.mrb[0].mxu0
  %v4453 = vadd.f32 0.0, %v4452
  %v4454 = vpop.f32.mrb[0].mxu0
  %4455 = vdwg.mxu0
  %4456 = vmatprep.subr.mxu0 0.0
  %4457 = vmatpush1.msra.mxu0 %v4028
  %4458 = vmatprep.subr.mxu0 0.0
  %4459 = vmatpush1.msra.mxu0 %v4030
  %4460 = vmatprep.subr.mxu0 0.0
  %4461 = vmatpush1.msra.mxu0 %v4032
  %4462 = vmatprep.subr.mxu0 0.0
  %4463 = vmatpush1.msra.mxu0 %v4034
  %4464 = vmatprep.subr.mxu0 0.0
  %4465 = vmatpush1.msra.mxu0 %v4036
  %4466 = vmatprep.subr.mxu0 0.0
  %4467 = vmatpush1.msra.mxu0 %v4038
  %4468 = vmatprep.subr.mxu0 0.0
  %4469 = vmatpush1.msra.mxu0 %v4040
  %4470 = vmatprep.subr.mxu0 0.0
  %4471 = vmatpush1.msra.mxu0 %v4042
  %4472 = vmatprep.subr.mxu0 0.0
  %4473 = vmatpush1.msra.mxu0 0.0
  %4474 = vmatprep.subr.mxu0 0.0
  %4475 = vmatpush1.msra.mxu0 0.0
  %4476 = vmatprep.subr.mxu0 0.0
  %4477 = vmatpush1.msra.mxu0 0.0
  %4478 = vmatprep.subr.mxu0 0.0
  %4479 = vmatpush1.msra.mxu0 0.0
  %4480 = vmatprep.subr.mxu0 0.0
  %4481 = vmatpush1.msra.mxu0 0.0
  %4482 = vmatprep.subr.mxu0 0.0
  %4483 = vmatpush1.msra.mxu0 0.0
  %4484 = vmatprep.subr.mxu0 0.0
  %4485 = vmatpush1.msra.mxu0 0.0
  %4486 = vmatprep.subr.mxu0 0.0
  %4487 = vmatpush1.msra.mxu0 0.0
  %4488 = vmatprep.subr.mxu0 0.0
  %4489 = vmatpush1.msra.mxu0 0.0
  %4490 = vmatprep.subr.mxu0 0.0
  %4491 = vmatpush1.msra.mxu0 0.0
  %4492 = vmatprep.subr.mxu0 0.0
  %4493 = vmatpush1.msra.mxu0 0.0
  %4494 = vmatprep.subr.mxu0 0.0
  %4495 = vmatpush1.msra.mxu0 0.0
  %4496 = vmatprep.subr.mxu0 0.0
  %4497 = vmatpush1.msra.mxu0 0.0
  %4498 = vmatprep.subr.mxu0 0.0
  %4499 = vmatpush1.msra.mxu0 0.0
  %4500 = vmatprep.subr.mxu0 0.0
  %4501 = vmatpush1.msra.mxu0 0.0
  %4502 = vmatprep.subr.mxu0 0.0
  %4503 = vmatpush1.msra.mxu0 0.0
  %4504 = vmatprep.subr.mxu0 0.0
  %4505 = vmatpush1.msra.mxu0 0.0
  %4506 = vmatprep.subr.mxu0 0.0
  %4507 = vmatpush1.msra.mxu0 0.0
  %4508 = vmatprep.subr.mxu0 0.0
  %4509 = vmatpush1.msra.mxu0 0.0
  %4510 = vmatprep.subr.mxu0 0.0
  %4511 = vmatpush1.msra.mxu0 0.0
  %4512 = vmatprep.subr.mxu0 0.0
  %4513 = vmatpush1.msra.mxu0 0.0
  %4514 = vmatprep.subr.mxu0 0.0
  %4515 = vmatpush1.msra.mxu0 0.0
  %4516 = vmatprep.subr.mxu0 0.0
  %4517 = vmatpush1.msra.mxu0 0.0
  %4518 = vmatprep.subr.mxu0 0.0
  %4519 = vmatpush1.msra.mxu0 0.0
  %4520 = vmatprep.mubr.f32.mxu0 0.0
  %4521 = vmatmul.mubr.f32.gmra.mrb[0].mxu0 %v1915
  %v4522 = vpop.f32.mrb[0].mxu0
  %v4523 = vadd.f32 0.0, %v4522
  %v4524 = vpop.f32.mrb[0].mxu0
  %4525 = vmatprep.mubr.f32.mxu0 0.0
  %4526 = vmatmul.mubr.f32.gmra.mrb[0].mxu0 %v1918
  %v4527 = vpop.f32.mrb[0].mxu0
  %v4528 = vadd.f32 0.0, %v4527
  %v4529 = vpop.f32.mrb[0].mxu0
  %4530 = vmatprep.mubr.f32.mxu0 0.0
  %4531 = vmatmul.mubr.f32.gmra.mrb[0].mxu0 %v1921
  %v4532 = vpop.f32.mrb[0].mxu0
  %v4533 = vadd.f32 0.0, %v4532
  %v4534 = vpop.f32.mrb[0].mxu0
  %4535 = vmatprep.mubr.f32.mxu0 0.0
  %4536 = vmatmul.mubr.f32.gmra.mrb[0].mxu0 %v1924
  %v4537 = vpop.f32.mrb[0].mxu0
  %v4538 = vadd.f32 0.0, %v4537
  %v4539 = vpop.f32.mrb[0].mxu0
  %4540 = vmatprep.mubr.f32.mxu0 0.0
  %4541 = vmatmul.mubr.f32.gmra.mrb[0].mxu0 %v1927
  %v4542 = vpop.f32.mrb[0].mxu0
  %v4543 = vadd.f32 0.0, %v4542
  %v4544 = vpop.f32.mrb[0].mxu0
  %4545 = vmatprep.mubr.f32.mxu0 0.0
  %4546 = vmatmul.mubr.f32.gmra.mrb[0].mxu0 %v1930
  %v4547 = vpop.f32.mrb[0].mxu0
  %v4548 = vadd.f32 0.0, %v4547
  %v4549 = vpop.f32.mrb[0].mxu0
  %4550 = vmatprep.mubr.f32.mxu0 0.0
  %4551 = vmatmul.mubr.f32.gmra.mrb[0].mxu0 %v1933
  %v4552 = vpop.f32.mrb[0].mxu0
  %v4553 = vadd.f32 0.0, %v4552
  %v4554 = vpop.f32.mrb[0].mxu0
  %4555 = vmatprep.mubr.f32.mxu0 0.0
  %4556 = vmatmul.mubr.f32.gmra.mrb[0].mxu0 %v1936
  %v4557 = vpop.f32.mrb[0].mxu0
  %v4558 = vadd.f32 0.0, %v4557
  %v4559 = vpop.f32.mrb[0].mxu0
  %4560 = vdwg.mxu0
  %4561 = vmatprep.subr.mxu0 0.0
  %4562 = vmatpush1.msra.mxu0 %v4028
  %4563 = vmatprep.subr.mxu0 0.0
  %4564 = vmatpush1.msra.mxu0 %v4030
  %4565 = vmatprep.subr.mxu0 0.0
  %4566 = vmatpush1.msra.mxu0 %v4032
  %4567 = vmatprep.subr.mxu0 0.0
  %4568 = vmatpush1.msra.mxu0 %v4034
  %4569 = vmatprep.subr.mxu0 0.0
  %4570 = vmatpush1.msra.mxu0 %v4036
  %4571 = vmatprep.subr.mxu0 0.0
  %4572 = vmatpush1.msra.mxu0 %v4038
  %4573 = vmatprep.subr.mxu0 0.0
  %4574 = vmatpush1.msra.mxu0 %v4040
  %4575 = vmatprep.subr.mxu0 0.0
  %4576 = vmatpush1.msra.mxu0 %v4042
  %4577 = vmatprep.subr.mxu0 0.0
  %4578 = vmatpush1.msra.mxu0 0.0
  %4579 = vmatprep.subr.mxu0 0.0
  %4580 = vmatpush1.msra.mxu0 0.0
  %4581 = vmatprep.subr.mxu0 0.0
  %4582 = vmatpush1.msra.mxu0 0.0
  %4583 = vmatprep.subr.mxu0 0.0
  %4584 = vmatpush1.msra.mxu0 0.0
  %4585 = vmatprep.subr.mxu0 0.0
  %4586 = vmatpush1.msra.mxu0 0.0
  %4587 = vmatprep.subr.mxu0 0.0
  %4588 = vmatpush1.msra.mxu0 0.0
  %4589 = vmatprep.subr.mxu0 0.0
  %4590 = vmatpush1.msra.mxu0 0.0
  %4591 = vmatprep.subr.mxu0 0.0
  %4592 = vmatpush1.msra.mxu0 0.0
  %4593 = vmatprep.subr.mxu0 0.0
  %4594 = vmatpush1.msra.mxu0 0.0
  %4595 = vmatprep.subr.mxu0 0.0
  %4596 = vmatpush1.msra.mxu0 0.0
  %4597 = vmatprep.subr.mxu0 0.0
  %4598 = vmatpush1.msra.mxu0 0.0
  %4599 = vmatprep.subr.mxu0 0.0
  %4600 = vmatpush1.msra.mxu0 0.0
  %4601 = vmatprep.subr.mxu0 0.0
  %4602 = vmatpush1.msra.mxu0 0.0
  %4603 = vmatprep.subr.mxu0 0.0
  %4604 = vmatpush1.msra.mxu0 0.0
  %4605 = vmatprep.subr.mxu0 0.0
  %4606 = vmatpush1.msra.mxu0 0.0
  %4607 = vmatprep.subr.mxu0 0.0
  %4608 = vmatpush1.msra.mxu0 0.0
  %4609 = vmatprep.subr.mxu0 0.0
  %4610 = vmatpush1.msra.mxu0 0.0
  %4611 = vmatprep.subr.mxu0 0.0
  %4612 = vmatpush1.msra.mxu0 0.0
  %4613 = vmatprep.subr.mxu0 0.0
  %4614 = vmatpush1.msra.mxu0 0.0
  %4615 = vmatprep.subr.mxu0 0.0
  %4616 = vmatpush1.msra.mxu0 0.0
  %4617 = vmatprep.subr.mxu0 0.0
  %4618 = vmatpush1.msra.mxu0 0.0
  %4619 = vmatprep.subr.mxu0 0.0
  %4620 = vmatpush1.msra.mxu0 0.0
  %4621 = vmatprep.subr.mxu0 0.0
  %4622 = vmatpush1.msra.mxu0 0.0
  %4623 = vmatprep.subr.mxu0 0.0
  %4624 = vmatpush1.msra.mxu0 0.0
  %4625 = vmatprep.mubr.f32.mxu0 0.0
  %4626 = vmatmul.mubr.f32.gmra.mrb[0].mxu0 %v2044
  %v4627 = vpop.f32.mrb[0].mxu0
  %v4628 = vadd.f32 0.0, %v4627
  %v4629 = vpop.f32.mrb[0].mxu0
  %4630 = vmatprep.mubr.f32.mxu0 0.0
  %4631 = vmatmul.mubr.f32.gmra.mrb[0].mxu0 %v2047
  %v4632 = vpop.f32.mrb[0].mxu0
  %v4633 = vadd.f32 0.0, %v4632
  %v4634 = vpop.f32.mrb[0].mxu0
  %4635 = vmatprep.mubr.f32.mxu0 0.0
  %4636 = vmatmul.mubr.f32.gmra.mrb[0].mxu0 %v2050
  %v4637 = vpop.f32.mrb[0].mxu0
  %v4638 = vadd.f32 0.0, %v4637
  %v4639 = vpop.f32.mrb[0].mxu0
  %4640 = vmatprep.mubr.f32.mxu0 0.0
  %4641 = vmatmul.mubr.f32.gmra.mrb[0].mxu0 %v2053
  %v4642 = vpop.f32.mrb[0].mxu0
  %v4643 = vadd.f32 0.0, %v4642
  %v4644 = vpop.f32.mrb[0].mxu0
  %4645 = vmatprep.mubr.f32.mxu0 0.0
  %4646 = vmatmul.mubr.f32.gmra.mrb[0].mxu0 %v2056
  %v4647 = vpop.f32.mrb[0].mxu0
  %v4648 = vadd.f32 0.0, %v4647
  %v4649 = vpop.f32.mrb[0].mxu0
  %4650 = vmatprep.mubr.f32.mxu0 0.0
  %4651 = vmatmul.mubr.f32.gmra.mrb[0].mxu0 %v2059
  %v4652 = vpop.f32.mrb[0].mxu0
  %v4653 = vadd.f32 0.0, %v4652
  %v4654 = vpop.f32.mrb[0].mxu0
  %4655 = vmatprep.mubr.f32.mxu0 0.0
  %4656 = vmatmul.mubr.f32.gmra.mrb[0].mxu0 %v2062
  %v4657 = vpop.f32.mrb[0].mxu0
  %v4658 = vadd.f32 0.0, %v4657
  %v4659 = vpop.f32.mrb[0].mxu0
  %4660 = vmatprep.mubr.f32.mxu0 0.0
  %4661 = vmatmul.mubr.f32.gmra.mrb[0].mxu0 %v2065
  %v4662 = vpop.f32.mrb[0].mxu0
  %v4663 = vadd.f32 0.0, %v4662
  %v4664 = vpop.f32.mrb[0].mxu0
  %4665 = vdwg.mxu0
  %4666 = vmatprep.subr.mxu0 0.0
  %4667 = vmatpush1.msra.mxu0 %v4028
  %4668 = vmatprep.subr.mxu0 0.0
  %4669 = vmatpush1.msra.mxu0 %v4030
  %4670 = vmatprep.subr.mxu0 0.0
  %4671 = vmatpush1.msra.mxu0 %v4032
  %4672 = vmatprep.subr.mxu0 0.0
  %4673 = vmatpush1.msra.mxu0 %v4034
  %4674 = vmatprep.subr.mxu0 0.0
  %4675 = vmatpush1.msra.mxu0 %v4036
  %4676 = vmatprep.subr.mxu0 0.0
  %4677 = vmatpush1.msra.mxu0 %v4038
  %4678 = vmatprep.subr.mxu0 0.0
  %4679 = vmatpush1.msra.mxu0 %v4040
  %4680 = vmatprep.subr.mxu0 0.0
  %4681 = vmatpush1.msra.mxu0 %v4042
  %4682 = vmatprep.subr.mxu0 0.0
  %4683 = vmatpush1.msra.mxu0 0.0
  %4684 = vmatprep.subr.mxu0 0.0
  %4685 = vmatpush1.msra.mxu0 0.0
  %4686 = vmatprep.subr.mxu0 0.0
  %4687 = vmatpush1.msra.mxu0 0.0
  %4688 = vmatprep.subr.mxu0 0.0
  %4689 = vmatpush1.msra.mxu0 0.0
  %4690 = vmatprep.subr.mxu0 0.0
  %4691 = vmatpush1.msra.mxu0 0.0
  %4692 = vmatprep.subr.mxu0 0.0
  %4693 = vmatpush1.msra.mxu0 0.0
  %4694 = vmatprep.subr.mxu0 0.0
  %4695 = vmatpush1.msra.mxu0 0.0
  %4696 = vmatprep.subr.mxu0 0.0
  %4697 = vmatpush1.msra.mxu0 0.0
  %4698 = vmatprep.subr.mxu0 0.0
  %4699 = vmatpush1.msra.mxu0 0.0
  %4700 = vmatprep.subr.mxu0 0.0
  %4701 = vmatpush1.msra.mxu0 0.0
  %4702 = vmatprep.subr.mxu0 0.0
  %4703 = vmatpush1.msra.mxu0 0.0
  %4704 = vmatprep.subr.mxu0 0.0
  %4705 = vmatpush1.msra.mxu0 0.0
  %4706 = vmatprep.subr.mxu0 0.0
  %4707 = vmatpush1.msra.mxu0 0.0
  %4708 = vmatprep.subr.mxu0 0.0
  %4709 = vmatpush1.msra.mxu0 0.0
  %4710 = vmatprep.subr.mxu0 0.0
  %4711 = vmatpush1.msra.mxu0 0.0
  %4712 = vmatprep.subr.mxu0 0.0
  %4713 = vmatpush1.msra.mxu0 0.0
  %4714 = vmatprep.subr.mxu0 0.0
  %4715 = vmatpush1.msra.mxu0 0.0
  %4716 = vmatprep.subr.mxu0 0.0
  %4717 = vmatpush1.msra.mxu0 0.0
  %4718 = vmatprep.subr.mxu0 0.0
  %4719 = vmatpush1.msra.mxu0 0.0
  %4720 = vmatprep.subr.mxu0 0.0
  %4721 = vmatpush1.msra.mxu0 0.0
  %4722 = vmatprep.subr.mxu0 0.0
  %4723 = vmatpush1.msra.mxu0 0.0
  %4724 = vmatprep.subr.mxu0 0.0
  %4725 = vmatpush1.msra.mxu0 0.0
  %4726 = vmatprep.subr.mxu0 0.0
  %4727 = vmatpush1.msra.mxu0 0.0
  %4728 = vmatprep.subr.mxu0 0.0
  %4729 = vmatpush1.msra.mxu0 0.0
  %4730 = vmatprep.mubr.f32.mxu0 0.0
  %4731 = vmatmul.mubr.f32.gmra.mrb[0].mxu0 %v2173
  %v4732 = vpop.f32.mrb[0].mxu0
  %v4733 = vadd.f32 0.0, %v4732
  %v4734 = vpop.f32.mrb[0].mxu0
  %4735 = vmatprep.mubr.f32.mxu0 0.0
  %4736 = vmatmul.mubr.f32.gmra.mrb[0].mxu0 %v2176
  %v4737 = vpop.f32.mrb[0].mxu0
  %v4738 = vadd.f32 0.0, %v4737
  %v4739 = vpop.f32.mrb[0].mxu0
  %4740 = vmatprep.mubr.f32.mxu0 0.0
  %4741 = vmatmul.mubr.f32.gmra.mrb[0].mxu0 %v2179
  %v4742 = vpop.f32.mrb[0].mxu0
  %v4743 = vadd.f32 0.0, %v4742
  %v4744 = vpop.f32.mrb[0].mxu0
  %4745 = vmatprep.mubr.f32.mxu0 0.0
  %4746 = vmatmul.mubr.f32.gmra.mrb[0].mxu0 %v2182
  %v4747 = vpop.f32.mrb[0].mxu0
  %v4748 = vadd.f32 0.0, %v4747
  %v4749 = vpop.f32.mrb[0].mxu0
  %4750 = vmatprep.mubr.f32.mxu0 0.0
  %4751 = vmatmul.mubr.f32.gmra.mrb[0].mxu0 %v2185
  %v4752 = vpop.f32.mrb[0].mxu0
  %v4753 = vadd.f32 0.0, %v4752
  %v4754 = vpop.f32.mrb[0].mxu0
  %4755 = vmatprep.mubr.f32.mxu0 0.0
  %4756 = vmatmul.mubr.f32.gmra.mrb[0].mxu0 %v2188
  %v4757 = vpop.f32.mrb[0].mxu0
  %v4758 = vadd.f32 0.0, %v4757
  %v4759 = vpop.f32.mrb[0].mxu0
  %4760 = vmatprep.mubr.f32.mxu0 0.0
  %4761 = vmatmul.mubr.f32.gmra.mrb[0].mxu0 %v2191
  %v4762 = vpop.f32.mrb[0].mxu0
  %v4763 = vadd.f32 0.0, %v4762
  %v4764 = vpop.f32.mrb[0].mxu0
  %4765 = vmatprep.mubr.f32.mxu0 0.0
  %4766 = vmatmul.mubr.f32.gmra.mrb[0].mxu0 %v2194
  %v4767 = vpop.f32.mrb[0].mxu0
  %v4768 = vadd.f32 0.0, %v4767
  %v4769 = vpop.f32.mrb[0].mxu0
  %4770 = vdwg.mxu0
  %4771 = vmatprep.subr.mxu0 0.0
  %4772 = vmatpush1.msra.mxu0 %v4028
  %4773 = vmatprep.subr.mxu0 0.0
  %4774 = vmatpush1.msra.mxu0 %v4030
  %4775 = vmatprep.subr.mxu0 0.0
  %4776 = vmatpush1.msra.mxu0 %v4032
  %4777 = vmatprep.subr.mxu0 0.0
  %4778 = vmatpush1.msra.mxu0 %v4034
  %4779 = vmatprep.subr.mxu0 0.0
  %4780 = vmatpush1.msra.mxu0 %v4036
  %4781 = vmatprep.subr.mxu0 0.0
  %4782 = vmatpush1.msra.mxu0 %v4038
  %4783 = vmatprep.subr.mxu0 0.0
  %4784 = vmatpush1.msra.mxu0 %v4040
  %4785 = vmatprep.subr.mxu0 0.0
  %4786 = vmatpush1.msra.mxu0 %v4042
  %4787 = vmatprep.subr.mxu0 0.0
  %4788 = vmatpush1.msra.mxu0 0.0
  %4789 = vmatprep.subr.mxu0 0.0
  %4790 = vmatpush1.msra.mxu0 0.0
  %4791 = vmatprep.subr.mxu0 0.0
  %4792 = vmatpush1.msra.mxu0 0.0
  %4793 = vmatprep.subr.mxu0 0.0
  %4794 = vmatpush1.msra.mxu0 0.0
  %4795 = vmatprep.subr.mxu0 0.0
  %4796 = vmatpush1.msra.mxu0 0.0
  %4797 = vmatprep.subr.mxu0 0.0
  %4798 = vmatpush1.msra.mxu0 0.0
  %4799 = vmatprep.subr.mxu0 0.0
  %4800 = vmatpush1.msra.mxu0 0.0
  %4801 = vmatprep.subr.mxu0 0.0
  %4802 = vmatpush1.msra.mxu0 0.0
  %4803 = vmatprep.subr.mxu0 0.0
  %4804 = vmatpush1.msra.mxu0 0.0
  %4805 = vmatprep.subr.mxu0 0.0
  %4806 = vmatpush1.msra.mxu0 0.0
  %4807 = vmatprep.subr.mxu0 0.0
  %4808 = vmatpush1.msra.mxu0 0.0
  %4809 = vmatprep.subr.mxu0 0.0
  %4810 = vmatpush1.msra.mxu0 0.0
  %4811 = vmatprep.subr.mxu0 0.0
  %4812 = vmatpush1.msra.mxu0 0.0
  %4813 = vmatprep.subr.mxu0 0.0
  %4814 = vmatpush1.msra.mxu0 0.0
  %4815 = vmatprep.subr.mxu0 0.0
  %4816 = vmatpush1.msra.mxu0 0.0
  %4817 = vmatprep.subr.mxu0 0.0
  %4818 = vmatpush1.msra.mxu0 0.0
  %4819 = vmatprep.subr.mxu0 0.0
  %4820 = vmatpush1.msra.mxu0 0.0
  %4821 = vmatprep.subr.mxu0 0.0
  %4822 = vmatpush1.msra.mxu0 0.0
  %4823 = vmatprep.subr.mxu0 0.0
  %4824 = vmatpush1.msra.mxu0 0.0
  %4825 = vmatprep.subr.mxu0 0.0
  %4826 = vmatpush1.msra.mxu0 0.0
  %4827 = vmatprep.subr.mxu0 0.0
  %4828 = vmatpush1.msra.mxu0 0.0
  %4829 = vmatprep.subr.mxu0 0.0
  %4830 = vmatpush1.msra.mxu0 0.0
  %4831 = vmatprep.subr.mxu0 0.0
  %4832 = vmatpush1.msra.mxu0 0.0
  %4833 = vmatprep.subr.mxu0 0.0
  %4834 = vmatpush1.msra.mxu0 0.0
  %4835 = vmatprep.mubr.f32.mxu0 0.0
  %4836 = vmatmul.mubr.f32.gmra.mrb[0].mxu0 %v2302
  %v4837 = vpop.f32.mrb[0].mxu0
  %v4838 = vadd.f32 0.0, %v4837
  %v4839 = vpop.f32.mrb[0].mxu0
  %4840 = vmatprep.mubr.f32.mxu0 0.0
  %4841 = vmatmul.mubr.f32.gmra.mrb[0].mxu0 %v2305
  %v4842 = vpop.f32.mrb[0].mxu0
  %v4843 = vadd.f32 0.0, %v4842
  %v4844 = vpop.f32.mrb[0].mxu0
  %4845 = vmatprep.mubr.f32.mxu0 0.0
  %4846 = vmatmul.mubr.f32.gmra.mrb[0].mxu0 %v2308
  %v4847 = vpop.f32.mrb[0].mxu0
  %v4848 = vadd.f32 0.0, %v4847
  %v4849 = vpop.f32.mrb[0].mxu0
  %4850 = vmatprep.mubr.f32.mxu0 0.0
  %4851 = vmatmul.mubr.f32.gmra.mrb[0].mxu0 %v2311
  %v4852 = vpop.f32.mrb[0].mxu0
  %v4853 = vadd.f32 0.0, %v4852
  %v4854 = vpop.f32.mrb[0].mxu0
  %4855 = vmatprep.mubr.f32.mxu0 0.0
  %4856 = vmatmul.mubr.f32.gmra.mrb[0].mxu0 %v2314
  %v4857 = vpop.f32.mrb[0].mxu0
  %v4858 = vadd.f32 0.0, %v4857
  %v4859 = vpop.f32.mrb[0].mxu0
  %4860 = vmatprep.mubr.f32.mxu0 0.0
  %4861 = vmatmul.mubr.f32.gmra.mrb[0].mxu0 %v2317
  %v4862 = vpop.f32.mrb[0].mxu0
  %v4863 = vadd.f32 0.0, %v4862
  %v4864 = vpop.f32.mrb[0].mxu0
  %4865 = vmatprep.mubr.f32.mxu0 0.0
  %4866 = vmatmul.mubr.f32.gmra.mrb[0].mxu0 %v2320
  %v4867 = vpop.f32.mrb[0].mxu0
  %v4868 = vadd.f32 0.0, %v4867
  %v4869 = vpop.f32.mrb[0].mxu0
  %4870 = vmatprep.mubr.f32.mxu0 0.0
  %4871 = vmatmul.mubr.f32.gmra.mrb[0].mxu0 %v2323
  %v4872 = vpop.f32.mrb[0].mxu0
  %v4873 = vadd.f32 0.0, %v4872
  %v4874 = vpop.f32.mrb[0].mxu0
  %4875 = vdwg.mxu0
  %4876 = vmatprep.subr.mxu0 0.0
  %4877 = vmatpush1.msra.mxu0 %v4028
  %4878 = vmatprep.subr.mxu0 0.0
  %4879 = vmatpush1.msra.mxu0 %v4030
  %4880 = vmatprep.subr.mxu0 0.0
  %4881 = vmatpush1.msra.mxu0 %v4032
  %4882 = vmatprep.subr.mxu0 0.0
  %4883 = vmatpush1.msra.mxu0 %v4034
  %4884 = vmatprep.subr.mxu0 0.0
  %4885 = vmatpush1.msra.mxu0 %v4036
  %4886 = vmatprep.subr.mxu0 0.0
  %4887 = vmatpush1.msra.mxu0 %v4038
  %4888 = vmatprep.subr.mxu0 0.0
  %4889 = vmatpush1.msra.mxu0 %v4040
  %4890 = vmatprep.subr.mxu0 0.0
  %4891 = vmatpush1.msra.mxu0 %v4042
  %4892 = vmatprep.subr.mxu0 0.0
  %4893 = vmatpush1.msra.mxu0 0.0
  %4894 = vmatprep.subr.mxu0 0.0
  %4895 = vmatpush1.msra.mxu0 0.0
  %4896 = vmatprep.subr.mxu0 0.0
  %4897 = vmatpush1.msra.mxu0 0.0
  %4898 = vmatprep.subr.mxu0 0.0
  %4899 = vmatpush1.msra.mxu0 0.0
  %4900 = vmatprep.subr.mxu0 0.0
  %4901 = vmatpush1.msra.mxu0 0.0
  %4902 = vmatprep.subr.mxu0 0.0
  %4903 = vmatpush1.msra.mxu0 0.0
  %4904 = vmatprep.subr.mxu0 0.0
  %4905 = vmatpush1.msra.mxu0 0.0
  %4906 = vmatprep.subr.mxu0 0.0
  %4907 = vmatpush1.msra.mxu0 0.0
  %4908 = vmatprep.subr.mxu0 0.0
  %4909 = vmatpush1.msra.mxu0 0.0
  %4910 = vmatprep.subr.mxu0 0.0
  %4911 = vmatpush1.msra.mxu0 0.0
  %4912 = vmatprep.subr.mxu0 0.0
  %4913 = vmatpush1.msra.mxu0 0.0
  %4914 = vmatprep.subr.mxu0 0.0
  %4915 = vmatpush1.msra.mxu0 0.0
  %4916 = vmatprep.subr.mxu0 0.0
  %4917 = vmatpush1.msra.mxu0 0.0
  %4918 = vmatprep.subr.mxu0 0.0
  %4919 = vmatpush1.msra.mxu0 0.0
  %4920 = vmatprep.subr.mxu0 0.0
  %4921 = vmatpush1.msra.mxu0 0.0
  %4922 = vmatprep.subr.mxu0 0.0
  %4923 = vmatpush1.msra.mxu0 0.0
  %4924 = vmatprep.subr.mxu0 0.0
  %4925 = vmatpush1.msra.mxu0 0.0
  %4926 = vmatprep.subr.mxu0 0.0
  %4927 = vmatpush1.msra.mxu0 0.0
  %4928 = vmatprep.subr.mxu0 0.0
  %4929 = vmatpush1.msra.mxu0 0.0
  %4930 = vmatprep.subr.mxu0 0.0
  %4931 = vmatpush1.msra.mxu0 0.0
  %4932 = vmatprep.subr.mxu0 0.0
  %4933 = vmatpush1.msra.mxu0 0.0
  %4934 = vmatprep.subr.mxu0 0.0
  %4935 = vmatpush1.msra.mxu0 0.0
  %4936 = vmatprep.subr.mxu0 0.0
  %4937 = vmatpush1.msra.mxu0 0.0
  %4938 = vmatprep.subr.mxu0 0.0
  %4939 = vmatpush1.msra.mxu0 0.0
  %4940 = vmatprep.mubr.f32.mxu0 0.0
  %4941 = vmatmul.mubr.f32.gmra.mrb[0].mxu0 %v2431
  %v4942 = vpop.f32.mrb[0].mxu0
  %v4943 = vadd.f32 0.0, %v4942
  %v4944 = vpop.f32.mrb[0].mxu0
  %4945 = vmatprep.mubr.f32.mxu0 0.0
  %4946 = vmatmul.mubr.f32.gmra.mrb[0].mxu0 %v2434
  %v4947 = vpop.f32.mrb[0].mxu0
  %v4948 = vadd.f32 0.0, %v4947
  %v4949 = vpop.f32.mrb[0].mxu0
  %4950 = vmatprep.mubr.f32.mxu0 0.0
  %4951 = vmatmul.mubr.f32.gmra.mrb[0].mxu0 %v2437
  %v4952 = vpop.f32.mrb[0].mxu0
  %v4953 = vadd.f32 0.0, %v4952
  %v4954 = vpop.f32.mrb[0].mxu0
  %4955 = vmatprep.mubr.f32.mxu0 0.0
  %4956 = vmatmul.mubr.f32.gmra.mrb[0].mxu0 %v2440
  %v4957 = vpop.f32.mrb[0].mxu0
  %v4958 = vadd.f32 0.0, %v4957
  %v4959 = vpop.f32.mrb[0].mxu0
  %4960 = vmatprep.mubr.f32.mxu0 0.0
  %4961 = vmatmul.mubr.f32.gmra.mrb[0].mxu0 %v2443
  %v4962 = vpop.f32.mrb[0].mxu0
  %v4963 = vadd.f32 0.0, %v4962
  %v4964 = vpop.f32.mrb[0].mxu0
  %4965 = vmatprep.mubr.f32.mxu0 0.0
  %4966 = vmatmul.mubr.f32.gmra.mrb[0].mxu0 %v2446
  %v4967 = vpop.f32.mrb[0].mxu0
  %v4968 = vadd.f32 0.0, %v4967
  %v4969 = vpop.f32.mrb[0].mxu0
  %4970 = vmatprep.mubr.f32.mxu0 0.0
  %4971 = vmatmul.mubr.f32.gmra.mrb[0].mxu0 %v2449
  %v4972 = vpop.f32.mrb[0].mxu0
  %v4973 = vadd.f32 0.0, %v4972
  %v4974 = vpop.f32.mrb[0].mxu0
  %4975 = vmatprep.mubr.f32.mxu0 0.0
  %4976 = vmatmul.mubr.f32.gmra.mrb[0].mxu0 %v2452
  %v4977 = vpop.f32.mrb[0].mxu0
  %v4978 = vadd.f32 0.0, %v4977
  %v4979 = vpop.f32.mrb[0].mxu0
  %4980 = vdwg.mxu0
  %4989 = vrot.lane.b32.xlu0 %v4313, 8
  %v4990 = vpop.permute.xlu0 %4989
  %4991 = vrot.lane.b32.xlu0 %v4318, 8
  %v4992 = vpop.permute.xlu0 %4991
  %4993 = vrot.lane.b32.xlu0 %v4323, 8
  %v4994 = vpop.permute.xlu0 %4993
  %4995 = vrot.lane.b32.xlu0 %v4328, 8
  %v4996 = vpop.permute.xlu0 %4995
  %4997 = vrot.lane.b32.xlu0 %v4333, 8
  %v4998 = vpop.permute.xlu0 %4997
  %4999 = vrot.lane.b32.xlu0 %v4338, 8
  %v5000 = vpop.permute.xlu0 %4999
  %5001 = vrot.lane.b32.xlu0 %v4343, 8
  %v5002 = vpop.permute.xlu0 %5001
  %5003 = vrot.lane.b32.xlu0 %v4348, 8
  %v5004 = vpop.permute.xlu0 %5003
  %5021 = vrot.lane.b32.xlu0 %v4418, 16
  %v5022 = vpop.permute.xlu0 %5021
  %5023 = vrot.lane.b32.xlu0 %v4423, 16
  %v5024 = vpop.permute.xlu0 %5023
  %5025 = vrot.lane.b32.xlu0 %v4428, 16
  %v5026 = vpop.permute.xlu0 %5025
  %5027 = vrot.lane.b32.xlu0 %v4433, 16
  %v5028 = vpop.permute.xlu0 %5027
  %5029 = vrot.lane.b32.xlu0 %v4438, 16
  %v5030 = vpop.permute.xlu0 %5029
  %5031 = vrot.lane.b32.xlu0 %v4443, 16
  %v5032 = vpop.permute.xlu0 %5031
  %5033 = vrot.lane.b32.xlu0 %v4448, 16
  %v5034 = vpop.permute.xlu0 %5033
  %5035 = vrot.lane.b32.xlu0 %v4453, 16
  %v5036 = vpop.permute.xlu0 %5035
  %5053 = vrot.lane.b32.xlu0 %v4523, 24
  %v5054 = vpop.permute.xlu0 %5053
  %5055 = vrot.lane.b32.xlu0 %v4528, 24
  %v5056 = vpop.permute.xlu0 %5055
  %5057 = vrot.lane.b32.xlu0 %v4533, 24
  %v5058 = vpop.permute.xlu0 %5057
  %5059 = vrot.lane.b32.xlu0 %v4538, 24
  %v5060 = vpop.permute.xlu0 %5059
  %5061 = vrot.lane.b32.xlu0 %v4543, 24
  %v5062 = vpop.permute.xlu0 %5061
  %5063 = vrot.lane.b32.xlu0 %v4548, 24
  %v5064 = vpop.permute.xlu0 %5063
  %5065 = vrot.lane.b32.xlu0 %v4553, 24
  %v5066 = vpop.permute.xlu0 %5065
  %5067 = vrot.lane.b32.xlu0 %v4558, 24
  %v5068 = vpop.permute.xlu0 %5067
  %5085 = vrot.lane.b32.xlu0 %v4628, 32
  %v5086 = vpop.permute.xlu0 %5085
  %5087 = vrot.lane.b32.xlu0 %v4633, 32
  %v5088 = vpop.permute.xlu0 %5087
  %5089 = vrot.lane.b32.xlu0 %v4638, 32
  %v5090 = vpop.permute.xlu0 %5089
  %5091 = vrot.lane.b32.xlu0 %v4643, 32
  %v5092 = vpop.permute.xlu0 %5091
  %5093 = vrot.lane.b32.xlu0 %v4648, 32
  %v5094 = vpop.permute.xlu0 %5093
  %5095 = vrot.lane.b32.xlu0 %v4653, 32
  %v5096 = vpop.permute.xlu0 %5095
  %5097 = vrot.lane.b32.xlu0 %v4658, 32
  %v5098 = vpop.permute.xlu0 %5097
  %5099 = vrot.lane.b32.xlu0 %v4663, 32
  %v5100 = vpop.permute.xlu0 %5099
  %5117 = vrot.lane.b32.xlu0 %v4733, 40
  %v5118 = vpop.permute.xlu0 %5117
  %5119 = vrot.lane.b32.xlu0 %v4738, 40
  %v5120 = vpop.permute.xlu0 %5119
  %5121 = vrot.lane.b32.xlu0 %v4743, 40
  %v5122 = vpop.permute.xlu0 %5121
  %5123 = vrot.lane.b32.xlu0 %v4748, 40
  %v5124 = vpop.permute.xlu0 %5123
  %5125 = vrot.lane.b32.xlu0 %v4753, 40
  %v5126 = vpop.permute.xlu0 %5125
  %5127 = vrot.lane.b32.xlu0 %v4758, 40
  %v5128 = vpop.permute.xlu0 %5127
  %5129 = vrot.lane.b32.xlu0 %v4763, 40
  %v5130 = vpop.permute.xlu0 %5129
  %5131 = vrot.lane.b32.xlu0 %v4768, 40
  %v5132 = vpop.permute.xlu0 %5131
  %5149 = vrot.lane.b32.xlu0 %v4838, 48
  %v5150 = vpop.permute.xlu0 %5149
  %5151 = vrot.lane.b32.xlu0 %v4843, 48
  %v5152 = vpop.permute.xlu0 %5151
  %5153 = vrot.lane.b32.xlu0 %v4848, 48
  %v5154 = vpop.permute.xlu0 %5153
  %5155 = vrot.lane.b32.xlu0 %v4853, 48
  %v5156 = vpop.permute.xlu0 %5155
  %5157 = vrot.lane.b32.xlu0 %v4858, 48
  %v5158 = vpop.permute.xlu0 %5157
  %5159 = vrot.lane.b32.xlu0 %v4863, 48
  %v5160 = vpop.permute.xlu0 %5159
  %5161 = vrot.lane.b32.xlu0 %v4868, 48
  %v5162 = vpop.permute.xlu0 %5161
  %5163 = vrot.lane.b32.xlu0 %v4873, 48
  %v5164 = vpop.permute.xlu0 %5163
  %5181 = vrot.lane.b32.xlu0 %v4943, 56
  %v5182 = vpop.permute.xlu0 %5181
  %5183 = vrot.lane.b32.xlu0 %v4948, 56
  %v5184 = vpop.permute.xlu0 %5183
  %5185 = vrot.lane.b32.xlu0 %v4953, 56
  %v5186 = vpop.permute.xlu0 %5185
  %5187 = vrot.lane.b32.xlu0 %v4958, 56
  %v5188 = vpop.permute.xlu0 %5187
  %5189 = vrot.lane.b32.xlu0 %v4963, 56
  %v5190 = vpop.permute.xlu0 %5189
  %5191 = vrot.lane.b32.xlu0 %v4968, 56
  %v5192 = vpop.permute.xlu0 %5191
  %5193 = vrot.lane.b32.xlu0 %v4973, 56
  %v5194 = vpop.permute.xlu0 %5193
  %5195 = vrot.lane.b32.xlu0 %v4978, 56
  %v5196 = vpop.permute.xlu0 %5195
  %v5205 = vsel %vm1517, %v4208, %v4990
  %v5206 = vsel %vm1517, %v4213, %v4992
  %v5207 = vsel %vm1517, %v4218, %v4994
  %v5208 = vsel %vm1517, %v4223, %v4996
  %v5209 = vsel %vm1517, %v4228, %v4998
  %v5210 = vsel %vm1517, %v4233, %v5000
  %v5211 = vsel %vm1517, %v4238, %v5002
  %v5212 = vsel %vm1517, %v4243, %v5004
  %v5213 = vsel %vm1519, %v5205, %v5022
  %v5214 = vsel %vm1519, %v5206, %v5024
  %v5215 = vsel %vm1519, %v5207, %v5026
  %v5216 = vsel %vm1519, %v5208, %v5028
  %v5217 = vsel %vm1519, %v5209, %v5030
  %v5218 = vsel %vm1519, %v5210, %v5032
  %v5219 = vsel %vm1519, %v5211, %v5034
  %v5220 = vsel %vm1519, %v5212, %v5036
  %v5221 = vsel %vm1521, %v5213, %v5054
  %v5222 = vsel %vm1521, %v5214, %v5056
  %v5223 = vsel %vm1521, %v5215, %v5058
  %v5224 = vsel %vm1521, %v5216, %v5060
  %v5225 = vsel %vm1521, %v5217, %v5062
  %v5226 = vsel %vm1521, %v5218, %v5064
  %v5227 = vsel %vm1521, %v5219, %v5066
  %v5228 = vsel %vm1521, %v5220, %v5068
  %v5229 = vsel %vm84, %v5221, %v5086
  %v5230 = vsel %vm84, %v5222, %v5088
  %v5231 = vsel %vm84, %v5223, %v5090
  %v5232 = vsel %vm84, %v5224, %v5092
  %v5233 = vsel %vm84, %v5225, %v5094
  %v5234 = vsel %vm84, %v5226, %v5096
  %v5235 = vsel %vm84, %v5227, %v5098
  %v5236 = vsel %vm84, %v5228, %v5100
  %v5237 = vsel %vm2815, %v5229, %v5118
  %v5238 = vsel %vm2815, %v5230, %v5120
  %v5239 = vsel %vm2815, %v5231, %v5122
  %v5240 = vsel %vm2815, %v5232, %v5124
  %v5241 = vsel %vm2815, %v5233, %v5126
  %v5242 = vsel %vm2815, %v5234, %v5128
  %v5243 = vsel %vm2815, %v5235, %v5130
  %v5244 = vsel %vm2815, %v5236, %v5132
  %v5245 = vsel %vm2824, %v5237, %v5150
  %v5246 = vsel %vm2824, %v5238, %v5152
  %v5247 = vsel %vm2824, %v5239, %v5154
  %v5248 = vsel %vm2824, %v5240, %v5156
  %v5249 = vsel %vm2824, %v5241, %v5158
  %v5250 = vsel %vm2824, %v5242, %v5160
  %v5251 = vsel %vm2824, %v5243, %v5162
  %v5252 = vsel %vm2824, %v5244, %v5164
  %v5253 = vsel %vm2833, %v5245, %v5182
  %v5254 = vsel %vm2833, %v5246, %v5184
  %v5255 = vsel %vm2833, %v5247, %v5186
  %v5256 = vsel %vm2833, %v5248, %v5188
  %v5257 = vsel %vm2833, %v5249, %v5190
  %v5258 = vsel %vm2833, %v5250, %v5192
  %v5259 = vsel %vm2833, %v5251, %v5194
  %v5260 = vsel %vm2833, %v5252, %v5196
  %5269 = vrot.lane.b32.xlu0 %v5253, 64
  %v5270 = vpop.permute.xlu0 %5269
  %5271 = vrot.lane.b32.xlu0 %v5254, 64
  %v5272 = vpop.permute.xlu0 %5271
  %5273 = vrot.lane.b32.xlu0 %v5255, 64
  %v5274 = vpop.permute.xlu0 %5273
  %5275 = vrot.lane.b32.xlu0 %v5256, 64
  %v5276 = vpop.permute.xlu0 %5275
  %5277 = vrot.lane.b32.xlu0 %v5257, 64
  %v5278 = vpop.permute.xlu0 %5277
  %5279 = vrot.lane.b32.xlu0 %v5258, 64
  %v5280 = vpop.permute.xlu0 %5279
  %5281 = vrot.lane.b32.xlu0 %v5259, 64
  %v5282 = vpop.permute.xlu0 %5281
  %5283 = vrot.lane.b32.xlu0 %v5260, 64
  %v5284 = vpop.permute.xlu0 %5283
  %v5293 = vsel %vm1433, %v5253, %v5270
  %v5294 = vsel %vm1433, %v5254, %v5272
  %v5295 = vsel %vm1433, %v5255, %v5274
  %v5296 = vsel %vm1433, %v5256, %v5276
  %v5297 = vsel %vm1433, %v5257, %v5278
  %v5298 = vsel %vm1433, %v5258, %v5280
  %v5299 = vsel %vm1433, %v5259, %v5282
  %v5300 = vsel %vm1433, %v5260, %v5284
  %v5302 = vsel %vm84, %v691, 0
  %v5305 = vsel %vm84, %v692, 0
  %v5308 = vsel %vm84, %v693, 0
  %v5311 = vsel %vm84, %v694, 0
  %v5314 = vsel %vm84, %v695, 0
  %v5317 = vsel %vm84, %v696, 0
  %v5320 = vsel %vm84, %v697, 0
  %v5323 = vsel %vm84, %v698, 0
  %5325 = vmatprep.subr.mxu0 %v1177
  %5326 = vmatpush1.msra.mxu0 %v1176
  %5327 = vmatprep.subr.mxu0 %v1179
  %5328 = vmatpush1.msra.mxu0 %v1178
  %5329 = vmatprep.subr.mxu0 %v1181
  %5330 = vmatpush1.msra.mxu0 %v1180
  %5331 = vmatprep.subr.mxu0 %v1183
  %5332 = vmatpush1.msra.mxu0 %v1182
  %5333 = vmatprep.subr.mxu0 0.0
  %5334 = vmatpush1.msra.mxu0 0.0
  %5335 = vmatprep.subr.mxu0 0.0
  %5336 = vmatpush1.msra.mxu0 0.0
  %5337 = vmatprep.subr.mxu0 0.0
  %5338 = vmatpush1.msra.mxu0 0.0
  %5339 = vmatprep.subr.mxu0 0.0
  %5340 = vmatpush1.msra.mxu0 0.0
  %5341 = vmatprep.subr.mxu0 0.0
  %5342 = vmatpush1.msra.mxu0 0.0
  %5343 = vmatprep.subr.mxu0 0.0
  %5344 = vmatpush1.msra.mxu0 0.0
  %5345 = vmatprep.subr.mxu0 0.0
  %5346 = vmatpush1.msra.mxu0 0.0
  %5347 = vmatprep.subr.mxu0 0.0
  %5348 = vmatpush1.msra.mxu0 0.0
  %5349 = vmatprep.subr.mxu0 0.0
  %5350 = vmatpush1.msra.mxu0 0.0
  %5351 = vmatprep.subr.mxu0 0.0
  %5352 = vmatpush1.msra.mxu0 0.0
  %5353 = vmatprep.subr.mxu0 0.0
  %5354 = vmatpush1.msra.mxu0 0.0
  %5355 = vmatprep.subr.mxu0 0.0
  %5356 = vmatpush1.msra.mxu0 0.0
  %5357 = vmatprep.subr.mxu0 0.0
  %5358 = vmatpush1.msra.mxu0 0.0
  %5359 = vmatprep.subr.mxu0 0.0
  %5360 = vmatpush1.msra.mxu0 0.0
  %5361 = vmatprep.subr.mxu0 0.0
  %5362 = vmatpush1.msra.mxu0 0.0
  %5363 = vmatprep.subr.mxu0 0.0
  %5364 = vmatpush1.msra.mxu0 0.0
  %5365 = vmatprep.subr.mxu0 0.0
  %5366 = vmatpush1.msra.mxu0 0.0
  %5367 = vmatprep.subr.mxu0 0.0
  %5368 = vmatpush1.msra.mxu0 0.0
  %5369 = vmatprep.subr.mxu0 0.0
  %5370 = vmatpush1.msra.mxu0 0.0
  %5371 = vmatprep.subr.mxu0 0.0
  %5372 = vmatpush1.msra.mxu0 0.0
  %5373 = vmatprep.subr.mxu0 0.0
  %5374 = vmatpush1.msra.mxu0 0.0
  %5375 = vmatprep.subr.mxu0 0.0
  %5376 = vmatpush1.msra.mxu0 0.0
  %5377 = vmatprep.subr.mxu0 0.0
  %5378 = vmatpush1.msra.mxu0 0.0
  %5379 = vmatprep.subr.mxu0 0.0
  %5380 = vmatpush1.msra.mxu0 0.0
  %5381 = vmatprep.subr.mxu0 0.0
  %5382 = vmatpush1.msra.mxu0 0.0
  %5383 = vmatprep.subr.mxu0 0.0
  %5384 = vmatpush1.msra.mxu0 0.0
  %5385 = vmatprep.subr.mxu0 0.0
  %5386 = vmatpush1.msra.mxu0 0.0
  %5387 = vmatprep.subr.mxu0 0.0
  %5388 = vmatpush1.msra.mxu0 0.0
  %5389 = vmatprep.mubr.f32.mxu0 0.0
  %5390 = vmatmul.mubr.f32.gmra.mrb[0].mxu0 %v5302
  %v5391 = vpop.f32.mrb[0].mxu0
  %v5392 = vadd.f32 0.0, %v5391
  %v5393 = vpop.f32.mrb[0].mxu0
  %v5394 = vadd.f32 0.0, %v5393
  %5395 = vmatprep.mubr.f32.mxu0 0.0
  %5396 = vmatmul.mubr.f32.gmra.mrb[0].mxu0 %v5305
  %v5397 = vpop.f32.mrb[0].mxu0
  %v5398 = vadd.f32 0.0, %v5397
  %v5399 = vpop.f32.mrb[0].mxu0
  %v5400 = vadd.f32 0.0, %v5399
  %5401 = vmatprep.mubr.f32.mxu0 0.0
  %5402 = vmatmul.mubr.f32.gmra.mrb[0].mxu0 %v5308
  %v5403 = vpop.f32.mrb[0].mxu0
  %v5404 = vadd.f32 0.0, %v5403
  %v5405 = vpop.f32.mrb[0].mxu0
  %v5406 = vadd.f32 0.0, %v5405
  %5407 = vmatprep.mubr.f32.mxu0 0.0
  %5408 = vmatmul.mubr.f32.gmra.mrb[0].mxu0 %v5311
  %v5409 = vpop.f32.mrb[0].mxu0
  %v5410 = vadd.f32 0.0, %v5409
  %v5411 = vpop.f32.mrb[0].mxu0
  %v5412 = vadd.f32 0.0, %v5411
  %5413 = vmatprep.mubr.f32.mxu0 0.0
  %5414 = vmatmul.mubr.f32.gmra.mrb[0].mxu0 %v5314
  %v5415 = vpop.f32.mrb[0].mxu0
  %v5416 = vadd.f32 0.0, %v5415
  %v5417 = vpop.f32.mrb[0].mxu0
  %v5418 = vadd.f32 0.0, %v5417
  %5419 = vmatprep.mubr.f32.mxu0 0.0
  %5420 = vmatmul.mubr.f32.gmra.mrb[0].mxu0 %v5317
  %v5421 = vpop.f32.mrb[0].mxu0
  %v5422 = vadd.f32 0.0, %v5421
  %v5423 = vpop.f32.mrb[0].mxu0
  %v5424 = vadd.f32 0.0, %v5423
  %5425 = vmatprep.mubr.f32.mxu0 0.0
  %5426 = vmatmul.mubr.f32.gmra.mrb[0].mxu0 %v5320
  %v5427 = vpop.f32.mrb[0].mxu0
  %v5428 = vadd.f32 0.0, %v5427
  %v5429 = vpop.f32.mrb[0].mxu0
  %v5430 = vadd.f32 0.0, %v5429
  %5431 = vmatprep.mubr.f32.mxu0 0.0
  %5432 = vmatmul.mubr.f32.gmra.mrb[0].mxu0 %v5323
  %v5433 = vpop.f32.mrb[0].mxu0
  %v5434 = vadd.f32 0.0, %v5433
  %v5435 = vpop.f32.mrb[0].mxu0
  %v5436 = vadd.f32 0.0, %v5435
  %5437 = vdwg.mxu0
  %v5439 = vsel %vm84, %v1104, 0
  %v5442 = vsel %vm84, %v1105, 0
  %v5445 = vsel %vm84, %v1106, 0
  %v5448 = vsel %vm84, %v1107, 0
  %v5451 = vsel %vm84, %v1108, 0
  %v5454 = vsel %vm84, %v1109, 0
  %v5457 = vsel %vm84, %v1110, 0
  %v5460 = vsel %vm84, %v1111, 0
  %5462 = vmatprep.subr.mxu0 %v1177
  %5463 = vmatpush1.msra.mxu0 %v1176
  %5464 = vmatprep.subr.mxu0 %v1179
  %5465 = vmatpush1.msra.mxu0 %v1178
  %5466 = vmatprep.subr.mxu0 %v1181
  %5467 = vmatpush1.msra.mxu0 %v1180
  %5468 = vmatprep.subr.mxu0 %v1183
  %5469 = vmatpush1.msra.mxu0 %v1182
  %5470 = vmatprep.subr.mxu0 0.0
  %5471 = vmatpush1.msra.mxu0 0.0
  %5472 = vmatprep.subr.mxu0 0.0
  %5473 = vmatpush1.msra.mxu0 0.0
  %5474 = vmatprep.subr.mxu0 0.0
  %5475 = vmatpush1.msra.mxu0 0.0
  %5476 = vmatprep.subr.mxu0 0.0
  %5477 = vmatpush1.msra.mxu0 0.0
  %5478 = vmatprep.subr.mxu0 0.0
  %5479 = vmatpush1.msra.mxu0 0.0
  %5480 = vmatprep.subr.mxu0 0.0
  %5481 = vmatpush1.msra.mxu0 0.0
  %5482 = vmatprep.subr.mxu0 0.0
  %5483 = vmatpush1.msra.mxu0 0.0
  %5484 = vmatprep.subr.mxu0 0.0
  %5485 = vmatpush1.msra.mxu0 0.0
  %5486 = vmatprep.subr.mxu0 0.0
  %5487 = vmatpush1.msra.mxu0 0.0
  %5488 = vmatprep.subr.mxu0 0.0
  %5489 = vmatpush1.msra.mxu0 0.0
  %5490 = vmatprep.subr.mxu0 0.0
  %5491 = vmatpush1.msra.mxu0 0.0
  %5492 = vmatprep.subr.mxu0 0.0
  %5493 = vmatpush1.msra.mxu0 0.0
  %5494 = vmatprep.subr.mxu0 0.0
  %5495 = vmatpush1.msra.mxu0 0.0
  %5496 = vmatprep.subr.mxu0 0.0
  %5497 = vmatpush1.msra.mxu0 0.0
  %5498 = vmatprep.subr.mxu0 0.0
  %5499 = vmatpush1.msra.mxu0 0.0
  %5500 = vmatprep.subr.mxu0 0.0
  %5501 = vmatpush1.msra.mxu0 0.0
  %5502 = vmatprep.subr.mxu0 0.0
  %5503 = vmatpush1.msra.mxu0 0.0
  %5504 = vmatprep.subr.mxu0 0.0
  %5505 = vmatpush1.msra.mxu0 0.0
  %5506 = vmatprep.subr.mxu0 0.0
  %5507 = vmatpush1.msra.mxu0 0.0
  %5508 = vmatprep.subr.mxu0 0.0
  %5509 = vmatpush1.msra.mxu0 0.0
  %5510 = vmatprep.subr.mxu0 0.0
  %5511 = vmatpush1.msra.mxu0 0.0
  %5512 = vmatprep.subr.mxu0 0.0
  %5513 = vmatpush1.msra.mxu0 0.0
  %5514 = vmatprep.subr.mxu0 0.0
  %5515 = vmatpush1.msra.mxu0 0.0
  %5516 = vmatprep.subr.mxu0 0.0
  %5517 = vmatpush1.msra.mxu0 0.0
  %5518 = vmatprep.subr.mxu0 0.0
  %5519 = vmatpush1.msra.mxu0 0.0
  %5520 = vmatprep.subr.mxu0 0.0
  %5521 = vmatpush1.msra.mxu0 0.0
  %5522 = vmatprep.subr.mxu0 0.0
  %5523 = vmatpush1.msra.mxu0 0.0
  %5524 = vmatprep.subr.mxu0 0.0
  %5525 = vmatpush1.msra.mxu0 0.0
  %5526 = vmatprep.mubr.f32.mxu0 0.0
  %5527 = vmatmul.mubr.f32.gmra.mrb[0].mxu0 %v5439
  %v5528 = vpop.f32.mrb[0].mxu0
  %v5529 = vadd.f32 0.0, %v5528
  %v5530 = vpop.f32.mrb[0].mxu0
  %v5531 = vadd.f32 0.0, %v5530
  %5532 = vmatprep.mubr.f32.mxu0 0.0
  %5533 = vmatmul.mubr.f32.gmra.mrb[0].mxu0 %v5442
  %v5534 = vpop.f32.mrb[0].mxu0
  %v5535 = vadd.f32 0.0, %v5534
  %v5536 = vpop.f32.mrb[0].mxu0
  %v5537 = vadd.f32 0.0, %v5536
  %5538 = vmatprep.mubr.f32.mxu0 0.0
  %5539 = vmatmul.mubr.f32.gmra.mrb[0].mxu0 %v5445
  %v5540 = vpop.f32.mrb[0].mxu0
  %v5541 = vadd.f32 0.0, %v5540
  %v5542 = vpop.f32.mrb[0].mxu0
  %v5543 = vadd.f32 0.0, %v5542
  %5544 = vmatprep.mubr.f32.mxu0 0.0
  %5545 = vmatmul.mubr.f32.gmra.mrb[0].mxu0 %v5448
  %v5546 = vpop.f32.mrb[0].mxu0
  %v5547 = vadd.f32 0.0, %v5546
  %v5548 = vpop.f32.mrb[0].mxu0
  %v5549 = vadd.f32 0.0, %v5548
  %5550 = vmatprep.mubr.f32.mxu0 0.0
  %5551 = vmatmul.mubr.f32.gmra.mrb[0].mxu0 %v5451
  %v5552 = vpop.f32.mrb[0].mxu0
  %v5553 = vadd.f32 0.0, %v5552
  %v5554 = vpop.f32.mrb[0].mxu0
  %v5555 = vadd.f32 0.0, %v5554
  %5556 = vmatprep.mubr.f32.mxu0 0.0
  %5557 = vmatmul.mubr.f32.gmra.mrb[0].mxu0 %v5454
  %v5558 = vpop.f32.mrb[0].mxu0
  %v5559 = vadd.f32 0.0, %v5558
  %v5560 = vpop.f32.mrb[0].mxu0
  %v5561 = vadd.f32 0.0, %v5560
  %5562 = vmatprep.mubr.f32.mxu0 0.0
  %5563 = vmatmul.mubr.f32.gmra.mrb[0].mxu0 %v5457
  %v5564 = vpop.f32.mrb[0].mxu0
  %v5565 = vadd.f32 0.0, %v5564
  %v5566 = vpop.f32.mrb[0].mxu0
  %v5567 = vadd.f32 0.0, %v5566
  %5568 = vmatprep.mubr.f32.mxu0 0.0
  %5569 = vmatmul.mubr.f32.gmra.mrb[0].mxu0 %v5460
  %v5570 = vpop.f32.mrb[0].mxu0
  %v5571 = vadd.f32 0.0, %v5570
  %v5572 = vpop.f32.mrb[0].mxu0
  %v5573 = vadd.f32 0.0, %v5572
  %5574 = vdwg.mxu0
  %v5575 = vmul.f32 %v5392, %v5293
  %v5576 = vmul.f32 %v5394, %v5293
  %v5577 = vmul.f32 %v5398, %v5294
  %v5578 = vmul.f32 %v5400, %v5294
  %v5579 = vmul.f32 %v5404, %v5295
  %v5580 = vmul.f32 %v5406, %v5295
  %v5581 = vmul.f32 %v5410, %v5296
  %v5582 = vmul.f32 %v5412, %v5296
  %v5583 = vmul.f32 %v5416, %v5297
  %v5584 = vmul.f32 %v5418, %v5297
  %v5585 = vmul.f32 %v5422, %v5298
  %v5586 = vmul.f32 %v5424, %v5298
  %v5587 = vmul.f32 %v5428, %v5299
  %v5588 = vmul.f32 %v5430, %v5299
  %v5589 = vmul.f32 %v5434, %v5300
  %v5590 = vmul.f32 %v5436, %v5300
  %5591 = vmatprep.subr.mxu0 0.0
  %5592 = vmatpush1.msra.mxu0 %v4137
  %5593 = vmatprep.subr.mxu0 0.0
  %5594 = vmatpush1.msra.mxu0 %v4138
  %5595 = vmatprep.subr.mxu0 0.0
  %5596 = vmatpush1.msra.mxu0 %v4139
  %5597 = vmatprep.subr.mxu0 0.0
  %5598 = vmatpush1.msra.mxu0 %v4140
  %5599 = vmatprep.subr.mxu0 0.0
  %5600 = vmatpush1.msra.mxu0 0.0
  %5601 = vmatprep.subr.mxu0 0.0
  %5602 = vmatpush1.msra.mxu0 0.0
  %5603 = vmatprep.subr.mxu0 0.0
  %5604 = vmatpush1.msra.mxu0 0.0
  %5605 = vmatprep.subr.mxu0 0.0
  %5606 = vmatpush1.msra.mxu0 0.0
  %5607 = vmatprep.subr.mxu0 0.0
  %5608 = vmatpush1.msra.mxu0 0.0
  %5609 = vmatprep.subr.mxu0 0.0
  %5610 = vmatpush1.msra.mxu0 0.0
  %5611 = vmatprep.subr.mxu0 0.0
  %5612 = vmatpush1.msra.mxu0 0.0
  %5613 = vmatprep.subr.mxu0 0.0
  %5614 = vmatpush1.msra.mxu0 0.0
  %5615 = vmatprep.subr.mxu0 0.0
  %5616 = vmatpush1.msra.mxu0 0.0
  %5617 = vmatprep.subr.mxu0 0.0
  %5618 = vmatpush1.msra.mxu0 0.0
  %5619 = vmatprep.subr.mxu0 0.0
  %5620 = vmatpush1.msra.mxu0 0.0
  %5621 = vmatprep.subr.mxu0 0.0
  %5622 = vmatpush1.msra.mxu0 0.0
  %5623 = vmatprep.subr.mxu0 0.0
  %5624 = vmatpush1.msra.mxu0 0.0
  %5625 = vmatprep.subr.mxu0 0.0
  %5626 = vmatpush1.msra.mxu0 0.0
  %5627 = vmatprep.subr.mxu0 0.0
  %5628 = vmatpush1.msra.mxu0 0.0
  %5629 = vmatprep.subr.mxu0 0.0
  %5630 = vmatpush1.msra.mxu0 0.0
  %5631 = vmatprep.subr.mxu0 0.0
  %5632 = vmatpush1.msra.mxu0 0.0
  %5633 = vmatprep.subr.mxu0 0.0
  %5634 = vmatpush1.msra.mxu0 0.0
  %5635 = vmatprep.subr.mxu0 0.0
  %5636 = vmatpush1.msra.mxu0 0.0
  %5637 = vmatprep.subr.mxu0 0.0
  %5638 = vmatpush1.msra.mxu0 0.0
  %5639 = vmatprep.subr.mxu0 0.0
  %5640 = vmatpush1.msra.mxu0 0.0
  %5641 = vmatprep.subr.mxu0 0.0
  %5642 = vmatpush1.msra.mxu0 0.0
  %5643 = vmatprep.subr.mxu0 0.0
  %5644 = vmatpush1.msra.mxu0 0.0
  %5645 = vmatprep.subr.mxu0 0.0
  %5646 = vmatpush1.msra.mxu0 0.0
  %5647 = vmatprep.subr.mxu0 0.0
  %5648 = vmatpush1.msra.mxu0 0.0
  %5649 = vmatprep.subr.mxu0 0.0
  %5650 = vmatpush1.msra.mxu0 0.0
  %5651 = vmatprep.subr.mxu0 0.0
  %5652 = vmatpush1.msra.mxu0 0.0
  %5653 = vmatprep.subr.mxu0 0.0
  %5654 = vmatpush1.msra.mxu0 0.0
  %5655 = vmatprep.mubr.f32.mxu0 0.0
  %5656 = vmatmul.mubr.f32.gmra.mrb[0].mxu0 %v5302
  %v5657 = vpop.f32.mrb[0].mxu0
  %v5658 = vadd.f32 0.0, %v5657
  %v5659 = vpop.f32.mrb[0].mxu0
  %5660 = vmatprep.mubr.f32.mxu0 0.0
  %5661 = vmatmul.mubr.f32.gmra.mrb[0].mxu0 %v5305
  %v5662 = vpop.f32.mrb[0].mxu0
  %v5663 = vadd.f32 0.0, %v5662
  %v5664 = vpop.f32.mrb[0].mxu0
  %5665 = vmatprep.mubr.f32.mxu0 0.0
  %5666 = vmatmul.mubr.f32.gmra.mrb[0].mxu0 %v5308
  %v5667 = vpop.f32.mrb[0].mxu0
  %v5668 = vadd.f32 0.0, %v5667
  %v5669 = vpop.f32.mrb[0].mxu0
  %5670 = vmatprep.mubr.f32.mxu0 0.0
  %5671 = vmatmul.mubr.f32.gmra.mrb[0].mxu0 %v5311
  %v5672 = vpop.f32.mrb[0].mxu0
  %v5673 = vadd.f32 0.0, %v5672
  %v5674 = vpop.f32.mrb[0].mxu0
  %5675 = vmatprep.mubr.f32.mxu0 0.0
  %5676 = vmatmul.mubr.f32.gmra.mrb[0].mxu0 %v5314
  %v5677 = vpop.f32.mrb[0].mxu0
  %v5678 = vadd.f32 0.0, %v5677
  %v5679 = vpop.f32.mrb[0].mxu0
  %5680 = vmatprep.mubr.f32.mxu0 0.0
  %5681 = vmatmul.mubr.f32.gmra.mrb[0].mxu0 %v5317
  %v5682 = vpop.f32.mrb[0].mxu0
  %v5683 = vadd.f32 0.0, %v5682
  %v5684 = vpop.f32.mrb[0].mxu0
  %5685 = vmatprep.mubr.f32.mxu0 0.0
  %5686 = vmatmul.mubr.f32.gmra.mrb[0].mxu0 %v5320
  %v5687 = vpop.f32.mrb[0].mxu0
  %v5688 = vadd.f32 0.0, %v5687
  %v5689 = vpop.f32.mrb[0].mxu0
  %5690 = vmatprep.mubr.f32.mxu0 0.0
  %5691 = vmatmul.mubr.f32.gmra.mrb[0].mxu0 %v5323
  %v5692 = vpop.f32.mrb[0].mxu0
  %v5693 = vadd.f32 0.0, %v5692
  %v5694 = vpop.f32.mrb[0].mxu0
  %5695 = vdwg.mxu0
  %5696 = vmatprep.subr.mxu0 0.0
  %5697 = vmatpush1.msra.mxu0 %v1184
  %5698 = vmatprep.subr.mxu0 0.0
  %5699 = vmatpush1.msra.mxu0 %v1185
  %5700 = vmatprep.subr.mxu0 0.0
  %5701 = vmatpush1.msra.mxu0 %v1186
  %5702 = vmatprep.subr.mxu0 0.0
  %5703 = vmatpush1.msra.mxu0 %v1187
  %5704 = vmatprep.subr.mxu0 0.0
  %5705 = vmatpush1.msra.mxu0 %v1188
  %5706 = vmatprep.subr.mxu0 0.0
  %5707 = vmatpush1.msra.mxu0 %v1189
  %5708 = vmatprep.subr.mxu0 0.0
  %5709 = vmatpush1.msra.mxu0 %v1190
  %5710 = vmatprep.subr.mxu0 0.0
  %5711 = vmatpush1.msra.mxu0 %v1191
  %5712 = vmatprep.subr.mxu0 0.0
  %5713 = vmatpush1.msra.mxu0 %v1192
  %5714 = vmatprep.subr.mxu0 0.0
  %5715 = vmatpush1.msra.mxu0 %v1193
  %5716 = vmatprep.subr.mxu0 0.0
  %5717 = vmatpush1.msra.mxu0 %v1194
  %5718 = vmatprep.subr.mxu0 0.0
  %5719 = vmatpush1.msra.mxu0 %v1195
  %5720 = vmatprep.subr.mxu0 0.0
  %5721 = vmatpush1.msra.mxu0 %v1196
  %5722 = vmatprep.subr.mxu0 0.0
  %5723 = vmatpush1.msra.mxu0 %v1197
  %5724 = vmatprep.subr.mxu0 0.0
  %5725 = vmatpush1.msra.mxu0 %v1198
  %5726 = vmatprep.subr.mxu0 0.0
  %5727 = vmatpush1.msra.mxu0 %v1199
  %5728 = vmatprep.subr.mxu0 0.0
  %5729 = vmatpush1.msra.mxu0 %v1200
  %5730 = vmatprep.subr.mxu0 0.0
  %5731 = vmatpush1.msra.mxu0 %v1201
  %5732 = vmatprep.subr.mxu0 0.0
  %5733 = vmatpush1.msra.mxu0 %v1202
  %5734 = vmatprep.subr.mxu0 0.0
  %5735 = vmatpush1.msra.mxu0 %v1203
  %5736 = vmatprep.subr.mxu0 0.0
  %5737 = vmatpush1.msra.mxu0 %v1204
  %5738 = vmatprep.subr.mxu0 0.0
  %5739 = vmatpush1.msra.mxu0 %v1205
  %5740 = vmatprep.subr.mxu0 0.0
  %5741 = vmatpush1.msra.mxu0 %v1206
  %5742 = vmatprep.subr.mxu0 0.0
  %5743 = vmatpush1.msra.mxu0 %v1207
  %5744 = vmatprep.subr.mxu0 0.0
  %5745 = vmatpush1.msra.mxu0 %v1208
  %5746 = vmatprep.subr.mxu0 0.0
  %5747 = vmatpush1.msra.mxu0 %v1209
  %5748 = vmatprep.subr.mxu0 0.0
  %5749 = vmatpush1.msra.mxu0 %v1210
  %5750 = vmatprep.subr.mxu0 0.0
  %5751 = vmatpush1.msra.mxu0 %v1211
  %5752 = vmatprep.subr.mxu0 0.0
  %5753 = vmatpush1.msra.mxu0 %v1212
  %5754 = vmatprep.subr.mxu0 0.0
  %5755 = vmatpush1.msra.mxu0 %v1213
  %5756 = vmatprep.subr.mxu0 0.0
  %5757 = vmatpush1.msra.mxu0 %v1214
  %5758 = vmatprep.subr.mxu0 0.0
  %5759 = vmatpush1.msra.mxu0 %v1215
  %5760 = vmatprep.mubr.f32.mxu0 %v5576
  %5761 = vmatmul.mubr.f32.gmra.mrb[0].mxu0 %v5575
  %v5762 = vpop.f32.mrb[0].mxu0
  %v5763 = vadd.f32 %v5658, %v5762
  %v5764 = vpop.f32.mrb[0].mxu0
  %5765 = vmatprep.mubr.f32.mxu0 %v5578
  %5766 = vmatmul.mubr.f32.gmra.mrb[0].mxu0 %v5577
  %v5767 = vpop.f32.mrb[0].mxu0
  %v5768 = vadd.f32 %v5663, %v5767
  %v5769 = vpop.f32.mrb[0].mxu0
  %5770 = vmatprep.mubr.f32.mxu0 %v5580
  %5771 = vmatmul.mubr.f32.gmra.mrb[0].mxu0 %v5579
  %v5772 = vpop.f32.mrb[0].mxu0
  %v5773 = vadd.f32 %v5668, %v5772
  %v5774 = vpop.f32.mrb[0].mxu0
  %5775 = vmatprep.mubr.f32.mxu0 %v5582
  %5776 = vmatmul.mubr.f32.gmra.mrb[0].mxu0 %v5581
  %v5777 = vpop.f32.mrb[0].mxu0
  %v5778 = vadd.f32 %v5673, %v5777
  %v5779 = vpop.f32.mrb[0].mxu0
  %5780 = vmatprep.mubr.f32.mxu0 %v5584
  %5781 = vmatmul.mubr.f32.gmra.mrb[0].mxu0 %v5583
  %v5782 = vpop.f32.mrb[0].mxu0
  %v5783 = vadd.f32 %v5678, %v5782
  %v5784 = vpop.f32.mrb[0].mxu0
  %5785 = vmatprep.mubr.f32.mxu0 %v5586
  %5786 = vmatmul.mubr.f32.gmra.mrb[0].mxu0 %v5585
  %v5787 = vpop.f32.mrb[0].mxu0
  %v5788 = vadd.f32 %v5683, %v5787
  %v5789 = vpop.f32.mrb[0].mxu0
  %5790 = vmatprep.mubr.f32.mxu0 %v5588
  %5791 = vmatmul.mubr.f32.gmra.mrb[0].mxu0 %v5587
  %v5792 = vpop.f32.mrb[0].mxu0
  %v5793 = vadd.f32 %v5688, %v5792
  %v5794 = vpop.f32.mrb[0].mxu0
  %5795 = vmatprep.mubr.f32.mxu0 %v5590
  %5796 = vmatmul.mubr.f32.gmra.mrb[0].mxu0 %v5589
  %v5797 = vpop.f32.mrb[0].mxu0
  %v5798 = vadd.f32 %v5693, %v5797
  %v5799 = vpop.f32.mrb[0].mxu0
  %5800 = vdwg.mxu0
  %v5801 = vmul.f32 %v5529, %v5293
  %v5802 = vmul.f32 %v5531, %v5293
  %v5803 = vmul.f32 %v5535, %v5294
  %v5804 = vmul.f32 %v5537, %v5294
  %v5805 = vmul.f32 %v5541, %v5295
  %v5806 = vmul.f32 %v5543, %v5295
  %v5807 = vmul.f32 %v5547, %v5296
  %v5808 = vmul.f32 %v5549, %v5296
  %v5809 = vmul.f32 %v5553, %v5297
  %v5810 = vmul.f32 %v5555, %v5297
  %v5811 = vmul.f32 %v5559, %v5298
  %v5812 = vmul.f32 %v5561, %v5298
  %v5813 = vmul.f32 %v5565, %v5299
  %v5814 = vmul.f32 %v5567, %v5299
  %v5815 = vmul.f32 %v5571, %v5300
  %v5816 = vmul.f32 %v5573, %v5300
  %5817 = vmatprep.subr.mxu0 0.0
  %5818 = vmatpush1.msra.mxu0 %v4137
  %5819 = vmatprep.subr.mxu0 0.0
  %5820 = vmatpush1.msra.mxu0 %v4138
  %5821 = vmatprep.subr.mxu0 0.0
  %5822 = vmatpush1.msra.mxu0 %v4139
  %5823 = vmatprep.subr.mxu0 0.0
  %5824 = vmatpush1.msra.mxu0 %v4140
  %5825 = vmatprep.subr.mxu0 0.0
  %5826 = vmatpush1.msra.mxu0 0.0
  %5827 = vmatprep.subr.mxu0 0.0
  %5828 = vmatpush1.msra.mxu0 0.0
  %5829 = vmatprep.subr.mxu0 0.0
  %5830 = vmatpush1.msra.mxu0 0.0
  %5831 = vmatprep.subr.mxu0 0.0
  %5832 = vmatpush1.msra.mxu0 0.0
  %5833 = vmatprep.subr.mxu0 0.0
  %5834 = vmatpush1.msra.mxu0 0.0
  %5835 = vmatprep.subr.mxu0 0.0
  %5836 = vmatpush1.msra.mxu0 0.0
  %5837 = vmatprep.subr.mxu0 0.0
  %5838 = vmatpush1.msra.mxu0 0.0
  %5839 = vmatprep.subr.mxu0 0.0
  %5840 = vmatpush1.msra.mxu0 0.0
  %5841 = vmatprep.subr.mxu0 0.0
  %5842 = vmatpush1.msra.mxu0 0.0
  %5843 = vmatprep.subr.mxu0 0.0
  %5844 = vmatpush1.msra.mxu0 0.0
  %5845 = vmatprep.subr.mxu0 0.0
  %5846 = vmatpush1.msra.mxu0 0.0
  %5847 = vmatprep.subr.mxu0 0.0
  %5848 = vmatpush1.msra.mxu0 0.0
  %5849 = vmatprep.subr.mxu0 0.0
  %5850 = vmatpush1.msra.mxu0 0.0
  %5851 = vmatprep.subr.mxu0 0.0
  %5852 = vmatpush1.msra.mxu0 0.0
  %5853 = vmatprep.subr.mxu0 0.0
  %5854 = vmatpush1.msra.mxu0 0.0
  %5855 = vmatprep.subr.mxu0 0.0
  %5856 = vmatpush1.msra.mxu0 0.0
  %5857 = vmatprep.subr.mxu0 0.0
  %5858 = vmatpush1.msra.mxu0 0.0
  %5859 = vmatprep.subr.mxu0 0.0
  %5860 = vmatpush1.msra.mxu0 0.0
  %5861 = vmatprep.subr.mxu0 0.0
  %5862 = vmatpush1.msra.mxu0 0.0
  %5863 = vmatprep.subr.mxu0 0.0
  %5864 = vmatpush1.msra.mxu0 0.0
  %5865 = vmatprep.subr.mxu0 0.0
  %5866 = vmatpush1.msra.mxu0 0.0
  %5867 = vmatprep.subr.mxu0 0.0
  %5868 = vmatpush1.msra.mxu0 0.0
  %5869 = vmatprep.subr.mxu0 0.0
  %5870 = vmatpush1.msra.mxu0 0.0
  %5871 = vmatprep.subr.mxu0 0.0
  %5872 = vmatpush1.msra.mxu0 0.0
  %5873 = vmatprep.subr.mxu0 0.0
  %5874 = vmatpush1.msra.mxu0 0.0
  %5875 = vmatprep.subr.mxu0 0.0
  %5876 = vmatpush1.msra.mxu0 0.0
  %5877 = vmatprep.subr.mxu0 0.0
  %5878 = vmatpush1.msra.mxu0 0.0
  %5879 = vmatprep.subr.mxu0 0.0
  %5880 = vmatpush1.msra.mxu0 0.0
  %5881 = vmatprep.mubr.f32.mxu0 0.0
  %5882 = vmatmul.mubr.f32.gmra.mrb[0].mxu0 %v5439
  %v5883 = vpop.f32.mrb[0].mxu0
  %v5884 = vadd.f32 0.0, %v5883
  %v5885 = vpop.f32.mrb[0].mxu0
  %5886 = vmatprep.mubr.f32.mxu0 0.0
  %5887 = vmatmul.mubr.f32.gmra.mrb[0].mxu0 %v5442
  %v5888 = vpop.f32.mrb[0].mxu0
  %v5889 = vadd.f32 0.0, %v5888
  %v5890 = vpop.f32.mrb[0].mxu0
  %5891 = vmatprep.mubr.f32.mxu0 0.0
  %5892 = vmatmul.mubr.f32.gmra.mrb[0].mxu0 %v5445
  %v5893 = vpop.f32.mrb[0].mxu0
  %v5894 = vadd.f32 0.0, %v5893
  %v5895 = vpop.f32.mrb[0].mxu0
  %5896 = vmatprep.mubr.f32.mxu0 0.0
  %5897 = vmatmul.mubr.f32.gmra.mrb[0].mxu0 %v5448
  %v5898 = vpop.f32.mrb[0].mxu0
  %v5899 = vadd.f32 0.0, %v5898
  %v5900 = vpop.f32.mrb[0].mxu0
  %5901 = vmatprep.mubr.f32.mxu0 0.0
  %5902 = vmatmul.mubr.f32.gmra.mrb[0].mxu0 %v5451
  %v5903 = vpop.f32.mrb[0].mxu0
  %v5904 = vadd.f32 0.0, %v5903
  %v5905 = vpop.f32.mrb[0].mxu0
  %5906 = vmatprep.mubr.f32.mxu0 0.0
  %5907 = vmatmul.mubr.f32.gmra.mrb[0].mxu0 %v5454
  %v5908 = vpop.f32.mrb[0].mxu0
  %v5909 = vadd.f32 0.0, %v5908
  %v5910 = vpop.f32.mrb[0].mxu0
  %5911 = vmatprep.mubr.f32.mxu0 0.0
  %5912 = vmatmul.mubr.f32.gmra.mrb[0].mxu0 %v5457
  %v5913 = vpop.f32.mrb[0].mxu0
  %v5914 = vadd.f32 0.0, %v5913
  %v5915 = vpop.f32.mrb[0].mxu0
  %5916 = vmatprep.mubr.f32.mxu0 0.0
  %5917 = vmatmul.mubr.f32.gmra.mrb[0].mxu0 %v5460
  %v5918 = vpop.f32.mrb[0].mxu0
  %v5919 = vadd.f32 0.0, %v5918
  %v5920 = vpop.f32.mrb[0].mxu0
  %5921 = vdwg.mxu0
  %5922 = vmatprep.subr.mxu0 0.0
  %5923 = vmatpush1.msra.mxu0 %v1184
  %5924 = vmatprep.subr.mxu0 0.0
  %5925 = vmatpush1.msra.mxu0 %v1185
  %5926 = vmatprep.subr.mxu0 0.0
  %5927 = vmatpush1.msra.mxu0 %v1186
  %5928 = vmatprep.subr.mxu0 0.0
  %5929 = vmatpush1.msra.mxu0 %v1187
  %5930 = vmatprep.subr.mxu0 0.0
  %5931 = vmatpush1.msra.mxu0 %v1188
  %5932 = vmatprep.subr.mxu0 0.0
  %5933 = vmatpush1.msra.mxu0 %v1189
  %5934 = vmatprep.subr.mxu0 0.0
  %5935 = vmatpush1.msra.mxu0 %v1190
  %5936 = vmatprep.subr.mxu0 0.0
  %5937 = vmatpush1.msra.mxu0 %v1191
  %5938 = vmatprep.subr.mxu0 0.0
  %5939 = vmatpush1.msra.mxu0 %v1192
  %5940 = vmatprep.subr.mxu0 0.0
  %5941 = vmatpush1.msra.mxu0 %v1193
  %5942 = vmatprep.subr.mxu0 0.0
  %5943 = vmatpush1.msra.mxu0 %v1194
  %5944 = vmatprep.subr.mxu0 0.0
  %5945 = vmatpush1.msra.mxu0 %v1195
  %5946 = vmatprep.subr.mxu0 0.0
  %5947 = vmatpush1.msra.mxu0 %v1196
  %5948 = vmatprep.subr.mxu0 0.0
  %5949 = vmatpush1.msra.mxu0 %v1197
  %5950 = vmatprep.subr.mxu0 0.0
  %5951 = vmatpush1.msra.mxu0 %v1198
  %5952 = vmatprep.subr.mxu0 0.0
  %5953 = vmatpush1.msra.mxu0 %v1199
  %5954 = vmatprep.subr.mxu0 0.0
  %5955 = vmatpush1.msra.mxu0 %v1200
  %5956 = vmatprep.subr.mxu0 0.0
  %5957 = vmatpush1.msra.mxu0 %v1201
  %5958 = vmatprep.subr.mxu0 0.0
  %5959 = vmatpush1.msra.mxu0 %v1202
  %5960 = vmatprep.subr.mxu0 0.0
  %5961 = vmatpush1.msra.mxu0 %v1203
  %5962 = vmatprep.subr.mxu0 0.0
  %5963 = vmatpush1.msra.mxu0 %v1204
  %5964 = vmatprep.subr.mxu0 0.0
  %5965 = vmatpush1.msra.mxu0 %v1205
  %5966 = vmatprep.subr.mxu0 0.0
  %5967 = vmatpush1.msra.mxu0 %v1206
  %5968 = vmatprep.subr.mxu0 0.0
  %5969 = vmatpush1.msra.mxu0 %v1207
  %5970 = vmatprep.subr.mxu0 0.0
  %5971 = vmatpush1.msra.mxu0 %v1208
  %5972 = vmatprep.subr.mxu0 0.0
  %5973 = vmatpush1.msra.mxu0 %v1209
  %5974 = vmatprep.subr.mxu0 0.0
  %5975 = vmatpush1.msra.mxu0 %v1210
  %5976 = vmatprep.subr.mxu0 0.0
  %5977 = vmatpush1.msra.mxu0 %v1211
  %5978 = vmatprep.subr.mxu0 0.0
  %5979 = vmatpush1.msra.mxu0 %v1212
  %5980 = vmatprep.subr.mxu0 0.0
  %5981 = vmatpush1.msra.mxu0 %v1213
  %5982 = vmatprep.subr.mxu0 0.0
  %5983 = vmatpush1.msra.mxu0 %v1214
  %5984 = vmatprep.subr.mxu0 0.0
  %5985 = vmatpush1.msra.mxu0 %v1215
  %5986 = vmatprep.mubr.f32.mxu0 %v5802
  %5987 = vmatmul.mubr.f32.gmra.mrb[0].mxu0 %v5801
  %v5988 = vpop.f32.mrb[0].mxu0
  %v5989 = vadd.f32 %v5884, %v5988
  %v5990 = vpop.f32.mrb[0].mxu0
  %5991 = vmatprep.mubr.f32.mxu0 %v5804
  %5992 = vmatmul.mubr.f32.gmra.mrb[0].mxu0 %v5803
  %v5993 = vpop.f32.mrb[0].mxu0
  %v5994 = vadd.f32 %v5889, %v5993
  %v5995 = vpop.f32.mrb[0].mxu0
  %5996 = vmatprep.mubr.f32.mxu0 %v5806
  %5997 = vmatmul.mubr.f32.gmra.mrb[0].mxu0 %v5805
  %v5998 = vpop.f32.mrb[0].mxu0
  %v5999 = vadd.f32 %v5894, %v5998
  %v6000 = vpop.f32.mrb[0].mxu0
  %6001 = vmatprep.mubr.f32.mxu0 %v5808
  %6002 = vmatmul.mubr.f32.gmra.mrb[0].mxu0 %v5807
  %v6003 = vpop.f32.mrb[0].mxu0
  %v6004 = vadd.f32 %v5899, %v6003
  %v6005 = vpop.f32.mrb[0].mxu0
  %6006 = vmatprep.mubr.f32.mxu0 %v5810
  %6007 = vmatmul.mubr.f32.gmra.mrb[0].mxu0 %v5809
  %v6008 = vpop.f32.mrb[0].mxu0
  %v6009 = vadd.f32 %v5904, %v6008
  %v6010 = vpop.f32.mrb[0].mxu0
  %6011 = vmatprep.mubr.f32.mxu0 %v5812
  %6012 = vmatmul.mubr.f32.gmra.mrb[0].mxu0 %v5811
  %v6013 = vpop.f32.mrb[0].mxu0
  %v6014 = vadd.f32 %v5909, %v6013
  %v6015 = vpop.f32.mrb[0].mxu0
  %6016 = vmatprep.mubr.f32.mxu0 %v5814
  %6017 = vmatmul.mubr.f32.gmra.mrb[0].mxu0 %v5813
  %v6018 = vpop.f32.mrb[0].mxu0
  %v6019 = vadd.f32 %v5914, %v6018
  %v6020 = vpop.f32.mrb[0].mxu0
  %6021 = vmatprep.mubr.f32.mxu0 %v5816
  %6022 = vmatmul.mubr.f32.gmra.mrb[0].mxu0 %v5815
  %v6023 = vpop.f32.mrb[0].mxu0
  %v6024 = vadd.f32 %v5919, %v6023
  %v6025 = vpop.f32.mrb[0].mxu0
  %6026 = vdwg.mxu0
  %v6028 = vsel %vm84, %v5989, 0
  %v6031 = vsel %vm84, %v5994, 0
  %v6034 = vsel %vm84, %v5999, 0
  %v6037 = vsel %vm84, %v6004, 0
  %v6040 = vsel %vm84, %v6009, 0
  %v6043 = vsel %vm84, %v6014, 0
  %v6046 = vsel %vm84, %v6019, 0
  %v6049 = vsel %vm84, %v6024, 0
  %6051 = vmatprep.subr.mxu0 0.0
  %6052 = vmatpush1.msra.mxu0 %v1220
  %6053 = vmatprep.subr.mxu0 0.0
  %6054 = vmatpush1.msra.mxu0 %v1221
  %6055 = vmatprep.subr.mxu0 0.0
  %6056 = vmatpush1.msra.mxu0 %v1222
  %6057 = vmatprep.subr.mxu0 0.0
  %6058 = vmatpush1.msra.mxu0 %v1223
  %6059 = vmatprep.subr.mxu0 0.0
  %6060 = vmatpush1.msra.mxu0 0.0
  %6061 = vmatprep.subr.mxu0 0.0
  %6062 = vmatpush1.msra.mxu0 0.0
  %6063 = vmatprep.subr.mxu0 0.0
  %6064 = vmatpush1.msra.mxu0 0.0
  %6065 = vmatprep.subr.mxu0 0.0
  %6066 = vmatpush1.msra.mxu0 0.0
  %6067 = vmatprep.subr.mxu0 0.0
  %6068 = vmatpush1.msra.mxu0 0.0
  %6069 = vmatprep.subr.mxu0 0.0
  %6070 = vmatpush1.msra.mxu0 0.0
  %6071 = vmatprep.subr.mxu0 0.0
  %6072 = vmatpush1.msra.mxu0 0.0
  %6073 = vmatprep.subr.mxu0 0.0
  %6074 = vmatpush1.msra.mxu0 0.0
  %6075 = vmatprep.subr.mxu0 0.0
  %6076 = vmatpush1.msra.mxu0 0.0
  %6077 = vmatprep.subr.mxu0 0.0
  %6078 = vmatpush1.msra.mxu0 0.0
  %6079 = vmatprep.subr.mxu0 0.0
  %6080 = vmatpush1.msra.mxu0 0.0
  %6081 = vmatprep.subr.mxu0 0.0
  %6082 = vmatpush1.msra.mxu0 0.0
  %6083 = vmatprep.subr.mxu0 0.0
  %6084 = vmatpush1.msra.mxu0 0.0
  %6085 = vmatprep.subr.mxu0 0.0
  %6086 = vmatpush1.msra.mxu0 0.0
  %6087 = vmatprep.subr.mxu0 0.0
  %6088 = vmatpush1.msra.mxu0 0.0
  %6089 = vmatprep.subr.mxu0 0.0
  %6090 = vmatpush1.msra.mxu0 0.0
  %6091 = vmatprep.subr.mxu0 0.0
  %6092 = vmatpush1.msra.mxu0 0.0
  %6093 = vmatprep.subr.mxu0 0.0
  %6094 = vmatpush1.msra.mxu0 0.0
  %6095 = vmatprep.subr.mxu0 0.0
  %6096 = vmatpush1.msra.mxu0 0.0
  %6097 = vmatprep.subr.mxu0 0.0
  %6098 = vmatpush1.msra.mxu0 0.0
  %6099 = vmatprep.subr.mxu0 0.0
  %6100 = vmatpush1.msra.mxu0 0.0
  %6101 = vmatprep.subr.mxu0 0.0
  %6102 = vmatpush1.msra.mxu0 0.0
  %6103 = vmatprep.subr.mxu0 0.0
  %6104 = vmatpush1.msra.mxu0 0.0
  %6105 = vmatprep.subr.mxu0 0.0
  %6106 = vmatpush1.msra.mxu0 0.0
  %6107 = vmatprep.subr.mxu0 0.0
  %6108 = vmatpush1.msra.mxu0 0.0
  %6109 = vmatprep.subr.mxu0 0.0
  %6110 = vmatpush1.msra.mxu0 0.0
  %6111 = vmatprep.subr.mxu0 0.0
  %6112 = vmatpush1.msra.mxu0 0.0
  %6113 = vmatprep.subr.mxu0 0.0
  %6114 = vmatpush1.msra.mxu0 0.0
  %6115 = vmatprep.mubr.f32.mxu0 0.0
  %6116 = vmatmul.mubr.f32.gmra.mrb[0].mxu0 %v6028
  %v6117 = vpop.f32.mrb[0].mxu0
  %v6118 = vadd.f32 0.0, %v6117
  %v6119 = vpop.f32.mrb[0].mxu0
  %6120 = vmatprep.mubr.f32.mxu0 0.0
  %6121 = vmatmul.mubr.f32.gmra.mrb[0].mxu0 %v6031
  %v6122 = vpop.f32.mrb[0].mxu0
  %v6123 = vadd.f32 0.0, %v6122
  %v6124 = vpop.f32.mrb[0].mxu0
  %6125 = vmatprep.mubr.f32.mxu0 0.0
  %6126 = vmatmul.mubr.f32.gmra.mrb[0].mxu0 %v6034
  %v6127 = vpop.f32.mrb[0].mxu0
  %v6128 = vadd.f32 0.0, %v6127
  %v6129 = vpop.f32.mrb[0].mxu0
  %6130 = vmatprep.mubr.f32.mxu0 0.0
  %6131 = vmatmul.mubr.f32.gmra.mrb[0].mxu0 %v6037
  %v6132 = vpop.f32.mrb[0].mxu0
  %v6133 = vadd.f32 0.0, %v6132
  %v6134 = vpop.f32.mrb[0].mxu0
  %6135 = vmatprep.mubr.f32.mxu0 0.0
  %6136 = vmatmul.mubr.f32.gmra.mrb[0].mxu0 %v6040
  %v6137 = vpop.f32.mrb[0].mxu0
  %v6138 = vadd.f32 0.0, %v6137
  %v6139 = vpop.f32.mrb[0].mxu0
  %6140 = vmatprep.mubr.f32.mxu0 0.0
  %6141 = vmatmul.mubr.f32.gmra.mrb[0].mxu0 %v6043
  %v6142 = vpop.f32.mrb[0].mxu0
  %v6143 = vadd.f32 0.0, %v6142
  %v6144 = vpop.f32.mrb[0].mxu0
  %6145 = vmatprep.mubr.f32.mxu0 0.0
  %6146 = vmatmul.mubr.f32.gmra.mrb[0].mxu0 %v6046
  %v6147 = vpop.f32.mrb[0].mxu0
  %v6148 = vadd.f32 0.0, %v6147
  %v6149 = vpop.f32.mrb[0].mxu0
  %6150 = vmatprep.mubr.f32.mxu0 0.0
  %6151 = vmatmul.mubr.f32.gmra.mrb[0].mxu0 %v6049
  %v6152 = vpop.f32.mrb[0].mxu0
  %v6153 = vadd.f32 0.0, %v6152
  %v6154 = vpop.f32.mrb[0].mxu0
  %6155 = vdwg.mxu0
  %v6156 = vsub.f32 %v6118, %v1104
  %v6157 = vsub.f32 %v6123, %v1105
  %v6158 = vsub.f32 %v6128, %v1106
  %v6159 = vsub.f32 %v6133, %v1107
  %v6160 = vsub.f32 %v6138, %v1108
  %v6161 = vsub.f32 %v6143, %v1109
  %v6162 = vsub.f32 %v6148, %v1110
  %v6163 = vsub.f32 %v6153, %v1111
  %v6165 = vsel %vm84, %v6156, 0
  %v6168 = vsel %vm84, %v6157, 0
  %v6171 = vsel %vm84, %v6158, 0
  %v6174 = vsel %vm84, %v6159, 0
  %v6177 = vsel %vm84, %v6160, 0
  %v6180 = vsel %vm84, %v6161, 0
  %v6183 = vsel %vm84, %v6162, 0
  %v6186 = vsel %vm84, %v6163, 0
  %6188 = vmatprep.subr.mxu0 0.0
  %6189 = vmatpush1.msra.mxu0 %v1224
  %6190 = vmatprep.subr.mxu0 0.0
  %6191 = vmatpush1.msra.mxu0 %v1225
  %6192 = vmatprep.subr.mxu0 0.0
  %6193 = vmatpush1.msra.mxu0 %v1226
  %6194 = vmatprep.subr.mxu0 0.0
  %6195 = vmatpush1.msra.mxu0 %v1227
  %6196 = vmatprep.subr.mxu0 0.0
  %6197 = vmatpush1.msra.mxu0 0.0
  %6198 = vmatprep.subr.mxu0 0.0
  %6199 = vmatpush1.msra.mxu0 0.0
  %6200 = vmatprep.subr.mxu0 0.0
  %6201 = vmatpush1.msra.mxu0 0.0
  %6202 = vmatprep.subr.mxu0 0.0
  %6203 = vmatpush1.msra.mxu0 0.0
  %6204 = vmatprep.subr.mxu0 0.0
  %6205 = vmatpush1.msra.mxu0 0.0
  %6206 = vmatprep.subr.mxu0 0.0
  %6207 = vmatpush1.msra.mxu0 0.0
  %6208 = vmatprep.subr.mxu0 0.0
  %6209 = vmatpush1.msra.mxu0 0.0
  %6210 = vmatprep.subr.mxu0 0.0
  %6211 = vmatpush1.msra.mxu0 0.0
  %6212 = vmatprep.subr.mxu0 0.0
  %6213 = vmatpush1.msra.mxu0 0.0
  %6214 = vmatprep.subr.mxu0 0.0
  %6215 = vmatpush1.msra.mxu0 0.0
  %6216 = vmatprep.subr.mxu0 0.0
  %6217 = vmatpush1.msra.mxu0 0.0
  %6218 = vmatprep.subr.mxu0 0.0
  %6219 = vmatpush1.msra.mxu0 0.0
  %6220 = vmatprep.subr.mxu0 0.0
  %6221 = vmatpush1.msra.mxu0 0.0
  %6222 = vmatprep.subr.mxu0 0.0
  %6223 = vmatpush1.msra.mxu0 0.0
  %6224 = vmatprep.subr.mxu0 0.0
  %6225 = vmatpush1.msra.mxu0 0.0
  %6226 = vmatprep.subr.mxu0 0.0
  %6227 = vmatpush1.msra.mxu0 0.0
  %6228 = vmatprep.subr.mxu0 0.0
  %6229 = vmatpush1.msra.mxu0 0.0
  %6230 = vmatprep.subr.mxu0 0.0
  %6231 = vmatpush1.msra.mxu0 0.0
  %6232 = vmatprep.subr.mxu0 0.0
  %6233 = vmatpush1.msra.mxu0 0.0
  %6234 = vmatprep.subr.mxu0 0.0
  %6235 = vmatpush1.msra.mxu0 0.0
  %6236 = vmatprep.subr.mxu0 0.0
  %6237 = vmatpush1.msra.mxu0 0.0
  %6238 = vmatprep.subr.mxu0 0.0
  %6239 = vmatpush1.msra.mxu0 0.0
  %6240 = vmatprep.subr.mxu0 0.0
  %6241 = vmatpush1.msra.mxu0 0.0
  %6242 = vmatprep.subr.mxu0 0.0
  %6243 = vmatpush1.msra.mxu0 0.0
  %6244 = vmatprep.subr.mxu0 0.0
  %6245 = vmatpush1.msra.mxu0 0.0
  %6246 = vmatprep.subr.mxu0 0.0
  %6247 = vmatpush1.msra.mxu0 0.0
  %6248 = vmatprep.subr.mxu0 0.0
  %6249 = vmatpush1.msra.mxu0 0.0
  %6250 = vmatprep.subr.mxu0 0.0
  %6251 = vmatpush1.msra.mxu0 0.0
  %6252 = vmatprep.mubr.f32.mxu0 0.0
  %6253 = vmatmul.mubr.f32.gmra.mrb[0].mxu0 %v6165
  %v6254 = vpop.f32.mrb[0].mxu0
  %v6255 = vadd.f32 %v3749, %v6254
  %v6256 = vpop.f32.mrb[0].mxu0
  %6257 = vmatprep.mubr.f32.mxu0 0.0
  %6258 = vmatmul.mubr.f32.gmra.mrb[0].mxu0 %v6168
  %v6259 = vpop.f32.mrb[0].mxu0
  %v6260 = vadd.f32 %v3749, %v6259
  %v6261 = vpop.f32.mrb[0].mxu0
  %6262 = vmatprep.mubr.f32.mxu0 0.0
  %6263 = vmatmul.mubr.f32.gmra.mrb[0].mxu0 %v6171
  %v6264 = vpop.f32.mrb[0].mxu0
  %v6265 = vadd.f32 %v3749, %v6264
  %v6266 = vpop.f32.mrb[0].mxu0
  %6267 = vmatprep.mubr.f32.mxu0 0.0
  %6268 = vmatmul.mubr.f32.gmra.mrb[0].mxu0 %v6174
  %v6269 = vpop.f32.mrb[0].mxu0
  %v6270 = vadd.f32 %v3749, %v6269
  %v6271 = vpop.f32.mrb[0].mxu0
  %6272 = vmatprep.mubr.f32.mxu0 0.0
  %6273 = vmatmul.mubr.f32.gmra.mrb[0].mxu0 %v6177
  %v6274 = vpop.f32.mrb[0].mxu0
  %v6275 = vadd.f32 %v3749, %v6274
  %v6276 = vpop.f32.mrb[0].mxu0
  %6277 = vmatprep.mubr.f32.mxu0 0.0
  %6278 = vmatmul.mubr.f32.gmra.mrb[0].mxu0 %v6180
  %v6279 = vpop.f32.mrb[0].mxu0
  %v6280 = vadd.f32 %v3749, %v6279
  %v6281 = vpop.f32.mrb[0].mxu0
  %6282 = vmatprep.mubr.f32.mxu0 0.0
  %6283 = vmatmul.mubr.f32.gmra.mrb[0].mxu0 %v6183
  %v6284 = vpop.f32.mrb[0].mxu0
  %v6285 = vadd.f32 %v3749, %v6284
  %v6286 = vpop.f32.mrb[0].mxu0
  %6287 = vmatprep.mubr.f32.mxu0 0.0
  %6288 = vmatmul.mubr.f32.gmra.mrb[0].mxu0 %v6186
  %v6289 = vpop.f32.mrb[0].mxu0
  %v6290 = vadd.f32 %v3749, %v6289
  %v6291 = vpop.f32.mrb[0].mxu0
  %6292 = vdwg.mxu0
  %6293 = vst.msk [vmem:[%s21] sm:$0xff] %vm1519, %v3842
  %6294 = vst.msk [vmem:[%s21 + $0x8] sm:$0xff] %vm1519, %v3847
  %6295 = vst.msk [vmem:[%s21 + $0x10] sm:$0xff] %vm1519, %v3852
  %6296 = vst.msk [vmem:[%s21 + $0x18] sm:$0xff] %vm1519, %v3857
  %6297 = vst.msk [vmem:[%s21 + $0x20] sm:$0xff] %vm1519, %v3862
  %6298 = vst.msk [vmem:[%s21 + $0x28] sm:$0xff] %vm1519, %v3867
  %6299 = vst.msk [vmem:[%s21 + $0x30] sm:$0xff] %vm1519, %v3872
  %6300 = vst.msk [vmem:[%s21 + $0x38] sm:$0xff] %vm1519, %v3877
  %6301 = vst.msk [vmem:[%s21 + $0x40] sm:$0xff] %vm1519, %v6255
  %6302 = vst.msk [vmem:[%s21 + $0x48] sm:$0xff] %vm1519, %v6260
  %6303 = vst.msk [vmem:[%s21 + $0x50] sm:$0xff] %vm1519, %v6265
  %6304 = vst.msk [vmem:[%s21 + $0x58] sm:$0xff] %vm1519, %v6270
  %6305 = vst.msk [vmem:[%s21 + $0x60] sm:$0xff] %vm1519, %v6275
  %6306 = vst.msk [vmem:[%s21 + $0x68] sm:$0xff] %vm1519, %v6280
  %6307 = vst.msk [vmem:[%s21 + $0x70] sm:$0xff] %vm1519, %v6285
  %6308 = vst.msk [vmem:[%s21 + $0x78] sm:$0xff] %vm1519, %v6290
  %v6309 = vadd.f32 %v318, %v3344
  %v6310 = vadd.f32 %v319, %v3349
  %v6311 = vadd.f32 %v320, %v3354
  %v6312 = vadd.f32 %v321, %v3359
  %v6313 = vadd.f32 %v322, %v3364
  %v6314 = vadd.f32 %v323, %v3369
  %v6315 = vadd.f32 %v324, %v3374
  %v6316 = vadd.f32 %v325, %v3379
  %v6317 = vadd.f32 %v326, %v5763
  %v6318 = vadd.f32 %v327, %v5768
  %v6319 = vadd.f32 %v328, %v5773
  %v6320 = vadd.f32 %v329, %v5778
  %v6321 = vadd.f32 %v330, %v5783
  %v6322 = vadd.f32 %v331, %v5788
  %v6323 = vadd.f32 %v332, %v5793
  %v6324 = vadd.f32 %v333, %v5798
  %v6325 = vsel %vm84, %v6309, 0.0
  %6326 = vadd.xlane.f32.xlu0 %v6325
  %v6327 = vpop.xlane.xlu0 %6326
  %v6328 = vsel %vm84, %v6310, 0.0
  %6329 = vadd.xlane.f32.xlu0 %v6328
  %v6330 = vpop.xlane.xlu0 %6329
  %v6331 = vsel %vm84, %v6311, 0.0
  %6332 = vadd.xlane.f32.xlu0 %v6331
  %v6333 = vpop.xlane.xlu0 %6332
  %v6334 = vsel %vm84, %v6312, 0.0
  %6335 = vadd.xlane.f32.xlu0 %v6334
  %v6336 = vpop.xlane.xlu0 %6335
  %v6337 = vsel %vm84, %v6313, 0.0
  %6338 = vadd.xlane.f32.xlu0 %v6337
  %v6339 = vpop.xlane.xlu0 %6338
  %v6340 = vsel %vm84, %v6314, 0.0
  %6341 = vadd.xlane.f32.xlu0 %v6340
  %v6342 = vpop.xlane.xlu0 %6341
  %v6343 = vsel %vm84, %v6315, 0.0
  %6344 = vadd.xlane.f32.xlu0 %v6343
  %v6345 = vpop.xlane.xlu0 %6344
  %v6346 = vsel %vm84, %v6316, 0.0
  %6347 = vadd.xlane.f32.xlu0 %v6346
  %v6348 = vpop.xlane.xlu0 %6347
  %v6349 = vsel %vm84, %v6317, 0.0
  %6350 = vadd.xlane.f32.xlu0 %v6349
  %v6351 = vpop.xlane.xlu0 %6350
  %v6352 = vsel %vm84, %v6318, 0.0
  %6353 = vadd.xlane.f32.xlu0 %v6352
  %v6354 = vpop.xlane.xlu0 %6353
  %v6355 = vsel %vm84, %v6319, 0.0
  %6356 = vadd.xlane.f32.xlu0 %v6355
  %v6357 = vpop.xlane.xlu0 %6356
  %v6358 = vsel %vm84, %v6320, 0.0
  %6359 = vadd.xlane.f32.xlu0 %v6358
  %v6360 = vpop.xlane.xlu0 %6359
  %v6361 = vsel %vm84, %v6321, 0.0
  %6362 = vadd.xlane.f32.xlu0 %v6361
  %v6363 = vpop.xlane.xlu0 %6362
  %v6364 = vsel %vm84, %v6322, 0.0
  %6365 = vadd.xlane.f32.xlu0 %v6364
  %v6366 = vpop.xlane.xlu0 %6365
  %v6367 = vsel %vm84, %v6323, 0.0
  %6368 = vadd.xlane.f32.xlu0 %v6367
  %v6369 = vpop.xlane.xlu0 %6368
  %v6370 = vsel %vm84, %v6324, 0.0
  %6371 = vadd.xlane.f32.xlu0 %v6370
  %v6372 = vpop.xlane.xlu0 %6371
  %v6373 = vmul.f32 %v6327, %v133
  %v6374 = vmul.f32 %v6330, %v133
  %v6375 = vmul.f32 %v6333, %v133
  %v6376 = vmul.f32 %v6336, %v133
  %v6377 = vmul.f32 %v6339, %v133
  %v6378 = vmul.f32 %v6342, %v133
  %v6379 = vmul.f32 %v6345, %v133
  %v6380 = vmul.f32 %v6348, %v133
  %v6381 = vmul.f32 %v6351, %v133
  %v6382 = vmul.f32 %v6354, %v133
  %v6383 = vmul.f32 %v6357, %v133
  %v6384 = vmul.f32 %v6360, %v133
  %v6385 = vmul.f32 %v6363, %v133
  %v6386 = vmul.f32 %v6366, %v133
  %v6387 = vmul.f32 %v6369, %v133
  %v6388 = vmul.f32 %v6372, %v133
  %v6389 = vsub.f32 %v6309, %v6373
  %v6390 = vsub.f32 %v6310, %v6374
  %v6391 = vsub.f32 %v6311, %v6375
  %v6392 = vsub.f32 %v6312, %v6376
  %v6393 = vsub.f32 %v6313, %v6377
  %v6394 = vsub.f32 %v6314, %v6378
  %v6395 = vsub.f32 %v6315, %v6379
  %v6396 = vsub.f32 %v6316, %v6380
  %v6397 = vsub.f32 %v6317, %v6381
  %v6398 = vsub.f32 %v6318, %v6382
  %v6399 = vsub.f32 %v6319, %v6383
  %v6400 = vsub.f32 %v6320, %v6384
  %v6401 = vsub.f32 %v6321, %v6385
  %v6402 = vsub.f32 %v6322, %v6386
  %v6403 = vsub.f32 %v6323, %v6387
  %v6404 = vsub.f32 %v6324, %v6388
  %v6405 = vmul.f32 %v6389, %v6389
  %v6406 = vmul.f32 %v6390, %v6390
  %v6407 = vmul.f32 %v6391, %v6391
  %v6408 = vmul.f32 %v6392, %v6392
  %v6409 = vmul.f32 %v6393, %v6393
  %v6410 = vmul.f32 %v6394, %v6394
  %v6411 = vmul.f32 %v6395, %v6395
  %v6412 = vmul.f32 %v6396, %v6396
  %v6413 = vmul.f32 %v6397, %v6397
  %v6414 = vmul.f32 %v6398, %v6398
  %v6415 = vmul.f32 %v6399, %v6399
  %v6416 = vmul.f32 %v6400, %v6400
  %v6417 = vmul.f32 %v6401, %v6401
  %v6418 = vmul.f32 %v6402, %v6402
  %v6419 = vmul.f32 %v6403, %v6403
  %v6420 = vmul.f32 %v6404, %v6404
  %v6421 = vsel %vm84, %v6405, 0.0
  %6422 = vadd.xlane.f32.xlu0 %v6421
  %v6423 = vpop.xlane.xlu0 %6422
  %v6424 = vsel %vm84, %v6406, 0.0
  %6425 = vadd.xlane.f32.xlu0 %v6424
  %v6426 = vpop.xlane.xlu0 %6425
  %v6427 = vsel %vm84, %v6407, 0.0
  %6428 = vadd.xlane.f32.xlu0 %v6427
  %v6429 = vpop.xlane.xlu0 %6428
  %v6430 = vsel %vm84, %v6408, 0.0
  %6431 = vadd.xlane.f32.xlu0 %v6430
  %v6432 = vpop.xlane.xlu0 %6431
  %v6433 = vsel %vm84, %v6409, 0.0
  %6434 = vadd.xlane.f32.xlu0 %v6433
  %v6435 = vpop.xlane.xlu0 %6434
  %v6436 = vsel %vm84, %v6410, 0.0
  %6437 = vadd.xlane.f32.xlu0 %v6436
  %v6438 = vpop.xlane.xlu0 %6437
  %v6439 = vsel %vm84, %v6411, 0.0
  %6440 = vadd.xlane.f32.xlu0 %v6439
  %v6441 = vpop.xlane.xlu0 %6440
  %v6442 = vsel %vm84, %v6412, 0.0
  %6443 = vadd.xlane.f32.xlu0 %v6442
  %v6444 = vpop.xlane.xlu0 %6443
  %v6445 = vsel %vm84, %v6413, 0.0
  %6446 = vadd.xlane.f32.xlu0 %v6445
  %v6447 = vpop.xlane.xlu0 %6446
  %v6448 = vsel %vm84, %v6414, 0.0
  %6449 = vadd.xlane.f32.xlu0 %v6448
  %v6450 = vpop.xlane.xlu0 %6449
  %v6451 = vsel %vm84, %v6415, 0.0
  %6452 = vadd.xlane.f32.xlu0 %v6451
  %v6453 = vpop.xlane.xlu0 %6452
  %v6454 = vsel %vm84, %v6416, 0.0
  %6455 = vadd.xlane.f32.xlu0 %v6454
  %v6456 = vpop.xlane.xlu0 %6455
  %v6457 = vsel %vm84, %v6417, 0.0
  %6458 = vadd.xlane.f32.xlu0 %v6457
  %v6459 = vpop.xlane.xlu0 %6458
  %v6460 = vsel %vm84, %v6418, 0.0
  %6461 = vadd.xlane.f32.xlu0 %v6460
  %v6462 = vpop.xlane.xlu0 %6461
  %v6463 = vsel %vm84, %v6419, 0.0
  %6464 = vadd.xlane.f32.xlu0 %v6463
  %v6465 = vpop.xlane.xlu0 %6464
  %v6466 = vsel %vm84, %v6420, 0.0
  %6467 = vadd.xlane.f32.xlu0 %v6466
  %v6468 = vpop.xlane.xlu0 %6467
  %v6469 = vmul.f32 %v6423, %v133
  %v6470 = vmul.f32 %v6426, %v133
  %v6471 = vmul.f32 %v6429, %v133
  %v6472 = vmul.f32 %v6432, %v133
  %v6473 = vmul.f32 %v6435, %v133
  %v6474 = vmul.f32 %v6438, %v133
  %v6475 = vmul.f32 %v6441, %v133
  %v6476 = vmul.f32 %v6444, %v133
  %v6477 = vmul.f32 %v6447, %v133
  %v6478 = vmul.f32 %v6450, %v133
  %v6479 = vmul.f32 %v6453, %v133
  %v6480 = vmul.f32 %v6456, %v133
  %v6481 = vmul.f32 %v6459, %v133
  %v6482 = vmul.f32 %v6462, %v133
  %v6483 = vmul.f32 %v6465, %v133
  %v6484 = vmul.f32 %v6468, %v133
  %v6485 = vadd.f32 %v6469, 1e-05
  %v6486 = vadd.f32 %v6470, 1e-05
  %v6487 = vadd.f32 %v6471, 1e-05
  %v6488 = vadd.f32 %v6472, 1e-05
  %v6489 = vadd.f32 %v6473, 1e-05
  %v6490 = vadd.f32 %v6474, 1e-05
  %v6491 = vadd.f32 %v6475, 1e-05
  %v6492 = vadd.f32 %v6476, 1e-05
  %v6493 = vadd.f32 %v6477, 1e-05
  %v6494 = vadd.f32 %v6478, 1e-05
  %v6495 = vadd.f32 %v6479, 1e-05
  %v6496 = vadd.f32 %v6480, 1e-05
  %v6497 = vadd.f32 %v6481, 1e-05
  %v6498 = vadd.f32 %v6482, 1e-05
  %v6499 = vadd.f32 %v6483, 1e-05
  %v6500 = vadd.f32 %v6484, 1e-05
  %v6501 = vrsqrt.pop %v6485
  %v6502 = vrsqrt.pop %v6486
  %v6503 = vrsqrt.pop %v6487
  %v6504 = vrsqrt.pop %v6488
  %v6505 = vrsqrt.pop %v6489
  %v6506 = vrsqrt.pop %v6490
  %v6507 = vrsqrt.pop %v6491
  %v6508 = vrsqrt.pop %v6492
  %v6509 = vrsqrt.pop %v6493
  %v6510 = vrsqrt.pop %v6494
  %v6511 = vrsqrt.pop %v6495
  %v6512 = vrsqrt.pop %v6496
  %v6513 = vrsqrt.pop %v6497
  %v6514 = vrsqrt.pop %v6498
  %v6515 = vrsqrt.pop %v6499
  %v6516 = vrsqrt.pop %v6500
  %v6517 = vmul.f32 %v6389, %v6501
  %v6518 = vmul.f32 %v6390, %v6502
  %v6519 = vmul.f32 %v6391, %v6503
  %v6520 = vmul.f32 %v6392, %v6504
  %v6521 = vmul.f32 %v6393, %v6505
  %v6522 = vmul.f32 %v6394, %v6506
  %v6523 = vmul.f32 %v6395, %v6507
  %v6524 = vmul.f32 %v6396, %v6508
  %v6525 = vmul.f32 %v6397, %v6509
  %v6526 = vmul.f32 %v6398, %v6510
  %v6527 = vmul.f32 %v6399, %v6511
  %v6528 = vmul.f32 %v6400, %v6512
  %v6529 = vmul.f32 %v6401, %v6513
  %v6530 = vmul.f32 %v6402, %v6514
  %v6531 = vmul.f32 %v6403, %v6515
  %v6532 = vmul.f32 %v6404, %v6516
  %v6533 = vlaneseq
  %v6534 = vshrl.u32 %v6533, 7
  %v6535 = vsub.s32 2, %v6534
  %v6536 = vrot.slane %v83, %v6535
  %v6537 = vmul.f32 %v6517, %v6536
  %v6538 = vmul.f32 %v6518, %v6536
  %v6539 = vmul.f32 %v6519, %v6536
  %v6540 = vmul.f32 %v6520, %v6536
  %v6541 = vmul.f32 %v6521, %v6536
  %v6542 = vmul.f32 %v6522, %v6536
  %v6543 = vmul.f32 %v6523, %v6536
  %v6544 = vmul.f32 %v6524, %v6536
  %v6545 = vmul.f32 %v6525, %v6536
  %v6546 = vmul.f32 %v6526, %v6536
  %v6547 = vmul.f32 %v6527, %v6536
  %v6548 = vmul.f32 %v6528, %v6536
  %v6549 = vmul.f32 %v6529, %v6536
  %v6550 = vmul.f32 %v6530, %v6536
  %v6551 = vmul.f32 %v6531, %v6536
  %v6552 = vmul.f32 %v6532, %v6536
  %v6553 = vlaneseq
  %v6554 = vshrl.u32 %v6553, 7
  %v6555 = vsub.s32 3, %v6554
  %v6556 = vrot.slane %v83, %v6555
  %v6557 = vadd.f32 %v6537, %v6556
  %v6558 = vadd.f32 %v6538, %v6556
  %v6559 = vadd.f32 %v6539, %v6556
  %v6560 = vadd.f32 %v6540, %v6556
  %v6561 = vadd.f32 %v6541, %v6556
  %v6562 = vadd.f32 %v6542, %v6556
  %v6563 = vadd.f32 %v6543, %v6556
  %v6564 = vadd.f32 %v6544, %v6556
  %v6565 = vadd.f32 %v6545, %v6556
  %v6566 = vadd.f32 %v6546, %v6556
  %v6567 = vadd.f32 %v6547, %v6556
  %v6568 = vadd.f32 %v6548, %v6556
  %v6569 = vadd.f32 %v6549, %v6556
  %v6570 = vadd.f32 %v6550, %v6556
  %v6571 = vadd.f32 %v6551, %v6556
  %v6572 = vadd.f32 %v6552, %v6556
  %v6574 = vlaneseq
  %v6575 = vshrl.u32 %v6574, 7
  %v6576 = vsub.s32 0, %v6575
  %v6577 = vrot.slane %v1233, %v6576
  %v6580 = vsel %vm84, %v6557, 0
  %v6583 = vsel %vm84, %v6558, 0
  %v6586 = vsel %vm84, %v6559, 0
  %v6589 = vsel %vm84, %v6560, 0
  %v6592 = vsel %vm84, %v6561, 0
  %v6595 = vsel %vm84, %v6562, 0
  %v6598 = vsel %vm84, %v6563, 0
  %v6601 = vsel %vm84, %v6564, 0
  %v6604 = vsel %vm84, %v6565, 0
  %v6607 = vsel %vm84, %v6566, 0
  %v6610 = vsel %vm84, %v6567, 0
  %v6613 = vsel %vm84, %v6568, 0
  %v6616 = vsel %vm84, %v6569, 0
  %v6619 = vsel %vm84, %v6570, 0
  %v6622 = vsel %vm84, %v6571, 0
  %v6625 = vsel %vm84, %v6572, 0
  %6627 = vmatprep.subr.mxu0 0.0
  %6628 = vmatpush1.msra.mxu0 %v1229
  %6629 = vmatprep.subr.mxu0 0.0
  %6630 = vmatpush1.msra.mxu0 %v1230
  %6631 = vmatprep.subr.mxu0 0.0
  %6632 = vmatpush1.msra.mxu0 %v1231
  %6633 = vmatprep.subr.mxu0 0.0
  %6634 = vmatpush1.msra.mxu0 %v1232
  %6635 = vmatprep.subr.mxu0 0.0
  %6636 = vmatpush1.msra.mxu0 0.0
  %6637 = vmatprep.subr.mxu0 0.0
  %6638 = vmatpush1.msra.mxu0 0.0
  %6639 = vmatprep.subr.mxu0 0.0
  %6640 = vmatpush1.msra.mxu0 0.0
  %6641 = vmatprep.subr.mxu0 0.0
  %6642 = vmatpush1.msra.mxu0 0.0
  %6643 = vmatprep.subr.mxu0 0.0
  %6644 = vmatpush1.msra.mxu0 0.0
  %6645 = vmatprep.subr.mxu0 0.0
  %6646 = vmatpush1.msra.mxu0 0.0
  %6647 = vmatprep.subr.mxu0 0.0
  %6648 = vmatpush1.msra.mxu0 0.0
  %6649 = vmatprep.subr.mxu0 0.0
  %6650 = vmatpush1.msra.mxu0 0.0
  %6651 = vmatprep.subr.mxu0 0.0
  %6652 = vmatpush1.msra.mxu0 0.0
  %6653 = vmatprep.subr.mxu0 0.0
  %6654 = vmatpush1.msra.mxu0 0.0
  %6655 = vmatprep.subr.mxu0 0.0
  %6656 = vmatpush1.msra.mxu0 0.0
  %6657 = vmatprep.subr.mxu0 0.0
  %6658 = vmatpush1.msra.mxu0 0.0
  %6659 = vmatprep.subr.mxu0 0.0
  %6660 = vmatpush1.msra.mxu0 0.0
  %6661 = vmatprep.subr.mxu0 0.0
  %6662 = vmatpush1.msra.mxu0 0.0
  %6663 = vmatprep.subr.mxu0 0.0
  %6664 = vmatpush1.msra.mxu0 0.0
  %6665 = vmatprep.subr.mxu0 0.0
  %6666 = vmatpush1.msra.mxu0 0.0
  %6667 = vmatprep.subr.mxu0 0.0
  %6668 = vmatpush1.msra.mxu0 0.0
  %6669 = vmatprep.subr.mxu0 0.0
  %6670 = vmatpush1.msra.mxu0 0.0
  %6671 = vmatprep.subr.mxu0 0.0
  %6672 = vmatpush1.msra.mxu0 0.0
  %6673 = vmatprep.subr.mxu0 0.0
  %6674 = vmatpush1.msra.mxu0 0.0
  %6675 = vmatprep.subr.mxu0 0.0
  %6676 = vmatpush1.msra.mxu0 0.0
  %6677 = vmatprep.subr.mxu0 0.0
  %6678 = vmatpush1.msra.mxu0 0.0
  %6679 = vmatprep.subr.mxu0 0.0
  %6680 = vmatpush1.msra.mxu0 0.0
  %6681 = vmatprep.subr.mxu0 0.0
  %6682 = vmatpush1.msra.mxu0 0.0
  %6683 = vmatprep.subr.mxu0 0.0
  %6684 = vmatpush1.msra.mxu0 0.0
  %6685 = vmatprep.subr.mxu0 0.0
  %6686 = vmatpush1.msra.mxu0 0.0
  %6687 = vmatprep.subr.mxu0 0.0
  %6688 = vmatpush1.msra.mxu0 0.0
  %6689 = vmatprep.subr.mxu0 0.0
  %6690 = vmatpush1.msra.mxu0 0.0
  %6691 = vmatprep.mubr.f32.mxu0 0.0
  %6692 = vmatmul.mubr.f32.gmra.mrb[0].mxu0 %v6580
  %v6693 = vpop.f32.mrb[0].mxu0
  %v6694 = vadd.f32 %v6577, %v6693
  %v6695 = vpop.f32.mrb[0].mxu0
  %6696 = vmatprep.mubr.f32.mxu0 0.0
  %6697 = vmatmul.mubr.f32.gmra.mrb[0].mxu0 %v6583
  %v6698 = vpop.f32.mrb[0].mxu0
  %v6699 = vadd.f32 %v6577, %v6698
  %v6700 = vpop.f32.mrb[0].mxu0
  %6701 = vmatprep.mubr.f32.mxu0 0.0
  %6702 = vmatmul.mubr.f32.gmra.mrb[0].mxu0 %v6586
  %v6703 = vpop.f32.mrb[0].mxu0
  %v6704 = vadd.f32 %v6577, %v6703
  %v6705 = vpop.f32.mrb[0].mxu0
  %6706 = vmatprep.mubr.f32.mxu0 0.0
  %6707 = vmatmul.mubr.f32.gmra.mrb[0].mxu0 %v6589
  %v6708 = vpop.f32.mrb[0].mxu0
  %v6709 = vadd.f32 %v6577, %v6708
  %v6710 = vpop.f32.mrb[0].mxu0
  %6711 = vmatprep.mubr.f32.mxu0 0.0
  %6712 = vmatmul.mubr.f32.gmra.mrb[0].mxu0 %v6592
  %v6713 = vpop.f32.mrb[0].mxu0
  %v6714 = vadd.f32 %v6577, %v6713
  %v6715 = vpop.f32.mrb[0].mxu0
  %6716 = vmatprep.mubr.f32.mxu0 0.0
  %6717 = vmatmul.mubr.f32.gmra.mrb[0].mxu0 %v6595
  %v6718 = vpop.f32.mrb[0].mxu0
  %v6719 = vadd.f32 %v6577, %v6718
  %v6720 = vpop.f32.mrb[0].mxu0
  %6721 = vmatprep.mubr.f32.mxu0 0.0
  %6722 = vmatmul.mubr.f32.gmra.mrb[0].mxu0 %v6598
  %v6723 = vpop.f32.mrb[0].mxu0
  %v6724 = vadd.f32 %v6577, %v6723
  %v6725 = vpop.f32.mrb[0].mxu0
  %6726 = vmatprep.mubr.f32.mxu0 0.0
  %6727 = vmatmul.mubr.f32.gmra.mrb[0].mxu0 %v6601
  %v6728 = vpop.f32.mrb[0].mxu0
  %v6729 = vadd.f32 %v6577, %v6728
  %v6730 = vpop.f32.mrb[0].mxu0
  %6731 = vmatprep.mubr.f32.mxu0 0.0
  %6732 = vmatmul.mubr.f32.gmra.mrb[0].mxu0 %v6604
  %v6733 = vpop.f32.mrb[0].mxu0
  %v6734 = vadd.f32 %v6577, %v6733
  %v6735 = vpop.f32.mrb[0].mxu0
  %6736 = vmatprep.mubr.f32.mxu0 0.0
  %6737 = vmatmul.mubr.f32.gmra.mrb[0].mxu0 %v6607
  %v6738 = vpop.f32.mrb[0].mxu0
  %v6739 = vadd.f32 %v6577, %v6738
  %v6740 = vpop.f32.mrb[0].mxu0
  %6741 = vmatprep.mubr.f32.mxu0 0.0
  %6742 = vmatmul.mubr.f32.gmra.mrb[0].mxu0 %v6610
  %v6743 = vpop.f32.mrb[0].mxu0
  %v6744 = vadd.f32 %v6577, %v6743
  %v6745 = vpop.f32.mrb[0].mxu0
  %6746 = vmatprep.mubr.f32.mxu0 0.0
  %6747 = vmatmul.mubr.f32.gmra.mrb[0].mxu0 %v6613
  %v6748 = vpop.f32.mrb[0].mxu0
  %v6749 = vadd.f32 %v6577, %v6748
  %v6750 = vpop.f32.mrb[0].mxu0
  %6751 = vmatprep.mubr.f32.mxu0 0.0
  %6752 = vmatmul.mubr.f32.gmra.mrb[0].mxu0 %v6616
  %v6753 = vpop.f32.mrb[0].mxu0
  %v6754 = vadd.f32 %v6577, %v6753
  %v6755 = vpop.f32.mrb[0].mxu0
  %6756 = vmatprep.mubr.f32.mxu0 0.0
  %6757 = vmatmul.mubr.f32.gmra.mrb[0].mxu0 %v6619
  %v6758 = vpop.f32.mrb[0].mxu0
  %v6759 = vadd.f32 %v6577, %v6758
  %v6760 = vpop.f32.mrb[0].mxu0
  %6761 = vmatprep.mubr.f32.mxu0 0.0
  %6762 = vmatmul.mubr.f32.gmra.mrb[0].mxu0 %v6622
  %v6763 = vpop.f32.mrb[0].mxu0
  %v6764 = vadd.f32 %v6577, %v6763
  %v6765 = vpop.f32.mrb[0].mxu0
  %6766 = vmatprep.mubr.f32.mxu0 0.0
  %6767 = vmatmul.mubr.f32.gmra.mrb[0].mxu0 %v6625
  %v6768 = vpop.f32.mrb[0].mxu0
  %v6769 = vadd.f32 %v6577, %v6768
  %v6770 = vpop.f32.mrb[0].mxu0
  %6771 = vdwg.mxu0
  %v6772 = vlaneseq
  %v6773 = vshrl.u32 %v6772, 7
  %vm6774 = vcmp.ge.s32.totalorder %v6773, 1
  %vm6775 = vcmp.le.s32.totalorder %v6773, 6
  %v6776 = vrot.slane %v6694, 7
  %v6777 = vrot.slane %v6699, 7
  %v6778 = vrot.slane %v6704, 7
  %v6779 = vrot.slane %v6709, 7
  %v6780 = vrot.slane %v6714, 7
  %v6781 = vrot.slane %v6719, 7
  %v6782 = vrot.slane %v6724, 7
  %v6783 = vsel %vm6774, 0.0, 0.0
  %v6784 = vsel %vm6774, %v6776, 0.0
  %v6785 = vsel %vm6774, %v6777, 0.0
  %v6786 = vsel %vm6774, %v6778, 0.0
  %v6787 = vsel %vm6774, %v6779, 0.0
  %v6788 = vsel %vm6774, %v6780, 0.0
  %v6789 = vsel %vm6774, %v6781, 0.0
  %v6790 = vsel %vm6774, %v6782, 0.0
  %v6792 = vlaneseq
  %v6793 = vshrl.u32 %v6792, 7
  %v6794 = vsub.s32 0, %v6793
  %v6795 = vrot.slane %v1234, %v6794
  %v6797 = vmul.f32 %v6783, %v6795
  %v6798 = vmul.f32 %v6784, %v6795
  %v6799 = vmul.f32 %v6785, %v6795
  %v6800 = vmul.f32 %v6786, %v6795
  %v6801 = vmul.f32 %v6787, %v6795
  %v6802 = vmul.f32 %v6788, %v6795
  %v6803 = vmul.f32 %v6789, %v6795
  %v6804 = vmul.f32 %v6790, %v6795
  %v6806 = vlaneseq
  %v6807 = vshrl.u32 %v6806, 7
  %v6808 = vsub.s32 0, %v6807
  %v6809 = vrot.slane %v1235, %v6808
  %v6811 = vmul.f32 %v6809, 0.0
  %v6812 = vmul.f32 %v6694, %v6809
  %v6813 = vmul.f32 %v6699, %v6809
  %v6814 = vmul.f32 %v6704, %v6809
  %v6815 = vmul.f32 %v6709, %v6809
  %v6816 = vmul.f32 %v6714, %v6809
  %v6817 = vmul.f32 %v6719, %v6809
  %v6818 = vmul.f32 %v6724, %v6809
  %v6819 = vadd.f32 %v6797, %v6811
  %v6820 = vadd.f32 %v6798, %v6812
  %v6821 = vadd.f32 %v6799, %v6813
  %v6822 = vadd.f32 %v6800, %v6814
  %v6823 = vadd.f32 %v6801, %v6815
  %v6824 = vadd.f32 %v6802, %v6816
  %v6825 = vadd.f32 %v6803, %v6817
  %v6826 = vadd.f32 %v6804, %v6818
  %v6827 = vrot.slane %v6694, 1
  %v6828 = vrot.slane %v6699, 1
  %v6829 = vrot.slane %v6704, 1
  %v6830 = vrot.slane %v6709, 1
  %v6831 = vrot.slane %v6714, 1
  %v6832 = vrot.slane %v6719, 1
  %v6833 = vrot.slane %v6724, 1
  %v6834 = vsel %vm6775, 0.0, 0.0
  %v6835 = vsel %vm6775, %v6827, 0.0
  %v6836 = vsel %vm6775, %v6828, 0.0
  %v6837 = vsel %vm6775, %v6829, 0.0
  %v6838 = vsel %vm6775, %v6830, 0.0
  %v6839 = vsel %vm6775, %v6831, 0.0
  %v6840 = vsel %vm6775, %v6832, 0.0
  %v6841 = vsel %vm6775, %v6833, 0.0
  %v6843 = vlaneseq
  %v6844 = vshrl.u32 %v6843, 7
  %v6845 = vsub.s32 0, %v6844
  %v6846 = vrot.slane %v1236, %v6845
  %v6848 = vmul.f32 %v6834, %v6846
  %v6849 = vmul.f32 %v6835, %v6846
  %v6850 = vmul.f32 %v6836, %v6846
  %v6851 = vmul.f32 %v6837, %v6846
  %v6852 = vmul.f32 %v6838, %v6846
  %v6853 = vmul.f32 %v6839, %v6846
  %v6854 = vmul.f32 %v6840, %v6846
  %v6855 = vmul.f32 %v6841, %v6846
  %v6856 = vadd.f32 %v6819, %v6848
  %v6857 = vadd.f32 %v6820, %v6849
  %v6858 = vadd.f32 %v6821, %v6850
  %v6859 = vadd.f32 %v6822, %v6851
  %v6860 = vadd.f32 %v6823, %v6852
  %v6861 = vadd.f32 %v6824, %v6853
  %v6862 = vadd.f32 %v6825, %v6854
  %v6863 = vadd.f32 %v6826, %v6855
  %v6864 = vrot.slane %v6729, 7
  %v6865 = vsel %vm6774, %v6864, 0.0
  %v6867 = vlaneseq
  %v6868 = vshrl.u32 %v6867, 7
  %v6869 = vsub.s32 0, %v6868
  %v6870 = vrot.slane %v1237, %v6869
  %v6872 = vmul.f32 %v6784, %v6870
  %v6873 = vmul.f32 %v6785, %v6870
  %v6874 = vmul.f32 %v6786, %v6870
  %v6875 = vmul.f32 %v6787, %v6870
  %v6876 = vmul.f32 %v6788, %v6870
  %v6877 = vmul.f32 %v6789, %v6870
  %v6878 = vmul.f32 %v6790, %v6870
  %v6879 = vmul.f32 %v6865, %v6870
  %v6880 = vadd.f32 %v6856, %v6872
  %v6881 = vadd.f32 %v6857, %v6873
  %v6882 = vadd.f32 %v6858, %v6874
  %v6883 = vadd.f32 %v6859, %v6875
  %v6884 = vadd.f32 %v6860, %v6876
  %v6885 = vadd.f32 %v6861, %v6877
  %v6886 = vadd.f32 %v6862, %v6878
  %v6887 = vadd.f32 %v6863, %v6879
  %v6889 = vlaneseq
  %v6890 = vshrl.u32 %v6889, 7
  %v6891 = vsub.s32 0, %v6890
  %v6892 = vrot.slane %v1238, %v6891
  %v6894 = vmul.f32 %v6694, %v6892
  %v6895 = vmul.f32 %v6699, %v6892
  %v6896 = vmul.f32 %v6704, %v6892
  %v6897 = vmul.f32 %v6709, %v6892
  %v6898 = vmul.f32 %v6714, %v6892
  %v6899 = vmul.f32 %v6719, %v6892
  %v6900 = vmul.f32 %v6724, %v6892
  %v6901 = vmul.f32 %v6729, %v6892
  %v6902 = vadd.f32 %v6880, %v6894
  %v6903 = vadd.f32 %v6881, %v6895
  %v6904 = vadd.f32 %v6882, %v6896
  %v6905 = vadd.f32 %v6883, %v6897
  %v6906 = vadd.f32 %v6884, %v6898
  %v6907 = vadd.f32 %v6885, %v6899
  %v6908 = vadd.f32 %v6886, %v6900
  %v6909 = vadd.f32 %v6887, %v6901
  %v6910 = vrot.slane %v6729, 1
  %v6911 = vsel %vm6775, %v6910, 0.0
  %v6913 = vlaneseq
  %v6914 = vshrl.u32 %v6913, 7
  %v6915 = vsub.s32 0, %v6914
  %v6916 = vrot.slane %v1239, %v6915
  %v6918 = vmul.f32 %v6835, %v6916
  %v6919 = vmul.f32 %v6836, %v6916
  %v6920 = vmul.f32 %v6837, %v6916
  %v6921 = vmul.f32 %v6838, %v6916
  %v6922 = vmul.f32 %v6839, %v6916
  %v6923 = vmul.f32 %v6840, %v6916
  %v6924 = vmul.f32 %v6841, %v6916
  %v6925 = vmul.f32 %v6911, %v6916
  %v6926 = vadd.f32 %v6902, %v6918
  %v6927 = vadd.f32 %v6903, %v6919
  %v6928 = vadd.f32 %v6904, %v6920
  %v6929 = vadd.f32 %v6905, %v6921
  %v6930 = vadd.f32 %v6906, %v6922
  %v6931 = vadd.f32 %v6907, %v6923
  %v6932 = vadd.f32 %v6908, %v6924
  %v6933 = vadd.f32 %v6909, %v6925
  %v6935 = vlaneseq
  %v6936 = vshrl.u32 %v6935, 7
  %v6937 = vsub.s32 0, %v6936
  %v6938 = vrot.slane %v1240, %v6937
  %v6940 = vmul.f32 %v6785, %v6938
  %v6941 = vmul.f32 %v6786, %v6938
  %v6942 = vmul.f32 %v6787, %v6938
  %v6943 = vmul.f32 %v6788, %v6938
  %v6944 = vmul.f32 %v6789, %v6938
  %v6945 = vmul.f32 %v6790, %v6938
  %v6946 = vmul.f32 %v6865, %v6938
  %v6947 = vmul.f32 %v6783, %v6938
  %v6948 = vadd.f32 %v6926, %v6940
  %v6949 = vadd.f32 %v6927, %v6941
  %v6950 = vadd.f32 %v6928, %v6942
  %v6951 = vadd.f32 %v6929, %v6943
  %v6952 = vadd.f32 %v6930, %v6944
  %v6953 = vadd.f32 %v6931, %v6945
  %v6954 = vadd.f32 %v6932, %v6946
  %v6955 = vadd.f32 %v6933, %v6947
  %v6957 = vlaneseq
  %v6958 = vshrl.u32 %v6957, 7
  %v6959 = vsub.s32 0, %v6958
  %v6960 = vrot.slane %v1241, %v6959
  %v6962 = vmul.f32 %v6699, %v6960
  %v6963 = vmul.f32 %v6704, %v6960
  %v6964 = vmul.f32 %v6709, %v6960
  %v6965 = vmul.f32 %v6714, %v6960
  %v6966 = vmul.f32 %v6719, %v6960
  %v6967 = vmul.f32 %v6724, %v6960
  %v6968 = vmul.f32 %v6729, %v6960
  %v6969 = vmul.f32 %v6960, 0.0
  %v6970 = vadd.f32 %v6948, %v6962
  %v6971 = vadd.f32 %v6949, %v6963
  %v6972 = vadd.f32 %v6950, %v6964
  %v6973 = vadd.f32 %v6951, %v6965
  %v6974 = vadd.f32 %v6952, %v6966
  %v6975 = vadd.f32 %v6953, %v6967
  %v6976 = vadd.f32 %v6954, %v6968
  %v6977 = vadd.f32 %v6955, %v6969
  %v6979 = vlaneseq
  %v6980 = vshrl.u32 %v6979, 7
  %v6981 = vsub.s32 0, %v6980
  %v6982 = vrot.slane %v1242, %v6981
  %v6984 = vmul.f32 %v6836, %v6982
  %v6985 = vmul.f32 %v6837, %v6982
  %v6986 = vmul.f32 %v6838, %v6982
  %v6987 = vmul.f32 %v6839, %v6982
  %v6988 = vmul.f32 %v6840, %v6982
  %v6989 = vmul.f32 %v6841, %v6982
  %v6990 = vmul.f32 %v6911, %v6982
  %v6991 = vmul.f32 %v6834, %v6982
  %v6992 = vadd.f32 %v6970, %v6984
  %v6993 = vadd.f32 %v6971, %v6985
  %v6994 = vadd.f32 %v6972, %v6986
  %v6995 = vadd.f32 %v6973, %v6987
  %v6996 = vadd.f32 %v6974, %v6988
  %v6997 = vadd.f32 %v6975, %v6989
  %v6998 = vadd.f32 %v6976, %v6990
  %v6999 = vadd.f32 %v6977, %v6991
  %v7001 = vlaneseq
  %v7002 = vshrl.u32 %v7001, 7
  %v7003 = vsub.s32 0, %v7002
  %v7004 = vrot.slane %v1243, %v7003
  %v7006 = vadd.f32 %v6992, %v7004
  %v7007 = vadd.f32 %v6993, %v7004
  %v7008 = vadd.f32 %v6994, %v7004
  %v7009 = vadd.f32 %v6995, %v7004
  %v7010 = vadd.f32 %v6996, %v7004
  %v7011 = vadd.f32 %v6997, %v7004
  %v7012 = vadd.f32 %v6998, %v7004
  %v7013 = vadd.f32 %v6999, %v7004
  %v7014 = vrot.slane %v6734, 7
  %v7015 = vrot.slane %v6739, 7
  %v7016 = vrot.slane %v6744, 7
  %v7017 = vrot.slane %v6749, 7
  %v7018 = vrot.slane %v6754, 7
  %v7019 = vrot.slane %v6759, 7
  %v7020 = vrot.slane %v6764, 7
  %v7021 = vsel %vm6774, %v7014, 0.0
  %v7022 = vsel %vm6774, %v7015, 0.0
  %v7023 = vsel %vm6774, %v7016, 0.0
  %v7024 = vsel %vm6774, %v7017, 0.0
  %v7025 = vsel %vm6774, %v7018, 0.0
  %v7026 = vsel %vm6774, %v7019, 0.0
  %v7027 = vsel %vm6774, %v7020, 0.0
  %v7028 = vmul.f32 %v7021, %v6795
  %v7029 = vmul.f32 %v7022, %v6795
  %v7030 = vmul.f32 %v7023, %v6795
  %v7031 = vmul.f32 %v7024, %v6795
  %v7032 = vmul.f32 %v7025, %v6795
  %v7033 = vmul.f32 %v7026, %v6795
  %v7034 = vmul.f32 %v7027, %v6795
  %v7035 = vmul.f32 %v6734, %v6809
  %v7036 = vmul.f32 %v6739, %v6809
  %v7037 = vmul.f32 %v6744, %v6809
  %v7038 = vmul.f32 %v6749, %v6809
  %v7039 = vmul.f32 %v6754, %v6809
  %v7040 = vmul.f32 %v6759, %v6809
  %v7041 = vmul.f32 %v6764, %v6809
  %v7042 = vadd.f32 %v7028, %v7035
  %v7043 = vadd.f32 %v7029, %v7036
  %v7044 = vadd.f32 %v7030, %v7037
  %v7045 = vadd.f32 %v7031, %v7038
  %v7046 = vadd.f32 %v7032, %v7039
  %v7047 = vadd.f32 %v7033, %v7040
  %v7048 = vadd.f32 %v7034, %v7041
  %v7049 = vrot.slane %v6734, 1
  %v7050 = vrot.slane %v6739, 1
  %v7051 = vrot.slane %v6744, 1
  %v7052 = vrot.slane %v6749, 1
  %v7053 = vrot.slane %v6754, 1
  %v7054 = vrot.slane %v6759, 1
  %v7055 = vrot.slane %v6764, 1
  %v7056 = vsel %vm6775, %v7049, 0.0
  %v7057 = vsel %vm6775, %v7050, 0.0
  %v7058 = vsel %vm6775, %v7051, 0.0
  %v7059 = vsel %vm6775, %v7052, 0.0
  %v7060 = vsel %vm6775, %v7053, 0.0
  %v7061 = vsel %vm6775, %v7054, 0.0
  %v7062 = vsel %vm6775, %v7055, 0.0
  %v7063 = vmul.f32 %v7056, %v6846
  %v7064 = vmul.f32 %v7057, %v6846
  %v7065 = vmul.f32 %v7058, %v6846
  %v7066 = vmul.f32 %v7059, %v6846
  %v7067 = vmul.f32 %v7060, %v6846
  %v7068 = vmul.f32 %v7061, %v6846
  %v7069 = vmul.f32 %v7062, %v6846
  %v7070 = vadd.f32 %v7042, %v7063
  %v7071 = vadd.f32 %v7043, %v7064
  %v7072 = vadd.f32 %v7044, %v7065
  %v7073 = vadd.f32 %v7045, %v7066
  %v7074 = vadd.f32 %v7046, %v7067
  %v7075 = vadd.f32 %v7047, %v7068
  %v7076 = vadd.f32 %v7048, %v7069
  %v7077 = vrot.slane %v6769, 7
  %v7078 = vsel %vm6774, %v7077, 0.0
  %v7079 = vmul.f32 %v7021, %v6870
  %v7080 = vmul.f32 %v7022, %v6870
  %v7081 = vmul.f32 %v7023, %v6870
  %v7082 = vmul.f32 %v7024, %v6870
  %v7083 = vmul.f32 %v7025, %v6870
  %v7084 = vmul.f32 %v7026, %v6870
  %v7085 = vmul.f32 %v7027, %v6870
  %v7086 = vmul.f32 %v7078, %v6870
  %v7087 = vadd.f32 %v6856, %v7079
  %v7088 = vadd.f32 %v7070, %v7080
  %v7089 = vadd.f32 %v7071, %v7081
  %v7090 = vadd.f32 %v7072, %v7082
  %v7091 = vadd.f32 %v7073, %v7083
  %v7092 = vadd.f32 %v7074, %v7084
  %v7093 = vadd.f32 %v7075, %v7085
  %v7094 = vadd.f32 %v7076, %v7086
  %v7095 = vmul.f32 %v6734, %v6892
  %v7096 = vmul.f32 %v6739, %v6892
  %v7097 = vmul.f32 %v6744, %v6892
  %v7098 = vmul.f32 %v6749, %v6892
  %v7099 = vmul.f32 %v6754, %v6892
  %v7100 = vmul.f32 %v6759, %v6892
  %v7101 = vmul.f32 %v6764, %v6892
  %v7102 = vmul.f32 %v6769, %v6892
  %v7103 = vadd.f32 %v7087, %v7095
  %v7104 = vadd.f32 %v7088, %v7096
  %v7105 = vadd.f32 %v7089, %v7097
  %v7106 = vadd.f32 %v7090, %v7098
  %v7107 = vadd.f32 %v7091, %v7099
  %v7108 = vadd.f32 %v7092, %v7100
  %v7109 = vadd.f32 %v7093, %v7101
  %v7110 = vadd.f32 %v7094, %v7102
  %v7111 = vrot.slane %v6769, 1
  %v7112 = vsel %vm6775, %v7111, 0.0
  %v7113 = vmul.f32 %v7056, %v6916
  %v7114 = vmul.f32 %v7057, %v6916
  %v7115 = vmul.f32 %v7058, %v6916
  %v7116 = vmul.f32 %v7059, %v6916
  %v7117 = vmul.f32 %v7060, %v6916
  %v7118 = vmul.f32 %v7061, %v6916
  %v7119 = vmul.f32 %v7062, %v6916
  %v7120 = vmul.f32 %v7112, %v6916
  %v7121 = vadd.f32 %v7103, %v7113
  %v7122 = vadd.f32 %v7104, %v7114
  %v7123 = vadd.f32 %v7105, %v7115
  %v7124 = vadd.f32 %v7106, %v7116
  %v7125 = vadd.f32 %v7107, %v7117
  %v7126 = vadd.f32 %v7108, %v7118
  %v7127 = vadd.f32 %v7109, %v7119
  %v7128 = vadd.f32 %v7110, %v7120
  %v7129 = vmul.f32 %v7022, %v6938
  %v7130 = vmul.f32 %v7023, %v6938
  %v7131 = vmul.f32 %v7024, %v6938
  %v7132 = vmul.f32 %v7025, %v6938
  %v7133 = vmul.f32 %v7026, %v6938
  %v7134 = vmul.f32 %v7027, %v6938
  %v7135 = vmul.f32 %v7078, %v6938
  %v7136 = vadd.f32 %v7121, %v7129
  %v7137 = vadd.f32 %v7122, %v7130
  %v7138 = vadd.f32 %v7123, %v7131
  %v7139 = vadd.f32 %v7124, %v7132
  %v7140 = vadd.f32 %v7125, %v7133
  %v7141 = vadd.f32 %v7126, %v7134
  %v7142 = vadd.f32 %v7127, %v7135
  %v7143 = vadd.f32 %v7128, %v6947
  %v7144 = vmul.f32 %v6739, %v6960
  %v7145 = vmul.f32 %v6744, %v6960
  %v7146 = vmul.f32 %v6749, %v6960
  %v7147 = vmul.f32 %v6754, %v6960
  %v7148 = vmul.f32 %v6759, %v6960
  %v7149 = vmul.f32 %v6764, %v6960
  %v7150 = vmul.f32 %v6769, %v6960
  %v7151 = vadd.f32 %v7136, %v7144
  %v7152 = vadd.f32 %v7137, %v7145
  %v7153 = vadd.f32 %v7138, %v7146
  %v7154 = vadd.f32 %v7139, %v7147
  %v7155 = vadd.f32 %v7140, %v7148
  %v7156 = vadd.f32 %v7141, %v7149
  %v7157 = vadd.f32 %v7142, %v7150
  %v7158 = vadd.f32 %v7143, %v6969
  %v7159 = vmul.f32 %v7057, %v6982
  %v7160 = vmul.f32 %v7058, %v6982
  %v7161 = vmul.f32 %v7059, %v6982
  %v7162 = vmul.f32 %v7060, %v6982
  %v7163 = vmul.f32 %v7061, %v6982
  %v7164 = vmul.f32 %v7062, %v6982
  %v7165 = vmul.f32 %v7112, %v6982
  %v7166 = vadd.f32 %v7151, %v7159
  %v7167 = vadd.f32 %v7152, %v7160
  %v7168 = vadd.f32 %v7153, %v7161
  %v7169 = vadd.f32 %v7154, %v7162
  %v7170 = vadd.f32 %v7155, %v7163
  %v7171 = vadd.f32 %v7156, %v7164
  %v7172 = vadd.f32 %v7157, %v7165
  %v7173 = vadd.f32 %v7158, %v6991
  %v7174 = vadd.f32 %v7166, %v7004
  %v7175 = vadd.f32 %v7167, %v7004
  %v7176 = vadd.f32 %v7168, %v7004
  %v7177 = vadd.f32 %v7169, %v7004
  %v7178 = vadd.f32 %v7170, %v7004
  %v7179 = vadd.f32 %v7171, %v7004
  %v7180 = vadd.f32 %v7172, %v7004
  %v7181 = vadd.f32 %v7173, %v7004
  %v7182 = vmul.f32 %v7006, 0.5
  %v7183 = vmul.f32 %v7007, 0.5
  %v7184 = vmul.f32 %v7008, 0.5
  %v7185 = vmul.f32 %v7009, 0.5
  %v7186 = vmul.f32 %v7010, 0.5
  %v7187 = vmul.f32 %v7011, 0.5
  %v7188 = vmul.f32 %v7012, 0.5
  %v7189 = vmul.f32 %v7013, 0.5
  %v7190 = vmul.f32 %v7174, 0.5
  %v7191 = vmul.f32 %v7175, 0.5
  %v7192 = vmul.f32 %v7176, 0.5
  %v7193 = vmul.f32 %v7177, 0.5
  %v7194 = vmul.f32 %v7178, 0.5
  %v7195 = vmul.f32 %v7179, 0.5
  %v7196 = vmul.f32 %v7180, 0.5
  %v7197 = vmul.f32 %v7181, 0.5
  %v7198 = vmul.f32 %v7006, 0.70710677
  %v7199 = vmul.f32 %v7007, 0.70710677
  %v7200 = vmul.f32 %v7008, 0.70710677
  %v7201 = vmul.f32 %v7009, 0.70710677
  %v7202 = vmul.f32 %v7010, 0.70710677
  %v7203 = vmul.f32 %v7011, 0.70710677
  %v7204 = vmul.f32 %v7012, 0.70710677
  %v7205 = vmul.f32 %v7013, 0.70710677
  %v7206 = vmul.f32 %v7174, 0.70710677
  %v7207 = vmul.f32 %v7175, 0.70710677
  %v7208 = vmul.f32 %v7176, 0.70710677
  %v7209 = vmul.f32 %v7177, 0.70710677
  %v7210 = vmul.f32 %v7178, 0.70710677
  %v7211 = vmul.f32 %v7179, 0.70710677
  %v7212 = vmul.f32 %v7180, 0.70710677
  %v7213 = vmul.f32 %v7181, 0.70710677
  %v7214 = verf.f32.pop %v7198
  %v7215 = verf.f32.pop %v7199
  %v7216 = verf.f32.pop %v7200
  %v7217 = verf.f32.pop %v7201
  %v7218 = verf.f32.pop %v7202
  %v7219 = verf.f32.pop %v7203
  %v7220 = verf.f32.pop %v7204
  %v7221 = verf.f32.pop %v7205
  %v7222 = verf.f32.pop %v7206
  %v7223 = verf.f32.pop %v7207
  %v7224 = verf.f32.pop %v7208
  %v7225 = verf.f32.pop %v7209
  %v7226 = verf.f32.pop %v7210
  %v7227 = verf.f32.pop %v7211
  %v7228 = verf.f32.pop %v7212
  %v7229 = verf.f32.pop %v7213
  %v7230 = vadd.f32 %v7214, 1.0
  %v7231 = vadd.f32 %v7215, 1.0
  %v7232 = vadd.f32 %v7216, 1.0
  %v7233 = vadd.f32 %v7217, 1.0
  %v7234 = vadd.f32 %v7218, 1.0
  %v7235 = vadd.f32 %v7219, 1.0
  %v7236 = vadd.f32 %v7220, 1.0
  %v7237 = vadd.f32 %v7221, 1.0
  %v7238 = vadd.f32 %v7222, 1.0
  %v7239 = vadd.f32 %v7223, 1.0
  %v7240 = vadd.f32 %v7224, 1.0
  %v7241 = vadd.f32 %v7225, 1.0
  %v7242 = vadd.f32 %v7226, 1.0
  %v7243 = vadd.f32 %v7227, 1.0
  %v7244 = vadd.f32 %v7228, 1.0
  %v7245 = vadd.f32 %v7229, 1.0
  %v7246 = vmul.f32 %v7182, %v7230
  %v7247 = vmul.f32 %v7183, %v7231
  %v7248 = vmul.f32 %v7184, %v7232
  %v7249 = vmul.f32 %v7185, %v7233
  %v7250 = vmul.f32 %v7186, %v7234
  %v7251 = vmul.f32 %v7187, %v7235
  %v7252 = vmul.f32 %v7188, %v7236
  %v7253 = vmul.f32 %v7189, %v7237
  %v7254 = vmul.f32 %v7190, %v7238
  %v7255 = vmul.f32 %v7191, %v7239
  %v7256 = vmul.f32 %v7192, %v7240
  %v7257 = vmul.f32 %v7193, %v7241
  %v7258 = vmul.f32 %v7194, %v7242
  %v7259 = vmul.f32 %v7195, %v7243
  %v7260 = vmul.f32 %v7196, %v7244
  %v7261 = vmul.f32 %v7197, %v7245
  %v7263 = vlaneseq
  %v7264 = vshrl.u32 %v7263, 7
  %v7265 = vsub.s32 0, %v7264
  %v7266 = vrot.slane %v1260, %v7265
  %7268 = vmatprep.subr.mxu0 0.0
  %7269 = vmatpush1.msra.mxu0 %v1244
  %7270 = vmatprep.subr.mxu0 0.0
  %7271 = vmatpush1.msra.mxu0 %v1245
  %7272 = vmatprep.subr.mxu0 0.0
  %7273 = vmatpush1.msra.mxu0 %v1246
  %7274 = vmatprep.subr.mxu0 0.0
  %7275 = vmatpush1.msra.mxu0 %v1247
  %7276 = vmatprep.subr.mxu0 0.0
  %7277 = vmatpush1.msra.mxu0 %v1248
  %7278 = vmatprep.subr.mxu0 0.0
  %7279 = vmatpush1.msra.mxu0 %v1249
  %7280 = vmatprep.subr.mxu0 0.0
  %7281 = vmatpush1.msra.mxu0 %v1250
  %7282 = vmatprep.subr.mxu0 0.0
  %7283 = vmatpush1.msra.mxu0 %v1251
  %7284 = vmatprep.subr.mxu0 0.0
  %7285 = vmatpush1.msra.mxu0 %v1252
  %7286 = vmatprep.subr.mxu0 0.0
  %7287 = vmatpush1.msra.mxu0 %v1253
  %7288 = vmatprep.subr.mxu0 0.0
  %7289 = vmatpush1.msra.mxu0 %v1254
  %7290 = vmatprep.subr.mxu0 0.0
  %7291 = vmatpush1.msra.mxu0 %v1255
  %7292 = vmatprep.subr.mxu0 0.0
  %7293 = vmatpush1.msra.mxu0 %v1256
  %7294 = vmatprep.subr.mxu0 0.0
  %7295 = vmatpush1.msra.mxu0 %v1257
  %7296 = vmatprep.subr.mxu0 0.0
  %7297 = vmatpush1.msra.mxu0 %v1258
  %7298 = vmatprep.subr.mxu0 0.0
  %7299 = vmatpush1.msra.mxu0 %v1259
  %7300 = vmatprep.subr.mxu0 0.0
  %7301 = vmatpush1.msra.mxu0 0.0
  %7302 = vmatprep.subr.mxu0 0.0
  %7303 = vmatpush1.msra.mxu0 0.0
  %7304 = vmatprep.subr.mxu0 0.0
  %7305 = vmatpush1.msra.mxu0 0.0
  %7306 = vmatprep.subr.mxu0 0.0
  %7307 = vmatpush1.msra.mxu0 0.0
  %7308 = vmatprep.subr.mxu0 0.0
  %7309 = vmatpush1.msra.mxu0 0.0
  %7310 = vmatprep.subr.mxu0 0.0
  %7311 = vmatpush1.msra.mxu0 0.0
  %7312 = vmatprep.subr.mxu0 0.0
  %7313 = vmatpush1.msra.mxu0 0.0
  %7314 = vmatprep.subr.mxu0 0.0
  %7315 = vmatpush1.msra.mxu0 0.0
  %7316 = vmatprep.subr.mxu0 0.0
  %7317 = vmatpush1.msra.mxu0 0.0
  %7318 = vmatprep.subr.mxu0 0.0
  %7319 = vmatpush1.msra.mxu0 0.0
  %7320 = vmatprep.subr.mxu0 0.0
  %7321 = vmatpush1.msra.mxu0 0.0
  %7322 = vmatprep.subr.mxu0 0.0
  %7323 = vmatpush1.msra.mxu0 0.0
  %7324 = vmatprep.subr.mxu0 0.0
  %7325 = vmatpush1.msra.mxu0 0.0
  %7326 = vmatprep.subr.mxu0 0.0
  %7327 = vmatpush1.msra.mxu0 0.0
  %7328 = vmatprep.subr.mxu0 0.0
  %7329 = vmatpush1.msra.mxu0 0.0
  %7330 = vmatprep.subr.mxu0 0.0
  %7331 = vmatpush1.msra.mxu0 0.0
  %7332 = vmatprep.mubr.f32.mxu0 0.0
  %7333 = vmatmul.mubr.f32.gmra.mrb[0].mxu0 %v7246
  %v7334 = vpop.f32.mrb[0].mxu0
  %v7335 = vadd.f32 %v7266, %v7334
  %v7336 = vpop.f32.mrb[0].mxu0
  %7337 = vmatprep.mubr.f32.mxu0 0.0
  %7338 = vmatmul.mubr.f32.gmra.mrb[0].mxu0 %v7247
  %v7339 = vpop.f32.mrb[0].mxu0
  %v7340 = vadd.f32 %v7266, %v7339
  %v7341 = vpop.f32.mrb[0].mxu0
  %7342 = vmatprep.mubr.f32.mxu0 0.0
  %7343 = vmatmul.mubr.f32.gmra.mrb[0].mxu0 %v7248
  %v7344 = vpop.f32.mrb[0].mxu0
  %v7345 = vadd.f32 %v7266, %v7344
  %v7346 = vpop.f32.mrb[0].mxu0
  %7347 = vmatprep.mubr.f32.mxu0 0.0
  %7348 = vmatmul.mubr.f32.gmra.mrb[0].mxu0 %v7249
  %v7349 = vpop.f32.mrb[0].mxu0
  %v7350 = vadd.f32 %v7266, %v7349
  %v7351 = vpop.f32.mrb[0].mxu0
  %7352 = vmatprep.mubr.f32.mxu0 0.0
  %7353 = vmatmul.mubr.f32.gmra.mrb[0].mxu0 %v7250
  %v7354 = vpop.f32.mrb[0].mxu0
  %v7355 = vadd.f32 %v7266, %v7354
  %v7356 = vpop.f32.mrb[0].mxu0
  %7357 = vmatprep.mubr.f32.mxu0 0.0
  %7358 = vmatmul.mubr.f32.gmra.mrb[0].mxu0 %v7251
  %v7359 = vpop.f32.mrb[0].mxu0
  %v7360 = vadd.f32 %v7266, %v7359
  %v7361 = vpop.f32.mrb[0].mxu0
  %7362 = vmatprep.mubr.f32.mxu0 0.0
  %7363 = vmatmul.mubr.f32.gmra.mrb[0].mxu0 %v7252
  %v7364 = vpop.f32.mrb[0].mxu0
  %v7365 = vadd.f32 %v7266, %v7364
  %v7366 = vpop.f32.mrb[0].mxu0
  %7367 = vmatprep.mubr.f32.mxu0 0.0
  %7368 = vmatmul.mubr.f32.gmra.mrb[0].mxu0 %v7253
  %v7369 = vpop.f32.mrb[0].mxu0
  %v7370 = vadd.f32 %v7266, %v7369
  %v7371 = vpop.f32.mrb[0].mxu0
  %7372 = vmatprep.mubr.f32.mxu0 0.0
  %7373 = vmatmul.mubr.f32.gmra.mrb[0].mxu0 %v7254
  %v7374 = vpop.f32.mrb[0].mxu0
  %v7375 = vadd.f32 %v7266, %v7374
  %v7376 = vpop.f32.mrb[0].mxu0
  %7377 = vmatprep.mubr.f32.mxu0 0.0
  %7378 = vmatmul.mubr.f32.gmra.mrb[0].mxu0 %v7255
  %v7379 = vpop.f32.mrb[0].mxu0
  %v7380 = vadd.f32 %v7266, %v7379
  %v7381 = vpop.f32.mrb[0].mxu0
  %7382 = vmatprep.mubr.f32.mxu0 0.0
  %7383 = vmatmul.mubr.f32.gmra.mrb[0].mxu0 %v7256
  %v7384 = vpop.f32.mrb[0].mxu0
  %v7385 = vadd.f32 %v7266, %v7384
  %v7386 = vpop.f32.mrb[0].mxu0
  %7387 = vmatprep.mubr.f32.mxu0 0.0
  %7388 = vmatmul.mubr.f32.gmra.mrb[0].mxu0 %v7257
  %v7389 = vpop.f32.mrb[0].mxu0
  %v7390 = vadd.f32 %v7266, %v7389
  %v7391 = vpop.f32.mrb[0].mxu0
  %7392 = vmatprep.mubr.f32.mxu0 0.0
  %7393 = vmatmul.mubr.f32.gmra.mrb[0].mxu0 %v7258
  %v7394 = vpop.f32.mrb[0].mxu0
  %v7395 = vadd.f32 %v7266, %v7394
  %v7396 = vpop.f32.mrb[0].mxu0
  %7397 = vmatprep.mubr.f32.mxu0 0.0
  %7398 = vmatmul.mubr.f32.gmra.mrb[0].mxu0 %v7259
  %v7399 = vpop.f32.mrb[0].mxu0
  %v7400 = vadd.f32 %v7266, %v7399
  %v7401 = vpop.f32.mrb[0].mxu0
  %7402 = vmatprep.mubr.f32.mxu0 0.0
  %7403 = vmatmul.mubr.f32.gmra.mrb[0].mxu0 %v7260
  %v7404 = vpop.f32.mrb[0].mxu0
  %v7405 = vadd.f32 %v7266, %v7404
  %v7406 = vpop.f32.mrb[0].mxu0
  %7407 = vmatprep.mubr.f32.mxu0 0.0
  %7408 = vmatmul.mubr.f32.gmra.mrb[0].mxu0 %v7261
  %v7409 = vpop.f32.mrb[0].mxu0
  %v7410 = vadd.f32 %v7266, %v7409
  %v7411 = vpop.f32.mrb[0].mxu0
  %7412 = vdwg.mxu0
  %v7413 = vadd.f32 %v6309, %v7335
  %v7414 = vadd.f32 %v6310, %v7340
  %v7415 = vadd.f32 %v6311, %v7345
  %v7416 = vadd.f32 %v6312, %v7350
  %v7417 = vadd.f32 %v6313, %v7355
  %v7418 = vadd.f32 %v6314, %v7360
  %v7419 = vadd.f32 %v6315, %v7365
  %v7420 = vadd.f32 %v6316, %v7370
  %v7421 = vadd.f32 %v6317, %v7375
  %v7422 = vadd.f32 %v6318, %v7380
  %v7423 = vadd.f32 %v6319, %v7385
  %v7424 = vadd.f32 %v6320, %v7390
  %v7425 = vadd.f32 %v6321, %v7395
  %v7426 = vadd.f32 %v6322, %v7400
  %v7427 = vadd.f32 %v6323, %v7405
  %v7428 = vadd.f32 %v6324, %v7410
  %7429 = vst.msk [vmem:[%s20] sm:$0xff] %vm84, %v7413
  %7430 = vst.msk [vmem:[%s20 + $0x8] sm:$0xff] %vm84, %v7414
  %7431 = vst.msk [vmem:[%s20 + $0x10] sm:$0xff] %vm84, %v7415
  %7432 = vst.msk [vmem:[%s20 + $0x18] sm:$0xff] %vm84, %v7416
  %7433 = vst.msk [vmem:[%s20 + $0x20] sm:$0xff] %vm84, %v7417
  %7434 = vst.msk [vmem:[%s20 + $0x28] sm:$0xff] %vm84, %v7418
  %7435 = vst.msk [vmem:[%s20 + $0x30] sm:$0xff] %vm84, %v7419
  %7436 = vst.msk [vmem:[%s20 + $0x38] sm:$0xff] %vm84, %v7420
  %7437 = vst.msk [vmem:[%s20 + $0x40] sm:$0xff] %vm84, %v7421
  %7438 = vst.msk [vmem:[%s20 + $0x48] sm:$0xff] %vm84, %v7422
  %7439 = vst.msk [vmem:[%s20 + $0x50] sm:$0xff] %vm84, %v7423
  %7440 = vst.msk [vmem:[%s20 + $0x58] sm:$0xff] %vm84, %v7424
  %7441 = vst.msk [vmem:[%s20 + $0x60] sm:$0xff] %vm84, %v7425
  %7442 = vst.msk [vmem:[%s20 + $0x68] sm:$0xff] %vm84, %v7426
  %7443 = vst.msk [vmem:[%s20 + $0x70] sm:$0xff] %vm84, %v7427
  %7444 = vst.msk [vmem:[%s20 + $0x78] sm:$0xff] %vm84, %v7428
  // Predicated region
  $region82: #{structformer_block_forward.1} parent=0 // pred_check
    _
  $region83: #{structformer_block_forward.1} parent=0 // pred_check_branch
    %7446 = sbr.rel (0) target = $region85
  $region84: #{structformer_block_forward.1} parent=0 // pred_region
    _
  $region85: #{structformer_block_forward.1} parent=0 // pred_fallthru
    _
  // Predicated region
  $region86: #{structformer_block_forward.1} parent=0 // pred_check
    _
  $region87: #{structformer_block_forward.1} parent=0 // pred_check_branch
    %7448 = sbr.rel (0) target = $region89
  $region88: #{structformer_block_forward.1} parent=0 // pred_region
    _
  $region89: #{structformer_block_forward.1} parent=0 // pred_fallthru
    _
  // Predicated region
  $region90: #{structformer_block_forward.1} parent=0 // pred_check
    _
  $region91: #{structformer_block_forward.1} parent=0 // pred_check_branch
    %7450 = sbr.rel (0) target = $region93
  $region92: #{structformer_block_forward.1} parent=0 // pred_region
    _
  $region93: #{structformer_block_forward.1} parent=0 // pred_fallthru
    _
  // Predicated region
  $region94: #{structformer_block_forward.1} parent=0 // pred_check
    _
  $region95: #{structformer_block_forward.1} parent=0 // pred_check_branch
    %7452 = sbr.rel (0) target = $region97
  $region96: #{structformer_block_forward.1} parent=0 // pred_region
    _
  $region97: #{structformer_block_forward.1} parent=0 // pred_fallthru
    _

</llo_original>
